<compile_context>
chip_gen: v6e
topology: v6e:2x2x1
jax: 0.10.0
libtpu: 0.0.40
codegen_flags: <defaults>
</compile_context>

<pallas_src>
import functools
import math

import jax
import jax.numpy as jnp
from jax.experimental import pallas as pl
from jax.experimental.pallas import tpu as pltpu

# ------------------------- model hyper-params (small) -------------------------
B = 2                     # batch
L = 330                   # raw audio samples
C1, K0, S0 = 32, 10, 5    # conv stage 0
C2, K1, S1 = 64, 3, 2     # conv stage 1
H = 64                    # hidden size (stand-in for 768)
NH, DH = 4, 16            # heads, head dim
FFN = 128                 # feed-forward dim
NLAYERS = 2               # encoder layers
NUM_CLASSES = 768         # matches the module default
T1 = (L - K0) // S0 + 1   # 65 frames after conv stage 0
T2 = (T1 - K1) // S1 + 1  # 32 frames after conv stage 1 (= encoder seq len)
RF = K0 + (K1 - 1) * S0   # 20: receptive field of one encoder frame (samples)
RS = S0 * S1              # 10: stride of one encoder frame (samples)
LN_EPS = 1e-5
BF16 = jnp.bfloat16
F32 = jnp.float32


# ------------------------------ in-kernel helpers ------------------------------
def _ln(x, g, b, eps):
    mu = jnp.mean(x, axis=-1, keepdims=True)
    var = jnp.mean((x - mu) ** 2, axis=-1, keepdims=True)
    return (x - mu) * jax.lax.rsqrt(var + eps) * g + b


def _mm(x_bf16, w_bf16):
    # bf16 operands, f32 accumulation on the MXU.
    return jnp.dot(x_bf16, w_bf16, preferred_element_type=jnp.float32)


# --------------------------- the single fused kernel ---------------------------
def _fused_forward_kernel(px_ref, w0_ref, b0_ref, w1_ref, b1_ref,
                          fpg_ref, fpb_ref, fpw_ref, fpbias_ref,
                          encg_ref, encb_ref, *rest,
                          nlayers, nh, dh, nbatch, tlen, eps):
    layer_refs = rest[:12 * nlayers]
    pool_ref, fcw_ref, fcb_ref, o_ref = rest[12 * nlayers:]

    k0 = w0_ref.shape[0]          # 10
    c1 = w0_ref.shape[1]          # 32
    hidden = fpw_ref.shape[1]     # 64
    bt = nbatch * tlen            # 64 = B*T rows for all token-wise matmuls

    # ---- conv feature encoder, both stages fused, on (B*T, .) flattened rows --
    # px row t holds the 20-sample receptive field of encoder frame t; the
    # 3 stage-1 taps are static lane slices of it (no gathers / strided loads).
    px = px_ref[...]                                            # (BT, 20) f32
    w1 = w1_ref[...]                                            # (K1*C1, C2) bf16
    acc = None
    for j in range(K1):
        win = px[:, S0 * j:S0 * j + k0].astype(BF16)            # (BT, 10)
        tap = _mm(win, w0_ref[...]) + b0_ref[...]               # conv stage 0
        tap = jax.nn.gelu(tap, approximate=True).astype(BF16)   # (BT, C1)
        part = _mm(tap, w1[j * c1:(j + 1) * c1, :])             # conv stage 1 tap
        acc = part if acc is None else acc + part
    h = jax.nn.gelu(acc + b1_ref[...], approximate=True)        # (BT, C2) f32

    # ---- feature projection: LN -> linear -> encoder pre-LN ----
    h = _ln(h, fpg_ref[...], fpb_ref[...], eps)
    h = _mm(h.astype(BF16), fpw_ref[...]) + fpbias_ref[...]
    h = _ln(h, encg_ref[...], encb_ref[...], eps)               # (BT, H) f32

    # ---- transformer encoder, everything VMEM-resident ----
    for l in range(nlayers):
        (wqkv, bqkv, wo, bo, ln1g, ln1b,
         fw1, fb1, fw2, fb2, ln2g, ln2b) = layer_refs[12 * l:12 * (l + 1)]

        # fused QKV projection on B*T rows; 1/sqrt(dh) already folded into Q.
        qkv = _mm(h.astype(BF16), wqkv[...]) + bqkv[...]        # (BT, 3H) f32
        qkv = qkv.astype(BF16)                                  # single down-cast
        q3 = qkv[:, 0 * hidden:1 * hidden].reshape(nbatch, tlen, hidden)
        k3 = qkv[:, 1 * hidden:2 * hidden].reshape(nbatch, tlen, hidden)
        v3 = qkv[:, 2 * hidden:3 * hidden].reshape(nbatch, tlen, hidden)
        wo_full = wo[...]                                       # (H, H) bf16

        # per-head attention, batched over B; head merge happens by
        # accumulating ctx_h @ Wo[h*dh:(h+1)*dh, :] (no lane concat).
        attn = jnp.zeros((bt, hidden), jnp.float32)
        for hh in range(nh):
            sl = slice(hh * dh, (hh + 1) * dh)
            s = jax.lax.dot_general(q3[:, :, sl], k3[:, :, sl],
                                    (((2,), (2,)), ((0,), (0,))),
                                    preferred_element_type=jnp.float32)  # (B,T,T)
            s = s - jnp.max(s, axis=-1, keepdims=True)
            p = jnp.exp(s)
            p = p * pl.reciprocal(jnp.sum(p, axis=-1, keepdims=True), approx=True)
            ctx = jax.lax.dot_general(p.astype(BF16), v3[:, :, sl],
                                      (((2,), (1,)), ((0,), (0,))),
                                      preferred_element_type=jnp.float32)  # (B,T,dh)
            attn = attn + _mm(ctx.reshape(bt, dh).astype(BF16), wo_full[sl, :])

        # post-LN block (residual -> LN), matching the reference structure.
        h1 = _ln(h + attn + bo[...], ln1g[...], ln1b[...], eps)

        ff = _mm(h1.astype(BF16), fw1[...]) + fb1[...]          # (BT, FFN) lane-dense
        ff = jax.nn.gelu(ff, approximate=True)
        ff = _mm(ff.astype(BF16), fw2[...]) + fb2[...]
        h = _ln(h1 + ff, ln2g[...], ln2b[...], eps)             # (BT, H)

    # ---- mean over time (dim=1) as a tiny pooling matmul, then fc head ----
    feats = _mm(pool_ref[...], h.astype(BF16))                  # (B, H) f32
    out = _mm(feats.astype(BF16), fcw_ref[...]) + fcb_ref[...]  # (B, 768) lane-dense
    o_ref[...] = out.astype(o_ref.dtype)


def fused_forward(px, params, nbatch):
    args = [px,
            params["conv0_w"], params["conv0_b"],
            params["conv1_w"], params["conv1_b"],
            params["fp_ln_g"], params["fp_ln_b"],
            params["fp_w"], params["fp_b"],
            params["enc_ln_g"], params["enc_ln_b"]]
    for lp in params["layers"]:
        args += [lp["wqkv"], lp["bqkv"], lp["wo"], lp["bo"],
                 lp["ln1_g"], lp["ln1_b"],
                 lp["ff_w1"], lp["ff_b1"], lp["ff_w2"], lp["ff_b2"],
                 lp["ln2_g"], lp["ln2_b"]]
    # mean-over-time pooling matrix: pool[b, b*T2:(b+1)*T2] = 1/T2 (jit constant).
    pool = jnp.repeat(jnp.eye(nbatch, dtype=F32) / T2, T2, axis=1).astype(BF16)
    args += [pool, params["fc_w"], params["fc_b"]]

    vmem_spec = pl.BlockSpec(memory_space=pltpu.MemorySpace.VMEM)
    return pl.pallas_call(
        functools.partial(_fused_forward_kernel, nlayers=NLAYERS, nh=NH, dh=DH,
                          nbatch=nbatch, tlen=T2, eps=LN_EPS),
        out_shape=jax.ShapeDtypeStruct((nbatch, NUM_CLASSES), jnp.float32),
        in_specs=[vmem_spec] * len(args),
        out_specs=vmem_spec,
    )(*args)


# --------------------------------- glue (JAX) ---------------------------------
def init_params(key):
    def nrm(k, shape, scale=0.02):
        return (scale * jax.random.normal(k, shape, dtype=F32))

    keys = iter(jax.random.split(key, 64))
    scale = 1.0 / math.sqrt(DH)

    p = {
        # weights stored in bf16 once; biases / LN params stay f32 (2-D, kernel-ready).
        "conv0_w": nrm(next(keys), (K0 * 1, C1)).astype(BF16),
        "conv0_b": jnp.zeros((1, C1), F32),
        "conv1_w": nrm(next(keys), (K1 * C1, C2)).astype(BF16),
        "conv1_b": jnp.zeros((1, C2), F32),
        "fp_ln_g": jnp.ones((1, C2), F32), "fp_ln_b": jnp.zeros((1, C2), F32),
        "fp_w": nrm(next(keys), (C2, H)).astype(BF16),
        "fp_b": jnp.zeros((1, H), F32),
        "enc_ln_g": jnp.ones((1, H), F32), "enc_ln_b": jnp.zeros((1, H), F32),
        "fc_w": nrm(next(keys), (H, NUM_CLASSES)).astype(BF16),
        "fc_b": jnp.zeros((1, NUM_CLASSES), F32),
        "layers": [],
    }
    for _ in range(NLAYERS):
        wqkv = nrm(next(keys), (H, 3 * H))
        bqkv = jnp.zeros((1, 3 * H), F32)
        # fold the 1/sqrt(dh) attention scale into the Q projection (weight + bias).
        wqkv = wqkv.at[:, :H].multiply(scale)
        bqkv = bqkv.at[:, :H].multiply(scale)
        lyr = {
            "wqkv": wqkv.astype(BF16), "bqkv": bqkv,
            "wo": nrm(next(keys), (H, H)).astype(BF16), "bo": jnp.zeros((1, H), F32),
            "ln1_g": jnp.ones((1, H), F32), "ln1_b": jnp.zeros((1, H), F32),
            "ff_w1": nrm(next(keys), (H, FFN)).astype(BF16),
            "ff_b1": jnp.zeros((1, FFN), F32),
            "ff_w2": nrm(next(keys), (FFN, H)).astype(BF16),
            "ff_b2": jnp.zeros((1, H), F32),
            "ln2_g": jnp.ones((1, H), F32), "ln2_b": jnp.zeros((1, H), F32),
        }
        p["layers"].append(lyr)
    return p


@jax.jit
def audio_feature_extractor(params, x):
    # x: [B, L] raw audio (same signature as the PyTorch module).
    Bb = x.shape[0]

    # Combined two-stage receptive-field im2col on the raw input (single input-side
    # XLA fusion, gather-free): encoder frame t sees samples x[RS*t : RS*t + RF].
    seg = x[:, :RS * (T2 + 1)].reshape(Bb, T2 + 1, RS)                 # (B, 33, 10)
    px = jnp.concatenate([seg[:, :T2, :], seg[:, 1:T2 + 1, :]], axis=-1)  # (B, T2, 20)
    px = px.reshape(Bb * T2, RF)                                       # (B*T2, 20)

    # Entire backbone + mean(dim=1) + fc in ONE pallas_call.
    return fused_forward(px, params, Bb)                              # [B, NUM_CLASSES]


if __name__ == "__main__":
    key = jax.random.PRNGKey(0)
    pkey, xkey = jax.random.split(key)
    params = init_params(pkey)
    x = jax.random.normal(xkey, (B, L), dtype=jnp.float32)             # raw audio [B, L]

    out = audio_feature_extractor(params, x)
    out = jax.block_until_ready(out)
    assert out.shape == (B, NUM_CLASSES), out.shape
    assert bool(jnp.all(jnp.isfinite(out)))
    print("KERNEL_OK")
</pallas_src>

<mosaic_0001>
module attributes {stable_mosaic.version = 11 : i64} {
  func.func @_fused_forward_kernel(%arg0: memref<64x20xf32, #tpu.memory_space<vmem>>, %arg1: memref<10x32xbf16, #tpu.memory_space<vmem>>, %arg2: memref<1x32xf32, #tpu.memory_space<vmem>>, %arg3: memref<96x64xbf16, #tpu.memory_space<vmem>>, %arg4: memref<1x64xf32, #tpu.memory_space<vmem>>, %arg5: memref<1x64xf32, #tpu.memory_space<vmem>>, %arg6: memref<1x64xf32, #tpu.memory_space<vmem>>, %arg7: memref<64x64xbf16, #tpu.memory_space<vmem>>, %arg8: memref<1x64xf32, #tpu.memory_space<vmem>>, %arg9: memref<1x64xf32, #tpu.memory_space<vmem>>, %arg10: memref<1x64xf32, #tpu.memory_space<vmem>>, %arg11: memref<64x192xbf16, #tpu.memory_space<vmem>>, %arg12: memref<1x192xf32, #tpu.memory_space<vmem>>, %arg13: memref<64x64xbf16, #tpu.memory_space<vmem>>, %arg14: memref<1x64xf32, #tpu.memory_space<vmem>>, %arg15: memref<1x64xf32, #tpu.memory_space<vmem>>, %arg16: memref<1x64xf32, #tpu.memory_space<vmem>>, %arg17: memref<64x128xbf16, #tpu.memory_space<vmem>>, %arg18: memref<1x128xf32, #tpu.memory_space<vmem>>, %arg19: memref<128x64xbf16, #tpu.memory_space<vmem>>, %arg20: memref<1x64xf32, #tpu.memory_space<vmem>>, %arg21: memref<1x64xf32, #tpu.memory_space<vmem>>, %arg22: memref<1x64xf32, #tpu.memory_space<vmem>>, %arg23: memref<64x192xbf16, #tpu.memory_space<vmem>>, %arg24: memref<1x192xf32, #tpu.memory_space<vmem>>, %arg25: memref<64x64xbf16, #tpu.memory_space<vmem>>, %arg26: memref<1x64xf32, #tpu.memory_space<vmem>>, %arg27: memref<1x64xf32, #tpu.memory_space<vmem>>, %arg28: memref<1x64xf32, #tpu.memory_space<vmem>>, %arg29: memref<64x128xbf16, #tpu.memory_space<vmem>>, %arg30: memref<1x128xf32, #tpu.memory_space<vmem>>, %arg31: memref<128x64xbf16, #tpu.memory_space<vmem>>, %arg32: memref<1x64xf32, #tpu.memory_space<vmem>>, %arg33: memref<1x64xf32, #tpu.memory_space<vmem>>, %arg34: memref<1x64xf32, #tpu.memory_space<vmem>>, %arg35: memref<2x64xbf16, #tpu.memory_space<vmem>>, %arg36: memref<64x768xbf16, #tpu.memory_space<vmem>>, %arg37: memref<1x768xf32, #tpu.memory_space<vmem>>, %arg38: memref<2x768xf32, #tpu.memory_space<vmem>>) attributes {dimension_semantics = [], scalar_prefetch = 0 : i64, scratch_operands = 0 : i64, tpu.core_type = #tpu.core_type<tc>} {
    %c0 = arith.constant 0 : index
    %c0_0 = arith.constant 0 : index
    %0 = vector.load %arg0[%c0, %c0_0] : memref<64x20xf32, #tpu.memory_space<vmem>>, vector<64x20xf32>
    %c0_1 = arith.constant 0 : index
    %c0_2 = arith.constant 0 : index
    %1 = vector.load %arg3[%c0_1, %c0_2] : memref<96x64xbf16, #tpu.memory_space<vmem>>, vector<96x64xbf16>
    %2 = vector.extract_strided_slice %0 {offsets = [0, 0], sizes = [64, 10], strides = [1, 1]} : vector<64x20xf32> to vector<64x10xf32>
    %3 = arith.truncf %2 : vector<64x10xf32> to vector<64x10xbf16>
    %c0_3 = arith.constant 0 : index
    %c0_4 = arith.constant 0 : index
    %4 = vector.load %arg1[%c0_3, %c0_4] : memref<10x32xbf16, #tpu.memory_space<vmem>>, vector<10x32xbf16>
    %cst = arith.constant dense<0.000000e+00> : vector<64x32xf32>
    %5 = tpu.matmul %3, %4, %cst {dimension_numbers = #tpu.dot_dimension_numbers<[1], [0], [0], [1], [0, 0, 1, 1], [], []>} : vector<64x10xbf16>, vector<10x32xbf16>, vector<64x32xf32> -> vector<64x32xf32>
    %c0_5 = arith.constant 0 : index
    %c0_6 = arith.constant 0 : index
    %6 = vector.load %arg2[%c0_5, %c0_6] : memref<1x32xf32, #tpu.memory_space<vmem>>, vector<1x32xf32>
    %7 = vector.broadcast %6 : vector<1x32xf32> to vector<64x32xf32>
    %8 = arith.addf %5, %7 : vector<64x32xf32>
    %9 = arith.mulf %8, %8 : vector<64x32xf32>
    %10 = arith.mulf %8, %9 : vector<64x32xf32>
    %cst_7 = arith.constant 4.471500e-02 : f32
    %11 = vector.broadcast %cst_7 : f32 to vector<64x32xf32>
    %12 = arith.mulf %11, %10 : vector<64x32xf32>
    %13 = arith.addf %8, %12 : vector<64x32xf32>
    %cst_8 = arith.constant 0.797884583 : f32
    %14 = vector.broadcast %cst_8 : f32 to vector<64x32xf32>
    %15 = arith.mulf %14, %13 : vector<64x32xf32>
    %16 = math.tanh %15 : vector<64x32xf32>
    %cst_9 = arith.constant 1.000000e+00 : f32
    %17 = vector.broadcast %cst_9 : f32 to vector<64x32xf32>
    %18 = arith.addf %17, %16 : vector<64x32xf32>
    %cst_10 = arith.constant 5.000000e-01 : f32
    %19 = vector.broadcast %cst_10 : f32 to vector<64x32xf32>
    %20 = arith.mulf %19, %18 : vector<64x32xf32>
    %21 = arith.mulf %8, %20 : vector<64x32xf32>
    %22 = arith.truncf %21 : vector<64x32xf32> to vector<64x32xbf16>
    %23 = vector.extract_strided_slice %1 {offsets = [0, 0], sizes = [32, 64], strides = [1, 1]} : vector<96x64xbf16> to vector<32x64xbf16>
    %cst_11 = arith.constant dense<0.000000e+00> : vector<64x64xf32>
    %24 = tpu.matmul %22, %23, %cst_11 {dimension_numbers = #tpu.dot_dimension_numbers<[1], [0], [0], [1], [0, 0, 1, 1], [], []>} : vector<64x32xbf16>, vector<32x64xbf16>, vector<64x64xf32> -> vector<64x64xf32>
    %25 = vector.extract_strided_slice %0 {offsets = [0, 5], sizes = [64, 10], strides = [1, 1]} : vector<64x20xf32> to vector<64x10xf32>
    %26 = arith.truncf %25 : vector<64x10xf32> to vector<64x10xbf16>
    %c0_12 = arith.constant 0 : index
    %c0_13 = arith.constant 0 : index
    %27 = vector.load %arg1[%c0_12, %c0_13] : memref<10x32xbf16, #tpu.memory_space<vmem>>, vector<10x32xbf16>
    %cst_14 = arith.constant dense<0.000000e+00> : vector<64x32xf32>
    %28 = tpu.matmul %26, %27, %cst_14 {dimension_numbers = #tpu.dot_dimension_numbers<[1], [0], [0], [1], [0, 0, 1, 1], [], []>} : vector<64x10xbf16>, vector<10x32xbf16>, vector<64x32xf32> -> vector<64x32xf32>
    %c0_15 = arith.constant 0 : index
    %c0_16 = arith.constant 0 : index
    %29 = vector.load %arg2[%c0_15, %c0_16] : memref<1x32xf32, #tpu.memory_space<vmem>>, vector<1x32xf32>
    %30 = vector.broadcast %29 : vector<1x32xf32> to vector<64x32xf32>
    %31 = arith.addf %28, %30 : vector<64x32xf32>
    %32 = arith.mulf %31, %31 : vector<64x32xf32>
    %33 = arith.mulf %31, %32 : vector<64x32xf32>
    %cst_17 = arith.constant 4.471500e-02 : f32
    %34 = vector.broadcast %cst_17 : f32 to vector<64x32xf32>
    %35 = arith.mulf %34, %33 : vector<64x32xf32>
    %36 = arith.addf %31, %35 : vector<64x32xf32>
    %cst_18 = arith.constant 0.797884583 : f32
    %37 = vector.broadcast %cst_18 : f32 to vector<64x32xf32>
    %38 = arith.mulf %37, %36 : vector<64x32xf32>
    %39 = math.tanh %38 : vector<64x32xf32>
    %cst_19 = arith.constant 1.000000e+00 : f32
    %40 = vector.broadcast %cst_19 : f32 to vector<64x32xf32>
    %41 = arith.addf %40, %39 : vector<64x32xf32>
    %cst_20 = arith.constant 5.000000e-01 : f32
    %42 = vector.broadcast %cst_20 : f32 to vector<64x32xf32>
    %43 = arith.mulf %42, %41 : vector<64x32xf32>
    %44 = arith.mulf %31, %43 : vector<64x32xf32>
    %45 = arith.truncf %44 : vector<64x32xf32> to vector<64x32xbf16>
    %46 = vector.extract_strided_slice %1 {offsets = [32, 0], sizes = [32, 64], strides = [1, 1]} : vector<96x64xbf16> to vector<32x64xbf16>
    %cst_21 = arith.constant dense<0.000000e+00> : vector<64x64xf32>
    %47 = tpu.matmul %45, %46, %cst_21 {dimension_numbers = #tpu.dot_dimension_numbers<[1], [0], [0], [1], [0, 0, 1, 1], [], []>} : vector<64x32xbf16>, vector<32x64xbf16>, vector<64x64xf32> -> vector<64x64xf32>
    %48 = arith.addf %24, %47 : vector<64x64xf32>
    %49 = vector.extract_strided_slice %0 {offsets = [0, 10], sizes = [64, 10], strides = [1, 1]} : vector<64x20xf32> to vector<64x10xf32>
    %50 = arith.truncf %49 : vector<64x10xf32> to vector<64x10xbf16>
    %c0_22 = arith.constant 0 : index
    %c0_23 = arith.constant 0 : index
    %51 = vector.load %arg1[%c0_22, %c0_23] : memref<10x32xbf16, #tpu.memory_space<vmem>>, vector<10x32xbf16>
    %cst_24 = arith.constant dense<0.000000e+00> : vector<64x32xf32>
    %52 = tpu.matmul %50, %51, %cst_24 {dimension_numbers = #tpu.dot_dimension_numbers<[1], [0], [0], [1], [0, 0, 1, 1], [], []>} : vector<64x10xbf16>, vector<10x32xbf16>, vector<64x32xf32> -> vector<64x32xf32>
    %c0_25 = arith.constant 0 : index
    %c0_26 = arith.constant 0 : index
    %53 = vector.load %arg2[%c0_25, %c0_26] : memref<1x32xf32, #tpu.memory_space<vmem>>, vector<1x32xf32>
    %54 = vector.broadcast %53 : vector<1x32xf32> to vector<64x32xf32>
    %55 = arith.addf %52, %54 : vector<64x32xf32>
    %56 = arith.mulf %55, %55 : vector<64x32xf32>
    %57 = arith.mulf %55, %56 : vector<64x32xf32>
    %cst_27 = arith.constant 4.471500e-02 : f32
    %58 = vector.broadcast %cst_27 : f32 to vector<64x32xf32>
    %59 = arith.mulf %58, %57 : vector<64x32xf32>
    %60 = arith.addf %55, %59 : vector<64x32xf32>
    %cst_28 = arith.constant 0.797884583 : f32
    %61 = vector.broadcast %cst_28 : f32 to vector<64x32xf32>
    %62 = arith.mulf %61, %60 : vector<64x32xf32>
    %63 = math.tanh %62 : vector<64x32xf32>
    %cst_29 = arith.constant 1.000000e+00 : f32
    %64 = vector.broadcast %cst_29 : f32 to vector<64x32xf32>
    %65 = arith.addf %64, %63 : vector<64x32xf32>
    %cst_30 = arith.constant 5.000000e-01 : f32
    %66 = vector.broadcast %cst_30 : f32 to vector<64x32xf32>
    %67 = arith.mulf %66, %65 : vector<64x32xf32>
    %68 = arith.mulf %55, %67 : vector<64x32xf32>
    %69 = arith.truncf %68 : vector<64x32xf32> to vector<64x32xbf16>
    %70 = vector.extract_strided_slice %1 {offsets = [64, 0], sizes = [32, 64], strides = [1, 1]} : vector<96x64xbf16> to vector<32x64xbf16>
    %cst_31 = arith.constant dense<0.000000e+00> : vector<64x64xf32>
    %71 = tpu.matmul %69, %70, %cst_31 {dimension_numbers = #tpu.dot_dimension_numbers<[1], [0], [0], [1], [0, 0, 1, 1], [], []>} : vector<64x32xbf16>, vector<32x64xbf16>, vector<64x64xf32> -> vector<64x64xf32>
    %72 = arith.addf %48, %71 : vector<64x64xf32>
    %c0_32 = arith.constant 0 : index
    %c0_33 = arith.constant 0 : index
    %73 = vector.load %arg4[%c0_32, %c0_33] : memref<1x64xf32, #tpu.memory_space<vmem>>, vector<1x64xf32>
    %74 = vector.broadcast %73 : vector<1x64xf32> to vector<64x64xf32>
    %75 = arith.addf %72, %74 : vector<64x64xf32>
    %76 = arith.mulf %75, %75 : vector<64x64xf32>
    %77 = arith.mulf %75, %76 : vector<64x64xf32>
    %cst_34 = arith.constant 4.471500e-02 : f32
    %78 = vector.broadcast %cst_34 : f32 to vector<64x64xf32>
    %79 = arith.mulf %78, %77 : vector<64x64xf32>
    %80 = arith.addf %75, %79 : vector<64x64xf32>
    %cst_35 = arith.constant 0.797884583 : f32
    %81 = vector.broadcast %cst_35 : f32 to vector<64x64xf32>
    %82 = arith.mulf %81, %80 : vector<64x64xf32>
    %83 = math.tanh %82 : vector<64x64xf32>
    %cst_36 = arith.constant 1.000000e+00 : f32
    %84 = vector.broadcast %cst_36 : f32 to vector<64x64xf32>
    %85 = arith.addf %84, %83 : vector<64x64xf32>
    %cst_37 = arith.constant 5.000000e-01 : f32
    %86 = vector.broadcast %cst_37 : f32 to vector<64x64xf32>
    %87 = arith.mulf %86, %85 : vector<64x64xf32>
    %88 = arith.mulf %75, %87 : vector<64x64xf32>
    %c0_38 = arith.constant 0 : index
    %c0_39 = arith.constant 0 : index
    %89 = vector.load %arg5[%c0_38, %c0_39] : memref<1x64xf32, #tpu.memory_space<vmem>>, vector<1x64xf32>
    %c0_40 = arith.constant 0 : index
    %c0_41 = arith.constant 0 : index
    %90 = vector.load %arg6[%c0_40, %c0_41] : memref<1x64xf32, #tpu.memory_space<vmem>>, vector<1x64xf32>
    %cst_42 = arith.constant dense<0.000000e+00> : vector<64xf32>
    %91 = vector.multi_reduction <add>, %88, %cst_42 [1] : vector<64x64xf32> to vector<64xf32>
    %92 = vector.shape_cast %91 : vector<64xf32> to vector<64x1xf32>
    %cst_43 = arith.constant 6.400000e+01 : f32
    %93 = vector.broadcast %cst_43 : f32 to vector<64x1xf32>
    %94 = arith.divf %92, %93 : vector<64x1xf32>
    %95 = vector.broadcast %94 : vector<64x1xf32> to vector<64x64xf32>
    %96 = arith.subf %88, %95 : vector<64x64xf32>
    %97 = arith.mulf %96, %96 : vector<64x64xf32>
    %cst_44 = arith.constant dense<0.000000e+00> : vector<64xf32>
    %98 = vector.multi_reduction <add>, %97, %cst_44 [1] : vector<64x64xf32> to vector<64xf32>
    %99 = vector.shape_cast %98 : vector<64xf32> to vector<64x1xf32>
    %cst_45 = arith.constant 6.400000e+01 : f32
    %100 = vector.broadcast %cst_45 : f32 to vector<64x1xf32>
    %101 = arith.divf %99, %100 : vector<64x1xf32>
    %102 = vector.broadcast %94 : vector<64x1xf32> to vector<64x64xf32>
    %103 = arith.subf %88, %102 : vector<64x64xf32>
    %cst_46 = arith.constant 9.99999974E-6 : f32
    %104 = vector.broadcast %cst_46 : f32 to vector<64x1xf32>
    %105 = arith.addf %101, %104 : vector<64x1xf32>
    %106 = math.rsqrt %105 : vector<64x1xf32>
    %107 = vector.broadcast %106 : vector<64x1xf32> to vector<64x64xf32>
    %108 = arith.mulf %103, %107 : vector<64x64xf32>
    %109 = vector.broadcast %89 : vector<1x64xf32> to vector<64x64xf32>
    %110 = arith.mulf %108, %109 : vector<64x64xf32>
    %111 = vector.broadcast %90 : vector<1x64xf32> to vector<64x64xf32>
    %112 = arith.addf %110, %111 : vector<64x64xf32>
    %113 = arith.truncf %112 : vector<64x64xf32> to vector<64x64xbf16>
    %c0_47 = arith.constant 0 : index
    %c0_48 = arith.constant 0 : index
    %114 = vector.load %arg7[%c0_47, %c0_48] : memref<64x64xbf16, #tpu.memory_space<vmem>>, vector<64x64xbf16>
    %cst_49 = arith.constant dense<0.000000e+00> : vector<64x64xf32>
    %115 = tpu.matmul %113, %114, %cst_49 {dimension_numbers = #tpu.dot_dimension_numbers<[1], [0], [0], [1], [0, 0, 1, 1], [], []>} : vector<64x64xbf16>, vector<64x64xbf16>, vector<64x64xf32> -> vector<64x64xf32>
    %c0_50 = arith.constant 0 : index
    %c0_51 = arith.constant 0 : index
    %116 = vector.load %arg8[%c0_50, %c0_51] : memref<1x64xf32, #tpu.memory_space<vmem>>, vector<1x64xf32>
    %117 = vector.broadcast %116 : vector<1x64xf32> to vector<64x64xf32>
    %118 = arith.addf %115, %117 : vector<64x64xf32>
    %c0_52 = arith.constant 0 : index
    %c0_53 = arith.constant 0 : index
    %119 = vector.load %arg9[%c0_52, %c0_53] : memref<1x64xf32, #tpu.memory_space<vmem>>, vector<1x64xf32>
    %c0_54 = arith.constant 0 : index
    %c0_55 = arith.constant 0 : index
    %120 = vector.load %arg10[%c0_54, %c0_55] : memref<1x64xf32, #tpu.memory_space<vmem>>, vector<1x64xf32>
    %cst_56 = arith.constant dense<0.000000e+00> : vector<64xf32>
    %121 = vector.multi_reduction <add>, %118, %cst_56 [1] : vector<64x64xf32> to vector<64xf32>
    %122 = vector.shape_cast %121 : vector<64xf32> to vector<64x1xf32>
    %cst_57 = arith.constant 6.400000e+01 : f32
    %123 = vector.broadcast %cst_57 : f32 to vector<64x1xf32>
    %124 = arith.divf %122, %123 : vector<64x1xf32>
    %125 = vector.broadcast %124 : vector<64x1xf32> to vector<64x64xf32>
    %126 = arith.subf %118, %125 : vector<64x64xf32>
    %127 = arith.mulf %126, %126 : vector<64x64xf32>
    %cst_58 = arith.constant dense<0.000000e+00> : vector<64xf32>
    %128 = vector.multi_reduction <add>, %127, %cst_58 [1] : vector<64x64xf32> to vector<64xf32>
    %129 = vector.shape_cast %128 : vector<64xf32> to vector<64x1xf32>
    %cst_59 = arith.constant 6.400000e+01 : f32
    %130 = vector.broadcast %cst_59 : f32 to vector<64x1xf32>
    %131 = arith.divf %129, %130 : vector<64x1xf32>
    %132 = vector.broadcast %124 : vector<64x1xf32> to vector<64x64xf32>
    %133 = arith.subf %118, %132 : vector<64x64xf32>
    %cst_60 = arith.constant 9.99999974E-6 : f32
    %134 = vector.broadcast %cst_60 : f32 to vector<64x1xf32>
    %135 = arith.addf %131, %134 : vector<64x1xf32>
    %136 = math.rsqrt %135 : vector<64x1xf32>
    %137 = vector.broadcast %136 : vector<64x1xf32> to vector<64x64xf32>
    %138 = arith.mulf %133, %137 : vector<64x64xf32>
    %139 = vector.broadcast %119 : vector<1x64xf32> to vector<64x64xf32>
    %140 = arith.mulf %138, %139 : vector<64x64xf32>
    %141 = vector.broadcast %120 : vector<1x64xf32> to vector<64x64xf32>
    %142 = arith.addf %140, %141 : vector<64x64xf32>
    %143 = arith.truncf %142 : vector<64x64xf32> to vector<64x64xbf16>
    %c0_61 = arith.constant 0 : index
    %c0_62 = arith.constant 0 : index
    %144 = vector.load %arg11[%c0_61, %c0_62] : memref<64x192xbf16, #tpu.memory_space<vmem>>, vector<64x192xbf16>
    %cst_63 = arith.constant dense<0.000000e+00> : vector<64x192xf32>
    %145 = tpu.matmul %143, %144, %cst_63 {dimension_numbers = #tpu.dot_dimension_numbers<[1], [0], [0], [1], [0, 0, 1, 1], [], []>} : vector<64x64xbf16>, vector<64x192xbf16>, vector<64x192xf32> -> vector<64x192xf32>
    %c0_64 = arith.constant 0 : index
    %c0_65 = arith.constant 0 : index
    %146 = vector.load %arg12[%c0_64, %c0_65] : memref<1x192xf32, #tpu.memory_space<vmem>>, vector<1x192xf32>
    %147 = vector.broadcast %146 : vector<1x192xf32> to vector<64x192xf32>
    %148 = arith.addf %145, %147 : vector<64x192xf32>
    %149 = arith.truncf %148 : vector<64x192xf32> to vector<64x192xbf16>
    %150 = vector.extract_strided_slice %149 {offsets = [0, 0], sizes = [64, 64], strides = [1, 1]} : vector<64x192xbf16> to vector<64x64xbf16>
    %151 = vector.shape_cast %150 : vector<64x64xbf16> to vector<2x32x64xbf16>
    %152 = vector.extract_strided_slice %149 {offsets = [0, 64], sizes = [64, 64], strides = [1, 1]} : vector<64x192xbf16> to vector<64x64xbf16>
    %153 = vector.shape_cast %152 : vector<64x64xbf16> to vector<2x32x64xbf16>
    %154 = vector.extract_strided_slice %149 {offsets = [0, 128], sizes = [64, 64], strides = [1, 1]} : vector<64x192xbf16> to vector<64x64xbf16>
    %155 = vector.shape_cast %154 : vector<64x64xbf16> to vector<2x32x64xbf16>
    %c0_66 = arith.constant 0 : index
    %c0_67 = arith.constant 0 : index
    %156 = vector.load %arg13[%c0_66, %c0_67] : memref<64x64xbf16, #tpu.memory_space<vmem>>, vector<64x64xbf16>
    %cst_68 = arith.constant 0.000000e+00 : f32
    %157 = vector.broadcast %cst_68 : f32 to vector<64x64xf32>
    %158 = vector.extract_strided_slice %151 {offsets = [0, 0, 0], sizes = [2, 32, 16], strides = [1, 1, 1]} : vector<2x32x64xbf16> to vector<2x32x16xbf16>
    %159 = vector.extract_strided_slice %153 {offsets = [0, 0, 0], sizes = [2, 32, 16], strides = [1, 1, 1]} : vector<2x32x64xbf16> to vector<2x32x16xbf16>
    %cst_69 = arith.constant dense<0.000000e+00> : vector<2x32x32xf32>
    %160 = tpu.matmul %158, %159, %cst_69 {dimension_numbers = #tpu.dot_dimension_numbers<[2], [2], [1], [1], [0, 0, 0, 1, 1, 1], [0], [0]>} : vector<2x32x16xbf16>, vector<2x32x16xbf16>, vector<2x32x32xf32> -> vector<2x32x32xf32>
    %cst_70 = arith.constant dense<0xFF800000> : vector<2x32xf32>
    %161 = vector.multi_reduction <maximumf>, %160, %cst_70 [2] : vector<2x32x32xf32> to vector<2x32xf32>
    %162 = vector.shape_cast %161 : vector<2x32xf32> to vector<2x32x1xf32>
    %163 = vector.broadcast %162 : vector<2x32x1xf32> to vector<2x32x32xf32>
    %164 = arith.subf %160, %163 : vector<2x32x32xf32>
    %165 = math.exp %164 : vector<2x32x32xf32>
    %cst_71 = arith.constant dense<0.000000e+00> : vector<2x32xf32>
    %166 = vector.multi_reduction <add>, %165, %cst_71 [2] : vector<2x32x32xf32> to vector<2x32xf32>
    %167 = vector.shape_cast %166 : vector<2x32xf32> to vector<2x32x1xf32>
    %168 = tpu.reciprocal %167 {approx = true} : vector<2x32x1xf32> -> vector<2x32x1xf32>
    %169 = vector.broadcast %168 : vector<2x32x1xf32> to vector<2x32x32xf32>
    %170 = arith.mulf %165, %169 : vector<2x32x32xf32>
    %171 = arith.truncf %170 : vector<2x32x32xf32> to vector<2x32x32xbf16>
    %172 = vector.extract_strided_slice %155 {offsets = [0, 0, 0], sizes = [2, 32, 16], strides = [1, 1, 1]} : vector<2x32x64xbf16> to vector<2x32x16xbf16>
    %cst_72 = arith.constant dense<0.000000e+00> : vector<2x32x16xf32>
    %173 = tpu.matmul %171, %172, %cst_72 {dimension_numbers = #tpu.dot_dimension_numbers<[2], [1], [1], [2], [0, 0, 0, 1, 1, 2], [0], [0]>} : vector<2x32x32xbf16>, vector<2x32x16xbf16>, vector<2x32x16xf32> -> vector<2x32x16xf32>
    %174 = vector.shape_cast %173 : vector<2x32x16xf32> to vector<64x16xf32>
    %175 = arith.truncf %174 : vector<64x16xf32> to vector<64x16xbf16>
    %176 = vector.extract_strided_slice %156 {offsets = [0, 0], sizes = [16, 64], strides = [1, 1]} : vector<64x64xbf16> to vector<16x64xbf16>
    %cst_73 = arith.constant dense<0.000000e+00> : vector<64x64xf32>
    %177 = tpu.matmul %175, %176, %cst_73 {dimension_numbers = #tpu.dot_dimension_numbers<[1], [0], [0], [1], [0, 0, 1, 1], [], []>} : vector<64x16xbf16>, vector<16x64xbf16>, vector<64x64xf32> -> vector<64x64xf32>
    %178 = arith.addf %157, %177 : vector<64x64xf32>
    %179 = vector.extract_strided_slice %151 {offsets = [0, 0, 16], sizes = [2, 32, 16], strides = [1, 1, 1]} : vector<2x32x64xbf16> to vector<2x32x16xbf16>
    %180 = vector.extract_strided_slice %153 {offsets = [0, 0, 16], sizes = [2, 32, 16], strides = [1, 1, 1]} : vector<2x32x64xbf16> to vector<2x32x16xbf16>
    %cst_74 = arith.constant dense<0.000000e+00> : vector<2x32x32xf32>
    %181 = tpu.matmul %179, %180, %cst_74 {dimension_numbers = #tpu.dot_dimension_numbers<[2], [2], [1], [1], [0, 0, 0, 1, 1, 1], [0], [0]>} : vector<2x32x16xbf16>, vector<2x32x16xbf16>, vector<2x32x32xf32> -> vector<2x32x32xf32>
    %cst_75 = arith.constant dense<0xFF800000> : vector<2x32xf32>
    %182 = vector.multi_reduction <maximumf>, %181, %cst_75 [2] : vector<2x32x32xf32> to vector<2x32xf32>
    %183 = vector.shape_cast %182 : vector<2x32xf32> to vector<2x32x1xf32>
    %184 = vector.broadcast %183 : vector<2x32x1xf32> to vector<2x32x32xf32>
    %185 = arith.subf %181, %184 : vector<2x32x32xf32>
    %186 = math.exp %185 : vector<2x32x32xf32>
    %cst_76 = arith.constant dense<0.000000e+00> : vector<2x32xf32>
    %187 = vector.multi_reduction <add>, %186, %cst_76 [2] : vector<2x32x32xf32> to vector<2x32xf32>
    %188 = vector.shape_cast %187 : vector<2x32xf32> to vector<2x32x1xf32>
    %189 = tpu.reciprocal %188 {approx = true} : vector<2x32x1xf32> -> vector<2x32x1xf32>
    %190 = vector.broadcast %189 : vector<2x32x1xf32> to vector<2x32x32xf32>
    %191 = arith.mulf %186, %190 : vector<2x32x32xf32>
    %192 = arith.truncf %191 : vector<2x32x32xf32> to vector<2x32x32xbf16>
    %193 = vector.extract_strided_slice %155 {offsets = [0, 0, 16], sizes = [2, 32, 16], strides = [1, 1, 1]} : vector<2x32x64xbf16> to vector<2x32x16xbf16>
    %cst_77 = arith.constant dense<0.000000e+00> : vector<2x32x16xf32>
    %194 = tpu.matmul %192, %193, %cst_77 {dimension_numbers = #tpu.dot_dimension_numbers<[2], [1], [1], [2], [0, 0, 0, 1, 1, 2], [0], [0]>} : vector<2x32x32xbf16>, vector<2x32x16xbf16>, vector<2x32x16xf32> -> vector<2x32x16xf32>
    %195 = vector.shape_cast %194 : vector<2x32x16xf32> to vector<64x16xf32>
    %196 = arith.truncf %195 : vector<64x16xf32> to vector<64x16xbf16>
    %197 = vector.extract_strided_slice %156 {offsets = [16, 0], sizes = [16, 64], strides = [1, 1]} : vector<64x64xbf16> to vector<16x64xbf16>
    %cst_78 = arith.constant dense<0.000000e+00> : vector<64x64xf32>
    %198 = tpu.matmul %196, %197, %cst_78 {dimension_numbers = #tpu.dot_dimension_numbers<[1], [0], [0], [1], [0, 0, 1, 1], [], []>} : vector<64x16xbf16>, vector<16x64xbf16>, vector<64x64xf32> -> vector<64x64xf32>
    %199 = arith.addf %178, %198 : vector<64x64xf32>
    %200 = vector.extract_strided_slice %151 {offsets = [0, 0, 32], sizes = [2, 32, 16], strides = [1, 1, 1]} : vector<2x32x64xbf16> to vector<2x32x16xbf16>
    %201 = vector.extract_strided_slice %153 {offsets = [0, 0, 32], sizes = [2, 32, 16], strides = [1, 1, 1]} : vector<2x32x64xbf16> to vector<2x32x16xbf16>
    %cst_79 = arith.constant dense<0.000000e+00> : vector<2x32x32xf32>
    %202 = tpu.matmul %200, %201, %cst_79 {dimension_numbers = #tpu.dot_dimension_numbers<[2], [2], [1], [1], [0, 0, 0, 1, 1, 1], [0], [0]>} : vector<2x32x16xbf16>, vector<2x32x16xbf16>, vector<2x32x32xf32> -> vector<2x32x32xf32>
    %cst_80 = arith.constant dense<0xFF800000> : vector<2x32xf32>
    %203 = vector.multi_reduction <maximumf>, %202, %cst_80 [2] : vector<2x32x32xf32> to vector<2x32xf32>
    %204 = vector.shape_cast %203 : vector<2x32xf32> to vector<2x32x1xf32>
    %205 = vector.broadcast %204 : vector<2x32x1xf32> to vector<2x32x32xf32>
    %206 = arith.subf %202, %205 : vector<2x32x32xf32>
    %207 = math.exp %206 : vector<2x32x32xf32>
    %cst_81 = arith.constant dense<0.000000e+00> : vector<2x32xf32>
    %208 = vector.multi_reduction <add>, %207, %cst_81 [2] : vector<2x32x32xf32> to vector<2x32xf32>
    %209 = vector.shape_cast %208 : vector<2x32xf32> to vector<2x32x1xf32>
    %210 = tpu.reciprocal %209 {approx = true} : vector<2x32x1xf32> -> vector<2x32x1xf32>
    %211 = vector.broadcast %210 : vector<2x32x1xf32> to vector<2x32x32xf32>
    %212 = arith.mulf %207, %211 : vector<2x32x32xf32>
    %213 = arith.truncf %212 : vector<2x32x32xf32> to vector<2x32x32xbf16>
    %214 = vector.extract_strided_slice %155 {offsets = [0, 0, 32], sizes = [2, 32, 16], strides = [1, 1, 1]} : vector<2x32x64xbf16> to vector<2x32x16xbf16>
    %cst_82 = arith.constant dense<0.000000e+00> : vector<2x32x16xf32>
    %215 = tpu.matmul %213, %214, %cst_82 {dimension_numbers = #tpu.dot_dimension_numbers<[2], [1], [1], [2], [0, 0, 0, 1, 1, 2], [0], [0]>} : vector<2x32x32xbf16>, vector<2x32x16xbf16>, vector<2x32x16xf32> -> vector<2x32x16xf32>
    %216 = vector.shape_cast %215 : vector<2x32x16xf32> to vector<64x16xf32>
    %217 = arith.truncf %216 : vector<64x16xf32> to vector<64x16xbf16>
    %218 = vector.extract_strided_slice %156 {offsets = [32, 0], sizes = [16, 64], strides = [1, 1]} : vector<64x64xbf16> to vector<16x64xbf16>
    %cst_83 = arith.constant dense<0.000000e+00> : vector<64x64xf32>
    %219 = tpu.matmul %217, %218, %cst_83 {dimension_numbers = #tpu.dot_dimension_numbers<[1], [0], [0], [1], [0, 0, 1, 1], [], []>} : vector<64x16xbf16>, vector<16x64xbf16>, vector<64x64xf32> -> vector<64x64xf32>
    %220 = arith.addf %199, %219 : vector<64x64xf32>
    %221 = vector.extract_strided_slice %151 {offsets = [0, 0, 48], sizes = [2, 32, 16], strides = [1, 1, 1]} : vector<2x32x64xbf16> to vector<2x32x16xbf16>
    %222 = vector.extract_strided_slice %153 {offsets = [0, 0, 48], sizes = [2, 32, 16], strides = [1, 1, 1]} : vector<2x32x64xbf16> to vector<2x32x16xbf16>
    %cst_84 = arith.constant dense<0.000000e+00> : vector<2x32x32xf32>
    %223 = tpu.matmul %221, %222, %cst_84 {dimension_numbers = #tpu.dot_dimension_numbers<[2], [2], [1], [1], [0, 0, 0, 1, 1, 1], [0], [0]>} : vector<2x32x16xbf16>, vector<2x32x16xbf16>, vector<2x32x32xf32> -> vector<2x32x32xf32>
    %cst_85 = arith.constant dense<0xFF800000> : vector<2x32xf32>
    %224 = vector.multi_reduction <maximumf>, %223, %cst_85 [2] : vector<2x32x32xf32> to vector<2x32xf32>
    %225 = vector.shape_cast %224 : vector<2x32xf32> to vector<2x32x1xf32>
    %226 = vector.broadcast %225 : vector<2x32x1xf32> to vector<2x32x32xf32>
    %227 = arith.subf %223, %226 : vector<2x32x32xf32>
    %228 = math.exp %227 : vector<2x32x32xf32>
    %cst_86 = arith.constant dense<0.000000e+00> : vector<2x32xf32>
    %229 = vector.multi_reduction <add>, %228, %cst_86 [2] : vector<2x32x32xf32> to vector<2x32xf32>
    %230 = vector.shape_cast %229 : vector<2x32xf32> to vector<2x32x1xf32>
    %231 = tpu.reciprocal %230 {approx = true} : vector<2x32x1xf32> -> vector<2x32x1xf32>
    %232 = vector.broadcast %231 : vector<2x32x1xf32> to vector<2x32x32xf32>
    %233 = arith.mulf %228, %232 : vector<2x32x32xf32>
    %234 = arith.truncf %233 : vector<2x32x32xf32> to vector<2x32x32xbf16>
    %235 = vector.extract_strided_slice %155 {offsets = [0, 0, 48], sizes = [2, 32, 16], strides = [1, 1, 1]} : vector<2x32x64xbf16> to vector<2x32x16xbf16>
    %cst_87 = arith.constant dense<0.000000e+00> : vector<2x32x16xf32>
    %236 = tpu.matmul %234, %235, %cst_87 {dimension_numbers = #tpu.dot_dimension_numbers<[2], [1], [1], [2], [0, 0, 0, 1, 1, 2], [0], [0]>} : vector<2x32x32xbf16>, vector<2x32x16xbf16>, vector<2x32x16xf32> -> vector<2x32x16xf32>
    %237 = vector.shape_cast %236 : vector<2x32x16xf32> to vector<64x16xf32>
    %238 = arith.truncf %237 : vector<64x16xf32> to vector<64x16xbf16>
    %239 = vector.extract_strided_slice %156 {offsets = [48, 0], sizes = [16, 64], strides = [1, 1]} : vector<64x64xbf16> to vector<16x64xbf16>
    %cst_88 = arith.constant dense<0.000000e+00> : vector<64x64xf32>
    %240 = tpu.matmul %238, %239, %cst_88 {dimension_numbers = #tpu.dot_dimension_numbers<[1], [0], [0], [1], [0, 0, 1, 1], [], []>} : vector<64x16xbf16>, vector<16x64xbf16>, vector<64x64xf32> -> vector<64x64xf32>
    %241 = arith.addf %220, %240 : vector<64x64xf32>
    %242 = arith.addf %142, %241 : vector<64x64xf32>
    %c0_89 = arith.constant 0 : index
    %c0_90 = arith.constant 0 : index
    %243 = vector.load %arg14[%c0_89, %c0_90] : memref<1x64xf32, #tpu.memory_space<vmem>>, vector<1x64xf32>
    %244 = vector.broadcast %243 : vector<1x64xf32> to vector<64x64xf32>
    %245 = arith.addf %242, %244 : vector<64x64xf32>
    %c0_91 = arith.constant 0 : index
    %c0_92 = arith.constant 0 : index
    %246 = vector.load %arg15[%c0_91, %c0_92] : memref<1x64xf32, #tpu.memory_space<vmem>>, vector<1x64xf32>
    %c0_93 = arith.constant 0 : index
    %c0_94 = arith.constant 0 : index
    %247 = vector.load %arg16[%c0_93, %c0_94] : memref<1x64xf32, #tpu.memory_space<vmem>>, vector<1x64xf32>
    %cst_95 = arith.constant dense<0.000000e+00> : vector<64xf32>
    %248 = vector.multi_reduction <add>, %245, %cst_95 [1] : vector<64x64xf32> to vector<64xf32>
    %249 = vector.shape_cast %248 : vector<64xf32> to vector<64x1xf32>
    %cst_96 = arith.constant 6.400000e+01 : f32
    %250 = vector.broadcast %cst_96 : f32 to vector<64x1xf32>
    %251 = arith.divf %249, %250 : vector<64x1xf32>
    %252 = vector.broadcast %251 : vector<64x1xf32> to vector<64x64xf32>
    %253 = arith.subf %245, %252 : vector<64x64xf32>
    %254 = arith.mulf %253, %253 : vector<64x64xf32>
    %cst_97 = arith.constant dense<0.000000e+00> : vector<64xf32>
    %255 = vector.multi_reduction <add>, %254, %cst_97 [1] : vector<64x64xf32> to vector<64xf32>
    %256 = vector.shape_cast %255 : vector<64xf32> to vector<64x1xf32>
    %cst_98 = arith.constant 6.400000e+01 : f32
    %257 = vector.broadcast %cst_98 : f32 to vector<64x1xf32>
    %258 = arith.divf %256, %257 : vector<64x1xf32>
    %259 = vector.broadcast %251 : vector<64x1xf32> to vector<64x64xf32>
    %260 = arith.subf %245, %259 : vector<64x64xf32>
    %cst_99 = arith.constant 9.99999974E-6 : f32
    %261 = vector.broadcast %cst_99 : f32 to vector<64x1xf32>
    %262 = arith.addf %258, %261 : vector<64x1xf32>
    %263 = math.rsqrt %262 : vector<64x1xf32>
    %264 = vector.broadcast %263 : vector<64x1xf32> to vector<64x64xf32>
    %265 = arith.mulf %260, %264 : vector<64x64xf32>
    %266 = vector.broadcast %246 : vector<1x64xf32> to vector<64x64xf32>
    %267 = arith.mulf %265, %266 : vector<64x64xf32>
    %268 = vector.broadcast %247 : vector<1x64xf32> to vector<64x64xf32>
    %269 = arith.addf %267, %268 : vector<64x64xf32>
    %270 = arith.truncf %269 : vector<64x64xf32> to vector<64x64xbf16>
    %c0_100 = arith.constant 0 : index
    %c0_101 = arith.constant 0 : index
    %271 = vector.load %arg17[%c0_100, %c0_101] : memref<64x128xbf16, #tpu.memory_space<vmem>>, vector<64x128xbf16>
    %cst_102 = arith.constant dense<0.000000e+00> : vector<64x128xf32>
    %272 = tpu.matmul %270, %271, %cst_102 {dimension_numbers = #tpu.dot_dimension_numbers<[1], [0], [0], [1], [0, 0, 1, 1], [], []>} : vector<64x64xbf16>, vector<64x128xbf16>, vector<64x128xf32> -> vector<64x128xf32>
    %c0_103 = arith.constant 0 : index
    %c0_104 = arith.constant 0 : index
    %273 = vector.load %arg18[%c0_103, %c0_104] : memref<1x128xf32, #tpu.memory_space<vmem>>, vector<1x128xf32>
    %274 = vector.broadcast %273 : vector<1x128xf32> to vector<64x128xf32>
    %275 = arith.addf %272, %274 : vector<64x128xf32>
    %276 = arith.mulf %275, %275 : vector<64x128xf32>
    %277 = arith.mulf %275, %276 : vector<64x128xf32>
    %cst_105 = arith.constant 4.471500e-02 : f32
    %278 = vector.broadcast %cst_105 : f32 to vector<64x128xf32>
    %279 = arith.mulf %278, %277 : vector<64x128xf32>
    %280 = arith.addf %275, %279 : vector<64x128xf32>
    %cst_106 = arith.constant 0.797884583 : f32
    %281 = vector.broadcast %cst_106 : f32 to vector<64x128xf32>
    %282 = arith.mulf %281, %280 : vector<64x128xf32>
    %283 = math.tanh %282 : vector<64x128xf32>
    %cst_107 = arith.constant 1.000000e+00 : f32
    %284 = vector.broadcast %cst_107 : f32 to vector<64x128xf32>
    %285 = arith.addf %284, %283 : vector<64x128xf32>
    %cst_108 = arith.constant 5.000000e-01 : f32
    %286 = vector.broadcast %cst_108 : f32 to vector<64x128xf32>
    %287 = arith.mulf %286, %285 : vector<64x128xf32>
    %288 = arith.mulf %275, %287 : vector<64x128xf32>
    %289 = arith.truncf %288 : vector<64x128xf32> to vector<64x128xbf16>
    %c0_109 = arith.constant 0 : index
    %c0_110 = arith.constant 0 : index
    %290 = vector.load %arg19[%c0_109, %c0_110] : memref<128x64xbf16, #tpu.memory_space<vmem>>, vector<128x64xbf16>
    %cst_111 = arith.constant dense<0.000000e+00> : vector<64x64xf32>
    %291 = tpu.matmul %289, %290, %cst_111 {dimension_numbers = #tpu.dot_dimension_numbers<[1], [0], [0], [1], [0, 0, 1, 1], [], []>} : vector<64x128xbf16>, vector<128x64xbf16>, vector<64x64xf32> -> vector<64x64xf32>
    %c0_112 = arith.constant 0 : index
    %c0_113 = arith.constant 0 : index
    %292 = vector.load %arg20[%c0_112, %c0_113] : memref<1x64xf32, #tpu.memory_space<vmem>>, vector<1x64xf32>
    %293 = vector.broadcast %292 : vector<1x64xf32> to vector<64x64xf32>
    %294 = arith.addf %291, %293 : vector<64x64xf32>
    %295 = arith.addf %269, %294 : vector<64x64xf32>
    %c0_114 = arith.constant 0 : index
    %c0_115 = arith.constant 0 : index
    %296 = vector.load %arg21[%c0_114, %c0_115] : memref<1x64xf32, #tpu.memory_space<vmem>>, vector<1x64xf32>
    %c0_116 = arith.constant 0 : index
    %c0_117 = arith.constant 0 : index
    %297 = vector.load %arg22[%c0_116, %c0_117] : memref<1x64xf32, #tpu.memory_space<vmem>>, vector<1x64xf32>
    %cst_118 = arith.constant dense<0.000000e+00> : vector<64xf32>
    %298 = vector.multi_reduction <add>, %295, %cst_118 [1] : vector<64x64xf32> to vector<64xf32>
    %299 = vector.shape_cast %298 : vector<64xf32> to vector<64x1xf32>
    %cst_119 = arith.constant 6.400000e+01 : f32
    %300 = vector.broadcast %cst_119 : f32 to vector<64x1xf32>
    %301 = arith.divf %299, %300 : vector<64x1xf32>
    %302 = vector.broadcast %301 : vector<64x1xf32> to vector<64x64xf32>
    %303 = arith.subf %295, %302 : vector<64x64xf32>
    %304 = arith.mulf %303, %303 : vector<64x64xf32>
    %cst_120 = arith.constant dense<0.000000e+00> : vector<64xf32>
    %305 = vector.multi_reduction <add>, %304, %cst_120 [1] : vector<64x64xf32> to vector<64xf32>
    %306 = vector.shape_cast %305 : vector<64xf32> to vector<64x1xf32>
    %cst_121 = arith.constant 6.400000e+01 : f32
    %307 = vector.broadcast %cst_121 : f32 to vector<64x1xf32>
    %308 = arith.divf %306, %307 : vector<64x1xf32>
    %309 = vector.broadcast %301 : vector<64x1xf32> to vector<64x64xf32>
    %310 = arith.subf %295, %309 : vector<64x64xf32>
    %cst_122 = arith.constant 9.99999974E-6 : f32
    %311 = vector.broadcast %cst_122 : f32 to vector<64x1xf32>
    %312 = arith.addf %308, %311 : vector<64x1xf32>
    %313 = math.rsqrt %312 : vector<64x1xf32>
    %314 = vector.broadcast %313 : vector<64x1xf32> to vector<64x64xf32>
    %315 = arith.mulf %310, %314 : vector<64x64xf32>
    %316 = vector.broadcast %296 : vector<1x64xf32> to vector<64x64xf32>
    %317 = arith.mulf %315, %316 : vector<64x64xf32>
    %318 = vector.broadcast %297 : vector<1x64xf32> to vector<64x64xf32>
    %319 = arith.addf %317, %318 : vector<64x64xf32>
    %320 = arith.truncf %319 : vector<64x64xf32> to vector<64x64xbf16>
    %c0_123 = arith.constant 0 : index
    %c0_124 = arith.constant 0 : index
    %321 = vector.load %arg23[%c0_123, %c0_124] : memref<64x192xbf16, #tpu.memory_space<vmem>>, vector<64x192xbf16>
    %cst_125 = arith.constant dense<0.000000e+00> : vector<64x192xf32>
    %322 = tpu.matmul %320, %321, %cst_125 {dimension_numbers = #tpu.dot_dimension_numbers<[1], [0], [0], [1], [0, 0, 1, 1], [], []>} : vector<64x64xbf16>, vector<64x192xbf16>, vector<64x192xf32> -> vector<64x192xf32>
    %c0_126 = arith.constant 0 : index
    %c0_127 = arith.constant 0 : index
    %323 = vector.load %arg24[%c0_126, %c0_127] : memref<1x192xf32, #tpu.memory_space<vmem>>, vector<1x192xf32>
    %324 = vector.broadcast %323 : vector<1x192xf32> to vector<64x192xf32>
    %325 = arith.addf %322, %324 : vector<64x192xf32>
    %326 = arith.truncf %325 : vector<64x192xf32> to vector<64x192xbf16>
    %327 = vector.extract_strided_slice %326 {offsets = [0, 0], sizes = [64, 64], strides = [1, 1]} : vector<64x192xbf16> to vector<64x64xbf16>
    %328 = vector.shape_cast %327 : vector<64x64xbf16> to vector<2x32x64xbf16>
    %329 = vector.extract_strided_slice %326 {offsets = [0, 64], sizes = [64, 64], strides = [1, 1]} : vector<64x192xbf16> to vector<64x64xbf16>
    %330 = vector.shape_cast %329 : vector<64x64xbf16> to vector<2x32x64xbf16>
    %331 = vector.extract_strided_slice %326 {offsets = [0, 128], sizes = [64, 64], strides = [1, 1]} : vector<64x192xbf16> to vector<64x64xbf16>
    %332 = vector.shape_cast %331 : vector<64x64xbf16> to vector<2x32x64xbf16>
    %c0_128 = arith.constant 0 : index
    %c0_129 = arith.constant 0 : index
    %333 = vector.load %arg25[%c0_128, %c0_129] : memref<64x64xbf16, #tpu.memory_space<vmem>>, vector<64x64xbf16>
    %cst_130 = arith.constant 0.000000e+00 : f32
    %334 = vector.broadcast %cst_130 : f32 to vector<64x64xf32>
    %335 = vector.extract_strided_slice %328 {offsets = [0, 0, 0], sizes = [2, 32, 16], strides = [1, 1, 1]} : vector<2x32x64xbf16> to vector<2x32x16xbf16>
    %336 = vector.extract_strided_slice %330 {offsets = [0, 0, 0], sizes = [2, 32, 16], strides = [1, 1, 1]} : vector<2x32x64xbf16> to vector<2x32x16xbf16>
    %cst_131 = arith.constant dense<0.000000e+00> : vector<2x32x32xf32>
    %337 = tpu.matmul %335, %336, %cst_131 {dimension_numbers = #tpu.dot_dimension_numbers<[2], [2], [1], [1], [0, 0, 0, 1, 1, 1], [0], [0]>} : vector<2x32x16xbf16>, vector<2x32x16xbf16>, vector<2x32x32xf32> -> vector<2x32x32xf32>
    %cst_132 = arith.constant dense<0xFF800000> : vector<2x32xf32>
    %338 = vector.multi_reduction <maximumf>, %337, %cst_132 [2] : vector<2x32x32xf32> to vector<2x32xf32>
    %339 = vector.shape_cast %338 : vector<2x32xf32> to vector<2x32x1xf32>
    %340 = vector.broadcast %339 : vector<2x32x1xf32> to vector<2x32x32xf32>
    %341 = arith.subf %337, %340 : vector<2x32x32xf32>
    %342 = math.exp %341 : vector<2x32x32xf32>
    %cst_133 = arith.constant dense<0.000000e+00> : vector<2x32xf32>
    %343 = vector.multi_reduction <add>, %342, %cst_133 [2] : vector<2x32x32xf32> to vector<2x32xf32>
    %344 = vector.shape_cast %343 : vector<2x32xf32> to vector<2x32x1xf32>
    %345 = tpu.reciprocal %344 {approx = true} : vector<2x32x1xf32> -> vector<2x32x1xf32>
    %346 = vector.broadcast %345 : vector<2x32x1xf32> to vector<2x32x32xf32>
    %347 = arith.mulf %342, %346 : vector<2x32x32xf32>
    %348 = arith.truncf %347 : vector<2x32x32xf32> to vector<2x32x32xbf16>
    %349 = vector.extract_strided_slice %332 {offsets = [0, 0, 0], sizes = [2, 32, 16], strides = [1, 1, 1]} : vector<2x32x64xbf16> to vector<2x32x16xbf16>
    %cst_134 = arith.constant dense<0.000000e+00> : vector<2x32x16xf32>
    %350 = tpu.matmul %348, %349, %cst_134 {dimension_numbers = #tpu.dot_dimension_numbers<[2], [1], [1], [2], [0, 0, 0, 1, 1, 2], [0], [0]>} : vector<2x32x32xbf16>, vector<2x32x16xbf16>, vector<2x32x16xf32> -> vector<2x32x16xf32>
    %351 = vector.shape_cast %350 : vector<2x32x16xf32> to vector<64x16xf32>
    %352 = arith.truncf %351 : vector<64x16xf32> to vector<64x16xbf16>
    %353 = vector.extract_strided_slice %333 {offsets = [0, 0], sizes = [16, 64], strides = [1, 1]} : vector<64x64xbf16> to vector<16x64xbf16>
    %cst_135 = arith.constant dense<0.000000e+00> : vector<64x64xf32>
    %354 = tpu.matmul %352, %353, %cst_135 {dimension_numbers = #tpu.dot_dimension_numbers<[1], [0], [0], [1], [0, 0, 1, 1], [], []>} : vector<64x16xbf16>, vector<16x64xbf16>, vector<64x64xf32> -> vector<64x64xf32>
    %355 = arith.addf %334, %354 : vector<64x64xf32>
    %356 = vector.extract_strided_slice %328 {offsets = [0, 0, 16], sizes = [2, 32, 16], strides = [1, 1, 1]} : vector<2x32x64xbf16> to vector<2x32x16xbf16>
    %357 = vector.extract_strided_slice %330 {offsets = [0, 0, 16], sizes = [2, 32, 16], strides = [1, 1, 1]} : vector<2x32x64xbf16> to vector<2x32x16xbf16>
    %cst_136 = arith.constant dense<0.000000e+00> : vector<2x32x32xf32>
    %358 = tpu.matmul %356, %357, %cst_136 {dimension_numbers = #tpu.dot_dimension_numbers<[2], [2], [1], [1], [0, 0, 0, 1, 1, 1], [0], [0]>} : vector<2x32x16xbf16>, vector<2x32x16xbf16>, vector<2x32x32xf32> -> vector<2x32x32xf32>
    %cst_137 = arith.constant dense<0xFF800000> : vector<2x32xf32>
    %359 = vector.multi_reduction <maximumf>, %358, %cst_137 [2] : vector<2x32x32xf32> to vector<2x32xf32>
    %360 = vector.shape_cast %359 : vector<2x32xf32> to vector<2x32x1xf32>
    %361 = vector.broadcast %360 : vector<2x32x1xf32> to vector<2x32x32xf32>
    %362 = arith.subf %358, %361 : vector<2x32x32xf32>
    %363 = math.exp %362 : vector<2x32x32xf32>
    %cst_138 = arith.constant dense<0.000000e+00> : vector<2x32xf32>
    %364 = vector.multi_reduction <add>, %363, %cst_138 [2] : vector<2x32x32xf32> to vector<2x32xf32>
    %365 = vector.shape_cast %364 : vector<2x32xf32> to vector<2x32x1xf32>
    %366 = tpu.reciprocal %365 {approx = true} : vector<2x32x1xf32> -> vector<2x32x1xf32>
    %367 = vector.broadcast %366 : vector<2x32x1xf32> to vector<2x32x32xf32>
    %368 = arith.mulf %363, %367 : vector<2x32x32xf32>
    %369 = arith.truncf %368 : vector<2x32x32xf32> to vector<2x32x32xbf16>
    %370 = vector.extract_strided_slice %332 {offsets = [0, 0, 16], sizes = [2, 32, 16], strides = [1, 1, 1]} : vector<2x32x64xbf16> to vector<2x32x16xbf16>
    %cst_139 = arith.constant dense<0.000000e+00> : vector<2x32x16xf32>
    %371 = tpu.matmul %369, %370, %cst_139 {dimension_numbers = #tpu.dot_dimension_numbers<[2], [1], [1], [2], [0, 0, 0, 1, 1, 2], [0], [0]>} : vector<2x32x32xbf16>, vector<2x32x16xbf16>, vector<2x32x16xf32> -> vector<2x32x16xf32>
    %372 = vector.shape_cast %371 : vector<2x32x16xf32> to vector<64x16xf32>
    %373 = arith.truncf %372 : vector<64x16xf32> to vector<64x16xbf16>
    %374 = vector.extract_strided_slice %333 {offsets = [16, 0], sizes = [16, 64], strides = [1, 1]} : vector<64x64xbf16> to vector<16x64xbf16>
    %cst_140 = arith.constant dense<0.000000e+00> : vector<64x64xf32>
    %375 = tpu.matmul %373, %374, %cst_140 {dimension_numbers = #tpu.dot_dimension_numbers<[1], [0], [0], [1], [0, 0, 1, 1], [], []>} : vector<64x16xbf16>, vector<16x64xbf16>, vector<64x64xf32> -> vector<64x64xf32>
    %376 = arith.addf %355, %375 : vector<64x64xf32>
    %377 = vector.extract_strided_slice %328 {offsets = [0, 0, 32], sizes = [2, 32, 16], strides = [1, 1, 1]} : vector<2x32x64xbf16> to vector<2x32x16xbf16>
    %378 = vector.extract_strided_slice %330 {offsets = [0, 0, 32], sizes = [2, 32, 16], strides = [1, 1, 1]} : vector<2x32x64xbf16> to vector<2x32x16xbf16>
    %cst_141 = arith.constant dense<0.000000e+00> : vector<2x32x32xf32>
    %379 = tpu.matmul %377, %378, %cst_141 {dimension_numbers = #tpu.dot_dimension_numbers<[2], [2], [1], [1], [0, 0, 0, 1, 1, 1], [0], [0]>} : vector<2x32x16xbf16>, vector<2x32x16xbf16>, vector<2x32x32xf32> -> vector<2x32x32xf32>
    %cst_142 = arith.constant dense<0xFF800000> : vector<2x32xf32>
    %380 = vector.multi_reduction <maximumf>, %379, %cst_142 [2] : vector<2x32x32xf32> to vector<2x32xf32>
    %381 = vector.shape_cast %380 : vector<2x32xf32> to vector<2x32x1xf32>
    %382 = vector.broadcast %381 : vector<2x32x1xf32> to vector<2x32x32xf32>
    %383 = arith.subf %379, %382 : vector<2x32x32xf32>
    %384 = math.exp %383 : vector<2x32x32xf32>
    %cst_143 = arith.constant dense<0.000000e+00> : vector<2x32xf32>
    %385 = vector.multi_reduction <add>, %384, %cst_143 [2] : vector<2x32x32xf32> to vector<2x32xf32>
    %386 = vector.shape_cast %385 : vector<2x32xf32> to vector<2x32x1xf32>
    %387 = tpu.reciprocal %386 {approx = true} : vector<2x32x1xf32> -> vector<2x32x1xf32>
    %388 = vector.broadcast %387 : vector<2x32x1xf32> to vector<2x32x32xf32>
    %389 = arith.mulf %384, %388 : vector<2x32x32xf32>
    %390 = arith.truncf %389 : vector<2x32x32xf32> to vector<2x32x32xbf16>
    %391 = vector.extract_strided_slice %332 {offsets = [0, 0, 32], sizes = [2, 32, 16], strides = [1, 1, 1]} : vector<2x32x64xbf16> to vector<2x32x16xbf16>
    %cst_144 = arith.constant dense<0.000000e+00> : vector<2x32x16xf32>
    %392 = tpu.matmul %390, %391, %cst_144 {dimension_numbers = #tpu.dot_dimension_numbers<[2], [1], [1], [2], [0, 0, 0, 1, 1, 2], [0], [0]>} : vector<2x32x32xbf16>, vector<2x32x16xbf16>, vector<2x32x16xf32> -> vector<2x32x16xf32>
    %393 = vector.shape_cast %392 : vector<2x32x16xf32> to vector<64x16xf32>
    %394 = arith.truncf %393 : vector<64x16xf32> to vector<64x16xbf16>
    %395 = vector.extract_strided_slice %333 {offsets = [32, 0], sizes = [16, 64], strides = [1, 1]} : vector<64x64xbf16> to vector<16x64xbf16>
    %cst_145 = arith.constant dense<0.000000e+00> : vector<64x64xf32>
    %396 = tpu.matmul %394, %395, %cst_145 {dimension_numbers = #tpu.dot_dimension_numbers<[1], [0], [0], [1], [0, 0, 1, 1], [], []>} : vector<64x16xbf16>, vector<16x64xbf16>, vector<64x64xf32> -> vector<64x64xf32>
    %397 = arith.addf %376, %396 : vector<64x64xf32>
    %398 = vector.extract_strided_slice %328 {offsets = [0, 0, 48], sizes = [2, 32, 16], strides = [1, 1, 1]} : vector<2x32x64xbf16> to vector<2x32x16xbf16>
    %399 = vector.extract_strided_slice %330 {offsets = [0, 0, 48], sizes = [2, 32, 16], strides = [1, 1, 1]} : vector<2x32x64xbf16> to vector<2x32x16xbf16>
    %cst_146 = arith.constant dense<0.000000e+00> : vector<2x32x32xf32>
    %400 = tpu.matmul %398, %399, %cst_146 {dimension_numbers = #tpu.dot_dimension_numbers<[2], [2], [1], [1], [0, 0, 0, 1, 1, 1], [0], [0]>} : vector<2x32x16xbf16>, vector<2x32x16xbf16>, vector<2x32x32xf32> -> vector<2x32x32xf32>
    %cst_147 = arith.constant dense<0xFF800000> : vector<2x32xf32>
    %401 = vector.multi_reduction <maximumf>, %400, %cst_147 [2] : vector<2x32x32xf32> to vector<2x32xf32>
    %402 = vector.shape_cast %401 : vector<2x32xf32> to vector<2x32x1xf32>
    %403 = vector.broadcast %402 : vector<2x32x1xf32> to vector<2x32x32xf32>
    %404 = arith.subf %400, %403 : vector<2x32x32xf32>
    %405 = math.exp %404 : vector<2x32x32xf32>
    %cst_148 = arith.constant dense<0.000000e+00> : vector<2x32xf32>
    %406 = vector.multi_reduction <add>, %405, %cst_148 [2] : vector<2x32x32xf32> to vector<2x32xf32>
    %407 = vector.shape_cast %406 : vector<2x32xf32> to vector<2x32x1xf32>
    %408 = tpu.reciprocal %407 {approx = true} : vector<2x32x1xf32> -> vector<2x32x1xf32>
    %409 = vector.broadcast %408 : vector<2x32x1xf32> to vector<2x32x32xf32>
    %410 = arith.mulf %405, %409 : vector<2x32x32xf32>
    %411 = arith.truncf %410 : vector<2x32x32xf32> to vector<2x32x32xbf16>
    %412 = vector.extract_strided_slice %332 {offsets = [0, 0, 48], sizes = [2, 32, 16], strides = [1, 1, 1]} : vector<2x32x64xbf16> to vector<2x32x16xbf16>
    %cst_149 = arith.constant dense<0.000000e+00> : vector<2x32x16xf32>
    %413 = tpu.matmul %411, %412, %cst_149 {dimension_numbers = #tpu.dot_dimension_numbers<[2], [1], [1], [2], [0, 0, 0, 1, 1, 2], [0], [0]>} : vector<2x32x32xbf16>, vector<2x32x16xbf16>, vector<2x32x16xf32> -> vector<2x32x16xf32>
    %414 = vector.shape_cast %413 : vector<2x32x16xf32> to vector<64x16xf32>
    %415 = arith.truncf %414 : vector<64x16xf32> to vector<64x16xbf16>
    %416 = vector.extract_strided_slice %333 {offsets = [48, 0], sizes = [16, 64], strides = [1, 1]} : vector<64x64xbf16> to vector<16x64xbf16>
    %cst_150 = arith.constant dense<0.000000e+00> : vector<64x64xf32>
    %417 = tpu.matmul %415, %416, %cst_150 {dimension_numbers = #tpu.dot_dimension_numbers<[1], [0], [0], [1], [0, 0, 1, 1], [], []>} : vector<64x16xbf16>, vector<16x64xbf16>, vector<64x64xf32> -> vector<64x64xf32>
    %418 = arith.addf %397, %417 : vector<64x64xf32>
    %419 = arith.addf %319, %418 : vector<64x64xf32>
    %c0_151 = arith.constant 0 : index
    %c0_152 = arith.constant 0 : index
    %420 = vector.load %arg26[%c0_151, %c0_152] : memref<1x64xf32, #tpu.memory_space<vmem>>, vector<1x64xf32>
    %421 = vector.broadcast %420 : vector<1x64xf32> to vector<64x64xf32>
    %422 = arith.addf %419, %421 : vector<64x64xf32>
    %c0_153 = arith.constant 0 : index
    %c0_154 = arith.constant 0 : index
    %423 = vector.load %arg27[%c0_153, %c0_154] : memref<1x64xf32, #tpu.memory_space<vmem>>, vector<1x64xf32>
    %c0_155 = arith.constant 0 : index
    %c0_156 = arith.constant 0 : index
    %424 = vector.load %arg28[%c0_155, %c0_156] : memref<1x64xf32, #tpu.memory_space<vmem>>, vector<1x64xf32>
    %cst_157 = arith.constant dense<0.000000e+00> : vector<64xf32>
    %425 = vector.multi_reduction <add>, %422, %cst_157 [1] : vector<64x64xf32> to vector<64xf32>
    %426 = vector.shape_cast %425 : vector<64xf32> to vector<64x1xf32>
    %cst_158 = arith.constant 6.400000e+01 : f32
    %427 = vector.broadcast %cst_158 : f32 to vector<64x1xf32>
    %428 = arith.divf %426, %427 : vector<64x1xf32>
    %429 = vector.broadcast %428 : vector<64x1xf32> to vector<64x64xf32>
    %430 = arith.subf %422, %429 : vector<64x64xf32>
    %431 = arith.mulf %430, %430 : vector<64x64xf32>
    %cst_159 = arith.constant dense<0.000000e+00> : vector<64xf32>
    %432 = vector.multi_reduction <add>, %431, %cst_159 [1] : vector<64x64xf32> to vector<64xf32>
    %433 = vector.shape_cast %432 : vector<64xf32> to vector<64x1xf32>
    %cst_160 = arith.constant 6.400000e+01 : f32
    %434 = vector.broadcast %cst_160 : f32 to vector<64x1xf32>
    %435 = arith.divf %433, %434 : vector<64x1xf32>
    %436 = vector.broadcast %428 : vector<64x1xf32> to vector<64x64xf32>
    %437 = arith.subf %422, %436 : vector<64x64xf32>
    %cst_161 = arith.constant 9.99999974E-6 : f32
    %438 = vector.broadcast %cst_161 : f32 to vector<64x1xf32>
    %439 = arith.addf %435, %438 : vector<64x1xf32>
    %440 = math.rsqrt %439 : vector<64x1xf32>
    %441 = vector.broadcast %440 : vector<64x1xf32> to vector<64x64xf32>
    %442 = arith.mulf %437, %441 : vector<64x64xf32>
    %443 = vector.broadcast %423 : vector<1x64xf32> to vector<64x64xf32>
    %444 = arith.mulf %442, %443 : vector<64x64xf32>
    %445 = vector.broadcast %424 : vector<1x64xf32> to vector<64x64xf32>
    %446 = arith.addf %444, %445 : vector<64x64xf32>
    %447 = arith.truncf %446 : vector<64x64xf32> to vector<64x64xbf16>
    %c0_162 = arith.constant 0 : index
    %c0_163 = arith.constant 0 : index
    %448 = vector.load %arg29[%c0_162, %c0_163] : memref<64x128xbf16, #tpu.memory_space<vmem>>, vector<64x128xbf16>
    %cst_164 = arith.constant dense<0.000000e+00> : vector<64x128xf32>
    %449 = tpu.matmul %447, %448, %cst_164 {dimension_numbers = #tpu.dot_dimension_numbers<[1], [0], [0], [1], [0, 0, 1, 1], [], []>} : vector<64x64xbf16>, vector<64x128xbf16>, vector<64x128xf32> -> vector<64x128xf32>
    %c0_165 = arith.constant 0 : index
    %c0_166 = arith.constant 0 : index
    %450 = vector.load %arg30[%c0_165, %c0_166] : memref<1x128xf32, #tpu.memory_space<vmem>>, vector<1x128xf32>
    %451 = vector.broadcast %450 : vector<1x128xf32> to vector<64x128xf32>
    %452 = arith.addf %449, %451 : vector<64x128xf32>
    %453 = arith.mulf %452, %452 : vector<64x128xf32>
    %454 = arith.mulf %452, %453 : vector<64x128xf32>
    %cst_167 = arith.constant 4.471500e-02 : f32
    %455 = vector.broadcast %cst_167 : f32 to vector<64x128xf32>
    %456 = arith.mulf %455, %454 : vector<64x128xf32>
    %457 = arith.addf %452, %456 : vector<64x128xf32>
    %cst_168 = arith.constant 0.797884583 : f32
    %458 = vector.broadcast %cst_168 : f32 to vector<64x128xf32>
    %459 = arith.mulf %458, %457 : vector<64x128xf32>
    %460 = math.tanh %459 : vector<64x128xf32>
    %cst_169 = arith.constant 1.000000e+00 : f32
    %461 = vector.broadcast %cst_169 : f32 to vector<64x128xf32>
    %462 = arith.addf %461, %460 : vector<64x128xf32>
    %cst_170 = arith.constant 5.000000e-01 : f32
    %463 = vector.broadcast %cst_170 : f32 to vector<64x128xf32>
    %464 = arith.mulf %463, %462 : vector<64x128xf32>
    %465 = arith.mulf %452, %464 : vector<64x128xf32>
    %466 = arith.truncf %465 : vector<64x128xf32> to vector<64x128xbf16>
    %c0_171 = arith.constant 0 : index
    %c0_172 = arith.constant 0 : index
    %467 = vector.load %arg31[%c0_171, %c0_172] : memref<128x64xbf16, #tpu.memory_space<vmem>>, vector<128x64xbf16>
    %cst_173 = arith.constant dense<0.000000e+00> : vector<64x64xf32>
    %468 = tpu.matmul %466, %467, %cst_173 {dimension_numbers = #tpu.dot_dimension_numbers<[1], [0], [0], [1], [0, 0, 1, 1], [], []>} : vector<64x128xbf16>, vector<128x64xbf16>, vector<64x64xf32> -> vector<64x64xf32>
    %c0_174 = arith.constant 0 : index
    %c0_175 = arith.constant 0 : index
    %469 = vector.load %arg32[%c0_174, %c0_175] : memref<1x64xf32, #tpu.memory_space<vmem>>, vector<1x64xf32>
    %470 = vector.broadcast %469 : vector<1x64xf32> to vector<64x64xf32>
    %471 = arith.addf %468, %470 : vector<64x64xf32>
    %472 = arith.addf %446, %471 : vector<64x64xf32>
    %c0_176 = arith.constant 0 : index
    %c0_177 = arith.constant 0 : index
    %473 = vector.load %arg33[%c0_176, %c0_177] : memref<1x64xf32, #tpu.memory_space<vmem>>, vector<1x64xf32>
    %c0_178 = arith.constant 0 : index
    %c0_179 = arith.constant 0 : index
    %474 = vector.load %arg34[%c0_178, %c0_179] : memref<1x64xf32, #tpu.memory_space<vmem>>, vector<1x64xf32>
    %cst_180 = arith.constant dense<0.000000e+00> : vector<64xf32>
    %475 = vector.multi_reduction <add>, %472, %cst_180 [1] : vector<64x64xf32> to vector<64xf32>
    %476 = vector.shape_cast %475 : vector<64xf32> to vector<64x1xf32>
    %cst_181 = arith.constant 6.400000e+01 : f32
    %477 = vector.broadcast %cst_181 : f32 to vector<64x1xf32>
    %478 = arith.divf %476, %477 : vector<64x1xf32>
    %479 = vector.broadcast %478 : vector<64x1xf32> to vector<64x64xf32>
    %480 = arith.subf %472, %479 : vector<64x64xf32>
    %481 = arith.mulf %480, %480 : vector<64x64xf32>
    %cst_182 = arith.constant dense<0.000000e+00> : vector<64xf32>
    %482 = vector.multi_reduction <add>, %481, %cst_182 [1] : vector<64x64xf32> to vector<64xf32>
    %483 = vector.shape_cast %482 : vector<64xf32> to vector<64x1xf32>
    %cst_183 = arith.constant 6.400000e+01 : f32
    %484 = vector.broadcast %cst_183 : f32 to vector<64x1xf32>
    %485 = arith.divf %483, %484 : vector<64x1xf32>
    %486 = vector.broadcast %478 : vector<64x1xf32> to vector<64x64xf32>
    %487 = arith.subf %472, %486 : vector<64x64xf32>
    %cst_184 = arith.constant 9.99999974E-6 : f32
    %488 = vector.broadcast %cst_184 : f32 to vector<64x1xf32>
    %489 = arith.addf %485, %488 : vector<64x1xf32>
    %490 = math.rsqrt %489 : vector<64x1xf32>
    %491 = vector.broadcast %490 : vector<64x1xf32> to vector<64x64xf32>
    %492 = arith.mulf %487, %491 : vector<64x64xf32>
    %493 = vector.broadcast %473 : vector<1x64xf32> to vector<64x64xf32>
    %494 = arith.mulf %492, %493 : vector<64x64xf32>
    %495 = vector.broadcast %474 : vector<1x64xf32> to vector<64x64xf32>
    %496 = arith.addf %494, %495 : vector<64x64xf32>
    %c0_185 = arith.constant 0 : index
    %c0_186 = arith.constant 0 : index
    %497 = vector.load %arg35[%c0_185, %c0_186] : memref<2x64xbf16, #tpu.memory_space<vmem>>, vector<2x64xbf16>
    %498 = arith.truncf %496 : vector<64x64xf32> to vector<64x64xbf16>
    %cst_187 = arith.constant dense<0.000000e+00> : vector<2x64xf32>
    %499 = tpu.matmul %497, %498, %cst_187 {dimension_numbers = #tpu.dot_dimension_numbers<[1], [0], [0], [1], [0, 0, 1, 1], [], []>} : vector<2x64xbf16>, vector<64x64xbf16>, vector<2x64xf32> -> vector<2x64xf32>
    %500 = arith.truncf %499 : vector<2x64xf32> to vector<2x64xbf16>
    %c0_188 = arith.constant 0 : index
    %c0_189 = arith.constant 0 : index
    %501 = vector.load %arg36[%c0_188, %c0_189] : memref<64x768xbf16, #tpu.memory_space<vmem>>, vector<64x768xbf16>
    %cst_190 = arith.constant dense<0.000000e+00> : vector<2x768xf32>
    %502 = tpu.matmul %500, %501, %cst_190 {dimension_numbers = #tpu.dot_dimension_numbers<[1], [0], [0], [1], [0, 0, 1, 1], [], []>} : vector<2x64xbf16>, vector<64x768xbf16>, vector<2x768xf32> -> vector<2x768xf32>
    %c0_191 = arith.constant 0 : index
    %c0_192 = arith.constant 0 : index
    %503 = vector.load %arg37[%c0_191, %c0_192] : memref<1x768xf32, #tpu.memory_space<vmem>>, vector<1x768xf32>
    %504 = vector.broadcast %503 : vector<1x768xf32> to vector<2x768xf32>
    %505 = arith.addf %502, %504 : vector<2x768xf32>
    %c0_193 = arith.constant 0 : index
    %c0_194 = arith.constant 0 : index
    %506 = vector.load %arg38[%c0_193, %c0_194] : memref<2x768xf32, #tpu.memory_space<vmem>>, vector<2x768xf32>
    tpu.vector_store %arg38[%c0_193, %c0_194], %505 {strides = array<i32>} : memref<2x768xf32, #tpu.memory_space<vmem>>, vector<2x768xf32>,
    return
  }
}

</mosaic_0001>

<llo_original>
// kernel: audio_feature_extractor.1
$region0: #{audio_feature_extractor.1}
  #allocation0 [shape = 'u32[]', space=smem, size = 0x4, offset = 0x4, fixed_abs, tag = 'smem constant byte address 0x4 - core index']
  #allocation1 [shape = 'u32[144,128]{1,0:T(1,128)}', space=vmem, size = 0x12000, scoped, tag = 'internal scratch']
  %s0 = inlined_call_operand.smem [shape: u32[39], index: -1, kind: input, shape index: {}]
  %s1 = sld [smem:[%s0]]
  %s2 = scalar_lea.smem %s0, 1
  %s3 = sld [smem:[%s2]]
  %s4 = scalar_lea.smem %s0, 2
  %s5 = sld [smem:[%s4]]
  %s6 = scalar_lea.smem %s0, 3
  %s7 = sld [smem:[%s6]]
  %s8 = scalar_lea.smem %s0, 4
  %s9 = sld [smem:[%s8]]
  %s10 = scalar_lea.smem %s0, 5
  %s11 = sld [smem:[%s10]]
  %s12 = scalar_lea.smem %s0, 6
  %s13 = sld [smem:[%s12]]
  %s14 = scalar_lea.smem %s0, 7
  %s15 = sld [smem:[%s14]]
  %s16 = scalar_lea.smem %s0, 8
  %s17 = sld [smem:[%s16]]
  %s18 = scalar_lea.smem %s0, 9
  %s19 = sld [smem:[%s18]]
  %s20 = scalar_lea.smem %s0, 10
  %s21 = sld [smem:[%s20]]
  %s22 = scalar_lea.smem %s0, 11
  %s23 = sld [smem:[%s22]]
  %s24 = scalar_lea.smem %s0, 12
  %s25 = sld [smem:[%s24]]
  %s26 = scalar_lea.smem %s0, 13
  %s27 = sld [smem:[%s26]]
  %s28 = scalar_lea.smem %s0, 14
  %s29 = sld [smem:[%s28]]
  %s30 = scalar_lea.smem %s0, 15
  %s31 = sld [smem:[%s30]]
  %s32 = scalar_lea.smem %s0, 16
  %s33 = sld [smem:[%s32]]
  %s34 = scalar_lea.smem %s0, 17
  %s35 = sld [smem:[%s34]]
  %s36 = scalar_lea.smem %s0, 18
  %s37 = sld [smem:[%s36]]
  %s38 = scalar_lea.smem %s0, 19
  %s39 = sld [smem:[%s38]]
  %s40 = scalar_lea.smem %s0, 20
  %s41 = sld [smem:[%s40]]
  %s42 = scalar_lea.smem %s0, 21
  %s43 = sld [smem:[%s42]]
  %s44 = scalar_lea.smem %s0, 22
  %s45 = sld [smem:[%s44]]
  %s46 = scalar_lea.smem %s0, 23
  %s47 = sld [smem:[%s46]]
  %s48 = scalar_lea.smem %s0, 24
  %s49 = sld [smem:[%s48]]
  %s50 = scalar_lea.smem %s0, 25
  %s51 = sld [smem:[%s50]]
  %s52 = scalar_lea.smem %s0, 26
  %s53 = sld [smem:[%s52]]
  %s54 = scalar_lea.smem %s0, 27
  %s55 = sld [smem:[%s54]]
  %s56 = scalar_lea.smem %s0, 28
  %s57 = sld [smem:[%s56]]
  %s58 = scalar_lea.smem %s0, 29
  %s59 = sld [smem:[%s58]]
  %s60 = scalar_lea.smem %s0, 30
  %s61 = sld [smem:[%s60]]
  %s62 = scalar_lea.smem %s0, 31
  %s63 = sld [smem:[%s62]]
  %s64 = scalar_lea.smem %s0, 32
  %s65 = sld [smem:[%s64]]
  %s66 = scalar_lea.smem %s0, 33
  %s67 = sld [smem:[%s66]]
  %s68 = scalar_lea.smem %s0, 34
  %s69 = sld [smem:[%s68]]
  %s70 = scalar_lea.smem %s0, 35
  %s71 = sld [smem:[%s70]]
  %s72 = scalar_lea.smem %s0, 36
  %s73 = sld [smem:[%s72]]
  %s74 = scalar_lea.smem %s0, 37
  %s75 = sld [smem:[%s74]]
  %s76 = scalar_lea.smem %s0, 38
  %s77 = sld [smem:[%s76]]
  %s78 = sld [smem:[#allocation0]]
  $region162: #{audio_feature_extractor.1} parent=0
    _
  %s80 = ssub.s32 1, %s78
  %s81 = scalar_select 0, %s80, %s78
  $region1: #{audio_feature_extractor.1} parent=0
    #allocation2 [shape = 'u8[6144]{0}', space=vmem, size = 0x1800, scoped, tag = 'output window, operand 0, single buffered']
    #allocation3 [shape = 's32[1]{0}', space=sflag, size = 0x4, scoped, tag = 'scoped memory for audio_feature_extractor.1']
    %82 = vsyncpa [#allocation3], 0
    // Predicated region
    $region2: #{audio_feature_extractor.1} parent=1 // pred_check
      _
    $region3: #{audio_feature_extractor.1} parent=1 // pred_check_branch
      %84 = sbr.rel (0) target = $region5
    $region4: #{audio_feature_extractor.1} parent=1 // pred_region
      _
    $region5: #{audio_feature_extractor.1} parent=1 // pred_fallthru
      _
    // Predicated region
    $region6: #{audio_feature_extractor.1} parent=1 // pred_check
      _
    $region7: #{audio_feature_extractor.1} parent=1 // pred_check_branch
      %86 = sbr.rel (0) target = $region9
    $region8: #{audio_feature_extractor.1} parent=1 // pred_region
      _
    $region9: #{audio_feature_extractor.1} parent=1 // pred_fallthru
      _
    // Predicated region
    $region10: #{audio_feature_extractor.1} parent=1 // pred_check
      _
    $region11: #{audio_feature_extractor.1} parent=1 // pred_check_branch
      %88 = sbr.rel (0) target = $region13
    $region12: #{audio_feature_extractor.1} parent=1 // pred_region
      _
    $region13: #{audio_feature_extractor.1} parent=1 // pred_fallthru
      _
    // Predicated region
    $region14: #{audio_feature_extractor.1} parent=1 // pred_check
      _
    $region15: #{audio_feature_extractor.1} parent=1 // pred_check_branch
      %90 = sbr.rel (0) target = $region17
    $region16: #{audio_feature_extractor.1} parent=1 // pred_region
      _
    $region17: #{audio_feature_extractor.1} parent=1 // pred_fallthru
      _
    // Predicated region
    $region18: #{audio_feature_extractor.1} parent=1 // pred_check
      _
    $region19: #{audio_feature_extractor.1} parent=1 // pred_check_branch
      %92 = sbr.rel (0) target = $region21
    $region20: #{audio_feature_extractor.1} parent=1 // pred_region
      _
    $region21: #{audio_feature_extractor.1} parent=1 // pred_fallthru
      _
    // Predicated region
    $region22: #{audio_feature_extractor.1} parent=1 // pred_check
      _
    $region23: #{audio_feature_extractor.1} parent=1 // pred_check_branch
      %94 = sbr.rel (0) target = $region25
    $region24: #{audio_feature_extractor.1} parent=1 // pred_region
      _
    $region25: #{audio_feature_extractor.1} parent=1 // pred_fallthru
      _
    // Predicated region
    $region26: #{audio_feature_extractor.1} parent=1 // pred_check
      _
    $region27: #{audio_feature_extractor.1} parent=1 // pred_check_branch
      %96 = sbr.rel (0) target = $region29
    $region28: #{audio_feature_extractor.1} parent=1 // pred_region
      _
    $region29: #{audio_feature_extractor.1} parent=1 // pred_fallthru
      _
    // Predicated region
    $region30: #{audio_feature_extractor.1} parent=1 // pred_check
      _
    $region31: #{audio_feature_extractor.1} parent=1 // pred_check_branch
      %98 = sbr.rel (0) target = $region33
    $region32: #{audio_feature_extractor.1} parent=1 // pred_region
      _
    $region33: #{audio_feature_extractor.1} parent=1 // pred_fallthru
      _
    // Predicated region
    $region34: #{audio_feature_extractor.1} parent=1 // pred_check
      _
    $region35: #{audio_feature_extractor.1} parent=1 // pred_check_branch
      %100 = sbr.rel (0) target = $region37
    $region36: #{audio_feature_extractor.1} parent=1 // pred_region
      _
    $region37: #{audio_feature_extractor.1} parent=1 // pred_fallthru
      _
    // Predicated region
    $region38: #{audio_feature_extractor.1} parent=1 // pred_check
      _
    $region39: #{audio_feature_extractor.1} parent=1 // pred_check_branch
      %102 = sbr.rel (0) target = $region41
    $region40: #{audio_feature_extractor.1} parent=1 // pred_region
      _
    $region41: #{audio_feature_extractor.1} parent=1 // pred_fallthru
      _
    // Predicated region
    $region42: #{audio_feature_extractor.1} parent=1 // pred_check
      _
    $region43: #{audio_feature_extractor.1} parent=1 // pred_check_branch
      %104 = sbr.rel (0) target = $region45
    $region44: #{audio_feature_extractor.1} parent=1 // pred_region
      _
    $region45: #{audio_feature_extractor.1} parent=1 // pred_fallthru
      _
    // Predicated region
    $region46: #{audio_feature_extractor.1} parent=1 // pred_check
      _
    $region47: #{audio_feature_extractor.1} parent=1 // pred_check_branch
      %106 = sbr.rel (0) target = $region49
    $region48: #{audio_feature_extractor.1} parent=1 // pred_region
      _
    $region49: #{audio_feature_extractor.1} parent=1 // pred_fallthru
      _
    // Predicated region
    $region50: #{audio_feature_extractor.1} parent=1 // pred_check
      _
    $region51: #{audio_feature_extractor.1} parent=1 // pred_check_branch
      %108 = sbr.rel (0) target = $region53
    $region52: #{audio_feature_extractor.1} parent=1 // pred_region
      _
    $region53: #{audio_feature_extractor.1} parent=1 // pred_fallthru
      _
    // Predicated region
    $region54: #{audio_feature_extractor.1} parent=1 // pred_check
      _
    $region55: #{audio_feature_extractor.1} parent=1 // pred_check_branch
      %110 = sbr.rel (0) target = $region57
    $region56: #{audio_feature_extractor.1} parent=1 // pred_region
      _
    $region57: #{audio_feature_extractor.1} parent=1 // pred_fallthru
      _
    // Predicated region
    $region58: #{audio_feature_extractor.1} parent=1 // pred_check
      _
    $region59: #{audio_feature_extractor.1} parent=1 // pred_check_branch
      %112 = sbr.rel (0) target = $region61
    $region60: #{audio_feature_extractor.1} parent=1 // pred_region
      _
    $region61: #{audio_feature_extractor.1} parent=1 // pred_fallthru
      _
    // Predicated region
    $region62: #{audio_feature_extractor.1} parent=1 // pred_check
      _
    $region63: #{audio_feature_extractor.1} parent=1 // pred_check_branch
      %114 = sbr.rel (0) target = $region65
    $region64: #{audio_feature_extractor.1} parent=1 // pred_region
      _
    $region65: #{audio_feature_extractor.1} parent=1 // pred_fallthru
      _
    // Predicated region
    $region66: #{audio_feature_extractor.1} parent=1 // pred_check
      _
    $region67: #{audio_feature_extractor.1} parent=1 // pred_check_branch
      %116 = sbr.rel (0) target = $region69
    $region68: #{audio_feature_extractor.1} parent=1 // pred_region
      _
    $region69: #{audio_feature_extractor.1} parent=1 // pred_fallthru
      _
    // Predicated region
    $region70: #{audio_feature_extractor.1} parent=1 // pred_check
      _
    $region71: #{audio_feature_extractor.1} parent=1 // pred_check_branch
      %118 = sbr.rel (0) target = $region73
    $region72: #{audio_feature_extractor.1} parent=1 // pred_region
      _
    $region73: #{audio_feature_extractor.1} parent=1 // pred_fallthru
      _
    // Predicated region
    $region74: #{audio_feature_extractor.1} parent=1 // pred_check
      _
    $region75: #{audio_feature_extractor.1} parent=1 // pred_check_branch
      %120 = sbr.rel (0) target = $region77
    $region76: #{audio_feature_extractor.1} parent=1 // pred_region
      _
    $region77: #{audio_feature_extractor.1} parent=1 // pred_fallthru
      _
    // Predicated region
    $region78: #{audio_feature_extractor.1} parent=1 // pred_check
      _
    $region79: #{audio_feature_extractor.1} parent=1 // pred_check_branch
      %122 = sbr.rel (0) target = $region81
    $region80: #{audio_feature_extractor.1} parent=1 // pred_region
      _
    $region81: #{audio_feature_extractor.1} parent=1 // pred_fallthru
      _
    // Predicated region
    $region82: #{audio_feature_extractor.1} parent=1 // pred_check
      _
    $region83: #{audio_feature_extractor.1} parent=1 // pred_check_branch
      %124 = sbr.rel (0) target = $region85
    $region84: #{audio_feature_extractor.1} parent=1 // pred_region
      _
    $region85: #{audio_feature_extractor.1} parent=1 // pred_fallthru
      _
    // Predicated region
    $region86: #{audio_feature_extractor.1} parent=1 // pred_check
      _
    $region87: #{audio_feature_extractor.1} parent=1 // pred_check_branch
      %126 = sbr.rel (0) target = $region89
    $region88: #{audio_feature_extractor.1} parent=1 // pred_region
      _
    $region89: #{audio_feature_extractor.1} parent=1 // pred_fallthru
      _
    // Predicated region
    $region90: #{audio_feature_extractor.1} parent=1 // pred_check
      _
    $region91: #{audio_feature_extractor.1} parent=1 // pred_check_branch
      %128 = sbr.rel (0) target = $region93
    $region92: #{audio_feature_extractor.1} parent=1 // pred_region
      _
    $region93: #{audio_feature_extractor.1} parent=1 // pred_fallthru
      _
    // Predicated region
    $region94: #{audio_feature_extractor.1} parent=1 // pred_check
      _
    $region95: #{audio_feature_extractor.1} parent=1 // pred_check_branch
      %130 = sbr.rel (0) target = $region97
    $region96: #{audio_feature_extractor.1} parent=1 // pred_region
      _
    $region97: #{audio_feature_extractor.1} parent=1 // pred_fallthru
      _
    // Predicated region
    $region98: #{audio_feature_extractor.1} parent=1 // pred_check
      _
    $region99: #{audio_feature_extractor.1} parent=1 // pred_check_branch
      %132 = sbr.rel (0) target = $region101
    $region100: #{audio_feature_extractor.1} parent=1 // pred_region
      _
    $region101: #{audio_feature_extractor.1} parent=1 // pred_fallthru
      _
    // Predicated region
    $region102: #{audio_feature_extractor.1} parent=1 // pred_check
      _
    $region103: #{audio_feature_extractor.1} parent=1 // pred_check_branch
      %134 = sbr.rel (0) target = $region105
    $region104: #{audio_feature_extractor.1} parent=1 // pred_region
      _
    $region105: #{audio_feature_extractor.1} parent=1 // pred_fallthru
      _
    // Predicated region
    $region106: #{audio_feature_extractor.1} parent=1 // pred_check
      _
    $region107: #{audio_feature_extractor.1} parent=1 // pred_check_branch
      %136 = sbr.rel (0) target = $region109
    $region108: #{audio_feature_extractor.1} parent=1 // pred_region
      _
    $region109: #{audio_feature_extractor.1} parent=1 // pred_fallthru
      _
    // Predicated region
    $region110: #{audio_feature_extractor.1} parent=1 // pred_check
      _
    $region111: #{audio_feature_extractor.1} parent=1 // pred_check_branch
      %138 = sbr.rel (0) target = $region113
    $region112: #{audio_feature_extractor.1} parent=1 // pred_region
      _
    $region113: #{audio_feature_extractor.1} parent=1 // pred_fallthru
      _
    // Predicated region
    $region114: #{audio_feature_extractor.1} parent=1 // pred_check
      _
    $region115: #{audio_feature_extractor.1} parent=1 // pred_check_branch
      %140 = sbr.rel (0) target = $region117
    $region116: #{audio_feature_extractor.1} parent=1 // pred_region
      _
    $region117: #{audio_feature_extractor.1} parent=1 // pred_fallthru
      _
    // Predicated region
    $region118: #{audio_feature_extractor.1} parent=1 // pred_check
      _
    $region119: #{audio_feature_extractor.1} parent=1 // pred_check_branch
      %142 = sbr.rel (0) target = $region121
    $region120: #{audio_feature_extractor.1} parent=1 // pred_region
      _
    $region121: #{audio_feature_extractor.1} parent=1 // pred_fallthru
      _
    // Predicated region
    $region122: #{audio_feature_extractor.1} parent=1 // pred_check
      _
    $region123: #{audio_feature_extractor.1} parent=1 // pred_check_branch
      %144 = sbr.rel (0) target = $region125
    $region124: #{audio_feature_extractor.1} parent=1 // pred_region
      _
    $region125: #{audio_feature_extractor.1} parent=1 // pred_fallthru
      _
    // Predicated region
    $region126: #{audio_feature_extractor.1} parent=1 // pred_check
      _
    $region127: #{audio_feature_extractor.1} parent=1 // pred_check_branch
      %146 = sbr.rel (0) target = $region129
    $region128: #{audio_feature_extractor.1} parent=1 // pred_region
      _
    $region129: #{audio_feature_extractor.1} parent=1 // pred_fallthru
      _
    // Predicated region
    $region130: #{audio_feature_extractor.1} parent=1 // pred_check
      _
    $region131: #{audio_feature_extractor.1} parent=1 // pred_check_branch
      %148 = sbr.rel (0) target = $region133
    $region132: #{audio_feature_extractor.1} parent=1 // pred_region
      _
    $region133: #{audio_feature_extractor.1} parent=1 // pred_fallthru
      _
    // Predicated region
    $region134: #{audio_feature_extractor.1} parent=1 // pred_check
      _
    $region135: #{audio_feature_extractor.1} parent=1 // pred_check_branch
      %150 = sbr.rel (0) target = $region137
    $region136: #{audio_feature_extractor.1} parent=1 // pred_region
      _
    $region137: #{audio_feature_extractor.1} parent=1 // pred_fallthru
      _
    // Predicated region
    $region138: #{audio_feature_extractor.1} parent=1 // pred_check
      _
    $region139: #{audio_feature_extractor.1} parent=1 // pred_check_branch
      %152 = sbr.rel (0) target = $region141
    $region140: #{audio_feature_extractor.1} parent=1 // pred_region
      _
    $region141: #{audio_feature_extractor.1} parent=1 // pred_fallthru
      _
    // Predicated region
    $region142: #{audio_feature_extractor.1} parent=1 // pred_check
      _
    $region143: #{audio_feature_extractor.1} parent=1 // pred_check_branch
      %154 = sbr.rel (0) target = $region145
    $region144: #{audio_feature_extractor.1} parent=1 // pred_region
      _
    $region145: #{audio_feature_extractor.1} parent=1 // pred_fallthru
      _
    // Predicated region
    $region146: #{audio_feature_extractor.1} parent=1 // pred_check
      _
    $region147: #{audio_feature_extractor.1} parent=1 // pred_check_branch
      %156 = sbr.rel (0) target = $region149
    $region148: #{audio_feature_extractor.1} parent=1 // pred_region
      _
    $region149: #{audio_feature_extractor.1} parent=1 // pred_fallthru
      _
    // Predicated region
    $region150: #{audio_feature_extractor.1} parent=1 // pred_check
      _
    $region151: #{audio_feature_extractor.1} parent=1 // pred_check_branch
      %158 = sbr.rel (0) target = $region153
    $region152: #{audio_feature_extractor.1} parent=1 // pred_region
      _
    $region153: #{audio_feature_extractor.1} parent=1 // pred_fallthru
      _
    %v160 = vld [vmem:[%s1] sm:$0xff]
    %v161 = vld [vmem:[%s1 + $0x8] sm:$0xff]
    %v162 = vld [vmem:[%s1 + $0x10] sm:$0xff]
    %v163 = vld [vmem:[%s1 + $0x18] sm:$0xff]
    %v164 = vld [vmem:[%s1 + $0x20] sm:$0xff]
    %v165 = vld [vmem:[%s1 + $0x28] sm:$0xff]
    %v166 = vld [vmem:[%s1 + $0x30] sm:$0xff]
    %v167 = vld [vmem:[%s1 + $0x38] sm:$0xff]
    %v168 = vld [vmem:[%s7] sm:$0xf]
    %v169 = vld [vmem:[%s7 + $0x4] sm:$0xf]
    %v170 = vld [vmem:[%s7 + $0x8] sm:$0xf]
    %v171 = vld [vmem:[%s7 + $0xc] sm:$0xf]
    %v172 = vld [vmem:[%s7 + $0x10] sm:$0xf]
    %v173 = vld [vmem:[%s7 + $0x14] sm:$0xf]
    %v174 = vld [vmem:[%s7 + $0x18] sm:$0xf]
    %v175 = vld [vmem:[%s7 + $0x1c] sm:$0xf]
    %v176 = vld [vmem:[%s7 + $0x20] sm:$0xf]
    %v177 = vld [vmem:[%s7 + $0x24] sm:$0xf]
    %v178 = vld [vmem:[%s7 + $0x28] sm:$0xf]
    %v179 = vld [vmem:[%s7 + $0x2c] sm:$0xf]
    %v180 = vpack.c.bf16 %v161, %v160
    %v181 = vpack.c.bf16 %v163, %v162
    %v182 = vpack.c.bf16 %v165, %v164
    %v183 = vpack.c.bf16 %v167, %v166
    %v184 = vld [vmem:[%s3] sm:$0xf]
    %v185 = vld [vmem:[%s3 + $0x4] sm:$0x1]
    %v186 = vld [vmem:[%s5] sm:$0x1]
    %v188 = vlaneseq
    %v189 = vshrl.u32 %v188, 7
    %v190 = vsub.s32 0, %v189
    %v191 = vrot.slane %v186, %v190
    %v195 = vunpack.c.l.b16 %v184
    %v196 = vunpack.c.l.b16 %v185
    %v197 = vpack.c.b16 %v196, %v195
    %vm198 = vcmask 80896
    %v200 = vsel %vm198, %v180, 0
    %v203 = vsel %vm198, %v181, 0
    %v206 = vsel %vm198, %v182, 0
    %v209 = vsel %vm198, %v183, 0
    %vm211 = vcmask 1044480
    %v213 = vsel %vm211, %v197, 0
    %215 = vmatprep.subr.bf16.mxu0 0
    %216 = vmatpush1.bf16.msra.mxu0 0
    %217 = vmatprep.subr.bf16.mxu0 0
    %218 = vmatpush1.bf16.msra.mxu0 0
    %219 = vmatprep.subr.bf16.mxu0 0
    %220 = vmatpush1.bf16.msra.mxu0 0
    %221 = vmatprep.subr.bf16.mxu0 0
    %222 = vmatpush1.bf16.msra.mxu0 0
    %223 = vmatprep.subr.bf16.mxu0 0
    %224 = vmatpush1.bf16.msra.mxu0 0
    %225 = vmatprep.subr.bf16.mxu0 0
    %226 = vmatpush1.bf16.msra.mxu0 0
    %227 = vmatprep.subr.bf16.mxu0 0
    %228 = vmatpush1.bf16.msra.mxu0 0
    %229 = vmatprep.subr.bf16.mxu0 0
    %230 = vmatpush1.bf16.msra.mxu0 %v213
    %231 = vmatprep.subr.bf16.mxu0 0
    %232 = vmatpush2.bf16.msra.mxu0 0
    %233 = vmatprep.subr.bf16.mxu0 0
    %234 = vmatpush2.bf16.msra.mxu0 0
    %235 = vmatprep.subr.bf16.mxu0 0
    %236 = vmatpush2.bf16.msra.mxu0 0
    %237 = vmatprep.subr.bf16.mxu0 0
    %238 = vmatpush2.bf16.msra.mxu0 0
    %239 = vmatprep.subr.bf16.mxu0 0
    %240 = vmatpush2.bf16.msra.mxu0 0
    %241 = vmatprep.subr.bf16.mxu0 0
    %242 = vmatpush2.bf16.msra.mxu0 0
    %243 = vmatprep.subr.bf16.mxu0 0
    %244 = vmatpush2.bf16.msra.mxu0 0
    %245 = vmatprep.subr.bf16.mxu0 0
    %246 = vmatpush2.bf16.msra.mxu0 0
    %247 = vmatprep.mubr.bf16.mxu0 0
    %248 = vmatmul.mubr.bf16.gmra.mxu0 %v200
    %v249 = vpop.f32.mrf.mxu0
    %v250 = vadd.f32 %v191, %v249
    %v251 = vpop.f32.mrf.mxu0
    %v252 = vpop.f32.mrf.mxu0
    %v253 = vadd.f32 %v191, %v252
    %v254 = vpop.f32.mrf.mxu0
    %255 = vmatprep.mubr.bf16.mxu0 0
    %256 = vmatmul.mubr.bf16.gmra.mxu0 %v203
    %v257 = vpop.f32.mrf.mxu0
    %v258 = vadd.f32 %v191, %v257
    %v259 = vpop.f32.mrf.mxu0
    %v260 = vpop.f32.mrf.mxu0
    %v261 = vadd.f32 %v191, %v260
    %v262 = vpop.f32.mrf.mxu0
    %263 = vmatprep.mubr.bf16.mxu0 0
    %264 = vmatmul.mubr.bf16.gmra.mxu0 %v206
    %v265 = vpop.f32.mrf.mxu0
    %v266 = vadd.f32 %v191, %v265
    %v267 = vpop.f32.mrf.mxu0
    %v268 = vpop.f32.mrf.mxu0
    %v269 = vadd.f32 %v191, %v268
    %v270 = vpop.f32.mrf.mxu0
    %271 = vmatprep.mubr.bf16.mxu0 0
    %272 = vmatmul.mubr.bf16.gmra.mxu0 %v209
    %v273 = vpop.f32.mrf.mxu0
    %v274 = vadd.f32 %v191, %v273
    %v275 = vpop.f32.mrf.mxu0
    %v276 = vpop.f32.mrf.mxu0
    %v277 = vadd.f32 %v191, %v276
    %v278 = vpop.f32.mrf.mxu0
    %279 = vdwg.mxu0
    %v280 = vmul.f32 %v250, %v250
    %v281 = vmul.f32 %v253, %v253
    %v282 = vmul.f32 %v258, %v258
    %v283 = vmul.f32 %v261, %v261
    %v284 = vmul.f32 %v266, %v266
    %v285 = vmul.f32 %v269, %v269
    %v286 = vmul.f32 %v274, %v274
    %v287 = vmul.f32 %v277, %v277
    %v288 = vmul.f32 %v250, %v280
    %v289 = vmul.f32 %v253, %v281
    %v290 = vmul.f32 %v258, %v282
    %v291 = vmul.f32 %v261, %v283
    %v292 = vmul.f32 %v266, %v284
    %v293 = vmul.f32 %v269, %v285
    %v294 = vmul.f32 %v274, %v286
    %v295 = vmul.f32 %v277, %v287
    %v296 = vmul.f32 %v288, 0.044715
    %v297 = vmul.f32 %v289, 0.044715
    %v298 = vmul.f32 %v290, 0.044715
    %v299 = vmul.f32 %v291, 0.044715
    %v300 = vmul.f32 %v292, 0.044715
    %v301 = vmul.f32 %v293, 0.044715
    %v302 = vmul.f32 %v294, 0.044715
    %v303 = vmul.f32 %v295, 0.044715
    %v304 = vadd.f32 %v250, %v296
    %v305 = vadd.f32 %v253, %v297
    %v306 = vadd.f32 %v258, %v298
    %v307 = vadd.f32 %v261, %v299
    %v308 = vadd.f32 %v266, %v300
    %v309 = vadd.f32 %v269, %v301
    %v310 = vadd.f32 %v274, %v302
    %v311 = vadd.f32 %v277, %v303
    %v312 = vmul.f32 %v304, 0.7978846
    %v313 = vmul.f32 %v305, 0.7978846
    %v314 = vmul.f32 %v306, 0.7978846
    %v315 = vmul.f32 %v307, 0.7978846
    %v316 = vmul.f32 %v308, 0.7978846
    %v317 = vmul.f32 %v309, 0.7978846
    %v318 = vmul.f32 %v310, 0.7978846
    %v319 = vmul.f32 %v311, 0.7978846
    %v320 = vtanh.pop %v312
    %v321 = vtanh.pop %v313
    %v322 = vtanh.pop %v314
    %v323 = vtanh.pop %v315
    %v324 = vtanh.pop %v316
    %v325 = vtanh.pop %v317
    %v326 = vtanh.pop %v318
    %v327 = vtanh.pop %v319
    %v328 = vadd.f32 %v320, 1.0
    %v329 = vadd.f32 %v321, 1.0
    %v330 = vadd.f32 %v322, 1.0
    %v331 = vadd.f32 %v323, 1.0
    %v332 = vadd.f32 %v324, 1.0
    %v333 = vadd.f32 %v325, 1.0
    %v334 = vadd.f32 %v326, 1.0
    %v335 = vadd.f32 %v327, 1.0
    %v336 = vmul.f32 %v328, 0.5
    %v337 = vmul.f32 %v329, 0.5
    %v338 = vmul.f32 %v330, 0.5
    %v339 = vmul.f32 %v331, 0.5
    %v340 = vmul.f32 %v332, 0.5
    %v341 = vmul.f32 %v333, 0.5
    %v342 = vmul.f32 %v334, 0.5
    %v343 = vmul.f32 %v335, 0.5
    %v344 = vmul.f32 %v250, %v336
    %v345 = vmul.f32 %v253, %v337
    %v346 = vmul.f32 %v258, %v338
    %v347 = vmul.f32 %v261, %v339
    %v348 = vmul.f32 %v266, %v340
    %v349 = vmul.f32 %v269, %v341
    %v350 = vmul.f32 %v274, %v342
    %v351 = vmul.f32 %v277, %v343
    %v352 = vpack.c.bf16 %v345, %v344
    %v353 = vpack.c.bf16 %v347, %v346
    %v354 = vpack.c.bf16 %v349, %v348
    %v355 = vpack.c.bf16 %v351, %v350
    %360 = vrot.lane.b32.xlu0 %v180, 123
    %v361 = vpop.permute.xlu0 %360
    %362 = vrot.lane.b32.xlu0 %v181, 123
    %v363 = vpop.permute.xlu0 %362
    %364 = vrot.lane.b32.xlu0 %v182, 123
    %v365 = vpop.permute.xlu0 %364
    %366 = vrot.lane.b32.xlu0 %v183, 123
    %v367 = vpop.permute.xlu0 %366
    %v369 = vsel %vm198, %v361, 0
    %v372 = vsel %vm198, %v363, 0
    %v375 = vsel %vm198, %v365, 0
    %v378 = vsel %vm198, %v367, 0
    %380 = vmatprep.subr.bf16.mxu0 0
    %381 = vmatpush1.bf16.msra.mxu0 0
    %382 = vmatprep.subr.bf16.mxu0 0
    %383 = vmatpush1.bf16.msra.mxu0 0
    %384 = vmatprep.subr.bf16.mxu0 0
    %385 = vmatpush1.bf16.msra.mxu0 0
    %386 = vmatprep.subr.bf16.mxu0 0
    %387 = vmatpush1.bf16.msra.mxu0 0
    %388 = vmatprep.subr.bf16.mxu0 0
    %389 = vmatpush1.bf16.msra.mxu0 0
    %390 = vmatprep.subr.bf16.mxu0 0
    %391 = vmatpush1.bf16.msra.mxu0 0
    %392 = vmatprep.subr.bf16.mxu0 0
    %393 = vmatpush1.bf16.msra.mxu0 0
    %394 = vmatprep.subr.bf16.mxu0 0
    %395 = vmatpush1.bf16.msra.mxu0 %v213
    %396 = vmatprep.subr.bf16.mxu0 0
    %397 = vmatpush2.bf16.msra.mxu0 0
    %398 = vmatprep.subr.bf16.mxu0 0
    %399 = vmatpush2.bf16.msra.mxu0 0
    %400 = vmatprep.subr.bf16.mxu0 0
    %401 = vmatpush2.bf16.msra.mxu0 0
    %402 = vmatprep.subr.bf16.mxu0 0
    %403 = vmatpush2.bf16.msra.mxu0 0
    %404 = vmatprep.subr.bf16.mxu0 0
    %405 = vmatpush2.bf16.msra.mxu0 0
    %406 = vmatprep.subr.bf16.mxu0 0
    %407 = vmatpush2.bf16.msra.mxu0 0
    %408 = vmatprep.subr.bf16.mxu0 0
    %409 = vmatpush2.bf16.msra.mxu0 0
    %410 = vmatprep.subr.bf16.mxu0 0
    %411 = vmatpush2.bf16.msra.mxu0 0
    %412 = vmatprep.mubr.bf16.mxu0 0
    %413 = vmatmul.mubr.bf16.gmra.mxu0 %v369
    %v414 = vpop.f32.mrf.mxu0
    %v415 = vadd.f32 %v191, %v414
    %v416 = vpop.f32.mrf.mxu0
    %v417 = vpop.f32.mrf.mxu0
    %v418 = vadd.f32 %v191, %v417
    %v419 = vpop.f32.mrf.mxu0
    %420 = vmatprep.mubr.bf16.mxu0 0
    %421 = vmatmul.mubr.bf16.gmra.mxu0 %v372
    %v422 = vpop.f32.mrf.mxu0
    %v423 = vadd.f32 %v191, %v422
    %v424 = vpop.f32.mrf.mxu0
    %v425 = vpop.f32.mrf.mxu0
    %v426 = vadd.f32 %v191, %v425
    %v427 = vpop.f32.mrf.mxu0
    %428 = vmatprep.mubr.bf16.mxu0 0
    %429 = vmatmul.mubr.bf16.gmra.mxu0 %v375
    %v430 = vpop.f32.mrf.mxu0
    %v431 = vadd.f32 %v191, %v430
    %v432 = vpop.f32.mrf.mxu0
    %v433 = vpop.f32.mrf.mxu0
    %v434 = vadd.f32 %v191, %v433
    %v435 = vpop.f32.mrf.mxu0
    %436 = vmatprep.mubr.bf16.mxu0 0
    %437 = vmatmul.mubr.bf16.gmra.mxu0 %v378
    %v438 = vpop.f32.mrf.mxu0
    %v439 = vadd.f32 %v191, %v438
    %v440 = vpop.f32.mrf.mxu0
    %v441 = vpop.f32.mrf.mxu0
    %v442 = vadd.f32 %v191, %v441
    %v443 = vpop.f32.mrf.mxu0
    %444 = vdwg.mxu0
    %v445 = vmul.f32 %v415, %v415
    %v446 = vmul.f32 %v418, %v418
    %v447 = vmul.f32 %v423, %v423
    %v448 = vmul.f32 %v426, %v426
    %v449 = vmul.f32 %v431, %v431
    %v450 = vmul.f32 %v434, %v434
    %v451 = vmul.f32 %v439, %v439
    %v452 = vmul.f32 %v442, %v442
    %v453 = vmul.f32 %v415, %v445
    %v454 = vmul.f32 %v418, %v446
    %v455 = vmul.f32 %v423, %v447
    %v456 = vmul.f32 %v426, %v448
    %v457 = vmul.f32 %v431, %v449
    %v458 = vmul.f32 %v434, %v450
    %v459 = vmul.f32 %v439, %v451
    %v460 = vmul.f32 %v442, %v452
    %v461 = vmul.f32 %v453, 0.044715
    %v462 = vmul.f32 %v454, 0.044715
    %v463 = vmul.f32 %v455, 0.044715
    %v464 = vmul.f32 %v456, 0.044715
    %v465 = vmul.f32 %v457, 0.044715
    %v466 = vmul.f32 %v458, 0.044715
    %v467 = vmul.f32 %v459, 0.044715
    %v468 = vmul.f32 %v460, 0.044715
    %v469 = vadd.f32 %v415, %v461
    %v470 = vadd.f32 %v418, %v462
    %v471 = vadd.f32 %v423, %v463
    %v472 = vadd.f32 %v426, %v464
    %v473 = vadd.f32 %v431, %v465
    %v474 = vadd.f32 %v434, %v466
    %v475 = vadd.f32 %v439, %v467
    %v476 = vadd.f32 %v442, %v468
    %v477 = vmul.f32 %v469, 0.7978846
    %v478 = vmul.f32 %v470, 0.7978846
    %v479 = vmul.f32 %v471, 0.7978846
    %v480 = vmul.f32 %v472, 0.7978846
    %v481 = vmul.f32 %v473, 0.7978846
    %v482 = vmul.f32 %v474, 0.7978846
    %v483 = vmul.f32 %v475, 0.7978846
    %v484 = vmul.f32 %v476, 0.7978846
    %v485 = vtanh.pop %v477
    %v486 = vtanh.pop %v478
    %v487 = vtanh.pop %v479
    %v488 = vtanh.pop %v480
    %v489 = vtanh.pop %v481
    %v490 = vtanh.pop %v482
    %v491 = vtanh.pop %v483
    %v492 = vtanh.pop %v484
    %v493 = vadd.f32 %v485, 1.0
    %v494 = vadd.f32 %v486, 1.0
    %v495 = vadd.f32 %v487, 1.0
    %v496 = vadd.f32 %v488, 1.0
    %v497 = vadd.f32 %v489, 1.0
    %v498 = vadd.f32 %v490, 1.0
    %v499 = vadd.f32 %v491, 1.0
    %v500 = vadd.f32 %v492, 1.0
    %v501 = vmul.f32 %v493, 0.5
    %v502 = vmul.f32 %v494, 0.5
    %v503 = vmul.f32 %v495, 0.5
    %v504 = vmul.f32 %v496, 0.5
    %v505 = vmul.f32 %v497, 0.5
    %v506 = vmul.f32 %v498, 0.5
    %v507 = vmul.f32 %v499, 0.5
    %v508 = vmul.f32 %v500, 0.5
    %v509 = vmul.f32 %v415, %v501
    %v510 = vmul.f32 %v418, %v502
    %v511 = vmul.f32 %v423, %v503
    %v512 = vmul.f32 %v426, %v504
    %v513 = vmul.f32 %v431, %v505
    %v514 = vmul.f32 %v434, %v506
    %v515 = vmul.f32 %v439, %v507
    %v516 = vmul.f32 %v442, %v508
    %v517 = vpack.c.bf16 %v510, %v509
    %v518 = vpack.c.bf16 %v512, %v511
    %v519 = vpack.c.bf16 %v514, %v513
    %v520 = vpack.c.bf16 %v516, %v515
    %v525 = vunpack.c.l.b16 %v172
    %v526 = vunpack.c.l.b16 %v173
    %v527 = vunpack.c.l.b16 %v174
    %v528 = vunpack.c.l.b16 %v175
    %v529 = vpack.c.b16 %v526, %v525
    %v530 = vpack.c.b16 %v528, %v527
    %vm533 = vcmask 261120
    %v535 = vsel %vm533, %v517, 0
    %v538 = vsel %vm533, %v518, 0
    %v541 = vsel %vm533, %v519, 0
    %v544 = vsel %vm533, %v520, 0
    %546 = vmatprep.subr.bf16.mxu0 0
    %547 = vmatpush1.bf16.msra.mxu0 0
    %548 = vmatprep.subr.bf16.mxu0 0
    %549 = vmatpush1.bf16.msra.mxu0 0
    %550 = vmatprep.subr.bf16.mxu0 0
    %551 = vmatpush1.bf16.msra.mxu0 0
    %552 = vmatprep.subr.bf16.mxu0 0
    %553 = vmatpush1.bf16.msra.mxu0 0
    %554 = vmatprep.subr.bf16.mxu0 0
    %555 = vmatpush1.bf16.msra.mxu0 0
    %556 = vmatprep.subr.bf16.mxu0 0
    %557 = vmatpush1.bf16.msra.mxu0 0
    %558 = vmatprep.subr.bf16.mxu0 0
    %559 = vmatpush1.bf16.msra.mxu0 %v530
    %560 = vmatprep.subr.bf16.mxu0 0
    %561 = vmatpush1.bf16.msra.mxu0 %v529
    %562 = vmatprep.subr.bf16.mxu0 0
    %563 = vmatpush2.bf16.msra.mxu0 0
    %564 = vmatprep.subr.bf16.mxu0 0
    %565 = vmatpush2.bf16.msra.mxu0 0
    %566 = vmatprep.subr.bf16.mxu0 0
    %567 = vmatpush2.bf16.msra.mxu0 0
    %568 = vmatprep.subr.bf16.mxu0 0
    %569 = vmatpush2.bf16.msra.mxu0 0
    %570 = vmatprep.subr.bf16.mxu0 0
    %571 = vmatpush2.bf16.msra.mxu0 0
    %572 = vmatprep.subr.bf16.mxu0 0
    %573 = vmatpush2.bf16.msra.mxu0 0
    %574 = vmatprep.subr.bf16.mxu0 0
    %575 = vmatpush2.bf16.msra.mxu0 0
    %576 = vmatprep.subr.bf16.mxu0 0
    %577 = vmatpush2.bf16.msra.mxu0 0
    %578 = vmatprep.mubr.bf16.mxu0 0
    %579 = vmatmul.mubr.bf16.gmra.mxu0 %v535
    %v580 = vpop.f32.mrf.mxu0
    %v581 = vadd.f32 0.0, %v580
    %v582 = vpop.f32.mrf.mxu0
    %v583 = vpop.f32.mrf.mxu0
    %v584 = vadd.f32 0.0, %v583
    %v585 = vpop.f32.mrf.mxu0
    %586 = vmatprep.mubr.bf16.mxu0 0
    %587 = vmatmul.mubr.bf16.gmra.mxu0 %v538
    %v588 = vpop.f32.mrf.mxu0
    %v589 = vadd.f32 0.0, %v588
    %v590 = vpop.f32.mrf.mxu0
    %v591 = vpop.f32.mrf.mxu0
    %v592 = vadd.f32 0.0, %v591
    %v593 = vpop.f32.mrf.mxu0
    %594 = vmatprep.mubr.bf16.mxu0 0
    %595 = vmatmul.mubr.bf16.gmra.mxu0 %v541
    %v596 = vpop.f32.mrf.mxu0
    %v597 = vadd.f32 0.0, %v596
    %v598 = vpop.f32.mrf.mxu0
    %v599 = vpop.f32.mrf.mxu0
    %v600 = vadd.f32 0.0, %v599
    %v601 = vpop.f32.mrf.mxu0
    %602 = vmatprep.mubr.bf16.mxu0 0
    %603 = vmatmul.mubr.bf16.gmra.mxu0 %v544
    %v604 = vpop.f32.mrf.mxu0
    %v605 = vadd.f32 0.0, %v604
    %v606 = vpop.f32.mrf.mxu0
    %v607 = vpop.f32.mrf.mxu0
    %v608 = vadd.f32 0.0, %v607
    %v609 = vpop.f32.mrf.mxu0
    %610 = vdwg.mxu0
    %v615 = vunpack.c.l.b16 %v168
    %v616 = vunpack.c.l.b16 %v169
    %v617 = vunpack.c.l.b16 %v170
    %v618 = vunpack.c.l.b16 %v171
    %v619 = vpack.c.b16 %v616, %v615
    %v620 = vpack.c.b16 %v618, %v617
    %v624 = vsel %vm533, %v352, 0
    %v627 = vsel %vm533, %v353, 0
    %v630 = vsel %vm533, %v354, 0
    %v633 = vsel %vm533, %v355, 0
    %635 = vmatprep.subr.bf16.mxu0 0
    %636 = vmatpush1.bf16.msra.mxu0 0
    %637 = vmatprep.subr.bf16.mxu0 0
    %638 = vmatpush1.bf16.msra.mxu0 0
    %639 = vmatprep.subr.bf16.mxu0 0
    %640 = vmatpush1.bf16.msra.mxu0 0
    %641 = vmatprep.subr.bf16.mxu0 0
    %642 = vmatpush1.bf16.msra.mxu0 0
    %643 = vmatprep.subr.bf16.mxu0 0
    %644 = vmatpush1.bf16.msra.mxu0 0
    %645 = vmatprep.subr.bf16.mxu0 0
    %646 = vmatpush1.bf16.msra.mxu0 0
    %647 = vmatprep.subr.bf16.mxu0 0
    %648 = vmatpush1.bf16.msra.mxu0 %v620
    %649 = vmatprep.subr.bf16.mxu0 0
    %650 = vmatpush1.bf16.msra.mxu0 %v619
    %651 = vmatprep.subr.bf16.mxu0 0
    %652 = vmatpush2.bf16.msra.mxu0 0
    %653 = vmatprep.subr.bf16.mxu0 0
    %654 = vmatpush2.bf16.msra.mxu0 0
    %655 = vmatprep.subr.bf16.mxu0 0
    %656 = vmatpush2.bf16.msra.mxu0 0
    %657 = vmatprep.subr.bf16.mxu0 0
    %658 = vmatpush2.bf16.msra.mxu0 0
    %659 = vmatprep.subr.bf16.mxu0 0
    %660 = vmatpush2.bf16.msra.mxu0 0
    %661 = vmatprep.subr.bf16.mxu0 0
    %662 = vmatpush2.bf16.msra.mxu0 0
    %663 = vmatprep.subr.bf16.mxu0 0
    %664 = vmatpush2.bf16.msra.mxu0 0
    %665 = vmatprep.subr.bf16.mxu0 0
    %666 = vmatpush2.bf16.msra.mxu0 0
    %667 = vmatprep.mubr.bf16.mxu0 0
    %668 = vmatmul.mubr.bf16.gmra.mxu0 %v624
    %v669 = vpop.f32.mrf.mxu0
    %v670 = vadd.f32 %v581, %v669
    %v671 = vpop.f32.mrf.mxu0
    %v672 = vpop.f32.mrf.mxu0
    %v673 = vadd.f32 %v584, %v672
    %v674 = vpop.f32.mrf.mxu0
    %675 = vmatprep.mubr.bf16.mxu0 0
    %676 = vmatmul.mubr.bf16.gmra.mxu0 %v627
    %v677 = vpop.f32.mrf.mxu0
    %v678 = vadd.f32 %v589, %v677
    %v679 = vpop.f32.mrf.mxu0
    %v680 = vpop.f32.mrf.mxu0
    %v681 = vadd.f32 %v592, %v680
    %v682 = vpop.f32.mrf.mxu0
    %683 = vmatprep.mubr.bf16.mxu0 0
    %684 = vmatmul.mubr.bf16.gmra.mxu0 %v630
    %v685 = vpop.f32.mrf.mxu0
    %v686 = vadd.f32 %v597, %v685
    %v687 = vpop.f32.mrf.mxu0
    %v688 = vpop.f32.mrf.mxu0
    %v689 = vadd.f32 %v600, %v688
    %v690 = vpop.f32.mrf.mxu0
    %691 = vmatprep.mubr.bf16.mxu0 0
    %692 = vmatmul.mubr.bf16.gmra.mxu0 %v633
    %v693 = vpop.f32.mrf.mxu0
    %v694 = vadd.f32 %v605, %v693
    %v695 = vpop.f32.mrf.mxu0
    %v696 = vpop.f32.mrf.mxu0
    %v697 = vadd.f32 %v608, %v696
    %v698 = vpop.f32.mrf.mxu0
    %699 = vdwg.mxu0
    %700 = vrot.lane.b32.xlu0 %v180, 118
    %v701 = vpop.permute.xlu0 %700
    %702 = vrot.lane.b32.xlu0 %v181, 118
    %v703 = vpop.permute.xlu0 %702
    %704 = vrot.lane.b32.xlu0 %v182, 118
    %v705 = vpop.permute.xlu0 %704
    %706 = vrot.lane.b32.xlu0 %v183, 118
    %v707 = vpop.permute.xlu0 %706
    %v709 = vsel %vm198, %v701, 0
    %v712 = vsel %vm198, %v703, 0
    %v715 = vsel %vm198, %v705, 0
    %v718 = vsel %vm198, %v707, 0
    %720 = vmatprep.subr.bf16.mxu0 0
    %721 = vmatpush1.bf16.msra.mxu0 0
    %722 = vmatprep.subr.bf16.mxu0 0
    %723 = vmatpush1.bf16.msra.mxu0 0
    %724 = vmatprep.subr.bf16.mxu0 0
    %725 = vmatpush1.bf16.msra.mxu0 0
    %726 = vmatprep.subr.bf16.mxu0 0
    %727 = vmatpush1.bf16.msra.mxu0 0
    %728 = vmatprep.subr.bf16.mxu0 0
    %729 = vmatpush1.bf16.msra.mxu0 0
    %730 = vmatprep.subr.bf16.mxu0 0
    %731 = vmatpush1.bf16.msra.mxu0 0
    %732 = vmatprep.subr.bf16.mxu0 0
    %733 = vmatpush1.bf16.msra.mxu0 0
    %734 = vmatprep.subr.bf16.mxu0 0
    %735 = vmatpush1.bf16.msra.mxu0 %v213
    %736 = vmatprep.subr.bf16.mxu0 0
    %737 = vmatpush2.bf16.msra.mxu0 0
    %738 = vmatprep.subr.bf16.mxu0 0
    %739 = vmatpush2.bf16.msra.mxu0 0
    %740 = vmatprep.subr.bf16.mxu0 0
    %741 = vmatpush2.bf16.msra.mxu0 0
    %742 = vmatprep.subr.bf16.mxu0 0
    %743 = vmatpush2.bf16.msra.mxu0 0
    %744 = vmatprep.subr.bf16.mxu0 0
    %745 = vmatpush2.bf16.msra.mxu0 0
    %746 = vmatprep.subr.bf16.mxu0 0
    %747 = vmatpush2.bf16.msra.mxu0 0
    %748 = vmatprep.subr.bf16.mxu0 0
    %749 = vmatpush2.bf16.msra.mxu0 0
    %750 = vmatprep.subr.bf16.mxu0 0
    %751 = vmatpush2.bf16.msra.mxu0 0
    %752 = vmatprep.mubr.bf16.mxu0 0
    %753 = vmatmul.mubr.bf16.gmra.mxu0 %v709
    %v754 = vpop.f32.mrf.mxu0
    %v755 = vadd.f32 %v191, %v754
    %v756 = vpop.f32.mrf.mxu0
    %v757 = vpop.f32.mrf.mxu0
    %v758 = vadd.f32 %v191, %v757
    %v759 = vpop.f32.mrf.mxu0
    %760 = vmatprep.mubr.bf16.mxu0 0
    %761 = vmatmul.mubr.bf16.gmra.mxu0 %v712
    %v762 = vpop.f32.mrf.mxu0
    %v763 = vadd.f32 %v191, %v762
    %v764 = vpop.f32.mrf.mxu0
    %v765 = vpop.f32.mrf.mxu0
    %v766 = vadd.f32 %v191, %v765
    %v767 = vpop.f32.mrf.mxu0
    %768 = vmatprep.mubr.bf16.mxu0 0
    %769 = vmatmul.mubr.bf16.gmra.mxu0 %v715
    %v770 = vpop.f32.mrf.mxu0
    %v771 = vadd.f32 %v191, %v770
    %v772 = vpop.f32.mrf.mxu0
    %v773 = vpop.f32.mrf.mxu0
    %v774 = vadd.f32 %v191, %v773
    %v775 = vpop.f32.mrf.mxu0
    %776 = vmatprep.mubr.bf16.mxu0 0
    %777 = vmatmul.mubr.bf16.gmra.mxu0 %v718
    %v778 = vpop.f32.mrf.mxu0
    %v779 = vadd.f32 %v191, %v778
    %v780 = vpop.f32.mrf.mxu0
    %v781 = vpop.f32.mrf.mxu0
    %v782 = vadd.f32 %v191, %v781
    %v783 = vpop.f32.mrf.mxu0
    %784 = vdwg.mxu0
    %v785 = vmul.f32 %v755, %v755
    %v786 = vmul.f32 %v758, %v758
    %v787 = vmul.f32 %v763, %v763
    %v788 = vmul.f32 %v766, %v766
    %v789 = vmul.f32 %v771, %v771
    %v790 = vmul.f32 %v774, %v774
    %v791 = vmul.f32 %v779, %v779
    %v792 = vmul.f32 %v782, %v782
    %v793 = vmul.f32 %v755, %v785
    %v794 = vmul.f32 %v758, %v786
    %v795 = vmul.f32 %v763, %v787
    %v796 = vmul.f32 %v766, %v788
    %v797 = vmul.f32 %v771, %v789
    %v798 = vmul.f32 %v774, %v790
    %v799 = vmul.f32 %v779, %v791
    %v800 = vmul.f32 %v782, %v792
    %v801 = vmul.f32 %v793, 0.044715
    %v802 = vmul.f32 %v794, 0.044715
    %v803 = vmul.f32 %v795, 0.044715
    %v804 = vmul.f32 %v796, 0.044715
    %v805 = vmul.f32 %v797, 0.044715
    %v806 = vmul.f32 %v798, 0.044715
    %v807 = vmul.f32 %v799, 0.044715
    %v808 = vmul.f32 %v800, 0.044715
    %v809 = vadd.f32 %v755, %v801
    %v810 = vadd.f32 %v758, %v802
    %v811 = vadd.f32 %v763, %v803
    %v812 = vadd.f32 %v766, %v804
    %v813 = vadd.f32 %v771, %v805
    %v814 = vadd.f32 %v774, %v806
    %v815 = vadd.f32 %v779, %v807
    %v816 = vadd.f32 %v782, %v808
    %v817 = vmul.f32 %v809, 0.7978846
    %v818 = vmul.f32 %v810, 0.7978846
    %v819 = vmul.f32 %v811, 0.7978846
    %v820 = vmul.f32 %v812, 0.7978846
    %v821 = vmul.f32 %v813, 0.7978846
    %v822 = vmul.f32 %v814, 0.7978846
    %v823 = vmul.f32 %v815, 0.7978846
    %v824 = vmul.f32 %v816, 0.7978846
    %v825 = vtanh.pop %v817
    %v826 = vtanh.pop %v818
    %v827 = vtanh.pop %v819
    %v828 = vtanh.pop %v820
    %v829 = vtanh.pop %v821
    %v830 = vtanh.pop %v822
    %v831 = vtanh.pop %v823
    %v832 = vtanh.pop %v824
    %v833 = vadd.f32 %v825, 1.0
    %v834 = vadd.f32 %v826, 1.0
    %v835 = vadd.f32 %v827, 1.0
    %v836 = vadd.f32 %v828, 1.0
    %v837 = vadd.f32 %v829, 1.0
    %v838 = vadd.f32 %v830, 1.0
    %v839 = vadd.f32 %v831, 1.0
    %v840 = vadd.f32 %v832, 1.0
    %v841 = vmul.f32 %v833, 0.5
    %v842 = vmul.f32 %v834, 0.5
    %v843 = vmul.f32 %v835, 0.5
    %v844 = vmul.f32 %v836, 0.5
    %v845 = vmul.f32 %v837, 0.5
    %v846 = vmul.f32 %v838, 0.5
    %v847 = vmul.f32 %v839, 0.5
    %v848 = vmul.f32 %v840, 0.5
    %v849 = vmul.f32 %v755, %v841
    %v850 = vmul.f32 %v758, %v842
    %v851 = vmul.f32 %v763, %v843
    %v852 = vmul.f32 %v766, %v844
    %v853 = vmul.f32 %v771, %v845
    %v854 = vmul.f32 %v774, %v846
    %v855 = vmul.f32 %v779, %v847
    %v856 = vmul.f32 %v782, %v848
    %v857 = vpack.c.bf16 %v850, %v849
    %v858 = vpack.c.bf16 %v852, %v851
    %v859 = vpack.c.bf16 %v854, %v853
    %v860 = vpack.c.bf16 %v856, %v855
    %v865 = vunpack.c.l.b16 %v176
    %v866 = vunpack.c.l.b16 %v177
    %v867 = vunpack.c.l.b16 %v178
    %v868 = vunpack.c.l.b16 %v179
    %v869 = vpack.c.b16 %v866, %v865
    %v870 = vpack.c.b16 %v868, %v867
    %v874 = vsel %vm533, %v857, 0
    %v877 = vsel %vm533, %v858, 0
    %v880 = vsel %vm533, %v859, 0
    %v883 = vsel %vm533, %v860, 0
    %885 = vmatprep.subr.bf16.mxu0 0
    %886 = vmatpush1.bf16.msra.mxu0 0
    %887 = vmatprep.subr.bf16.mxu0 0
    %888 = vmatpush1.bf16.msra.mxu0 0
    %889 = vmatprep.subr.bf16.mxu0 0
    %890 = vmatpush1.bf16.msra.mxu0 0
    %891 = vmatprep.subr.bf16.mxu0 0
    %892 = vmatpush1.bf16.msra.mxu0 0
    %893 = vmatprep.subr.bf16.mxu0 0
    %894 = vmatpush1.bf16.msra.mxu0 0
    %895 = vmatprep.subr.bf16.mxu0 0
    %896 = vmatpush1.bf16.msra.mxu0 0
    %897 = vmatprep.subr.bf16.mxu0 0
    %898 = vmatpush1.bf16.msra.mxu0 %v870
    %899 = vmatprep.subr.bf16.mxu0 0
    %900 = vmatpush1.bf16.msra.mxu0 %v869
    %901 = vmatprep.subr.bf16.mxu0 0
    %902 = vmatpush2.bf16.msra.mxu0 0
    %903 = vmatprep.subr.bf16.mxu0 0
    %904 = vmatpush2.bf16.msra.mxu0 0
    %905 = vmatprep.subr.bf16.mxu0 0
    %906 = vmatpush2.bf16.msra.mxu0 0
    %907 = vmatprep.subr.bf16.mxu0 0
    %908 = vmatpush2.bf16.msra.mxu0 0
    %909 = vmatprep.subr.bf16.mxu0 0
    %910 = vmatpush2.bf16.msra.mxu0 0
    %911 = vmatprep.subr.bf16.mxu0 0
    %912 = vmatpush2.bf16.msra.mxu0 0
    %913 = vmatprep.subr.bf16.mxu0 0
    %914 = vmatpush2.bf16.msra.mxu0 0
    %915 = vmatprep.subr.bf16.mxu0 0
    %916 = vmatpush2.bf16.msra.mxu0 0
    %917 = vmatprep.mubr.bf16.mxu0 0
    %918 = vmatmul.mubr.bf16.gmra.mxu0 %v874
    %v919 = vpop.f32.mrf.mxu0
    %v920 = vadd.f32 0.0, %v919
    %v921 = vpop.f32.mrf.mxu0
    %v922 = vpop.f32.mrf.mxu0
    %v923 = vadd.f32 0.0, %v922
    %v924 = vpop.f32.mrf.mxu0
    %925 = vmatprep.mubr.bf16.mxu0 0
    %926 = vmatmul.mubr.bf16.gmra.mxu0 %v877
    %v927 = vpop.f32.mrf.mxu0
    %v928 = vadd.f32 0.0, %v927
    %v929 = vpop.f32.mrf.mxu0
    %v930 = vpop.f32.mrf.mxu0
    %v931 = vadd.f32 0.0, %v930
    %v932 = vpop.f32.mrf.mxu0
    %933 = vmatprep.mubr.bf16.mxu0 0
    %934 = vmatmul.mubr.bf16.gmra.mxu0 %v880
    %v935 = vpop.f32.mrf.mxu0
    %v936 = vadd.f32 0.0, %v935
    %v937 = vpop.f32.mrf.mxu0
    %v938 = vpop.f32.mrf.mxu0
    %v939 = vadd.f32 0.0, %v938
    %v940 = vpop.f32.mrf.mxu0
    %941 = vmatprep.mubr.bf16.mxu0 0
    %942 = vmatmul.mubr.bf16.gmra.mxu0 %v883
    %v943 = vpop.f32.mrf.mxu0
    %v944 = vadd.f32 0.0, %v943
    %v945 = vpop.f32.mrf.mxu0
    %v946 = vpop.f32.mrf.mxu0
    %v947 = vadd.f32 0.0, %v946
    %v948 = vpop.f32.mrf.mxu0
    %949 = vdwg.mxu0
    %v950 = vadd.f32 %v670, %v920
    %v951 = vadd.f32 %v673, %v923
    %v952 = vadd.f32 %v678, %v928
    %v953 = vadd.f32 %v681, %v931
    %v954 = vadd.f32 %v686, %v936
    %v955 = vadd.f32 %v689, %v939
    %v956 = vadd.f32 %v694, %v944
    %v957 = vadd.f32 %v697, %v947
    %v958 = vld [vmem:[%s9] sm:$0x1]
    %v960 = vlaneseq
    %v961 = vshrl.u32 %v960, 7
    %v962 = vsub.s32 0, %v961
    %v963 = vrot.slane %v958, %v962
    %v965 = vadd.f32 %v950, %v963
    %v966 = vadd.f32 %v951, %v963
    %v967 = vadd.f32 %v952, %v963
    %v968 = vadd.f32 %v953, %v963
    %v969 = vadd.f32 %v954, %v963
    %v970 = vadd.f32 %v955, %v963
    %v971 = vadd.f32 %v956, %v963
    %v972 = vadd.f32 %v957, %v963
    %v973 = vmul.f32 %v965, %v965
    %v974 = vmul.f32 %v966, %v966
    %v975 = vmul.f32 %v967, %v967
    %v976 = vmul.f32 %v968, %v968
    %v977 = vmul.f32 %v969, %v969
    %v978 = vmul.f32 %v970, %v970
    %v979 = vmul.f32 %v971, %v971
    %v980 = vmul.f32 %v972, %v972
    %v981 = vmul.f32 %v965, %v973
    %v982 = vmul.f32 %v966, %v974
    %v983 = vmul.f32 %v967, %v975
    %v984 = vmul.f32 %v968, %v976
    %v985 = vmul.f32 %v969, %v977
    %v986 = vmul.f32 %v970, %v978
    %v987 = vmul.f32 %v971, %v979
    %v988 = vmul.f32 %v972, %v980
    %v989 = vmul.f32 %v981, 0.044715
    %v990 = vmul.f32 %v982, 0.044715
    %v991 = vmul.f32 %v983, 0.044715
    %v992 = vmul.f32 %v984, 0.044715
    %v993 = vmul.f32 %v985, 0.044715
    %v994 = vmul.f32 %v986, 0.044715
    %v995 = vmul.f32 %v987, 0.044715
    %v996 = vmul.f32 %v988, 0.044715
    %v997 = vadd.f32 %v965, %v989
    %v998 = vadd.f32 %v966, %v990
    %v999 = vadd.f32 %v967, %v991
    %v1000 = vadd.f32 %v968, %v992
    %v1001 = vadd.f32 %v969, %v993
    %v1002 = vadd.f32 %v970, %v994
    %v1003 = vadd.f32 %v971, %v995
    %v1004 = vadd.f32 %v972, %v996
    %v1005 = vmul.f32 %v997, 0.7978846
    %v1006 = vmul.f32 %v998, 0.7978846
    %v1007 = vmul.f32 %v999, 0.7978846
    %v1008 = vmul.f32 %v1000, 0.7978846
    %v1009 = vmul.f32 %v1001, 0.7978846
    %v1010 = vmul.f32 %v1002, 0.7978846
    %v1011 = vmul.f32 %v1003, 0.7978846
    %v1012 = vmul.f32 %v1004, 0.7978846
    %v1013 = vtanh.pop %v1005
    %v1014 = vtanh.pop %v1006
    %v1015 = vtanh.pop %v1007
    %v1016 = vtanh.pop %v1008
    %v1017 = vtanh.pop %v1009
    %v1018 = vtanh.pop %v1010
    %v1019 = vtanh.pop %v1011
    %v1020 = vtanh.pop %v1012
    %v1021 = vadd.f32 %v1013, 1.0
    %v1022 = vadd.f32 %v1014, 1.0
    %v1023 = vadd.f32 %v1015, 1.0
    %v1024 = vadd.f32 %v1016, 1.0
    %v1025 = vadd.f32 %v1017, 1.0
    %v1026 = vadd.f32 %v1018, 1.0
    %v1027 = vadd.f32 %v1019, 1.0
    %v1028 = vadd.f32 %v1020, 1.0
    %v1029 = vmul.f32 %v1021, 0.5
    %v1030 = vmul.f32 %v1022, 0.5
    %v1031 = vmul.f32 %v1023, 0.5
    %v1032 = vmul.f32 %v1024, 0.5
    %v1033 = vmul.f32 %v1025, 0.5
    %v1034 = vmul.f32 %v1026, 0.5
    %v1035 = vmul.f32 %v1027, 0.5
    %v1036 = vmul.f32 %v1028, 0.5
    %v1037 = vmul.f32 %v965, %v1029
    %v1038 = vmul.f32 %v966, %v1030
    %v1039 = vmul.f32 %v967, %v1031
    %v1040 = vmul.f32 %v968, %v1032
    %v1041 = vmul.f32 %v969, %v1033
    %v1042 = vmul.f32 %v970, %v1034
    %v1043 = vmul.f32 %v971, %v1035
    %v1044 = vmul.f32 %v972, %v1036
    %v1045 = vld [vmem:[%s11] sm:$0x1]
    %v1046 = vld [vmem:[%s13] sm:$0x1]
    %vm1047 = vcmask 523264
    %v1048 = vsel %vm1047, %v1037, 0.0
    %1049 = vadd.xlane.f32.xlu0 %v1048
    %v1050 = vpop.xlane.xlu0 %1049
    %v1051 = vsel %vm1047, %v1038, 0.0
    %1052 = vadd.xlane.f32.xlu0 %v1051
    %v1053 = vpop.xlane.xlu0 %1052
    %v1054 = vsel %vm1047, %v1039, 0.0
    %1055 = vadd.xlane.f32.xlu0 %v1054
    %v1056 = vpop.xlane.xlu0 %1055
    %v1057 = vsel %vm1047, %v1040, 0.0
    %1058 = vadd.xlane.f32.xlu0 %v1057
    %v1059 = vpop.xlane.xlu0 %1058
    %v1060 = vsel %vm1047, %v1041, 0.0
    %1061 = vadd.xlane.f32.xlu0 %v1060
    %v1062 = vpop.xlane.xlu0 %1061
    %v1063 = vsel %vm1047, %v1042, 0.0
    %1064 = vadd.xlane.f32.xlu0 %v1063
    %v1065 = vpop.xlane.xlu0 %1064
    %v1066 = vsel %vm1047, %v1043, 0.0
    %1067 = vadd.xlane.f32.xlu0 %v1066
    %v1068 = vpop.xlane.xlu0 %1067
    %v1069 = vsel %vm1047, %v1044, 0.0
    %1070 = vadd.xlane.f32.xlu0 %v1069
    %v1071 = vpop.xlane.xlu0 %1070
    %v1072 = vrcp.pop 64.0
    %v1073 = vmul.f32 %v1050, %v1072
    %v1074 = vmul.f32 %v1053, %v1072
    %v1075 = vmul.f32 %v1056, %v1072
    %v1076 = vmul.f32 %v1059, %v1072
    %v1077 = vmul.f32 %v1062, %v1072
    %v1078 = vmul.f32 %v1065, %v1072
    %v1079 = vmul.f32 %v1068, %v1072
    %v1080 = vmul.f32 %v1071, %v1072
    %v1081 = vsub.f32 %v1037, %v1073
    %v1082 = vsub.f32 %v1038, %v1074
    %v1083 = vsub.f32 %v1039, %v1075
    %v1084 = vsub.f32 %v1040, %v1076
    %v1085 = vsub.f32 %v1041, %v1077
    %v1086 = vsub.f32 %v1042, %v1078
    %v1087 = vsub.f32 %v1043, %v1079
    %v1088 = vsub.f32 %v1044, %v1080
    %v1089 = vmul.f32 %v1081, %v1081
    %v1090 = vmul.f32 %v1082, %v1082
    %v1091 = vmul.f32 %v1083, %v1083
    %v1092 = vmul.f32 %v1084, %v1084
    %v1093 = vmul.f32 %v1085, %v1085
    %v1094 = vmul.f32 %v1086, %v1086
    %v1095 = vmul.f32 %v1087, %v1087
    %v1096 = vmul.f32 %v1088, %v1088
    %v1097 = vsel %vm1047, %v1089, 0.0
    %1098 = vadd.xlane.f32.xlu0 %v1097
    %v1099 = vpop.xlane.xlu0 %1098
    %v1100 = vsel %vm1047, %v1090, 0.0
    %1101 = vadd.xlane.f32.xlu0 %v1100
    %v1102 = vpop.xlane.xlu0 %1101
    %v1103 = vsel %vm1047, %v1091, 0.0
    %1104 = vadd.xlane.f32.xlu0 %v1103
    %v1105 = vpop.xlane.xlu0 %1104
    %v1106 = vsel %vm1047, %v1092, 0.0
    %1107 = vadd.xlane.f32.xlu0 %v1106
    %v1108 = vpop.xlane.xlu0 %1107
    %v1109 = vsel %vm1047, %v1093, 0.0
    %1110 = vadd.xlane.f32.xlu0 %v1109
    %v1111 = vpop.xlane.xlu0 %1110
    %v1112 = vsel %vm1047, %v1094, 0.0
    %1113 = vadd.xlane.f32.xlu0 %v1112
    %v1114 = vpop.xlane.xlu0 %1113
    %v1115 = vsel %vm1047, %v1095, 0.0
    %1116 = vadd.xlane.f32.xlu0 %v1115
    %v1117 = vpop.xlane.xlu0 %1116
    %v1118 = vsel %vm1047, %v1096, 0.0
    %1119 = vadd.xlane.f32.xlu0 %v1118
    %v1120 = vpop.xlane.xlu0 %1119
    %v1121 = vmul.f32 %v1099, %v1072
    %v1122 = vmul.f32 %v1102, %v1072
    %v1123 = vmul.f32 %v1105, %v1072
    %v1124 = vmul.f32 %v1108, %v1072
    %v1125 = vmul.f32 %v1111, %v1072
    %v1126 = vmul.f32 %v1114, %v1072
    %v1127 = vmul.f32 %v1117, %v1072
    %v1128 = vmul.f32 %v1120, %v1072
    %v1129 = vadd.f32 %v1121, 1e-05
    %v1130 = vadd.f32 %v1122, 1e-05
    %v1131 = vadd.f32 %v1123, 1e-05
    %v1132 = vadd.f32 %v1124, 1e-05
    %v1133 = vadd.f32 %v1125, 1e-05
    %v1134 = vadd.f32 %v1126, 1e-05
    %v1135 = vadd.f32 %v1127, 1e-05
    %v1136 = vadd.f32 %v1128, 1e-05
    %v1137 = vrsqrt.pop %v1129
    %v1138 = vrsqrt.pop %v1130
    %v1139 = vrsqrt.pop %v1131
    %v1140 = vrsqrt.pop %v1132
    %v1141 = vrsqrt.pop %v1133
    %v1142 = vrsqrt.pop %v1134
    %v1143 = vrsqrt.pop %v1135
    %v1144 = vrsqrt.pop %v1136
    %v1145 = vmul.f32 %v1081, %v1137
    %v1146 = vmul.f32 %v1082, %v1138
    %v1147 = vmul.f32 %v1083, %v1139
    %v1148 = vmul.f32 %v1084, %v1140
    %v1149 = vmul.f32 %v1085, %v1141
    %v1150 = vmul.f32 %v1086, %v1142
    %v1151 = vmul.f32 %v1087, %v1143
    %v1152 = vmul.f32 %v1088, %v1144
    %v1154 = vlaneseq
    %v1155 = vshrl.u32 %v1154, 7
    %v1156 = vsub.s32 0, %v1155
    %v1157 = vrot.slane %v1045, %v1156
    %v1159 = vmul.f32 %v1145, %v1157
    %v1160 = vmul.f32 %v1146, %v1157
    %v1161 = vmul.f32 %v1147, %v1157
    %v1162 = vmul.f32 %v1148, %v1157
    %v1163 = vmul.f32 %v1149, %v1157
    %v1164 = vmul.f32 %v1150, %v1157
    %v1165 = vmul.f32 %v1151, %v1157
    %v1166 = vmul.f32 %v1152, %v1157
    %v1168 = vlaneseq
    %v1169 = vshrl.u32 %v1168, 7
    %v1170 = vsub.s32 0, %v1169
    %v1171 = vrot.slane %v1046, %v1170
    %v1173 = vadd.f32 %v1159, %v1171
    %v1174 = vadd.f32 %v1160, %v1171
    %v1175 = vadd.f32 %v1161, %v1171
    %v1176 = vadd.f32 %v1162, %v1171
    %v1177 = vadd.f32 %v1163, %v1171
    %v1178 = vadd.f32 %v1164, %v1171
    %v1179 = vadd.f32 %v1165, %v1171
    %v1180 = vadd.f32 %v1166, %v1171
    %v1181 = vpack.c.bf16 %v1174, %v1173
    %v1182 = vpack.c.bf16 %v1176, %v1175
    %v1183 = vpack.c.bf16 %v1178, %v1177
    %v1184 = vpack.c.bf16 %v1180, %v1179
    %v1185 = vld [vmem:[%s15] sm:$0xf]
    %v1186 = vld [vmem:[%s15 + $0x4] sm:$0xf]
    %v1187 = vld [vmem:[%s15 + $0x8] sm:$0xf]
    %v1188 = vld [vmem:[%s15 + $0xc] sm:$0xf]
    %v1189 = vld [vmem:[%s15 + $0x10] sm:$0xf]
    %v1190 = vld [vmem:[%s15 + $0x14] sm:$0xf]
    %v1191 = vld [vmem:[%s15 + $0x18] sm:$0xf]
    %v1192 = vld [vmem:[%s15 + $0x1c] sm:$0xf]
    %v1193 = vld [vmem:[%s17] sm:$0x1]
    %v1195 = vlaneseq
    %v1196 = vshrl.u32 %v1195, 7
    %v1197 = vsub.s32 0, %v1196
    %v1198 = vrot.slane %v1193, %v1197
    %v1208 = vunpack.c.l.b16 %v1185
    %v1209 = vunpack.c.l.b16 %v1186
    %v1210 = vunpack.c.l.b16 %v1187
    %v1211 = vunpack.c.l.b16 %v1188
    %v1212 = vunpack.c.l.b16 %v1189
    %v1213 = vunpack.c.l.b16 %v1190
    %v1214 = vunpack.c.l.b16 %v1191
    %v1215 = vunpack.c.l.b16 %v1192
    %v1216 = vpack.c.b16 %v1209, %v1208
    %v1217 = vpack.c.b16 %v1211, %v1210
    %v1218 = vpack.c.b16 %v1213, %v1212
    %v1219 = vpack.c.b16 %v1215, %v1214
    %v1225 = vsel %vm1047, %v1181, 0
    %v1228 = vsel %vm1047, %v1182, 0
    %v1231 = vsel %vm1047, %v1183, 0
    %v1234 = vsel %vm1047, %v1184, 0
    %1236 = vmatprep.subr.bf16.mxu0 0
    %1237 = vmatpush1.bf16.msra.mxu0 0
    %1238 = vmatprep.subr.bf16.mxu0 0
    %1239 = vmatpush1.bf16.msra.mxu0 0
    %1240 = vmatprep.subr.bf16.mxu0 0
    %1241 = vmatpush1.bf16.msra.mxu0 0
    %1242 = vmatprep.subr.bf16.mxu0 0
    %1243 = vmatpush1.bf16.msra.mxu0 0
    %1244 = vmatprep.subr.bf16.mxu0 0
    %1245 = vmatpush1.bf16.msra.mxu0 %v1219
    %1246 = vmatprep.subr.bf16.mxu0 0
    %1247 = vmatpush1.bf16.msra.mxu0 %v1218
    %1248 = vmatprep.subr.bf16.mxu0 0
    %1249 = vmatpush1.bf16.msra.mxu0 %v1217
    %1250 = vmatprep.subr.bf16.mxu0 0
    %1251 = vmatpush1.bf16.msra.mxu0 %v1216
    %1252 = vmatprep.subr.bf16.mxu0 0
    %1253 = vmatpush2.bf16.msra.mxu0 0
    %1254 = vmatprep.subr.bf16.mxu0 0
    %1255 = vmatpush2.bf16.msra.mxu0 0
    %1256 = vmatprep.subr.bf16.mxu0 0
    %1257 = vmatpush2.bf16.msra.mxu0 0
    %1258 = vmatprep.subr.bf16.mxu0 0
    %1259 = vmatpush2.bf16.msra.mxu0 0
    %1260 = vmatprep.subr.bf16.mxu0 0
    %1261 = vmatpush2.bf16.msra.mxu0 0
    %1262 = vmatprep.subr.bf16.mxu0 0
    %1263 = vmatpush2.bf16.msra.mxu0 0
    %1264 = vmatprep.subr.bf16.mxu0 0
    %1265 = vmatpush2.bf16.msra.mxu0 0
    %1266 = vmatprep.subr.bf16.mxu0 0
    %1267 = vmatpush2.bf16.msra.mxu0 0
    %1268 = vmatprep.mubr.bf16.mxu0 0
    %1269 = vmatmul.mubr.bf16.gmra.mxu0 %v1225
    %v1270 = vpop.f32.mrf.mxu0
    %v1271 = vadd.f32 %v1198, %v1270
    %v1272 = vpop.f32.mrf.mxu0
    %v1273 = vpop.f32.mrf.mxu0
    %v1274 = vadd.f32 %v1198, %v1273
    %v1275 = vpop.f32.mrf.mxu0
    %1276 = vmatprep.mubr.bf16.mxu0 0
    %1277 = vmatmul.mubr.bf16.gmra.mxu0 %v1228
    %v1278 = vpop.f32.mrf.mxu0
    %v1279 = vadd.f32 %v1198, %v1278
    %v1280 = vpop.f32.mrf.mxu0
    %v1281 = vpop.f32.mrf.mxu0
    %v1282 = vadd.f32 %v1198, %v1281
    %v1283 = vpop.f32.mrf.mxu0
    %1284 = vmatprep.mubr.bf16.mxu0 0
    %1285 = vmatmul.mubr.bf16.gmra.mxu0 %v1231
    %v1286 = vpop.f32.mrf.mxu0
    %v1287 = vadd.f32 %v1198, %v1286
    %v1288 = vpop.f32.mrf.mxu0
    %v1289 = vpop.f32.mrf.mxu0
    %v1290 = vadd.f32 %v1198, %v1289
    %v1291 = vpop.f32.mrf.mxu0
    %1292 = vmatprep.mubr.bf16.mxu0 0
    %1293 = vmatmul.mubr.bf16.gmra.mxu0 %v1234
    %v1294 = vpop.f32.mrf.mxu0
    %v1295 = vadd.f32 %v1198, %v1294
    %v1296 = vpop.f32.mrf.mxu0
    %v1297 = vpop.f32.mrf.mxu0
    %v1298 = vadd.f32 %v1198, %v1297
    %v1299 = vpop.f32.mrf.mxu0
    %1300 = vdwg.mxu0
    %v1301 = vld [vmem:[%s19] sm:$0x1]
    %v1302 = vld [vmem:[%s21] sm:$0x1]
    %v1303 = vsel %vm1047, %v1271, 0.0
    %1304 = vadd.xlane.f32.xlu0 %v1303
    %v1305 = vpop.xlane.xlu0 %1304
    %v1306 = vsel %vm1047, %v1274, 0.0
    %1307 = vadd.xlane.f32.xlu0 %v1306
    %v1308 = vpop.xlane.xlu0 %1307
    %v1309 = vsel %vm1047, %v1279, 0.0
    %1310 = vadd.xlane.f32.xlu0 %v1309
    %v1311 = vpop.xlane.xlu0 %1310
    %v1312 = vsel %vm1047, %v1282, 0.0
    %1313 = vadd.xlane.f32.xlu0 %v1312
    %v1314 = vpop.xlane.xlu0 %1313
    %v1315 = vsel %vm1047, %v1287, 0.0
    %1316 = vadd.xlane.f32.xlu0 %v1315
    %v1317 = vpop.xlane.xlu0 %1316
    %v1318 = vsel %vm1047, %v1290, 0.0
    %1319 = vadd.xlane.f32.xlu0 %v1318
    %v1320 = vpop.xlane.xlu0 %1319
    %v1321 = vsel %vm1047, %v1295, 0.0
    %1322 = vadd.xlane.f32.xlu0 %v1321
    %v1323 = vpop.xlane.xlu0 %1322
    %v1324 = vsel %vm1047, %v1298, 0.0
    %1325 = vadd.xlane.f32.xlu0 %v1324
    %v1326 = vpop.xlane.xlu0 %1325
    %v1327 = vmul.f32 %v1305, %v1072
    %v1328 = vmul.f32 %v1308, %v1072
    %v1329 = vmul.f32 %v1311, %v1072
    %v1330 = vmul.f32 %v1314, %v1072
    %v1331 = vmul.f32 %v1317, %v1072
    %v1332 = vmul.f32 %v1320, %v1072
    %v1333 = vmul.f32 %v1323, %v1072
    %v1334 = vmul.f32 %v1326, %v1072
    %v1335 = vsub.f32 %v1271, %v1327
    %v1336 = vsub.f32 %v1274, %v1328
    %v1337 = vsub.f32 %v1279, %v1329
    %v1338 = vsub.f32 %v1282, %v1330
    %v1339 = vsub.f32 %v1287, %v1331
    %v1340 = vsub.f32 %v1290, %v1332
    %v1341 = vsub.f32 %v1295, %v1333
    %v1342 = vsub.f32 %v1298, %v1334
    %v1343 = vmul.f32 %v1335, %v1335
    %v1344 = vmul.f32 %v1336, %v1336
    %v1345 = vmul.f32 %v1337, %v1337
    %v1346 = vmul.f32 %v1338, %v1338
    %v1347 = vmul.f32 %v1339, %v1339
    %v1348 = vmul.f32 %v1340, %v1340
    %v1349 = vmul.f32 %v1341, %v1341
    %v1350 = vmul.f32 %v1342, %v1342
    %v1351 = vsel %vm1047, %v1343, 0.0
    %1352 = vadd.xlane.f32.xlu0 %v1351
    %v1353 = vpop.xlane.xlu0 %1352
    %v1354 = vsel %vm1047, %v1344, 0.0
    %1355 = vadd.xlane.f32.xlu0 %v1354
    %v1356 = vpop.xlane.xlu0 %1355
    %v1357 = vsel %vm1047, %v1345, 0.0
    %1358 = vadd.xlane.f32.xlu0 %v1357
    %v1359 = vpop.xlane.xlu0 %1358
    %v1360 = vsel %vm1047, %v1346, 0.0
    %1361 = vadd.xlane.f32.xlu0 %v1360
    %v1362 = vpop.xlane.xlu0 %1361
    %v1363 = vsel %vm1047, %v1347, 0.0
    %1364 = vadd.xlane.f32.xlu0 %v1363
    %v1365 = vpop.xlane.xlu0 %1364
    %v1366 = vsel %vm1047, %v1348, 0.0
    %1367 = vadd.xlane.f32.xlu0 %v1366
    %v1368 = vpop.xlane.xlu0 %1367
    %v1369 = vsel %vm1047, %v1349, 0.0
    %1370 = vadd.xlane.f32.xlu0 %v1369
    %v1371 = vpop.xlane.xlu0 %1370
    %v1372 = vsel %vm1047, %v1350, 0.0
    %1373 = vadd.xlane.f32.xlu0 %v1372
    %v1374 = vpop.xlane.xlu0 %1373
    %v1375 = vmul.f32 %v1353, %v1072
    %v1376 = vmul.f32 %v1356, %v1072
    %v1377 = vmul.f32 %v1359, %v1072
    %v1378 = vmul.f32 %v1362, %v1072
    %v1379 = vmul.f32 %v1365, %v1072
    %v1380 = vmul.f32 %v1368, %v1072
    %v1381 = vmul.f32 %v1371, %v1072
    %v1382 = vmul.f32 %v1374, %v1072
    %v1383 = vadd.f32 %v1375, 1e-05
    %v1384 = vadd.f32 %v1376, 1e-05
    %v1385 = vadd.f32 %v1377, 1e-05
    %v1386 = vadd.f32 %v1378, 1e-05
    %v1387 = vadd.f32 %v1379, 1e-05
    %v1388 = vadd.f32 %v1380, 1e-05
    %v1389 = vadd.f32 %v1381, 1e-05
    %v1390 = vadd.f32 %v1382, 1e-05
    %v1391 = vrsqrt.pop %v1383
    %v1392 = vrsqrt.pop %v1384
    %v1393 = vrsqrt.pop %v1385
    %v1394 = vrsqrt.pop %v1386
    %v1395 = vrsqrt.pop %v1387
    %v1396 = vrsqrt.pop %v1388
    %v1397 = vrsqrt.pop %v1389
    %v1398 = vrsqrt.pop %v1390
    %v1399 = vmul.f32 %v1335, %v1391
    %v1400 = vmul.f32 %v1336, %v1392
    %v1401 = vmul.f32 %v1337, %v1393
    %v1402 = vmul.f32 %v1338, %v1394
    %v1403 = vmul.f32 %v1339, %v1395
    %v1404 = vmul.f32 %v1340, %v1396
    %v1405 = vmul.f32 %v1341, %v1397
    %v1406 = vmul.f32 %v1342, %v1398
    %v1408 = vlaneseq
    %v1409 = vshrl.u32 %v1408, 7
    %v1410 = vsub.s32 0, %v1409
    %v1411 = vrot.slane %v1301, %v1410
    %v1413 = vmul.f32 %v1399, %v1411
    %v1414 = vmul.f32 %v1400, %v1411
    %v1415 = vmul.f32 %v1401, %v1411
    %v1416 = vmul.f32 %v1402, %v1411
    %v1417 = vmul.f32 %v1403, %v1411
    %v1418 = vmul.f32 %v1404, %v1411
    %v1419 = vmul.f32 %v1405, %v1411
    %v1420 = vmul.f32 %v1406, %v1411
    %v1422 = vlaneseq
    %v1423 = vshrl.u32 %v1422, 7
    %v1424 = vsub.s32 0, %v1423
    %v1425 = vrot.slane %v1302, %v1424
    %v1427 = vadd.f32 %v1413, %v1425
    %v1428 = vadd.f32 %v1414, %v1425
    %v1429 = vadd.f32 %v1415, %v1425
    %v1430 = vadd.f32 %v1416, %v1425
    %v1431 = vadd.f32 %v1417, %v1425
    %v1432 = vadd.f32 %v1418, %v1425
    %v1433 = vadd.f32 %v1419, %v1425
    %v1434 = vadd.f32 %v1420, %v1425
    %v1435 = vpack.c.bf16 %v1428, %v1427
    %v1436 = vpack.c.bf16 %v1430, %v1429
    %v1437 = vpack.c.bf16 %v1432, %v1431
    %v1438 = vpack.c.bf16 %v1434, %v1433
    %v1439 = vld [vmem:[%s23] sm:$0xff]
    %v1440 = vld [vmem:[%s23 + $0x8] sm:$0xff]
    %v1441 = vld [vmem:[%s23 + $0x10] sm:$0xff]
    %v1442 = vld [vmem:[%s23 + $0x18] sm:$0xff]
    %v1443 = vld [vmem:[%s23 + $0x20] sm:$0xff]
    %v1444 = vld [vmem:[%s23 + $0x28] sm:$0xff]
    %v1445 = vld [vmem:[%s23 + $0x30] sm:$0xff]
    %v1446 = vld [vmem:[%s23 + $0x38] sm:$0xff]
    %v1447 = vld [vmem:[%s25] sm:$0x3]
    %v1449 = vlaneseq
    %v1450 = vshrl.u32 %v1449, 7
    %v1451 = vsub.s32 0, %v1450
    %v1452 = vrot.slane %v1447, %v1451
    %v1453 = vlaneseq
    %v1454 = vshrl.u32 %v1453, 7
    %v1455 = vsub.s32 1, %v1454
    %v1456 = vrot.slane %v1447, %v1455
    %v1467 = vunpack.c.l.b16 %v1439
    %v1468 = vunpack.c.h.b16 %v1439
    %v1469 = vunpack.c.l.b16 %v1440
    %v1470 = vunpack.c.h.b16 %v1440
    %v1471 = vunpack.c.l.b16 %v1441
    %v1472 = vunpack.c.h.b16 %v1441
    %v1473 = vunpack.c.l.b16 %v1442
    %v1474 = vunpack.c.h.b16 %v1442
    %v1475 = vunpack.c.l.b16 %v1443
    %v1476 = vunpack.c.h.b16 %v1443
    %v1477 = vunpack.c.l.b16 %v1444
    %v1478 = vunpack.c.h.b16 %v1444
    %v1479 = vunpack.c.l.b16 %v1445
    %v1480 = vunpack.c.h.b16 %v1445
    %v1481 = vunpack.c.l.b16 %v1446
    %v1482 = vunpack.c.h.b16 %v1446
    %v1483 = vpack.c.b16 %v1469, %v1467
    %v1484 = vpack.c.b16 %v1470, %v1468
    %v1485 = vpack.c.b16 %v1473, %v1471
    %v1486 = vpack.c.b16 %v1474, %v1472
    %v1487 = vpack.c.b16 %v1477, %v1475
    %v1488 = vpack.c.b16 %v1478, %v1476
    %v1489 = vpack.c.b16 %v1481, %v1479
    %v1490 = vpack.c.b16 %v1482, %v1480
    %v1500 = vsel %vm1047, %v1435, 0
    %v1503 = vsel %vm1047, %v1436, 0
    %v1506 = vsel %vm1047, %v1437, 0
    %v1509 = vsel %vm1047, %v1438, 0
    %1511 = vmatprep.subr.bf16.mxu0 0
    %1512 = vmatpush1.bf16.msra.mxu0 0
    %1513 = vmatprep.subr.bf16.mxu0 0
    %1514 = vmatpush1.bf16.msra.mxu0 0
    %1515 = vmatprep.subr.bf16.mxu0 0
    %1516 = vmatpush1.bf16.msra.mxu0 0
    %1517 = vmatprep.subr.bf16.mxu0 0
    %1518 = vmatpush1.bf16.msra.mxu0 0
    %1519 = vmatprep.subr.bf16.mxu0 %v1490
    %1520 = vmatpush1.bf16.msra.mxu0 %v1489
    %1521 = vmatprep.subr.bf16.mxu0 %v1488
    %1522 = vmatpush1.bf16.msra.mxu0 %v1487
    %1523 = vmatprep.subr.bf16.mxu0 %v1486
    %1524 = vmatpush1.bf16.msra.mxu0 %v1485
    %1525 = vmatprep.subr.bf16.mxu0 %v1484
    %1526 = vmatpush1.bf16.msra.mxu0 %v1483
    %1527 = vmatprep.subr.bf16.mxu0 0
    %1528 = vmatpush2.bf16.msra.mxu0 0
    %1529 = vmatprep.subr.bf16.mxu0 0
    %1530 = vmatpush2.bf16.msra.mxu0 0
    %1531 = vmatprep.subr.bf16.mxu0 0
    %1532 = vmatpush2.bf16.msra.mxu0 0
    %1533 = vmatprep.subr.bf16.mxu0 0
    %1534 = vmatpush2.bf16.msra.mxu0 0
    %1535 = vmatprep.subr.bf16.mxu0 0
    %1536 = vmatpush2.bf16.msra.mxu0 0
    %1537 = vmatprep.subr.bf16.mxu0 0
    %1538 = vmatpush2.bf16.msra.mxu0 0
    %1539 = vmatprep.subr.bf16.mxu0 0
    %1540 = vmatpush2.bf16.msra.mxu0 0
    %1541 = vmatprep.subr.bf16.mxu0 0
    %1542 = vmatpush2.bf16.msra.mxu0 0
    %1543 = vmatprep.mubr.bf16.mxu0 0
    %1544 = vmatmul.mubr.bf16.gmra.mxu0 %v1500
    %v1545 = vpop.f32.mrf.mxu0
    %v1546 = vadd.f32 %v1452, %v1545
    %v1547 = vpop.f32.mrf.mxu0
    %v1548 = vadd.f32 %v1456, %v1547
    %v1549 = vpop.f32.mrf.mxu0
    %v1550 = vadd.f32 %v1452, %v1549
    %v1551 = vpop.f32.mrf.mxu0
    %v1552 = vadd.f32 %v1456, %v1551
    %1553 = vmatprep.mubr.bf16.mxu0 0
    %1554 = vmatmul.mubr.bf16.gmra.mxu0 %v1503
    %v1555 = vpop.f32.mrf.mxu0
    %v1556 = vadd.f32 %v1452, %v1555
    %v1557 = vpop.f32.mrf.mxu0
    %v1558 = vadd.f32 %v1456, %v1557
    %v1559 = vpop.f32.mrf.mxu0
    %v1560 = vadd.f32 %v1452, %v1559
    %v1561 = vpop.f32.mrf.mxu0
    %v1562 = vadd.f32 %v1456, %v1561
    %1563 = vmatprep.mubr.bf16.mxu0 0
    %1564 = vmatmul.mubr.bf16.gmra.mxu0 %v1506
    %v1565 = vpop.f32.mrf.mxu0
    %v1566 = vadd.f32 %v1452, %v1565
    %v1567 = vpop.f32.mrf.mxu0
    %v1568 = vadd.f32 %v1456, %v1567
    %v1569 = vpop.f32.mrf.mxu0
    %v1570 = vadd.f32 %v1452, %v1569
    %v1571 = vpop.f32.mrf.mxu0
    %v1572 = vadd.f32 %v1456, %v1571
    %1573 = vmatprep.mubr.bf16.mxu0 0
    %1574 = vmatmul.mubr.bf16.gmra.mxu0 %v1509
    %v1575 = vpop.f32.mrf.mxu0
    %v1576 = vadd.f32 %v1452, %v1575
    %v1577 = vpop.f32.mrf.mxu0
    %v1578 = vadd.f32 %v1456, %v1577
    %v1579 = vpop.f32.mrf.mxu0
    %v1580 = vadd.f32 %v1452, %v1579
    %v1581 = vpop.f32.mrf.mxu0
    %v1582 = vadd.f32 %v1456, %v1581
    %1583 = vdwg.mxu0
    %v1584 = vpack.c.bf16 %v1550, %v1546
    %v1585 = vpack.c.bf16 %v1552, %v1548
    %v1586 = vpack.c.bf16 %v1560, %v1556
    %v1587 = vpack.c.bf16 %v1562, %v1558
    %v1588 = vpack.c.bf16 %v1570, %v1566
    %v1589 = vpack.c.bf16 %v1572, %v1568
    %v1590 = vpack.c.bf16 %v1580, %v1576
    %v1591 = vpack.c.bf16 %v1582, %v1578
    %v1592 = vld [vmem:[%s27] sm:$0xf]
    %v1593 = vld [vmem:[%s27 + $0x4] sm:$0xf]
    %v1594 = vld [vmem:[%s27 + $0x8] sm:$0xf]
    %v1595 = vld [vmem:[%s27 + $0xc] sm:$0xf]
    %v1596 = vld [vmem:[%s27 + $0x10] sm:$0xf]
    %v1597 = vld [vmem:[%s27 + $0x14] sm:$0xf]
    %v1598 = vld [vmem:[%s27 + $0x18] sm:$0xf]
    %v1599 = vld [vmem:[%s27 + $0x1c] sm:$0xf]
    %1602 = vrot.lane.b32.xlu0 %v1584, 64
    %v1603 = vpop.permute.xlu0 %1602
    %1604 = vrot.lane.b32.xlu0 %v1586, 64
    %v1605 = vpop.permute.xlu0 %1604
    %vm1606 = vcmask 130048
    %v1608 = vsel %vm1606, %v1584, 0
    %v1611 = vsel %vm1606, %v1586, 0
    %v1614 = vsel %vm1606, %v1603, 0
    %v1617 = vsel %vm1606, %v1605, 0
    %1619 = vmatprep.subr.bf16.mxu0 0
    %1620 = vmatpush1.bf16.xpose.msra.mxu0 0
    %1621 = vmatprep.subr.bf16.mxu0 0
    %1622 = vmatpush1.bf16.xpose.msra.mxu0 0
    %1623 = vmatprep.subr.bf16.mxu0 0
    %1624 = vmatpush1.bf16.xpose.msra.mxu0 0
    %1625 = vmatprep.subr.bf16.mxu0 0
    %1626 = vmatpush1.bf16.xpose.msra.mxu0 0
    %1627 = vmatprep.subr.bf16.mxu0 0
    %1628 = vmatpush1.bf16.xpose.msra.mxu0 0
    %1629 = vmatprep.subr.bf16.mxu0 0
    %1630 = vmatpush1.bf16.xpose.msra.mxu0 0
    %1631 = vmatprep.subr.bf16.mxu0 0
    %1632 = vmatpush1.bf16.xpose.msra.mxu0 %v1617
    %1633 = vmatprep.subr.bf16.mxu0 0
    %1634 = vmatpush1.bf16.xpose.msra.mxu0 %v1614
    %1635 = vmatprep.subr.bf16.mxu0 0
    %1636 = vmatpush2.bf16.xpose.msra.mxu0 0
    %1637 = vmatprep.subr.bf16.mxu0 0
    %1638 = vmatpush2.bf16.xpose.msra.mxu0 0
    %1639 = vmatprep.subr.bf16.mxu0 0
    %1640 = vmatpush2.bf16.xpose.msra.mxu0 0
    %1641 = vmatprep.subr.bf16.mxu0 0
    %1642 = vmatpush2.bf16.xpose.msra.mxu0 0
    %1643 = vmatprep.subr.bf16.mxu0 0
    %1644 = vmatpush2.bf16.xpose.msra.mxu0 0
    %1645 = vmatprep.subr.bf16.mxu0 0
    %1646 = vmatpush2.bf16.xpose.msra.mxu0 0
    %1647 = vmatprep.subr.bf16.mxu0 0
    %1648 = vmatpush2.bf16.xpose.msra.mxu0 0
    %1649 = vmatprep.subr.bf16.mxu0 0
    %1650 = vmatpush2.bf16.xpose.msra.mxu0 0
    %1651 = vmatprep.mubr.bf16.mxu0 0
    %1652 = vmatmul.mubr.bf16.gmra.mxu0 %v1608
    %v1653 = vpop.f32.mrf.mxu0
    %v1654 = vadd.f32 0.0, %v1653
    %v1655 = vpop.f32.mrf.mxu0
    %v1656 = vpop.f32.mrf.mxu0
    %v1657 = vadd.f32 0.0, %v1656
    %v1658 = vpop.f32.mrf.mxu0
    %1659 = vmatprep.mubr.bf16.mxu0 0
    %1660 = vmatmul.mubr.bf16.gmra.mxu0 %v1611
    %v1661 = vpop.f32.mrf.mxu0
    %v1662 = vadd.f32 0.0, %v1661
    %v1663 = vpop.f32.mrf.mxu0
    %v1664 = vpop.f32.mrf.mxu0
    %v1665 = vadd.f32 0.0, %v1664
    %v1666 = vpop.f32.mrf.mxu0
    %1667 = vdwg.mxu0
    %1670 = vrot.lane.b32.xlu0 %v1588, 64
    %v1671 = vpop.permute.xlu0 %1670
    %1672 = vrot.lane.b32.xlu0 %v1590, 64
    %v1673 = vpop.permute.xlu0 %1672
    %v1675 = vsel %vm1606, %v1588, 0
    %v1678 = vsel %vm1606, %v1590, 0
    %v1681 = vsel %vm1606, %v1671, 0
    %v1684 = vsel %vm1606, %v1673, 0
    %1686 = vmatprep.subr.bf16.mxu0 0
    %1687 = vmatpush1.bf16.xpose.msra.mxu0 0
    %1688 = vmatprep.subr.bf16.mxu0 0
    %1689 = vmatpush1.bf16.xpose.msra.mxu0 0
    %1690 = vmatprep.subr.bf16.mxu0 0
    %1691 = vmatpush1.bf16.xpose.msra.mxu0 0
    %1692 = vmatprep.subr.bf16.mxu0 0
    %1693 = vmatpush1.bf16.xpose.msra.mxu0 0
    %1694 = vmatprep.subr.bf16.mxu0 0
    %1695 = vmatpush1.bf16.xpose.msra.mxu0 0
    %1696 = vmatprep.subr.bf16.mxu0 0
    %1697 = vmatpush1.bf16.xpose.msra.mxu0 0
    %1698 = vmatprep.subr.bf16.mxu0 0
    %1699 = vmatpush1.bf16.xpose.msra.mxu0 %v1684
    %1700 = vmatprep.subr.bf16.mxu0 0
    %1701 = vmatpush1.bf16.xpose.msra.mxu0 %v1681
    %1702 = vmatprep.subr.bf16.mxu0 0
    %1703 = vmatpush2.bf16.xpose.msra.mxu0 0
    %1704 = vmatprep.subr.bf16.mxu0 0
    %1705 = vmatpush2.bf16.xpose.msra.mxu0 0
    %1706 = vmatprep.subr.bf16.mxu0 0
    %1707 = vmatpush2.bf16.xpose.msra.mxu0 0
    %1708 = vmatprep.subr.bf16.mxu0 0
    %1709 = vmatpush2.bf16.xpose.msra.mxu0 0
    %1710 = vmatprep.subr.bf16.mxu0 0
    %1711 = vmatpush2.bf16.xpose.msra.mxu0 0
    %1712 = vmatprep.subr.bf16.mxu0 0
    %1713 = vmatpush2.bf16.xpose.msra.mxu0 0
    %1714 = vmatprep.subr.bf16.mxu0 0
    %1715 = vmatpush2.bf16.xpose.msra.mxu0 0
    %1716 = vmatprep.subr.bf16.mxu0 0
    %1717 = vmatpush2.bf16.xpose.msra.mxu0 0
    %1718 = vmatprep.mubr.bf16.mxu0 0
    %1719 = vmatmul.mubr.bf16.gmra.mxu0 %v1675
    %v1720 = vpop.f32.mrf.mxu0
    %v1721 = vadd.f32 0.0, %v1720
    %v1722 = vpop.f32.mrf.mxu0
    %v1723 = vpop.f32.mrf.mxu0
    %v1724 = vadd.f32 0.0, %v1723
    %v1725 = vpop.f32.mrf.mxu0
    %1726 = vmatprep.mubr.bf16.mxu0 0
    %1727 = vmatmul.mubr.bf16.gmra.mxu0 %v1678
    %v1728 = vpop.f32.mrf.mxu0
    %v1729 = vadd.f32 0.0, %v1728
    %v1730 = vpop.f32.mrf.mxu0
    %v1731 = vpop.f32.mrf.mxu0
    %v1732 = vadd.f32 0.0, %v1731
    %v1733 = vpop.f32.mrf.mxu0
    %1734 = vdwg.mxu0
    %v1735 = vsel %vm533, %v1654, -inf
    %1736 = vmax.xlane.f32.xlu0 %v1735
    %v1737 = vpop.xlane.xlu0 %1736
    %v1738 = vsel %vm533, %v1657, -inf
    %1739 = vmax.xlane.f32.xlu0 %v1738
    %v1740 = vpop.xlane.xlu0 %1739
    %v1741 = vsel %vm533, %v1662, -inf
    %1742 = vmax.xlane.f32.xlu0 %v1741
    %v1743 = vpop.xlane.xlu0 %1742
    %v1744 = vsel %vm533, %v1665, -inf
    %1745 = vmax.xlane.f32.xlu0 %v1744
    %v1746 = vpop.xlane.xlu0 %1745
    %v1747 = vsel %vm533, %v1721, -inf
    %1748 = vmax.xlane.f32.xlu0 %v1747
    %v1749 = vpop.xlane.xlu0 %1748
    %v1750 = vsel %vm533, %v1724, -inf
    %1751 = vmax.xlane.f32.xlu0 %v1750
    %v1752 = vpop.xlane.xlu0 %1751
    %v1753 = vsel %vm533, %v1729, -inf
    %1754 = vmax.xlane.f32.xlu0 %v1753
    %v1755 = vpop.xlane.xlu0 %1754
    %v1756 = vsel %vm533, %v1732, -inf
    %1757 = vmax.xlane.f32.xlu0 %v1756
    %v1758 = vpop.xlane.xlu0 %1757
    %v1759 = vsub.f32 %v1654, %v1737
    %v1760 = vsub.f32 %v1657, %v1740
    %v1761 = vsub.f32 %v1662, %v1743
    %v1762 = vsub.f32 %v1665, %v1746
    %v1763 = vsub.f32 %v1721, %v1749
    %v1764 = vsub.f32 %v1724, %v1752
    %v1765 = vsub.f32 %v1729, %v1755
    %v1766 = vsub.f32 %v1732, %v1758
    %v1767 = vmul.f32 %v1759, 1.442695
    %v1768 = vpow.pop %v1767
    %v1769 = vmul.f32 %v1760, 1.442695
    %v1770 = vpow.pop %v1769
    %v1771 = vmul.f32 %v1761, 1.442695
    %v1772 = vpow.pop %v1771
    %v1773 = vmul.f32 %v1762, 1.442695
    %v1774 = vpow.pop %v1773
    %v1775 = vmul.f32 %v1763, 1.442695
    %v1776 = vpow.pop %v1775
    %v1777 = vmul.f32 %v1764, 1.442695
    %v1778 = vpow.pop %v1777
    %v1779 = vmul.f32 %v1765, 1.442695
    %v1780 = vpow.pop %v1779
    %v1781 = vmul.f32 %v1766, 1.442695
    %v1782 = vpow.pop %v1781
    %v1783 = vsel %vm533, %v1768, 0.0
    %1784 = vadd.xlane.f32.xlu0 %v1783
    %v1785 = vpop.xlane.xlu0 %1784
    %v1786 = vsel %vm533, %v1770, 0.0
    %1787 = vadd.xlane.f32.xlu0 %v1786
    %v1788 = vpop.xlane.xlu0 %1787
    %v1789 = vsel %vm533, %v1772, 0.0
    %1790 = vadd.xlane.f32.xlu0 %v1789
    %v1791 = vpop.xlane.xlu0 %1790
    %v1792 = vsel %vm533, %v1774, 0.0
    %1793 = vadd.xlane.f32.xlu0 %v1792
    %v1794 = vpop.xlane.xlu0 %1793
    %v1795 = vsel %vm533, %v1776, 0.0
    %1796 = vadd.xlane.f32.xlu0 %v1795
    %v1797 = vpop.xlane.xlu0 %1796
    %v1798 = vsel %vm533, %v1778, 0.0
    %1799 = vadd.xlane.f32.xlu0 %v1798
    %v1800 = vpop.xlane.xlu0 %1799
    %v1801 = vsel %vm533, %v1780, 0.0
    %1802 = vadd.xlane.f32.xlu0 %v1801
    %v1803 = vpop.xlane.xlu0 %1802
    %v1804 = vsel %vm533, %v1782, 0.0
    %1805 = vadd.xlane.f32.xlu0 %v1804
    %v1806 = vpop.xlane.xlu0 %1805
    %v1807 = vrcp.pop %v1785
    %v1808 = vrcp.pop %v1788
    %v1809 = vrcp.pop %v1791
    %v1810 = vrcp.pop %v1794
    %v1811 = vrcp.pop %v1797
    %v1812 = vrcp.pop %v1800
    %v1813 = vrcp.pop %v1803
    %v1814 = vrcp.pop %v1806
    %v1815 = vmul.f32 %v1768, %v1807
    %v1816 = vmul.f32 %v1770, %v1808
    %v1817 = vmul.f32 %v1772, %v1809
    %v1818 = vmul.f32 %v1774, %v1810
    %v1819 = vmul.f32 %v1776, %v1811
    %v1820 = vmul.f32 %v1778, %v1812
    %v1821 = vmul.f32 %v1780, %v1813
    %v1822 = vmul.f32 %v1782, %v1814
    %v1823 = vpack.c.bf16 %v1816, %v1815
    %v1824 = vpack.c.bf16 %v1818, %v1817
    %v1825 = vpack.c.bf16 %v1820, %v1819
    %v1826 = vpack.c.bf16 %v1822, %v1821
    %v1828 = vsel %vm533, %v1823, 0
    %v1831 = vsel %vm533, %v1824, 0
    %1833 = vmatprep.subr.bf16.mxu0 0
    %1834 = vmatpush1.bf16.msra.mxu0 0
    %1835 = vmatprep.subr.bf16.mxu0 0
    %1836 = vmatpush1.bf16.msra.mxu0 0
    %1837 = vmatprep.subr.bf16.mxu0 0
    %1838 = vmatpush1.bf16.msra.mxu0 0
    %1839 = vmatprep.subr.bf16.mxu0 0
    %1840 = vmatpush1.bf16.msra.mxu0 0
    %1841 = vmatprep.subr.bf16.mxu0 0
    %1842 = vmatpush1.bf16.msra.mxu0 0
    %1843 = vmatprep.subr.bf16.mxu0 0
    %1844 = vmatpush1.bf16.msra.mxu0 0
    %1845 = vmatprep.subr.bf16.mxu0 0
    %1846 = vmatpush1.bf16.msra.mxu0 %v1587
    %1847 = vmatprep.subr.bf16.mxu0 0
    %1848 = vmatpush1.bf16.msra.mxu0 %v1585
    %1849 = vmatprep.subr.bf16.mxu0 0
    %1850 = vmatpush2.bf16.msra.mxu0 0
    %1851 = vmatprep.subr.bf16.mxu0 0
    %1852 = vmatpush2.bf16.msra.mxu0 0
    %1853 = vmatprep.subr.bf16.mxu0 0
    %1854 = vmatpush2.bf16.msra.mxu0 0
    %1855 = vmatprep.subr.bf16.mxu0 0
    %1856 = vmatpush2.bf16.msra.mxu0 0
    %1857 = vmatprep.subr.bf16.mxu0 0
    %1858 = vmatpush2.bf16.msra.mxu0 0
    %1859 = vmatprep.subr.bf16.mxu0 0
    %1860 = vmatpush2.bf16.msra.mxu0 0
    %1861 = vmatprep.subr.bf16.mxu0 0
    %1862 = vmatpush2.bf16.msra.mxu0 0
    %1863 = vmatprep.subr.bf16.mxu0 0
    %1864 = vmatpush2.bf16.msra.mxu0 0
    %1865 = vmatprep.mubr.bf16.mxu0 0
    %1866 = vmatmul.mubr.bf16.gmra.mxu0 %v1828
    %v1867 = vpop.f32.mrf.mxu0
    %v1868 = vadd.f32 0.0, %v1867
    %v1869 = vpop.f32.mrf.mxu0
    %v1870 = vpop.f32.mrf.mxu0
    %v1871 = vadd.f32 0.0, %v1870
    %v1872 = vpop.f32.mrf.mxu0
    %1873 = vmatprep.mubr.bf16.mxu0 0
    %1874 = vmatmul.mubr.bf16.gmra.mxu0 %v1831
    %v1875 = vpop.f32.mrf.mxu0
    %v1876 = vadd.f32 0.0, %v1875
    %v1877 = vpop.f32.mrf.mxu0
    %v1878 = vpop.f32.mrf.mxu0
    %v1879 = vadd.f32 0.0, %v1878
    %v1880 = vpop.f32.mrf.mxu0
    %1881 = vdwg.mxu0
    %v1883 = vsel %vm533, %v1825, 0
    %v1886 = vsel %vm533, %v1826, 0
    %1888 = vmatprep.subr.bf16.mxu0 0
    %1889 = vmatpush1.bf16.msra.mxu0 0
    %1890 = vmatprep.subr.bf16.mxu0 0
    %1891 = vmatpush1.bf16.msra.mxu0 0
    %1892 = vmatprep.subr.bf16.mxu0 0
    %1893 = vmatpush1.bf16.msra.mxu0 0
    %1894 = vmatprep.subr.bf16.mxu0 0
    %1895 = vmatpush1.bf16.msra.mxu0 0
    %1896 = vmatprep.subr.bf16.mxu0 0
    %1897 = vmatpush1.bf16.msra.mxu0 0
    %1898 = vmatprep.subr.bf16.mxu0 0
    %1899 = vmatpush1.bf16.msra.mxu0 0
    %1900 = vmatprep.subr.bf16.mxu0 0
    %1901 = vmatpush1.bf16.msra.mxu0 %v1591
    %1902 = vmatprep.subr.bf16.mxu0 0
    %1903 = vmatpush1.bf16.msra.mxu0 %v1589
    %1904 = vmatprep.subr.bf16.mxu0 0
    %1905 = vmatpush2.bf16.msra.mxu0 0
    %1906 = vmatprep.subr.bf16.mxu0 0
    %1907 = vmatpush2.bf16.msra.mxu0 0
    %1908 = vmatprep.subr.bf16.mxu0 0
    %1909 = vmatpush2.bf16.msra.mxu0 0
    %1910 = vmatprep.subr.bf16.mxu0 0
    %1911 = vmatpush2.bf16.msra.mxu0 0
    %1912 = vmatprep.subr.bf16.mxu0 0
    %1913 = vmatpush2.bf16.msra.mxu0 0
    %1914 = vmatprep.subr.bf16.mxu0 0
    %1915 = vmatpush2.bf16.msra.mxu0 0
    %1916 = vmatprep.subr.bf16.mxu0 0
    %1917 = vmatpush2.bf16.msra.mxu0 0
    %1918 = vmatprep.subr.bf16.mxu0 0
    %1919 = vmatpush2.bf16.msra.mxu0 0
    %1920 = vmatprep.mubr.bf16.mxu0 0
    %1921 = vmatmul.mubr.bf16.gmra.mxu0 %v1883
    %v1922 = vpop.f32.mrf.mxu0
    %v1923 = vadd.f32 0.0, %v1922
    %v1924 = vpop.f32.mrf.mxu0
    %v1925 = vpop.f32.mrf.mxu0
    %v1926 = vadd.f32 0.0, %v1925
    %v1927 = vpop.f32.mrf.mxu0
    %1928 = vmatprep.mubr.bf16.mxu0 0
    %1929 = vmatmul.mubr.bf16.gmra.mxu0 %v1886
    %v1930 = vpop.f32.mrf.mxu0
    %v1931 = vadd.f32 0.0, %v1930
    %v1932 = vpop.f32.mrf.mxu0
    %v1933 = vpop.f32.mrf.mxu0
    %v1934 = vadd.f32 0.0, %v1933
    %v1935 = vpop.f32.mrf.mxu0
    %1936 = vdwg.mxu0
    %v1937 = vpack.c.bf16 %v1871, %v1868
    %v1938 = vpack.c.bf16 %v1879, %v1876
    %v1939 = vpack.c.bf16 %v1926, %v1923
    %v1940 = vpack.c.bf16 %v1934, %v1931
    %1941 = vrot.lane.b32.xlu0 %v1584, 112
    %v1942 = vpop.permute.xlu0 %1941
    %1943 = vrot.lane.b32.xlu0 %v1586, 112
    %v1944 = vpop.permute.xlu0 %1943
    %1945 = vrot.lane.b32.xlu0 %v1584, 48
    %v1946 = vpop.permute.xlu0 %1945
    %1947 = vrot.lane.b32.xlu0 %v1586, 48
    %v1948 = vpop.permute.xlu0 %1947
    %v1950 = vsel %vm1606, %v1942, 0
    %v1953 = vsel %vm1606, %v1944, 0
    %v1956 = vsel %vm1606, %v1946, 0
    %v1959 = vsel %vm1606, %v1948, 0
    %1961 = vmatprep.subr.bf16.mxu0 0
    %1962 = vmatpush1.bf16.xpose.msra.mxu0 0
    %1963 = vmatprep.subr.bf16.mxu0 0
    %1964 = vmatpush1.bf16.xpose.msra.mxu0 0
    %1965 = vmatprep.subr.bf16.mxu0 0
    %1966 = vmatpush1.bf16.xpose.msra.mxu0 0
    %1967 = vmatprep.subr.bf16.mxu0 0
    %1968 = vmatpush1.bf16.xpose.msra.mxu0 0
    %1969 = vmatprep.subr.bf16.mxu0 0
    %1970 = vmatpush1.bf16.xpose.msra.mxu0 0
    %1971 = vmatprep.subr.bf16.mxu0 0
    %1972 = vmatpush1.bf16.xpose.msra.mxu0 0
    %1973 = vmatprep.subr.bf16.mxu0 0
    %1974 = vmatpush1.bf16.xpose.msra.mxu0 %v1959
    %1975 = vmatprep.subr.bf16.mxu0 0
    %1976 = vmatpush1.bf16.xpose.msra.mxu0 %v1956
    %1977 = vmatprep.subr.bf16.mxu0 0
    %1978 = vmatpush2.bf16.xpose.msra.mxu0 0
    %1979 = vmatprep.subr.bf16.mxu0 0
    %1980 = vmatpush2.bf16.xpose.msra.mxu0 0
    %1981 = vmatprep.subr.bf16.mxu0 0
    %1982 = vmatpush2.bf16.xpose.msra.mxu0 0
    %1983 = vmatprep.subr.bf16.mxu0 0
    %1984 = vmatpush2.bf16.xpose.msra.mxu0 0
    %1985 = vmatprep.subr.bf16.mxu0 0
    %1986 = vmatpush2.bf16.xpose.msra.mxu0 0
    %1987 = vmatprep.subr.bf16.mxu0 0
    %1988 = vmatpush2.bf16.xpose.msra.mxu0 0
    %1989 = vmatprep.subr.bf16.mxu0 0
    %1990 = vmatpush2.bf16.xpose.msra.mxu0 0
    %1991 = vmatprep.subr.bf16.mxu0 0
    %1992 = vmatpush2.bf16.xpose.msra.mxu0 0
    %1993 = vmatprep.mubr.bf16.mxu0 0
    %1994 = vmatmul.mubr.bf16.gmra.mxu0 %v1950
    %v1995 = vpop.f32.mrf.mxu0
    %v1996 = vadd.f32 0.0, %v1995
    %v1997 = vpop.f32.mrf.mxu0
    %v1998 = vpop.f32.mrf.mxu0
    %v1999 = vadd.f32 0.0, %v1998
    %v2000 = vpop.f32.mrf.mxu0
    %2001 = vmatprep.mubr.bf16.mxu0 0
    %2002 = vmatmul.mubr.bf16.gmra.mxu0 %v1953
    %v2003 = vpop.f32.mrf.mxu0
    %v2004 = vadd.f32 0.0, %v2003
    %v2005 = vpop.f32.mrf.mxu0
    %v2006 = vpop.f32.mrf.mxu0
    %v2007 = vadd.f32 0.0, %v2006
    %v2008 = vpop.f32.mrf.mxu0
    %2009 = vdwg.mxu0
    %2010 = vrot.lane.b32.xlu0 %v1588, 112
    %v2011 = vpop.permute.xlu0 %2010
    %2012 = vrot.lane.b32.xlu0 %v1590, 112
    %v2013 = vpop.permute.xlu0 %2012
    %2014 = vrot.lane.b32.xlu0 %v1588, 48
    %v2015 = vpop.permute.xlu0 %2014
    %2016 = vrot.lane.b32.xlu0 %v1590, 48
    %v2017 = vpop.permute.xlu0 %2016
    %v2019 = vsel %vm1606, %v2011, 0
    %v2022 = vsel %vm1606, %v2013, 0
    %v2025 = vsel %vm1606, %v2015, 0
    %v2028 = vsel %vm1606, %v2017, 0
    %2030 = vmatprep.subr.bf16.mxu0 0
    %2031 = vmatpush1.bf16.xpose.msra.mxu0 0
    %2032 = vmatprep.subr.bf16.mxu0 0
    %2033 = vmatpush1.bf16.xpose.msra.mxu0 0
    %2034 = vmatprep.subr.bf16.mxu0 0
    %2035 = vmatpush1.bf16.xpose.msra.mxu0 0
    %2036 = vmatprep.subr.bf16.mxu0 0
    %2037 = vmatpush1.bf16.xpose.msra.mxu0 0
    %2038 = vmatprep.subr.bf16.mxu0 0
    %2039 = vmatpush1.bf16.xpose.msra.mxu0 0
    %2040 = vmatprep.subr.bf16.mxu0 0
    %2041 = vmatpush1.bf16.xpose.msra.mxu0 0
    %2042 = vmatprep.subr.bf16.mxu0 0
    %2043 = vmatpush1.bf16.xpose.msra.mxu0 %v2028
    %2044 = vmatprep.subr.bf16.mxu0 0
    %2045 = vmatpush1.bf16.xpose.msra.mxu0 %v2025
    %2046 = vmatprep.subr.bf16.mxu0 0
    %2047 = vmatpush2.bf16.xpose.msra.mxu0 0
    %2048 = vmatprep.subr.bf16.mxu0 0
    %2049 = vmatpush2.bf16.xpose.msra.mxu0 0
    %2050 = vmatprep.subr.bf16.mxu0 0
    %2051 = vmatpush2.bf16.xpose.msra.mxu0 0
    %2052 = vmatprep.subr.bf16.mxu0 0
    %2053 = vmatpush2.bf16.xpose.msra.mxu0 0
    %2054 = vmatprep.subr.bf16.mxu0 0
    %2055 = vmatpush2.bf16.xpose.msra.mxu0 0
    %2056 = vmatprep.subr.bf16.mxu0 0
    %2057 = vmatpush2.bf16.xpose.msra.mxu0 0
    %2058 = vmatprep.subr.bf16.mxu0 0
    %2059 = vmatpush2.bf16.xpose.msra.mxu0 0
    %2060 = vmatprep.subr.bf16.mxu0 0
    %2061 = vmatpush2.bf16.xpose.msra.mxu0 0
    %2062 = vmatprep.mubr.bf16.mxu0 0
    %2063 = vmatmul.mubr.bf16.gmra.mxu0 %v2019
    %v2064 = vpop.f32.mrf.mxu0
    %v2065 = vadd.f32 0.0, %v2064
    %v2066 = vpop.f32.mrf.mxu0
    %v2067 = vpop.f32.mrf.mxu0
    %v2068 = vadd.f32 0.0, %v2067
    %v2069 = vpop.f32.mrf.mxu0
    %2070 = vmatprep.mubr.bf16.mxu0 0
    %2071 = vmatmul.mubr.bf16.gmra.mxu0 %v2022
    %v2072 = vpop.f32.mrf.mxu0
    %v2073 = vadd.f32 0.0, %v2072
    %v2074 = vpop.f32.mrf.mxu0
    %v2075 = vpop.f32.mrf.mxu0
    %v2076 = vadd.f32 0.0, %v2075
    %v2077 = vpop.f32.mrf.mxu0
    %2078 = vdwg.mxu0
    %v2079 = vsel %vm533, %v1996, -inf
    %2080 = vmax.xlane.f32.xlu0 %v2079
    %v2081 = vpop.xlane.xlu0 %2080
    %v2082 = vsel %vm533, %v1999, -inf
    %2083 = vmax.xlane.f32.xlu0 %v2082
    %v2084 = vpop.xlane.xlu0 %2083
    %v2085 = vsel %vm533, %v2004, -inf
    %2086 = vmax.xlane.f32.xlu0 %v2085
    %v2087 = vpop.xlane.xlu0 %2086
    %v2088 = vsel %vm533, %v2007, -inf
    %2089 = vmax.xlane.f32.xlu0 %v2088
    %v2090 = vpop.xlane.xlu0 %2089
    %v2091 = vsel %vm533, %v2065, -inf
    %2092 = vmax.xlane.f32.xlu0 %v2091
    %v2093 = vpop.xlane.xlu0 %2092
    %v2094 = vsel %vm533, %v2068, -inf
    %2095 = vmax.xlane.f32.xlu0 %v2094
    %v2096 = vpop.xlane.xlu0 %2095
    %v2097 = vsel %vm533, %v2073, -inf
    %2098 = vmax.xlane.f32.xlu0 %v2097
    %v2099 = vpop.xlane.xlu0 %2098
    %v2100 = vsel %vm533, %v2076, -inf
    %2101 = vmax.xlane.f32.xlu0 %v2100
    %v2102 = vpop.xlane.xlu0 %2101
    %v2103 = vsub.f32 %v1996, %v2081
    %v2104 = vsub.f32 %v1999, %v2084
    %v2105 = vsub.f32 %v2004, %v2087
    %v2106 = vsub.f32 %v2007, %v2090
    %v2107 = vsub.f32 %v2065, %v2093
    %v2108 = vsub.f32 %v2068, %v2096
    %v2109 = vsub.f32 %v2073, %v2099
    %v2110 = vsub.f32 %v2076, %v2102
    %v2111 = vmul.f32 %v2103, 1.442695
    %v2112 = vpow.pop %v2111
    %v2113 = vmul.f32 %v2104, 1.442695
    %v2114 = vpow.pop %v2113
    %v2115 = vmul.f32 %v2105, 1.442695
    %v2116 = vpow.pop %v2115
    %v2117 = vmul.f32 %v2106, 1.442695
    %v2118 = vpow.pop %v2117
    %v2119 = vmul.f32 %v2107, 1.442695
    %v2120 = vpow.pop %v2119
    %v2121 = vmul.f32 %v2108, 1.442695
    %v2122 = vpow.pop %v2121
    %v2123 = vmul.f32 %v2109, 1.442695
    %v2124 = vpow.pop %v2123
    %v2125 = vmul.f32 %v2110, 1.442695
    %v2126 = vpow.pop %v2125
    %v2127 = vsel %vm533, %v2112, 0.0
    %2128 = vadd.xlane.f32.xlu0 %v2127
    %v2129 = vpop.xlane.xlu0 %2128
    %v2130 = vsel %vm533, %v2114, 0.0
    %2131 = vadd.xlane.f32.xlu0 %v2130
    %v2132 = vpop.xlane.xlu0 %2131
    %v2133 = vsel %vm533, %v2116, 0.0
    %2134 = vadd.xlane.f32.xlu0 %v2133
    %v2135 = vpop.xlane.xlu0 %2134
    %v2136 = vsel %vm533, %v2118, 0.0
    %2137 = vadd.xlane.f32.xlu0 %v2136
    %v2138 = vpop.xlane.xlu0 %2137
    %v2139 = vsel %vm533, %v2120, 0.0
    %2140 = vadd.xlane.f32.xlu0 %v2139
    %v2141 = vpop.xlane.xlu0 %2140
    %v2142 = vsel %vm533, %v2122, 0.0
    %2143 = vadd.xlane.f32.xlu0 %v2142
    %v2144 = vpop.xlane.xlu0 %2143
    %v2145 = vsel %vm533, %v2124, 0.0
    %2146 = vadd.xlane.f32.xlu0 %v2145
    %v2147 = vpop.xlane.xlu0 %2146
    %v2148 = vsel %vm533, %v2126, 0.0
    %2149 = vadd.xlane.f32.xlu0 %v2148
    %v2150 = vpop.xlane.xlu0 %2149
    %v2151 = vrcp.pop %v2129
    %v2152 = vrcp.pop %v2132
    %v2153 = vrcp.pop %v2135
    %v2154 = vrcp.pop %v2138
    %v2155 = vrcp.pop %v2141
    %v2156 = vrcp.pop %v2144
    %v2157 = vrcp.pop %v2147
    %v2158 = vrcp.pop %v2150
    %v2159 = vmul.f32 %v2112, %v2151
    %v2160 = vmul.f32 %v2114, %v2152
    %v2161 = vmul.f32 %v2116, %v2153
    %v2162 = vmul.f32 %v2118, %v2154
    %v2163 = vmul.f32 %v2120, %v2155
    %v2164 = vmul.f32 %v2122, %v2156
    %v2165 = vmul.f32 %v2124, %v2157
    %v2166 = vmul.f32 %v2126, %v2158
    %v2167 = vpack.c.bf16 %v2160, %v2159
    %v2168 = vpack.c.bf16 %v2162, %v2161
    %v2169 = vpack.c.bf16 %v2164, %v2163
    %v2170 = vpack.c.bf16 %v2166, %v2165
    %2173 = vrot.lane.b32.xlu0 %v1585, 112
    %v2174 = vpop.permute.xlu0 %2173
    %2175 = vrot.lane.b32.xlu0 %v1587, 112
    %v2176 = vpop.permute.xlu0 %2175
    %v2180 = vsel %vm533, %v2167, 0
    %v2183 = vsel %vm533, %v2168, 0
    %2185 = vmatprep.subr.bf16.mxu0 0
    %2186 = vmatpush1.bf16.msra.mxu0 0
    %2187 = vmatprep.subr.bf16.mxu0 0
    %2188 = vmatpush1.bf16.msra.mxu0 0
    %2189 = vmatprep.subr.bf16.mxu0 0
    %2190 = vmatpush1.bf16.msra.mxu0 0
    %2191 = vmatprep.subr.bf16.mxu0 0
    %2192 = vmatpush1.bf16.msra.mxu0 0
    %2193 = vmatprep.subr.bf16.mxu0 0
    %2194 = vmatpush1.bf16.msra.mxu0 0
    %2195 = vmatprep.subr.bf16.mxu0 0
    %2196 = vmatpush1.bf16.msra.mxu0 0
    %2197 = vmatprep.subr.bf16.mxu0 0
    %2198 = vmatpush1.bf16.msra.mxu0 %v2176
    %2199 = vmatprep.subr.bf16.mxu0 0
    %2200 = vmatpush1.bf16.msra.mxu0 %v2174
    %2201 = vmatprep.subr.bf16.mxu0 0
    %2202 = vmatpush2.bf16.msra.mxu0 0
    %2203 = vmatprep.subr.bf16.mxu0 0
    %2204 = vmatpush2.bf16.msra.mxu0 0
    %2205 = vmatprep.subr.bf16.mxu0 0
    %2206 = vmatpush2.bf16.msra.mxu0 0
    %2207 = vmatprep.subr.bf16.mxu0 0
    %2208 = vmatpush2.bf16.msra.mxu0 0
    %2209 = vmatprep.subr.bf16.mxu0 0
    %2210 = vmatpush2.bf16.msra.mxu0 0
    %2211 = vmatprep.subr.bf16.mxu0 0
    %2212 = vmatpush2.bf16.msra.mxu0 0
    %2213 = vmatprep.subr.bf16.mxu0 0
    %2214 = vmatpush2.bf16.msra.mxu0 0
    %2215 = vmatprep.subr.bf16.mxu0 0
    %2216 = vmatpush2.bf16.msra.mxu0 0
    %2217 = vmatprep.mubr.bf16.mxu0 0
    %2218 = vmatmul.mubr.bf16.gmra.mxu0 %v2180
    %v2219 = vpop.f32.mrf.mxu0
    %v2220 = vadd.f32 0.0, %v2219
    %v2221 = vpop.f32.mrf.mxu0
    %v2222 = vpop.f32.mrf.mxu0
    %v2223 = vadd.f32 0.0, %v2222
    %v2224 = vpop.f32.mrf.mxu0
    %2225 = vmatprep.mubr.bf16.mxu0 0
    %2226 = vmatmul.mubr.bf16.gmra.mxu0 %v2183
    %v2227 = vpop.f32.mrf.mxu0
    %v2228 = vadd.f32 0.0, %v2227
    %v2229 = vpop.f32.mrf.mxu0
    %v2230 = vpop.f32.mrf.mxu0
    %v2231 = vadd.f32 0.0, %v2230
    %v2232 = vpop.f32.mrf.mxu0
    %2233 = vdwg.mxu0
    %2236 = vrot.lane.b32.xlu0 %v1589, 112
    %v2237 = vpop.permute.xlu0 %2236
    %2238 = vrot.lane.b32.xlu0 %v1591, 112
    %v2239 = vpop.permute.xlu0 %2238
    %v2243 = vsel %vm533, %v2169, 0
    %v2246 = vsel %vm533, %v2170, 0
    %2248 = vmatprep.subr.bf16.mxu0 0
    %2249 = vmatpush1.bf16.msra.mxu0 0
    %2250 = vmatprep.subr.bf16.mxu0 0
    %2251 = vmatpush1.bf16.msra.mxu0 0
    %2252 = vmatprep.subr.bf16.mxu0 0
    %2253 = vmatpush1.bf16.msra.mxu0 0
    %2254 = vmatprep.subr.bf16.mxu0 0
    %2255 = vmatpush1.bf16.msra.mxu0 0
    %2256 = vmatprep.subr.bf16.mxu0 0
    %2257 = vmatpush1.bf16.msra.mxu0 0
    %2258 = vmatprep.subr.bf16.mxu0 0
    %2259 = vmatpush1.bf16.msra.mxu0 0
    %2260 = vmatprep.subr.bf16.mxu0 0
    %2261 = vmatpush1.bf16.msra.mxu0 %v2239
    %2262 = vmatprep.subr.bf16.mxu0 0
    %2263 = vmatpush1.bf16.msra.mxu0 %v2237
    %2264 = vmatprep.subr.bf16.mxu0 0
    %2265 = vmatpush2.bf16.msra.mxu0 0
    %2266 = vmatprep.subr.bf16.mxu0 0
    %2267 = vmatpush2.bf16.msra.mxu0 0
    %2268 = vmatprep.subr.bf16.mxu0 0
    %2269 = vmatpush2.bf16.msra.mxu0 0
    %2270 = vmatprep.subr.bf16.mxu0 0
    %2271 = vmatpush2.bf16.msra.mxu0 0
    %2272 = vmatprep.subr.bf16.mxu0 0
    %2273 = vmatpush2.bf16.msra.mxu0 0
    %2274 = vmatprep.subr.bf16.mxu0 0
    %2275 = vmatpush2.bf16.msra.mxu0 0
    %2276 = vmatprep.subr.bf16.mxu0 0
    %2277 = vmatpush2.bf16.msra.mxu0 0
    %2278 = vmatprep.subr.bf16.mxu0 0
    %2279 = vmatpush2.bf16.msra.mxu0 0
    %2280 = vmatprep.mubr.bf16.mxu0 0
    %2281 = vmatmul.mubr.bf16.gmra.mxu0 %v2243
    %v2282 = vpop.f32.mrf.mxu0
    %v2283 = vadd.f32 0.0, %v2282
    %v2284 = vpop.f32.mrf.mxu0
    %v2285 = vpop.f32.mrf.mxu0
    %v2286 = vadd.f32 0.0, %v2285
    %v2287 = vpop.f32.mrf.mxu0
    %2288 = vmatprep.mubr.bf16.mxu0 0
    %2289 = vmatmul.mubr.bf16.gmra.mxu0 %v2246
    %v2290 = vpop.f32.mrf.mxu0
    %v2291 = vadd.f32 0.0, %v2290
    %v2292 = vpop.f32.mrf.mxu0
    %v2293 = vpop.f32.mrf.mxu0
    %v2294 = vadd.f32 0.0, %v2293
    %v2295 = vpop.f32.mrf.mxu0
    %2296 = vdwg.mxu0
    %v2297 = vpack.c.bf16 %v2223, %v2220
    %v2298 = vpack.c.bf16 %v2231, %v2228
    %v2299 = vpack.c.bf16 %v2286, %v2283
    %v2300 = vpack.c.bf16 %v2294, %v2291
    %v2303 = vunpack.c.l.b16 %v1594
    %v2304 = vunpack.c.l.b16 %v1595
    %v2305 = vpack.c.b16 %v2304, %v2303
    %v2308 = vsel %vm1606, %v2297, 0
    %v2311 = vsel %vm1606, %v2298, 0
    %v2314 = vsel %vm1606, %v2299, 0
    %v2317 = vsel %vm1606, %v2300, 0
    %2319 = vmatprep.subr.bf16.mxu0 0
    %2320 = vmatpush1.bf16.msra.mxu0 0
    %2321 = vmatprep.subr.bf16.mxu0 0
    %2322 = vmatpush1.bf16.msra.mxu0 0
    %2323 = vmatprep.subr.bf16.mxu0 0
    %2324 = vmatpush1.bf16.msra.mxu0 0
    %2325 = vmatprep.subr.bf16.mxu0 0
    %2326 = vmatpush1.bf16.msra.mxu0 0
    %2327 = vmatprep.subr.bf16.mxu0 0
    %2328 = vmatpush1.bf16.msra.mxu0 0
    %2329 = vmatprep.subr.bf16.mxu0 0
    %2330 = vmatpush1.bf16.msra.mxu0 0
    %2331 = vmatprep.subr.bf16.mxu0 0
    %2332 = vmatpush1.bf16.msra.mxu0 0
    %2333 = vmatprep.subr.bf16.mxu0 0
    %2334 = vmatpush1.bf16.msra.mxu0 %v2305
    %2335 = vmatprep.subr.bf16.mxu0 0
    %2336 = vmatpush2.bf16.msra.mxu0 0
    %2337 = vmatprep.subr.bf16.mxu0 0
    %2338 = vmatpush2.bf16.msra.mxu0 0
    %2339 = vmatprep.subr.bf16.mxu0 0
    %2340 = vmatpush2.bf16.msra.mxu0 0
    %2341 = vmatprep.subr.bf16.mxu0 0
    %2342 = vmatpush2.bf16.msra.mxu0 0
    %2343 = vmatprep.subr.bf16.mxu0 0
    %2344 = vmatpush2.bf16.msra.mxu0 0
    %2345 = vmatprep.subr.bf16.mxu0 0
    %2346 = vmatpush2.bf16.msra.mxu0 0
    %2347 = vmatprep.subr.bf16.mxu0 0
    %2348 = vmatpush2.bf16.msra.mxu0 0
    %2349 = vmatprep.subr.bf16.mxu0 0
    %2350 = vmatpush2.bf16.msra.mxu0 0
    %2351 = vmatprep.mubr.bf16.mxu0 0
    %2352 = vmatmul.mubr.bf16.gmra.mxu0 %v2308
    %v2353 = vpop.f32.mrf.mxu0
    %v2354 = vadd.f32 0.0, %v2353
    %v2355 = vpop.f32.mrf.mxu0
    %v2356 = vpop.f32.mrf.mxu0
    %v2357 = vadd.f32 0.0, %v2356
    %v2358 = vpop.f32.mrf.mxu0
    %2359 = vmatprep.mubr.bf16.mxu0 0
    %2360 = vmatmul.mubr.bf16.gmra.mxu0 %v2311
    %v2361 = vpop.f32.mrf.mxu0
    %v2362 = vadd.f32 0.0, %v2361
    %v2363 = vpop.f32.mrf.mxu0
    %v2364 = vpop.f32.mrf.mxu0
    %v2365 = vadd.f32 0.0, %v2364
    %v2366 = vpop.f32.mrf.mxu0
    %2367 = vmatprep.mubr.bf16.mxu0 0
    %2368 = vmatmul.mubr.bf16.gmra.mxu0 %v2314
    %v2369 = vpop.f32.mrf.mxu0
    %v2370 = vadd.f32 0.0, %v2369
    %v2371 = vpop.f32.mrf.mxu0
    %v2372 = vpop.f32.mrf.mxu0
    %v2373 = vadd.f32 0.0, %v2372
    %v2374 = vpop.f32.mrf.mxu0
    %2375 = vmatprep.mubr.bf16.mxu0 0
    %2376 = vmatmul.mubr.bf16.gmra.mxu0 %v2317
    %v2377 = vpop.f32.mrf.mxu0
    %v2378 = vadd.f32 0.0, %v2377
    %v2379 = vpop.f32.mrf.mxu0
    %v2380 = vpop.f32.mrf.mxu0
    %v2381 = vadd.f32 0.0, %v2380
    %v2382 = vpop.f32.mrf.mxu0
    %2383 = vdwg.mxu0
    %v2386 = vunpack.c.l.b16 %v1592
    %v2387 = vunpack.c.l.b16 %v1593
    %v2388 = vpack.c.b16 %v2387, %v2386
    %v2391 = vsel %vm1606, %v1937, 0
    %v2394 = vsel %vm1606, %v1938, 0
    %v2397 = vsel %vm1606, %v1939, 0
    %v2400 = vsel %vm1606, %v1940, 0
    %2402 = vmatprep.subr.bf16.mxu0 0
    %2403 = vmatpush1.bf16.msra.mxu0 0
    %2404 = vmatprep.subr.bf16.mxu0 0
    %2405 = vmatpush1.bf16.msra.mxu0 0
    %2406 = vmatprep.subr.bf16.mxu0 0
    %2407 = vmatpush1.bf16.msra.mxu0 0
    %2408 = vmatprep.subr.bf16.mxu0 0
    %2409 = vmatpush1.bf16.msra.mxu0 0
    %2410 = vmatprep.subr.bf16.mxu0 0
    %2411 = vmatpush1.bf16.msra.mxu0 0
    %2412 = vmatprep.subr.bf16.mxu0 0
    %2413 = vmatpush1.bf16.msra.mxu0 0
    %2414 = vmatprep.subr.bf16.mxu0 0
    %2415 = vmatpush1.bf16.msra.mxu0 0
    %2416 = vmatprep.subr.bf16.mxu0 0
    %2417 = vmatpush1.bf16.msra.mxu0 %v2388
    %2418 = vmatprep.subr.bf16.mxu0 0
    %2419 = vmatpush2.bf16.msra.mxu0 0
    %2420 = vmatprep.subr.bf16.mxu0 0
    %2421 = vmatpush2.bf16.msra.mxu0 0
    %2422 = vmatprep.subr.bf16.mxu0 0
    %2423 = vmatpush2.bf16.msra.mxu0 0
    %2424 = vmatprep.subr.bf16.mxu0 0
    %2425 = vmatpush2.bf16.msra.mxu0 0
    %2426 = vmatprep.subr.bf16.mxu0 0
    %2427 = vmatpush2.bf16.msra.mxu0 0
    %2428 = vmatprep.subr.bf16.mxu0 0
    %2429 = vmatpush2.bf16.msra.mxu0 0
    %2430 = vmatprep.subr.bf16.mxu0 0
    %2431 = vmatpush2.bf16.msra.mxu0 0
    %2432 = vmatprep.subr.bf16.mxu0 0
    %2433 = vmatpush2.bf16.msra.mxu0 0
    %2434 = vmatprep.mubr.bf16.mxu0 0
    %2435 = vmatmul.mubr.bf16.gmra.mxu0 %v2391
    %v2436 = vpop.f32.mrf.mxu0
    %v2437 = vadd.f32 %v2354, %v2436
    %v2438 = vpop.f32.mrf.mxu0
    %v2439 = vpop.f32.mrf.mxu0
    %v2440 = vadd.f32 %v2357, %v2439
    %v2441 = vpop.f32.mrf.mxu0
    %2442 = vmatprep.mubr.bf16.mxu0 0
    %2443 = vmatmul.mubr.bf16.gmra.mxu0 %v2394
    %v2444 = vpop.f32.mrf.mxu0
    %v2445 = vadd.f32 %v2362, %v2444
    %v2446 = vpop.f32.mrf.mxu0
    %v2447 = vpop.f32.mrf.mxu0
    %v2448 = vadd.f32 %v2365, %v2447
    %v2449 = vpop.f32.mrf.mxu0
    %2450 = vmatprep.mubr.bf16.mxu0 0
    %2451 = vmatmul.mubr.bf16.gmra.mxu0 %v2397
    %v2452 = vpop.f32.mrf.mxu0
    %v2453 = vadd.f32 %v2370, %v2452
    %v2454 = vpop.f32.mrf.mxu0
    %v2455 = vpop.f32.mrf.mxu0
    %v2456 = vadd.f32 %v2373, %v2455
    %v2457 = vpop.f32.mrf.mxu0
    %2458 = vmatprep.mubr.bf16.mxu0 0
    %2459 = vmatmul.mubr.bf16.gmra.mxu0 %v2400
    %v2460 = vpop.f32.mrf.mxu0
    %v2461 = vadd.f32 %v2378, %v2460
    %v2462 = vpop.f32.mrf.mxu0
    %v2463 = vpop.f32.mrf.mxu0
    %v2464 = vadd.f32 %v2381, %v2463
    %v2465 = vpop.f32.mrf.mxu0
    %2466 = vdwg.mxu0
    %2467 = vrot.lane.b32.xlu0 %v1584, 96
    %v2468 = vpop.permute.xlu0 %2467
    %2469 = vrot.lane.b32.xlu0 %v1586, 96
    %v2470 = vpop.permute.xlu0 %2469
    %2471 = vrot.lane.b32.xlu0 %v1584, 32
    %v2472 = vpop.permute.xlu0 %2471
    %2473 = vrot.lane.b32.xlu0 %v1586, 32
    %v2474 = vpop.permute.xlu0 %2473
    %v2476 = vsel %vm1606, %v2468, 0
    %v2479 = vsel %vm1606, %v2470, 0
    %v2482 = vsel %vm1606, %v2472, 0
    %v2485 = vsel %vm1606, %v2474, 0
    %2487 = vmatprep.subr.bf16.mxu0 0
    %2488 = vmatpush1.bf16.xpose.msra.mxu0 0
    %2489 = vmatprep.subr.bf16.mxu0 0
    %2490 = vmatpush1.bf16.xpose.msra.mxu0 0
    %2491 = vmatprep.subr.bf16.mxu0 0
    %2492 = vmatpush1.bf16.xpose.msra.mxu0 0
    %2493 = vmatprep.subr.bf16.mxu0 0
    %2494 = vmatpush1.bf16.xpose.msra.mxu0 0
    %2495 = vmatprep.subr.bf16.mxu0 0
    %2496 = vmatpush1.bf16.xpose.msra.mxu0 0
    %2497 = vmatprep.subr.bf16.mxu0 0
    %2498 = vmatpush1.bf16.xpose.msra.mxu0 0
    %2499 = vmatprep.subr.bf16.mxu0 0
    %2500 = vmatpush1.bf16.xpose.msra.mxu0 %v2485
    %2501 = vmatprep.subr.bf16.mxu0 0
    %2502 = vmatpush1.bf16.xpose.msra.mxu0 %v2482
    %2503 = vmatprep.subr.bf16.mxu0 0
    %2504 = vmatpush2.bf16.xpose.msra.mxu0 0
    %2505 = vmatprep.subr.bf16.mxu0 0
    %2506 = vmatpush2.bf16.xpose.msra.mxu0 0
    %2507 = vmatprep.subr.bf16.mxu0 0
    %2508 = vmatpush2.bf16.xpose.msra.mxu0 0
    %2509 = vmatprep.subr.bf16.mxu0 0
    %2510 = vmatpush2.bf16.xpose.msra.mxu0 0
    %2511 = vmatprep.subr.bf16.mxu0 0
    %2512 = vmatpush2.bf16.xpose.msra.mxu0 0
    %2513 = vmatprep.subr.bf16.mxu0 0
    %2514 = vmatpush2.bf16.xpose.msra.mxu0 0
    %2515 = vmatprep.subr.bf16.mxu0 0
    %2516 = vmatpush2.bf16.xpose.msra.mxu0 0
    %2517 = vmatprep.subr.bf16.mxu0 0
    %2518 = vmatpush2.bf16.xpose.msra.mxu0 0
    %2519 = vmatprep.mubr.bf16.mxu0 0
    %2520 = vmatmul.mubr.bf16.gmra.mxu0 %v2476
    %v2521 = vpop.f32.mrf.mxu0
    %v2522 = vadd.f32 0.0, %v2521
    %v2523 = vpop.f32.mrf.mxu0
    %v2524 = vpop.f32.mrf.mxu0
    %v2525 = vadd.f32 0.0, %v2524
    %v2526 = vpop.f32.mrf.mxu0
    %2527 = vmatprep.mubr.bf16.mxu0 0
    %2528 = vmatmul.mubr.bf16.gmra.mxu0 %v2479
    %v2529 = vpop.f32.mrf.mxu0
    %v2530 = vadd.f32 0.0, %v2529
    %v2531 = vpop.f32.mrf.mxu0
    %v2532 = vpop.f32.mrf.mxu0
    %v2533 = vadd.f32 0.0, %v2532
    %v2534 = vpop.f32.mrf.mxu0
    %2535 = vdwg.mxu0
    %2536 = vrot.lane.b32.xlu0 %v1588, 96
    %v2537 = vpop.permute.xlu0 %2536
    %2538 = vrot.lane.b32.xlu0 %v1590, 96
    %v2539 = vpop.permute.xlu0 %2538
    %2540 = vrot.lane.b32.xlu0 %v1588, 32
    %v2541 = vpop.permute.xlu0 %2540
    %2542 = vrot.lane.b32.xlu0 %v1590, 32
    %v2543 = vpop.permute.xlu0 %2542
    %v2545 = vsel %vm1606, %v2537, 0
    %v2548 = vsel %vm1606, %v2539, 0
    %v2551 = vsel %vm1606, %v2541, 0
    %v2554 = vsel %vm1606, %v2543, 0
    %2556 = vmatprep.subr.bf16.mxu0 0
    %2557 = vmatpush1.bf16.xpose.msra.mxu0 0
    %2558 = vmatprep.subr.bf16.mxu0 0
    %2559 = vmatpush1.bf16.xpose.msra.mxu0 0
    %2560 = vmatprep.subr.bf16.mxu0 0
    %2561 = vmatpush1.bf16.xpose.msra.mxu0 0
    %2562 = vmatprep.subr.bf16.mxu0 0
    %2563 = vmatpush1.bf16.xpose.msra.mxu0 0
    %2564 = vmatprep.subr.bf16.mxu0 0
    %2565 = vmatpush1.bf16.xpose.msra.mxu0 0
    %2566 = vmatprep.subr.bf16.mxu0 0
    %2567 = vmatpush1.bf16.xpose.msra.mxu0 0
    %2568 = vmatprep.subr.bf16.mxu0 0
    %2569 = vmatpush1.bf16.xpose.msra.mxu0 %v2554
    %2570 = vmatprep.subr.bf16.mxu0 0
    %2571 = vmatpush1.bf16.xpose.msra.mxu0 %v2551
    %2572 = vmatprep.subr.bf16.mxu0 0
    %2573 = vmatpush2.bf16.xpose.msra.mxu0 0
    %2574 = vmatprep.subr.bf16.mxu0 0
    %2575 = vmatpush2.bf16.xpose.msra.mxu0 0
    %2576 = vmatprep.subr.bf16.mxu0 0
    %2577 = vmatpush2.bf16.xpose.msra.mxu0 0
    %2578 = vmatprep.subr.bf16.mxu0 0
    %2579 = vmatpush2.bf16.xpose.msra.mxu0 0
    %2580 = vmatprep.subr.bf16.mxu0 0
    %2581 = vmatpush2.bf16.xpose.msra.mxu0 0
    %2582 = vmatprep.subr.bf16.mxu0 0
    %2583 = vmatpush2.bf16.xpose.msra.mxu0 0
    %2584 = vmatprep.subr.bf16.mxu0 0
    %2585 = vmatpush2.bf16.xpose.msra.mxu0 0
    %2586 = vmatprep.subr.bf16.mxu0 0
    %2587 = vmatpush2.bf16.xpose.msra.mxu0 0
    %2588 = vmatprep.mubr.bf16.mxu0 0
    %2589 = vmatmul.mubr.bf16.gmra.mxu0 %v2545
    %v2590 = vpop.f32.mrf.mxu0
    %v2591 = vadd.f32 0.0, %v2590
    %v2592 = vpop.f32.mrf.mxu0
    %v2593 = vpop.f32.mrf.mxu0
    %v2594 = vadd.f32 0.0, %v2593
    %v2595 = vpop.f32.mrf.mxu0
    %2596 = vmatprep.mubr.bf16.mxu0 0
    %2597 = vmatmul.mubr.bf16.gmra.mxu0 %v2548
    %v2598 = vpop.f32.mrf.mxu0
    %v2599 = vadd.f32 0.0, %v2598
    %v2600 = vpop.f32.mrf.mxu0
    %v2601 = vpop.f32.mrf.mxu0
    %v2602 = vadd.f32 0.0, %v2601
    %v2603 = vpop.f32.mrf.mxu0
    %2604 = vdwg.mxu0
    %v2605 = vsel %vm533, %v2522, -inf
    %2606 = vmax.xlane.f32.xlu0 %v2605
    %v2607 = vpop.xlane.xlu0 %2606
    %v2608 = vsel %vm533, %v2525, -inf
    %2609 = vmax.xlane.f32.xlu0 %v2608
    %v2610 = vpop.xlane.xlu0 %2609
    %v2611 = vsel %vm533, %v2530, -inf
    %2612 = vmax.xlane.f32.xlu0 %v2611
    %v2613 = vpop.xlane.xlu0 %2612
    %v2614 = vsel %vm533, %v2533, -inf
    %2615 = vmax.xlane.f32.xlu0 %v2614
    %v2616 = vpop.xlane.xlu0 %2615
    %v2617 = vsel %vm533, %v2591, -inf
    %2618 = vmax.xlane.f32.xlu0 %v2617
    %v2619 = vpop.xlane.xlu0 %2618
    %v2620 = vsel %vm533, %v2594, -inf
    %2621 = vmax.xlane.f32.xlu0 %v2620
    %v2622 = vpop.xlane.xlu0 %2621
    %v2623 = vsel %vm533, %v2599, -inf
    %2624 = vmax.xlane.f32.xlu0 %v2623
    %v2625 = vpop.xlane.xlu0 %2624
    %v2626 = vsel %vm533, %v2602, -inf
    %2627 = vmax.xlane.f32.xlu0 %v2626
    %v2628 = vpop.xlane.xlu0 %2627
    %v2629 = vsub.f32 %v2522, %v2607
    %v2630 = vsub.f32 %v2525, %v2610
    %v2631 = vsub.f32 %v2530, %v2613
    %v2632 = vsub.f32 %v2533, %v2616
    %v2633 = vsub.f32 %v2591, %v2619
    %v2634 = vsub.f32 %v2594, %v2622
    %v2635 = vsub.f32 %v2599, %v2625
    %v2636 = vsub.f32 %v2602, %v2628
    %v2637 = vmul.f32 %v2629, 1.442695
    %v2638 = vpow.pop %v2637
    %v2639 = vmul.f32 %v2630, 1.442695
    %v2640 = vpow.pop %v2639
    %v2641 = vmul.f32 %v2631, 1.442695
    %v2642 = vpow.pop %v2641
    %v2643 = vmul.f32 %v2632, 1.442695
    %v2644 = vpow.pop %v2643
    %v2645 = vmul.f32 %v2633, 1.442695
    %v2646 = vpow.pop %v2645
    %v2647 = vmul.f32 %v2634, 1.442695
    %v2648 = vpow.pop %v2647
    %v2649 = vmul.f32 %v2635, 1.442695
    %v2650 = vpow.pop %v2649
    %v2651 = vmul.f32 %v2636, 1.442695
    %v2652 = vpow.pop %v2651
    %v2653 = vsel %vm533, %v2638, 0.0
    %2654 = vadd.xlane.f32.xlu0 %v2653
    %v2655 = vpop.xlane.xlu0 %2654
    %v2656 = vsel %vm533, %v2640, 0.0
    %2657 = vadd.xlane.f32.xlu0 %v2656
    %v2658 = vpop.xlane.xlu0 %2657
    %v2659 = vsel %vm533, %v2642, 0.0
    %2660 = vadd.xlane.f32.xlu0 %v2659
    %v2661 = vpop.xlane.xlu0 %2660
    %v2662 = vsel %vm533, %v2644, 0.0
    %2663 = vadd.xlane.f32.xlu0 %v2662
    %v2664 = vpop.xlane.xlu0 %2663
    %v2665 = vsel %vm533, %v2646, 0.0
    %2666 = vadd.xlane.f32.xlu0 %v2665
    %v2667 = vpop.xlane.xlu0 %2666
    %v2668 = vsel %vm533, %v2648, 0.0
    %2669 = vadd.xlane.f32.xlu0 %v2668
    %v2670 = vpop.xlane.xlu0 %2669
    %v2671 = vsel %vm533, %v2650, 0.0
    %2672 = vadd.xlane.f32.xlu0 %v2671
    %v2673 = vpop.xlane.xlu0 %2672
    %v2674 = vsel %vm533, %v2652, 0.0
    %2675 = vadd.xlane.f32.xlu0 %v2674
    %v2676 = vpop.xlane.xlu0 %2675
    %v2677 = vrcp.pop %v2655
    %v2678 = vrcp.pop %v2658
    %v2679 = vrcp.pop %v2661
    %v2680 = vrcp.pop %v2664
    %v2681 = vrcp.pop %v2667
    %v2682 = vrcp.pop %v2670
    %v2683 = vrcp.pop %v2673
    %v2684 = vrcp.pop %v2676
    %v2685 = vmul.f32 %v2638, %v2677
    %v2686 = vmul.f32 %v2640, %v2678
    %v2687 = vmul.f32 %v2642, %v2679
    %v2688 = vmul.f32 %v2644, %v2680
    %v2689 = vmul.f32 %v2646, %v2681
    %v2690 = vmul.f32 %v2648, %v2682
    %v2691 = vmul.f32 %v2650, %v2683
    %v2692 = vmul.f32 %v2652, %v2684
    %v2693 = vpack.c.bf16 %v2686, %v2685
    %v2694 = vpack.c.bf16 %v2688, %v2687
    %v2695 = vpack.c.bf16 %v2690, %v2689
    %v2696 = vpack.c.bf16 %v2692, %v2691
    %2697 = vrot.lane.b32.xlu0 %v1585, 96
    %v2698 = vpop.permute.xlu0 %2697
    %2699 = vrot.lane.b32.xlu0 %v1587, 96
    %v2700 = vpop.permute.xlu0 %2699
    %v2704 = vsel %vm533, %v2693, 0
    %v2707 = vsel %vm533, %v2694, 0
    %2709 = vmatprep.subr.bf16.mxu0 0
    %2710 = vmatpush1.bf16.msra.mxu0 0
    %2711 = vmatprep.subr.bf16.mxu0 0
    %2712 = vmatpush1.bf16.msra.mxu0 0
    %2713 = vmatprep.subr.bf16.mxu0 0
    %2714 = vmatpush1.bf16.msra.mxu0 0
    %2715 = vmatprep.subr.bf16.mxu0 0
    %2716 = vmatpush1.bf16.msra.mxu0 0
    %2717 = vmatprep.subr.bf16.mxu0 0
    %2718 = vmatpush1.bf16.msra.mxu0 0
    %2719 = vmatprep.subr.bf16.mxu0 0
    %2720 = vmatpush1.bf16.msra.mxu0 0
    %2721 = vmatprep.subr.bf16.mxu0 0
    %2722 = vmatpush1.bf16.msra.mxu0 %v2700
    %2723 = vmatprep.subr.bf16.mxu0 0
    %2724 = vmatpush1.bf16.msra.mxu0 %v2698
    %2725 = vmatprep.subr.bf16.mxu0 0
    %2726 = vmatpush2.bf16.msra.mxu0 0
    %2727 = vmatprep.subr.bf16.mxu0 0
    %2728 = vmatpush2.bf16.msra.mxu0 0
    %2729 = vmatprep.subr.bf16.mxu0 0
    %2730 = vmatpush2.bf16.msra.mxu0 0
    %2731 = vmatprep.subr.bf16.mxu0 0
    %2732 = vmatpush2.bf16.msra.mxu0 0
    %2733 = vmatprep.subr.bf16.mxu0 0
    %2734 = vmatpush2.bf16.msra.mxu0 0
    %2735 = vmatprep.subr.bf16.mxu0 0
    %2736 = vmatpush2.bf16.msra.mxu0 0
    %2737 = vmatprep.subr.bf16.mxu0 0
    %2738 = vmatpush2.bf16.msra.mxu0 0
    %2739 = vmatprep.subr.bf16.mxu0 0
    %2740 = vmatpush2.bf16.msra.mxu0 0
    %2741 = vmatprep.mubr.bf16.mxu0 0
    %2742 = vmatmul.mubr.bf16.gmra.mxu0 %v2704
    %v2743 = vpop.f32.mrf.mxu0
    %v2744 = vadd.f32 0.0, %v2743
    %v2745 = vpop.f32.mrf.mxu0
    %v2746 = vpop.f32.mrf.mxu0
    %v2747 = vadd.f32 0.0, %v2746
    %v2748 = vpop.f32.mrf.mxu0
    %2749 = vmatprep.mubr.bf16.mxu0 0
    %2750 = vmatmul.mubr.bf16.gmra.mxu0 %v2707
    %v2751 = vpop.f32.mrf.mxu0
    %v2752 = vadd.f32 0.0, %v2751
    %v2753 = vpop.f32.mrf.mxu0
    %v2754 = vpop.f32.mrf.mxu0
    %v2755 = vadd.f32 0.0, %v2754
    %v2756 = vpop.f32.mrf.mxu0
    %2757 = vdwg.mxu0
    %2758 = vrot.lane.b32.xlu0 %v1589, 96
    %v2759 = vpop.permute.xlu0 %2758
    %2760 = vrot.lane.b32.xlu0 %v1591, 96
    %v2761 = vpop.permute.xlu0 %2760
    %v2765 = vsel %vm533, %v2695, 0
    %v2768 = vsel %vm533, %v2696, 0
    %2770 = vmatprep.subr.bf16.mxu0 0
    %2771 = vmatpush1.bf16.msra.mxu0 0
    %2772 = vmatprep.subr.bf16.mxu0 0
    %2773 = vmatpush1.bf16.msra.mxu0 0
    %2774 = vmatprep.subr.bf16.mxu0 0
    %2775 = vmatpush1.bf16.msra.mxu0 0
    %2776 = vmatprep.subr.bf16.mxu0 0
    %2777 = vmatpush1.bf16.msra.mxu0 0
    %2778 = vmatprep.subr.bf16.mxu0 0
    %2779 = vmatpush1.bf16.msra.mxu0 0
    %2780 = vmatprep.subr.bf16.mxu0 0
    %2781 = vmatpush1.bf16.msra.mxu0 0
    %2782 = vmatprep.subr.bf16.mxu0 0
    %2783 = vmatpush1.bf16.msra.mxu0 %v2761
    %2784 = vmatprep.subr.bf16.mxu0 0
    %2785 = vmatpush1.bf16.msra.mxu0 %v2759
    %2786 = vmatprep.subr.bf16.mxu0 0
    %2787 = vmatpush2.bf16.msra.mxu0 0
    %2788 = vmatprep.subr.bf16.mxu0 0
    %2789 = vmatpush2.bf16.msra.mxu0 0
    %2790 = vmatprep.subr.bf16.mxu0 0
    %2791 = vmatpush2.bf16.msra.mxu0 0
    %2792 = vmatprep.subr.bf16.mxu0 0
    %2793 = vmatpush2.bf16.msra.mxu0 0
    %2794 = vmatprep.subr.bf16.mxu0 0
    %2795 = vmatpush2.bf16.msra.mxu0 0
    %2796 = vmatprep.subr.bf16.mxu0 0
    %2797 = vmatpush2.bf16.msra.mxu0 0
    %2798 = vmatprep.subr.bf16.mxu0 0
    %2799 = vmatpush2.bf16.msra.mxu0 0
    %2800 = vmatprep.subr.bf16.mxu0 0
    %2801 = vmatpush2.bf16.msra.mxu0 0
    %2802 = vmatprep.mubr.bf16.mxu0 0
    %2803 = vmatmul.mubr.bf16.gmra.mxu0 %v2765
    %v2804 = vpop.f32.mrf.mxu0
    %v2805 = vadd.f32 0.0, %v2804
    %v2806 = vpop.f32.mrf.mxu0
    %v2807 = vpop.f32.mrf.mxu0
    %v2808 = vadd.f32 0.0, %v2807
    %v2809 = vpop.f32.mrf.mxu0
    %2810 = vmatprep.mubr.bf16.mxu0 0
    %2811 = vmatmul.mubr.bf16.gmra.mxu0 %v2768
    %v2812 = vpop.f32.mrf.mxu0
    %v2813 = vadd.f32 0.0, %v2812
    %v2814 = vpop.f32.mrf.mxu0
    %v2815 = vpop.f32.mrf.mxu0
    %v2816 = vadd.f32 0.0, %v2815
    %v2817 = vpop.f32.mrf.mxu0
    %2818 = vdwg.mxu0
    %v2819 = vpack.c.bf16 %v2747, %v2744
    %v2820 = vpack.c.bf16 %v2755, %v2752
    %v2821 = vpack.c.bf16 %v2808, %v2805
    %v2822 = vpack.c.bf16 %v2816, %v2813
    %v2825 = vunpack.c.l.b16 %v1596
    %v2826 = vunpack.c.l.b16 %v1597
    %v2827 = vpack.c.b16 %v2826, %v2825
    %v2830 = vsel %vm1606, %v2819, 0
    %v2833 = vsel %vm1606, %v2820, 0
    %v2836 = vsel %vm1606, %v2821, 0
    %v2839 = vsel %vm1606, %v2822, 0
    %2841 = vmatprep.subr.bf16.mxu0 0
    %2842 = vmatpush1.bf16.msra.mxu0 0
    %2843 = vmatprep.subr.bf16.mxu0 0
    %2844 = vmatpush1.bf16.msra.mxu0 0
    %2845 = vmatprep.subr.bf16.mxu0 0
    %2846 = vmatpush1.bf16.msra.mxu0 0
    %2847 = vmatprep.subr.bf16.mxu0 0
    %2848 = vmatpush1.bf16.msra.mxu0 0
    %2849 = vmatprep.subr.bf16.mxu0 0
    %2850 = vmatpush1.bf16.msra.mxu0 0
    %2851 = vmatprep.subr.bf16.mxu0 0
    %2852 = vmatpush1.bf16.msra.mxu0 0
    %2853 = vmatprep.subr.bf16.mxu0 0
    %2854 = vmatpush1.bf16.msra.mxu0 0
    %2855 = vmatprep.subr.bf16.mxu0 0
    %2856 = vmatpush1.bf16.msra.mxu0 %v2827
    %2857 = vmatprep.subr.bf16.mxu0 0
    %2858 = vmatpush2.bf16.msra.mxu0 0
    %2859 = vmatprep.subr.bf16.mxu0 0
    %2860 = vmatpush2.bf16.msra.mxu0 0
    %2861 = vmatprep.subr.bf16.mxu0 0
    %2862 = vmatpush2.bf16.msra.mxu0 0
    %2863 = vmatprep.subr.bf16.mxu0 0
    %2864 = vmatpush2.bf16.msra.mxu0 0
    %2865 = vmatprep.subr.bf16.mxu0 0
    %2866 = vmatpush2.bf16.msra.mxu0 0
    %2867 = vmatprep.subr.bf16.mxu0 0
    %2868 = vmatpush2.bf16.msra.mxu0 0
    %2869 = vmatprep.subr.bf16.mxu0 0
    %2870 = vmatpush2.bf16.msra.mxu0 0
    %2871 = vmatprep.subr.bf16.mxu0 0
    %2872 = vmatpush2.bf16.msra.mxu0 0
    %2873 = vmatprep.mubr.bf16.mxu0 0
    %2874 = vmatmul.mubr.bf16.gmra.mxu0 %v2830
    %v2875 = vpop.f32.mrf.mxu0
    %v2876 = vadd.f32 0.0, %v2875
    %v2877 = vpop.f32.mrf.mxu0
    %v2878 = vpop.f32.mrf.mxu0
    %v2879 = vadd.f32 0.0, %v2878
    %v2880 = vpop.f32.mrf.mxu0
    %2881 = vmatprep.mubr.bf16.mxu0 0
    %2882 = vmatmul.mubr.bf16.gmra.mxu0 %v2833
    %v2883 = vpop.f32.mrf.mxu0
    %v2884 = vadd.f32 0.0, %v2883
    %v2885 = vpop.f32.mrf.mxu0
    %v2886 = vpop.f32.mrf.mxu0
    %v2887 = vadd.f32 0.0, %v2886
    %v2888 = vpop.f32.mrf.mxu0
    %2889 = vmatprep.mubr.bf16.mxu0 0
    %2890 = vmatmul.mubr.bf16.gmra.mxu0 %v2836
    %v2891 = vpop.f32.mrf.mxu0
    %v2892 = vadd.f32 0.0, %v2891
    %v2893 = vpop.f32.mrf.mxu0
    %v2894 = vpop.f32.mrf.mxu0
    %v2895 = vadd.f32 0.0, %v2894
    %v2896 = vpop.f32.mrf.mxu0
    %2897 = vmatprep.mubr.bf16.mxu0 0
    %2898 = vmatmul.mubr.bf16.gmra.mxu0 %v2839
    %v2899 = vpop.f32.mrf.mxu0
    %v2900 = vadd.f32 0.0, %v2899
    %v2901 = vpop.f32.mrf.mxu0
    %v2902 = vpop.f32.mrf.mxu0
    %v2903 = vadd.f32 0.0, %v2902
    %v2904 = vpop.f32.mrf.mxu0
    %2905 = vdwg.mxu0
    %v2906 = vadd.f32 %v2437, %v2876
    %v2907 = vadd.f32 %v2440, %v2879
    %v2908 = vadd.f32 %v2445, %v2884
    %v2909 = vadd.f32 %v2448, %v2887
    %v2910 = vadd.f32 %v2453, %v2892
    %v2911 = vadd.f32 %v2456, %v2895
    %v2912 = vadd.f32 %v2461, %v2900
    %v2913 = vadd.f32 %v2464, %v2903
    %2914 = vrot.lane.b32.xlu0 %v1584, 80
    %v2915 = vpop.permute.xlu0 %2914
    %2916 = vrot.lane.b32.xlu0 %v1586, 80
    %v2917 = vpop.permute.xlu0 %2916
    %2918 = vrot.lane.b32.xlu0 %v1584, 16
    %v2919 = vpop.permute.xlu0 %2918
    %2920 = vrot.lane.b32.xlu0 %v1586, 16
    %v2921 = vpop.permute.xlu0 %2920
    %v2923 = vsel %vm1606, %v2915, 0
    %v2926 = vsel %vm1606, %v2917, 0
    %v2929 = vsel %vm1606, %v2919, 0
    %v2932 = vsel %vm1606, %v2921, 0
    %2934 = vmatprep.subr.bf16.mxu0 0
    %2935 = vmatpush1.bf16.xpose.msra.mxu0 0
    %2936 = vmatprep.subr.bf16.mxu0 0
    %2937 = vmatpush1.bf16.xpose.msra.mxu0 0
    %2938 = vmatprep.subr.bf16.mxu0 0
    %2939 = vmatpush1.bf16.xpose.msra.mxu0 0
    %2940 = vmatprep.subr.bf16.mxu0 0
    %2941 = vmatpush1.bf16.xpose.msra.mxu0 0
    %2942 = vmatprep.subr.bf16.mxu0 0
    %2943 = vmatpush1.bf16.xpose.msra.mxu0 0
    %2944 = vmatprep.subr.bf16.mxu0 0
    %2945 = vmatpush1.bf16.xpose.msra.mxu0 0
    %2946 = vmatprep.subr.bf16.mxu0 0
    %2947 = vmatpush1.bf16.xpose.msra.mxu0 %v2932
    %2948 = vmatprep.subr.bf16.mxu0 0
    %2949 = vmatpush1.bf16.xpose.msra.mxu0 %v2929
    %2950 = vmatprep.subr.bf16.mxu0 0
    %2951 = vmatpush2.bf16.xpose.msra.mxu0 0
    %2952 = vmatprep.subr.bf16.mxu0 0
    %2953 = vmatpush2.bf16.xpose.msra.mxu0 0
    %2954 = vmatprep.subr.bf16.mxu0 0
    %2955 = vmatpush2.bf16.xpose.msra.mxu0 0
    %2956 = vmatprep.subr.bf16.mxu0 0
    %2957 = vmatpush2.bf16.xpose.msra.mxu0 0
    %2958 = vmatprep.subr.bf16.mxu0 0
    %2959 = vmatpush2.bf16.xpose.msra.mxu0 0
    %2960 = vmatprep.subr.bf16.mxu0 0
    %2961 = vmatpush2.bf16.xpose.msra.mxu0 0
    %2962 = vmatprep.subr.bf16.mxu0 0
    %2963 = vmatpush2.bf16.xpose.msra.mxu0 0
    %2964 = vmatprep.subr.bf16.mxu0 0
    %2965 = vmatpush2.bf16.xpose.msra.mxu0 0
    %2966 = vmatprep.mubr.bf16.mxu0 0
    %2967 = vmatmul.mubr.bf16.gmra.mxu0 %v2923
    %v2968 = vpop.f32.mrf.mxu0
    %v2969 = vadd.f32 0.0, %v2968
    %v2970 = vpop.f32.mrf.mxu0
    %v2971 = vpop.f32.mrf.mxu0
    %v2972 = vadd.f32 0.0, %v2971
    %v2973 = vpop.f32.mrf.mxu0
    %2974 = vmatprep.mubr.bf16.mxu0 0
    %2975 = vmatmul.mubr.bf16.gmra.mxu0 %v2926
    %v2976 = vpop.f32.mrf.mxu0
    %v2977 = vadd.f32 0.0, %v2976
    %v2978 = vpop.f32.mrf.mxu0
    %v2979 = vpop.f32.mrf.mxu0
    %v2980 = vadd.f32 0.0, %v2979
    %v2981 = vpop.f32.mrf.mxu0
    %2982 = vdwg.mxu0
    %2983 = vrot.lane.b32.xlu0 %v1588, 80
    %v2984 = vpop.permute.xlu0 %2983
    %2985 = vrot.lane.b32.xlu0 %v1590, 80
    %v2986 = vpop.permute.xlu0 %2985
    %2987 = vrot.lane.b32.xlu0 %v1588, 16
    %v2988 = vpop.permute.xlu0 %2987
    %2989 = vrot.lane.b32.xlu0 %v1590, 16
    %v2990 = vpop.permute.xlu0 %2989
    %v2992 = vsel %vm1606, %v2984, 0
    %v2995 = vsel %vm1606, %v2986, 0
    %v2998 = vsel %vm1606, %v2988, 0
    %v3001 = vsel %vm1606, %v2990, 0
    %3003 = vmatprep.subr.bf16.mxu0 0
    %3004 = vmatpush1.bf16.xpose.msra.mxu0 0
    %3005 = vmatprep.subr.bf16.mxu0 0
    %3006 = vmatpush1.bf16.xpose.msra.mxu0 0
    %3007 = vmatprep.subr.bf16.mxu0 0
    %3008 = vmatpush1.bf16.xpose.msra.mxu0 0
    %3009 = vmatprep.subr.bf16.mxu0 0
    %3010 = vmatpush1.bf16.xpose.msra.mxu0 0
    %3011 = vmatprep.subr.bf16.mxu0 0
    %3012 = vmatpush1.bf16.xpose.msra.mxu0 0
    %3013 = vmatprep.subr.bf16.mxu0 0
    %3014 = vmatpush1.bf16.xpose.msra.mxu0 0
    %3015 = vmatprep.subr.bf16.mxu0 0
    %3016 = vmatpush1.bf16.xpose.msra.mxu0 %v3001
    %3017 = vmatprep.subr.bf16.mxu0 0
    %3018 = vmatpush1.bf16.xpose.msra.mxu0 %v2998
    %3019 = vmatprep.subr.bf16.mxu0 0
    %3020 = vmatpush2.bf16.xpose.msra.mxu0 0
    %3021 = vmatprep.subr.bf16.mxu0 0
    %3022 = vmatpush2.bf16.xpose.msra.mxu0 0
    %3023 = vmatprep.subr.bf16.mxu0 0
    %3024 = vmatpush2.bf16.xpose.msra.mxu0 0
    %3025 = vmatprep.subr.bf16.mxu0 0
    %3026 = vmatpush2.bf16.xpose.msra.mxu0 0
    %3027 = vmatprep.subr.bf16.mxu0 0
    %3028 = vmatpush2.bf16.xpose.msra.mxu0 0
    %3029 = vmatprep.subr.bf16.mxu0 0
    %3030 = vmatpush2.bf16.xpose.msra.mxu0 0
    %3031 = vmatprep.subr.bf16.mxu0 0
    %3032 = vmatpush2.bf16.xpose.msra.mxu0 0
    %3033 = vmatprep.subr.bf16.mxu0 0
    %3034 = vmatpush2.bf16.xpose.msra.mxu0 0
    %3035 = vmatprep.mubr.bf16.mxu0 0
    %3036 = vmatmul.mubr.bf16.gmra.mxu0 %v2992
    %v3037 = vpop.f32.mrf.mxu0
    %v3038 = vadd.f32 0.0, %v3037
    %v3039 = vpop.f32.mrf.mxu0
    %v3040 = vpop.f32.mrf.mxu0
    %v3041 = vadd.f32 0.0, %v3040
    %v3042 = vpop.f32.mrf.mxu0
    %3043 = vmatprep.mubr.bf16.mxu0 0
    %3044 = vmatmul.mubr.bf16.gmra.mxu0 %v2995
    %v3045 = vpop.f32.mrf.mxu0
    %v3046 = vadd.f32 0.0, %v3045
    %v3047 = vpop.f32.mrf.mxu0
    %v3048 = vpop.f32.mrf.mxu0
    %v3049 = vadd.f32 0.0, %v3048
    %v3050 = vpop.f32.mrf.mxu0
    %3051 = vdwg.mxu0
    %v3052 = vsel %vm533, %v2969, -inf
    %3053 = vmax.xlane.f32.xlu0 %v3052
    %v3054 = vpop.xlane.xlu0 %3053
    %v3055 = vsel %vm533, %v2972, -inf
    %3056 = vmax.xlane.f32.xlu0 %v3055
    %v3057 = vpop.xlane.xlu0 %3056
    %v3058 = vsel %vm533, %v2977, -inf
    %3059 = vmax.xlane.f32.xlu0 %v3058
    %v3060 = vpop.xlane.xlu0 %3059
    %v3061 = vsel %vm533, %v2980, -inf
    %3062 = vmax.xlane.f32.xlu0 %v3061
    %v3063 = vpop.xlane.xlu0 %3062
    %v3064 = vsel %vm533, %v3038, -inf
    %3065 = vmax.xlane.f32.xlu0 %v3064
    %v3066 = vpop.xlane.xlu0 %3065
    %v3067 = vsel %vm533, %v3041, -inf
    %3068 = vmax.xlane.f32.xlu0 %v3067
    %v3069 = vpop.xlane.xlu0 %3068
    %v3070 = vsel %vm533, %v3046, -inf
    %3071 = vmax.xlane.f32.xlu0 %v3070
    %v3072 = vpop.xlane.xlu0 %3071
    %v3073 = vsel %vm533, %v3049, -inf
    %3074 = vmax.xlane.f32.xlu0 %v3073
    %v3075 = vpop.xlane.xlu0 %3074
    %v3076 = vsub.f32 %v2969, %v3054
    %v3077 = vsub.f32 %v2972, %v3057
    %v3078 = vsub.f32 %v2977, %v3060
    %v3079 = vsub.f32 %v2980, %v3063
    %v3080 = vsub.f32 %v3038, %v3066
    %v3081 = vsub.f32 %v3041, %v3069
    %v3082 = vsub.f32 %v3046, %v3072
    %v3083 = vsub.f32 %v3049, %v3075
    %v3084 = vmul.f32 %v3076, 1.442695
    %v3085 = vpow.pop %v3084
    %v3086 = vmul.f32 %v3077, 1.442695
    %v3087 = vpow.pop %v3086
    %v3088 = vmul.f32 %v3078, 1.442695
    %v3089 = vpow.pop %v3088
    %v3090 = vmul.f32 %v3079, 1.442695
    %v3091 = vpow.pop %v3090
    %v3092 = vmul.f32 %v3080, 1.442695
    %v3093 = vpow.pop %v3092
    %v3094 = vmul.f32 %v3081, 1.442695
    %v3095 = vpow.pop %v3094
    %v3096 = vmul.f32 %v3082, 1.442695
    %v3097 = vpow.pop %v3096
    %v3098 = vmul.f32 %v3083, 1.442695
    %v3099 = vpow.pop %v3098
    %v3100 = vsel %vm533, %v3085, 0.0
    %3101 = vadd.xlane.f32.xlu0 %v3100
    %v3102 = vpop.xlane.xlu0 %3101
    %v3103 = vsel %vm533, %v3087, 0.0
    %3104 = vadd.xlane.f32.xlu0 %v3103
    %v3105 = vpop.xlane.xlu0 %3104
    %v3106 = vsel %vm533, %v3089, 0.0
    %3107 = vadd.xlane.f32.xlu0 %v3106
    %v3108 = vpop.xlane.xlu0 %3107
    %v3109 = vsel %vm533, %v3091, 0.0
    %3110 = vadd.xlane.f32.xlu0 %v3109
    %v3111 = vpop.xlane.xlu0 %3110
    %v3112 = vsel %vm533, %v3093, 0.0
    %3113 = vadd.xlane.f32.xlu0 %v3112
    %v3114 = vpop.xlane.xlu0 %3113
    %v3115 = vsel %vm533, %v3095, 0.0
    %3116 = vadd.xlane.f32.xlu0 %v3115
    %v3117 = vpop.xlane.xlu0 %3116
    %v3118 = vsel %vm533, %v3097, 0.0
    %3119 = vadd.xlane.f32.xlu0 %v3118
    %v3120 = vpop.xlane.xlu0 %3119
    %v3121 = vsel %vm533, %v3099, 0.0
    %3122 = vadd.xlane.f32.xlu0 %v3121
    %v3123 = vpop.xlane.xlu0 %3122
    %v3124 = vrcp.pop %v3102
    %v3125 = vrcp.pop %v3105
    %v3126 = vrcp.pop %v3108
    %v3127 = vrcp.pop %v3111
    %v3128 = vrcp.pop %v3114
    %v3129 = vrcp.pop %v3117
    %v3130 = vrcp.pop %v3120
    %v3131 = vrcp.pop %v3123
    %v3132 = vmul.f32 %v3085, %v3124
    %v3133 = vmul.f32 %v3087, %v3125
    %v3134 = vmul.f32 %v3089, %v3126
    %v3135 = vmul.f32 %v3091, %v3127
    %v3136 = vmul.f32 %v3093, %v3128
    %v3137 = vmul.f32 %v3095, %v3129
    %v3138 = vmul.f32 %v3097, %v3130
    %v3139 = vmul.f32 %v3099, %v3131
    %v3140 = vpack.c.bf16 %v3133, %v3132
    %v3141 = vpack.c.bf16 %v3135, %v3134
    %v3142 = vpack.c.bf16 %v3137, %v3136
    %v3143 = vpack.c.bf16 %v3139, %v3138
    %3144 = vrot.lane.b32.xlu0 %v1585, 80
    %v3145 = vpop.permute.xlu0 %3144
    %3146 = vrot.lane.b32.xlu0 %v1587, 80
    %v3147 = vpop.permute.xlu0 %3146
    %v3151 = vsel %vm533, %v3140, 0
    %v3154 = vsel %vm533, %v3141, 0
    %3156 = vmatprep.subr.bf16.mxu0 0
    %3157 = vmatpush1.bf16.msra.mxu0 0
    %3158 = vmatprep.subr.bf16.mxu0 0
    %3159 = vmatpush1.bf16.msra.mxu0 0
    %3160 = vmatprep.subr.bf16.mxu0 0
    %3161 = vmatpush1.bf16.msra.mxu0 0
    %3162 = vmatprep.subr.bf16.mxu0 0
    %3163 = vmatpush1.bf16.msra.mxu0 0
    %3164 = vmatprep.subr.bf16.mxu0 0
    %3165 = vmatpush1.bf16.msra.mxu0 0
    %3166 = vmatprep.subr.bf16.mxu0 0
    %3167 = vmatpush1.bf16.msra.mxu0 0
    %3168 = vmatprep.subr.bf16.mxu0 0
    %3169 = vmatpush1.bf16.msra.mxu0 %v3147
    %3170 = vmatprep.subr.bf16.mxu0 0
    %3171 = vmatpush1.bf16.msra.mxu0 %v3145
    %3172 = vmatprep.subr.bf16.mxu0 0
    %3173 = vmatpush2.bf16.msra.mxu0 0
    %3174 = vmatprep.subr.bf16.mxu0 0
    %3175 = vmatpush2.bf16.msra.mxu0 0
    %3176 = vmatprep.subr.bf16.mxu0 0
    %3177 = vmatpush2.bf16.msra.mxu0 0
    %3178 = vmatprep.subr.bf16.mxu0 0
    %3179 = vmatpush2.bf16.msra.mxu0 0
    %3180 = vmatprep.subr.bf16.mxu0 0
    %3181 = vmatpush2.bf16.msra.mxu0 0
    %3182 = vmatprep.subr.bf16.mxu0 0
    %3183 = vmatpush2.bf16.msra.mxu0 0
    %3184 = vmatprep.subr.bf16.mxu0 0
    %3185 = vmatpush2.bf16.msra.mxu0 0
    %3186 = vmatprep.subr.bf16.mxu0 0
    %3187 = vmatpush2.bf16.msra.mxu0 0
    %3188 = vmatprep.mubr.bf16.mxu0 0
    %3189 = vmatmul.mubr.bf16.gmra.mxu0 %v3151
    %v3190 = vpop.f32.mrf.mxu0
    %v3191 = vadd.f32 0.0, %v3190
    %v3192 = vpop.f32.mrf.mxu0
    %v3193 = vpop.f32.mrf.mxu0
    %v3194 = vadd.f32 0.0, %v3193
    %v3195 = vpop.f32.mrf.mxu0
    %3196 = vmatprep.mubr.bf16.mxu0 0
    %3197 = vmatmul.mubr.bf16.gmra.mxu0 %v3154
    %v3198 = vpop.f32.mrf.mxu0
    %v3199 = vadd.f32 0.0, %v3198
    %v3200 = vpop.f32.mrf.mxu0
    %v3201 = vpop.f32.mrf.mxu0
    %v3202 = vadd.f32 0.0, %v3201
    %v3203 = vpop.f32.mrf.mxu0
    %3204 = vdwg.mxu0
    %3205 = vrot.lane.b32.xlu0 %v1589, 80
    %v3206 = vpop.permute.xlu0 %3205
    %3207 = vrot.lane.b32.xlu0 %v1591, 80
    %v3208 = vpop.permute.xlu0 %3207
    %v3212 = vsel %vm533, %v3142, 0
    %v3215 = vsel %vm533, %v3143, 0
    %3217 = vmatprep.subr.bf16.mxu0 0
    %3218 = vmatpush1.bf16.msra.mxu0 0
    %3219 = vmatprep.subr.bf16.mxu0 0
    %3220 = vmatpush1.bf16.msra.mxu0 0
    %3221 = vmatprep.subr.bf16.mxu0 0
    %3222 = vmatpush1.bf16.msra.mxu0 0
    %3223 = vmatprep.subr.bf16.mxu0 0
    %3224 = vmatpush1.bf16.msra.mxu0 0
    %3225 = vmatprep.subr.bf16.mxu0 0
    %3226 = vmatpush1.bf16.msra.mxu0 0
    %3227 = vmatprep.subr.bf16.mxu0 0
    %3228 = vmatpush1.bf16.msra.mxu0 0
    %3229 = vmatprep.subr.bf16.mxu0 0
    %3230 = vmatpush1.bf16.msra.mxu0 %v3208
    %3231 = vmatprep.subr.bf16.mxu0 0
    %3232 = vmatpush1.bf16.msra.mxu0 %v3206
    %3233 = vmatprep.subr.bf16.mxu0 0
    %3234 = vmatpush2.bf16.msra.mxu0 0
    %3235 = vmatprep.subr.bf16.mxu0 0
    %3236 = vmatpush2.bf16.msra.mxu0 0
    %3237 = vmatprep.subr.bf16.mxu0 0
    %3238 = vmatpush2.bf16.msra.mxu0 0
    %3239 = vmatprep.subr.bf16.mxu0 0
    %3240 = vmatpush2.bf16.msra.mxu0 0
    %3241 = vmatprep.subr.bf16.mxu0 0
    %3242 = vmatpush2.bf16.msra.mxu0 0
    %3243 = vmatprep.subr.bf16.mxu0 0
    %3244 = vmatpush2.bf16.msra.mxu0 0
    %3245 = vmatprep.subr.bf16.mxu0 0
    %3246 = vmatpush2.bf16.msra.mxu0 0
    %3247 = vmatprep.subr.bf16.mxu0 0
    %3248 = vmatpush2.bf16.msra.mxu0 0
    %3249 = vmatprep.mubr.bf16.mxu0 0
    %3250 = vmatmul.mubr.bf16.gmra.mxu0 %v3212
    %v3251 = vpop.f32.mrf.mxu0
    %v3252 = vadd.f32 0.0, %v3251
    %v3253 = vpop.f32.mrf.mxu0
    %v3254 = vpop.f32.mrf.mxu0
    %v3255 = vadd.f32 0.0, %v3254
    %v3256 = vpop.f32.mrf.mxu0
    %3257 = vmatprep.mubr.bf16.mxu0 0
    %3258 = vmatmul.mubr.bf16.gmra.mxu0 %v3215
    %v3259 = vpop.f32.mrf.mxu0
    %v3260 = vadd.f32 0.0, %v3259
    %v3261 = vpop.f32.mrf.mxu0
    %v3262 = vpop.f32.mrf.mxu0
    %v3263 = vadd.f32 0.0, %v3262
    %v3264 = vpop.f32.mrf.mxu0
    %3265 = vdwg.mxu0
    %v3266 = vpack.c.bf16 %v3194, %v3191
    %v3267 = vpack.c.bf16 %v3202, %v3199
    %v3268 = vpack.c.bf16 %v3255, %v3252
    %v3269 = vpack.c.bf16 %v3263, %v3260
    %v3272 = vunpack.c.l.b16 %v1598
    %v3273 = vunpack.c.l.b16 %v1599
    %v3274 = vpack.c.b16 %v3273, %v3272
    %v3277 = vsel %vm1606, %v3266, 0
    %v3280 = vsel %vm1606, %v3267, 0
    %v3283 = vsel %vm1606, %v3268, 0
    %v3286 = vsel %vm1606, %v3269, 0
    %3288 = vmatprep.subr.bf16.mxu0 0
    %3289 = vmatpush1.bf16.msra.mxu0 0
    %3290 = vmatprep.subr.bf16.mxu0 0
    %3291 = vmatpush1.bf16.msra.mxu0 0
    %3292 = vmatprep.subr.bf16.mxu0 0
    %3293 = vmatpush1.bf16.msra.mxu0 0
    %3294 = vmatprep.subr.bf16.mxu0 0
    %3295 = vmatpush1.bf16.msra.mxu0 0
    %3296 = vmatprep.subr.bf16.mxu0 0
    %3297 = vmatpush1.bf16.msra.mxu0 0
    %3298 = vmatprep.subr.bf16.mxu0 0
    %3299 = vmatpush1.bf16.msra.mxu0 0
    %3300 = vmatprep.subr.bf16.mxu0 0
    %3301 = vmatpush1.bf16.msra.mxu0 0
    %3302 = vmatprep.subr.bf16.mxu0 0
    %3303 = vmatpush1.bf16.msra.mxu0 %v3274
    %3304 = vmatprep.subr.bf16.mxu0 0
    %3305 = vmatpush2.bf16.msra.mxu0 0
    %3306 = vmatprep.subr.bf16.mxu0 0
    %3307 = vmatpush2.bf16.msra.mxu0 0
    %3308 = vmatprep.subr.bf16.mxu0 0
    %3309 = vmatpush2.bf16.msra.mxu0 0
    %3310 = vmatprep.subr.bf16.mxu0 0
    %3311 = vmatpush2.bf16.msra.mxu0 0
    %3312 = vmatprep.subr.bf16.mxu0 0
    %3313 = vmatpush2.bf16.msra.mxu0 0
    %3314 = vmatprep.subr.bf16.mxu0 0
    %3315 = vmatpush2.bf16.msra.mxu0 0
    %3316 = vmatprep.subr.bf16.mxu0 0
    %3317 = vmatpush2.bf16.msra.mxu0 0
    %3318 = vmatprep.subr.bf16.mxu0 0
    %3319 = vmatpush2.bf16.msra.mxu0 0
    %3320 = vmatprep.mubr.bf16.mxu0 0
    %3321 = vmatmul.mubr.bf16.gmra.mxu0 %v3277
    %v3322 = vpop.f32.mrf.mxu0
    %v3323 = vadd.f32 0.0, %v3322
    %v3324 = vpop.f32.mrf.mxu0
    %v3325 = vpop.f32.mrf.mxu0
    %v3326 = vadd.f32 0.0, %v3325
    %v3327 = vpop.f32.mrf.mxu0
    %3328 = vmatprep.mubr.bf16.mxu0 0
    %3329 = vmatmul.mubr.bf16.gmra.mxu0 %v3280
    %v3330 = vpop.f32.mrf.mxu0
    %v3331 = vadd.f32 0.0, %v3330
    %v3332 = vpop.f32.mrf.mxu0
    %v3333 = vpop.f32.mrf.mxu0
    %v3334 = vadd.f32 0.0, %v3333
    %v3335 = vpop.f32.mrf.mxu0
    %3336 = vmatprep.mubr.bf16.mxu0 0
    %3337 = vmatmul.mubr.bf16.gmra.mxu0 %v3283
    %v3338 = vpop.f32.mrf.mxu0
    %v3339 = vadd.f32 0.0, %v3338
    %v3340 = vpop.f32.mrf.mxu0
    %v3341 = vpop.f32.mrf.mxu0
    %v3342 = vadd.f32 0.0, %v3341
    %v3343 = vpop.f32.mrf.mxu0
    %3344 = vmatprep.mubr.bf16.mxu0 0
    %3345 = vmatmul.mubr.bf16.gmra.mxu0 %v3286
    %v3346 = vpop.f32.mrf.mxu0
    %v3347 = vadd.f32 0.0, %v3346
    %v3348 = vpop.f32.mrf.mxu0
    %v3349 = vpop.f32.mrf.mxu0
    %v3350 = vadd.f32 0.0, %v3349
    %v3351 = vpop.f32.mrf.mxu0
    %3352 = vdwg.mxu0
    %v3353 = vadd.f32 %v2906, %v3323
    %v3354 = vadd.f32 %v2907, %v3326
    %v3355 = vadd.f32 %v2908, %v3331
    %v3356 = vadd.f32 %v2909, %v3334
    %v3357 = vadd.f32 %v2910, %v3339
    %v3358 = vadd.f32 %v2911, %v3342
    %v3359 = vadd.f32 %v2912, %v3347
    %v3360 = vadd.f32 %v2913, %v3350
    %v3361 = vadd.f32 %v1427, %v3353
    %v3362 = vadd.f32 %v1428, %v3354
    %v3363 = vadd.f32 %v1429, %v3355
    %v3364 = vadd.f32 %v1430, %v3356
    %v3365 = vadd.f32 %v1431, %v3357
    %v3366 = vadd.f32 %v1432, %v3358
    %v3367 = vadd.f32 %v1433, %v3359
    %v3368 = vadd.f32 %v1434, %v3360
    %v3369 = vld [vmem:[%s29] sm:$0x1]
    %v3371 = vlaneseq
    %v3372 = vshrl.u32 %v3371, 7
    %v3373 = vsub.s32 0, %v3372
    %v3374 = vrot.slane %v3369, %v3373
    %v3376 = vadd.f32 %v3361, %v3374
    %v3377 = vadd.f32 %v3362, %v3374
    %v3378 = vadd.f32 %v3363, %v3374
    %v3379 = vadd.f32 %v3364, %v3374
    %v3380 = vadd.f32 %v3365, %v3374
    %v3381 = vadd.f32 %v3366, %v3374
    %v3382 = vadd.f32 %v3367, %v3374
    %v3383 = vadd.f32 %v3368, %v3374
    %v3384 = vld [vmem:[%s31] sm:$0x1]
    %v3385 = vld [vmem:[%s33] sm:$0x1]
    %v3386 = vsel %vm1047, %v3376, 0.0
    %3387 = vadd.xlane.f32.xlu0 %v3386
    %v3388 = vpop.xlane.xlu0 %3387
    %v3389 = vsel %vm1047, %v3377, 0.0
    %3390 = vadd.xlane.f32.xlu0 %v3389
    %v3391 = vpop.xlane.xlu0 %3390
    %v3392 = vsel %vm1047, %v3378, 0.0
    %3393 = vadd.xlane.f32.xlu0 %v3392
    %v3394 = vpop.xlane.xlu0 %3393
    %v3395 = vsel %vm1047, %v3379, 0.0
    %3396 = vadd.xlane.f32.xlu0 %v3395
    %v3397 = vpop.xlane.xlu0 %3396
    %v3398 = vsel %vm1047, %v3380, 0.0
    %3399 = vadd.xlane.f32.xlu0 %v3398
    %v3400 = vpop.xlane.xlu0 %3399
    %v3401 = vsel %vm1047, %v3381, 0.0
    %3402 = vadd.xlane.f32.xlu0 %v3401
    %v3403 = vpop.xlane.xlu0 %3402
    %v3404 = vsel %vm1047, %v3382, 0.0
    %3405 = vadd.xlane.f32.xlu0 %v3404
    %v3406 = vpop.xlane.xlu0 %3405
    %v3407 = vsel %vm1047, %v3383, 0.0
    %3408 = vadd.xlane.f32.xlu0 %v3407
    %v3409 = vpop.xlane.xlu0 %3408
    %v3410 = vmul.f32 %v3388, %v1072
    %v3411 = vmul.f32 %v3391, %v1072
    %v3412 = vmul.f32 %v3394, %v1072
    %v3413 = vmul.f32 %v3397, %v1072
    %v3414 = vmul.f32 %v3400, %v1072
    %v3415 = vmul.f32 %v3403, %v1072
    %v3416 = vmul.f32 %v3406, %v1072
    %v3417 = vmul.f32 %v3409, %v1072
    %v3418 = vsub.f32 %v3376, %v3410
    %v3419 = vsub.f32 %v3377, %v3411
    %v3420 = vsub.f32 %v3378, %v3412
    %v3421 = vsub.f32 %v3379, %v3413
    %v3422 = vsub.f32 %v3380, %v3414
    %v3423 = vsub.f32 %v3381, %v3415
    %v3424 = vsub.f32 %v3382, %v3416
    %v3425 = vsub.f32 %v3383, %v3417
    %v3426 = vmul.f32 %v3418, %v3418
    %v3427 = vmul.f32 %v3419, %v3419
    %v3428 = vmul.f32 %v3420, %v3420
    %v3429 = vmul.f32 %v3421, %v3421
    %v3430 = vmul.f32 %v3422, %v3422
    %v3431 = vmul.f32 %v3423, %v3423
    %v3432 = vmul.f32 %v3424, %v3424
    %v3433 = vmul.f32 %v3425, %v3425
    %v3434 = vsel %vm1047, %v3426, 0.0
    %3435 = vadd.xlane.f32.xlu0 %v3434
    %v3436 = vpop.xlane.xlu0 %3435
    %v3437 = vsel %vm1047, %v3427, 0.0
    %3438 = vadd.xlane.f32.xlu0 %v3437
    %v3439 = vpop.xlane.xlu0 %3438
    %v3440 = vsel %vm1047, %v3428, 0.0
    %3441 = vadd.xlane.f32.xlu0 %v3440
    %v3442 = vpop.xlane.xlu0 %3441
    %v3443 = vsel %vm1047, %v3429, 0.0
    %3444 = vadd.xlane.f32.xlu0 %v3443
    %v3445 = vpop.xlane.xlu0 %3444
    %v3446 = vsel %vm1047, %v3430, 0.0
    %3447 = vadd.xlane.f32.xlu0 %v3446
    %v3448 = vpop.xlane.xlu0 %3447
    %v3449 = vsel %vm1047, %v3431, 0.0
    %3450 = vadd.xlane.f32.xlu0 %v3449
    %v3451 = vpop.xlane.xlu0 %3450
    %v3452 = vsel %vm1047, %v3432, 0.0
    %3453 = vadd.xlane.f32.xlu0 %v3452
    %v3454 = vpop.xlane.xlu0 %3453
    %v3455 = vsel %vm1047, %v3433, 0.0
    %3456 = vadd.xlane.f32.xlu0 %v3455
    %v3457 = vpop.xlane.xlu0 %3456
    %v3458 = vmul.f32 %v3436, %v1072
    %v3459 = vmul.f32 %v3439, %v1072
    %v3460 = vmul.f32 %v3442, %v1072
    %v3461 = vmul.f32 %v3445, %v1072
    %v3462 = vmul.f32 %v3448, %v1072
    %v3463 = vmul.f32 %v3451, %v1072
    %v3464 = vmul.f32 %v3454, %v1072
    %v3465 = vmul.f32 %v3457, %v1072
    %v3466 = vadd.f32 %v3458, 1e-05
    %v3467 = vadd.f32 %v3459, 1e-05
    %v3468 = vadd.f32 %v3460, 1e-05
    %v3469 = vadd.f32 %v3461, 1e-05
    %v3470 = vadd.f32 %v3462, 1e-05
    %v3471 = vadd.f32 %v3463, 1e-05
    %v3472 = vadd.f32 %v3464, 1e-05
    %v3473 = vadd.f32 %v3465, 1e-05
    %v3474 = vrsqrt.pop %v3466
    %v3475 = vrsqrt.pop %v3467
    %v3476 = vrsqrt.pop %v3468
    %v3477 = vrsqrt.pop %v3469
    %v3478 = vrsqrt.pop %v3470
    %v3479 = vrsqrt.pop %v3471
    %v3480 = vrsqrt.pop %v3472
    %v3481 = vrsqrt.pop %v3473
    %v3482 = vmul.f32 %v3418, %v3474
    %v3483 = vmul.f32 %v3419, %v3475
    %v3484 = vmul.f32 %v3420, %v3476
    %v3485 = vmul.f32 %v3421, %v3477
    %v3486 = vmul.f32 %v3422, %v3478
    %v3487 = vmul.f32 %v3423, %v3479
    %v3488 = vmul.f32 %v3424, %v3480
    %v3489 = vmul.f32 %v3425, %v3481
    %v3491 = vlaneseq
    %v3492 = vshrl.u32 %v3491, 7
    %v3493 = vsub.s32 0, %v3492
    %v3494 = vrot.slane %v3384, %v3493
    %v3496 = vmul.f32 %v3482, %v3494
    %v3497 = vmul.f32 %v3483, %v3494
    %v3498 = vmul.f32 %v3484, %v3494
    %v3499 = vmul.f32 %v3485, %v3494
    %v3500 = vmul.f32 %v3486, %v3494
    %v3501 = vmul.f32 %v3487, %v3494
    %v3502 = vmul.f32 %v3488, %v3494
    %v3503 = vmul.f32 %v3489, %v3494
    %v3505 = vlaneseq
    %v3506 = vshrl.u32 %v3505, 7
    %v3507 = vsub.s32 0, %v3506
    %v3508 = vrot.slane %v3385, %v3507
    %v3510 = vadd.f32 %v3496, %v3508
    %v3511 = vadd.f32 %v3497, %v3508
    %v3512 = vadd.f32 %v3498, %v3508
    %v3513 = vadd.f32 %v3499, %v3508
    %v3514 = vadd.f32 %v3500, %v3508
    %v3515 = vadd.f32 %v3501, %v3508
    %v3516 = vadd.f32 %v3502, %v3508
    %v3517 = vadd.f32 %v3503, %v3508
    %v3518 = vpack.c.bf16 %v3511, %v3510
    %v3519 = vpack.c.bf16 %v3513, %v3512
    %v3520 = vpack.c.bf16 %v3515, %v3514
    %v3521 = vpack.c.bf16 %v3517, %v3516
    %v3522 = vld [vmem:[%s35] sm:$0xf]
    %v3523 = vld [vmem:[%s35 + $0x4] sm:$0xf]
    %v3524 = vld [vmem:[%s35 + $0x8] sm:$0xf]
    %v3525 = vld [vmem:[%s35 + $0xc] sm:$0xf]
    %v3526 = vld [vmem:[%s35 + $0x10] sm:$0xf]
    %v3527 = vld [vmem:[%s35 + $0x14] sm:$0xf]
    %v3528 = vld [vmem:[%s35 + $0x18] sm:$0xf]
    %v3529 = vld [vmem:[%s35 + $0x1c] sm:$0xf]
    %v3530 = vld [vmem:[%s37] sm:$0x1]
    %v3532 = vlaneseq
    %v3533 = vshrl.u32 %v3532, 7
    %v3534 = vsub.s32 0, %v3533
    %v3535 = vrot.slane %v3530, %v3534
    %v3545 = vunpack.c.l.b16 %v3522
    %v3546 = vunpack.c.l.b16 %v3523
    %v3547 = vunpack.c.l.b16 %v3524
    %v3548 = vunpack.c.l.b16 %v3525
    %v3549 = vunpack.c.l.b16 %v3526
    %v3550 = vunpack.c.l.b16 %v3527
    %v3551 = vunpack.c.l.b16 %v3528
    %v3552 = vunpack.c.l.b16 %v3529
    %v3553 = vpack.c.b16 %v3546, %v3545
    %v3554 = vpack.c.b16 %v3548, %v3547
    %v3555 = vpack.c.b16 %v3550, %v3549
    %v3556 = vpack.c.b16 %v3552, %v3551
    %v3562 = vsel %vm1047, %v3518, 0
    %v3565 = vsel %vm1047, %v3519, 0
    %v3568 = vsel %vm1047, %v3520, 0
    %v3571 = vsel %vm1047, %v3521, 0
    %3573 = vmatprep.subr.bf16.mxu0 0
    %3574 = vmatpush1.bf16.msra.mxu0 0
    %3575 = vmatprep.subr.bf16.mxu0 0
    %3576 = vmatpush1.bf16.msra.mxu0 0
    %3577 = vmatprep.subr.bf16.mxu0 0
    %3578 = vmatpush1.bf16.msra.mxu0 0
    %3579 = vmatprep.subr.bf16.mxu0 0
    %3580 = vmatpush1.bf16.msra.mxu0 0
    %3581 = vmatprep.subr.bf16.mxu0 0
    %3582 = vmatpush1.bf16.msra.mxu0 %v3556
    %3583 = vmatprep.subr.bf16.mxu0 0
    %3584 = vmatpush1.bf16.msra.mxu0 %v3555
    %3585 = vmatprep.subr.bf16.mxu0 0
    %3586 = vmatpush1.bf16.msra.mxu0 %v3554
    %3587 = vmatprep.subr.bf16.mxu0 0
    %3588 = vmatpush1.bf16.msra.mxu0 %v3553
    %3589 = vmatprep.subr.bf16.mxu0 0
    %3590 = vmatpush2.bf16.msra.mxu0 0
    %3591 = vmatprep.subr.bf16.mxu0 0
    %3592 = vmatpush2.bf16.msra.mxu0 0
    %3593 = vmatprep.subr.bf16.mxu0 0
    %3594 = vmatpush2.bf16.msra.mxu0 0
    %3595 = vmatprep.subr.bf16.mxu0 0
    %3596 = vmatpush2.bf16.msra.mxu0 0
    %3597 = vmatprep.subr.bf16.mxu0 0
    %3598 = vmatpush2.bf16.msra.mxu0 0
    %3599 = vmatprep.subr.bf16.mxu0 0
    %3600 = vmatpush2.bf16.msra.mxu0 0
    %3601 = vmatprep.subr.bf16.mxu0 0
    %3602 = vmatpush2.bf16.msra.mxu0 0
    %3603 = vmatprep.subr.bf16.mxu0 0
    %3604 = vmatpush2.bf16.msra.mxu0 0
    %3605 = vmatprep.mubr.bf16.mxu0 0
    %3606 = vmatmul.mubr.bf16.gmra.mxu0 %v3562
    %v3607 = vpop.f32.mrf.mxu0
    %v3608 = vadd.f32 %v3535, %v3607
    %v3609 = vpop.f32.mrf.mxu0
    %v3610 = vpop.f32.mrf.mxu0
    %v3611 = vadd.f32 %v3535, %v3610
    %v3612 = vpop.f32.mrf.mxu0
    %3613 = vmatprep.mubr.bf16.mxu0 0
    %3614 = vmatmul.mubr.bf16.gmra.mxu0 %v3565
    %v3615 = vpop.f32.mrf.mxu0
    %v3616 = vadd.f32 %v3535, %v3615
    %v3617 = vpop.f32.mrf.mxu0
    %v3618 = vpop.f32.mrf.mxu0
    %v3619 = vadd.f32 %v3535, %v3618
    %v3620 = vpop.f32.mrf.mxu0
    %3621 = vmatprep.mubr.bf16.mxu0 0
    %3622 = vmatmul.mubr.bf16.gmra.mxu0 %v3568
    %v3623 = vpop.f32.mrf.mxu0
    %v3624 = vadd.f32 %v3535, %v3623
    %v3625 = vpop.f32.mrf.mxu0
    %v3626 = vpop.f32.mrf.mxu0
    %v3627 = vadd.f32 %v3535, %v3626
    %v3628 = vpop.f32.mrf.mxu0
    %3629 = vmatprep.mubr.bf16.mxu0 0
    %3630 = vmatmul.mubr.bf16.gmra.mxu0 %v3571
    %v3631 = vpop.f32.mrf.mxu0
    %v3632 = vadd.f32 %v3535, %v3631
    %v3633 = vpop.f32.mrf.mxu0
    %v3634 = vpop.f32.mrf.mxu0
    %v3635 = vadd.f32 %v3535, %v3634
    %v3636 = vpop.f32.mrf.mxu0
    %3637 = vdwg.mxu0
    %v3638 = vmul.f32 %v3608, %v3608
    %v3639 = vmul.f32 %v3611, %v3611
    %v3640 = vmul.f32 %v3616, %v3616
    %v3641 = vmul.f32 %v3619, %v3619
    %v3642 = vmul.f32 %v3624, %v3624
    %v3643 = vmul.f32 %v3627, %v3627
    %v3644 = vmul.f32 %v3632, %v3632
    %v3645 = vmul.f32 %v3635, %v3635
    %v3646 = vmul.f32 %v3608, %v3638
    %v3647 = vmul.f32 %v3611, %v3639
    %v3648 = vmul.f32 %v3616, %v3640
    %v3649 = vmul.f32 %v3619, %v3641
    %v3650 = vmul.f32 %v3624, %v3642
    %v3651 = vmul.f32 %v3627, %v3643
    %v3652 = vmul.f32 %v3632, %v3644
    %v3653 = vmul.f32 %v3635, %v3645
    %v3654 = vmul.f32 %v3646, 0.044715
    %v3655 = vmul.f32 %v3647, 0.044715
    %v3656 = vmul.f32 %v3648, 0.044715
    %v3657 = vmul.f32 %v3649, 0.044715
    %v3658 = vmul.f32 %v3650, 0.044715
    %v3659 = vmul.f32 %v3651, 0.044715
    %v3660 = vmul.f32 %v3652, 0.044715
    %v3661 = vmul.f32 %v3653, 0.044715
    %v3662 = vadd.f32 %v3608, %v3654
    %v3663 = vadd.f32 %v3611, %v3655
    %v3664 = vadd.f32 %v3616, %v3656
    %v3665 = vadd.f32 %v3619, %v3657
    %v3666 = vadd.f32 %v3624, %v3658
    %v3667 = vadd.f32 %v3627, %v3659
    %v3668 = vadd.f32 %v3632, %v3660
    %v3669 = vadd.f32 %v3635, %v3661
    %v3670 = vmul.f32 %v3662, 0.7978846
    %v3671 = vmul.f32 %v3663, 0.7978846
    %v3672 = vmul.f32 %v3664, 0.7978846
    %v3673 = vmul.f32 %v3665, 0.7978846
    %v3674 = vmul.f32 %v3666, 0.7978846
    %v3675 = vmul.f32 %v3667, 0.7978846
    %v3676 = vmul.f32 %v3668, 0.7978846
    %v3677 = vmul.f32 %v3669, 0.7978846
    %v3678 = vtanh.pop %v3670
    %v3679 = vtanh.pop %v3671
    %v3680 = vtanh.pop %v3672
    %v3681 = vtanh.pop %v3673
    %v3682 = vtanh.pop %v3674
    %v3683 = vtanh.pop %v3675
    %v3684 = vtanh.pop %v3676
    %v3685 = vtanh.pop %v3677
    %v3686 = vadd.f32 %v3678, 1.0
    %v3687 = vadd.f32 %v3679, 1.0
    %v3688 = vadd.f32 %v3680, 1.0
    %v3689 = vadd.f32 %v3681, 1.0
    %v3690 = vadd.f32 %v3682, 1.0
    %v3691 = vadd.f32 %v3683, 1.0
    %v3692 = vadd.f32 %v3684, 1.0
    %v3693 = vadd.f32 %v3685, 1.0
    %v3694 = vmul.f32 %v3686, 0.5
    %v3695 = vmul.f32 %v3687, 0.5
    %v3696 = vmul.f32 %v3688, 0.5
    %v3697 = vmul.f32 %v3689, 0.5
    %v3698 = vmul.f32 %v3690, 0.5
    %v3699 = vmul.f32 %v3691, 0.5
    %v3700 = vmul.f32 %v3692, 0.5
    %v3701 = vmul.f32 %v3693, 0.5
    %v3702 = vmul.f32 %v3608, %v3694
    %v3703 = vmul.f32 %v3611, %v3695
    %v3704 = vmul.f32 %v3616, %v3696
    %v3705 = vmul.f32 %v3619, %v3697
    %v3706 = vmul.f32 %v3624, %v3698
    %v3707 = vmul.f32 %v3627, %v3699
    %v3708 = vmul.f32 %v3632, %v3700
    %v3709 = vmul.f32 %v3635, %v3701
    %v3710 = vpack.c.bf16 %v3703, %v3702
    %v3711 = vpack.c.bf16 %v3705, %v3704
    %v3712 = vpack.c.bf16 %v3707, %v3706
    %v3713 = vpack.c.bf16 %v3709, %v3708
    %v3714 = vld [vmem:[%s39] sm:$0xf]
    %v3715 = vld [vmem:[%s39 + $0x4] sm:$0xf]
    %v3716 = vld [vmem:[%s39 + $0x8] sm:$0xf]
    %v3717 = vld [vmem:[%s39 + $0xc] sm:$0xf]
    %v3718 = vld [vmem:[%s39 + $0x10] sm:$0xf]
    %v3719 = vld [vmem:[%s39 + $0x14] sm:$0xf]
    %v3720 = vld [vmem:[%s39 + $0x18] sm:$0xf]
    %v3721 = vld [vmem:[%s39 + $0x1c] sm:$0xf]
    %v3722 = vld [vmem:[%s39 + $0x20] sm:$0xf]
    %v3723 = vld [vmem:[%s39 + $0x24] sm:$0xf]
    %v3724 = vld [vmem:[%s39 + $0x28] sm:$0xf]
    %v3725 = vld [vmem:[%s39 + $0x2c] sm:$0xf]
    %v3726 = vld [vmem:[%s39 + $0x30] sm:$0xf]
    %v3727 = vld [vmem:[%s39 + $0x34] sm:$0xf]
    %v3728 = vld [vmem:[%s39 + $0x38] sm:$0xf]
    %v3729 = vld [vmem:[%s39 + $0x3c] sm:$0xf]
    %v3730 = vld [vmem:[%s41] sm:$0x1]
    %v3732 = vlaneseq
    %v3733 = vshrl.u32 %v3732, 7
    %v3734 = vsub.s32 0, %v3733
    %v3735 = vrot.slane %v3730, %v3734
    %v3753 = vunpack.c.l.b16 %v3714
    %v3754 = vunpack.c.l.b16 %v3715
    %v3755 = vunpack.c.l.b16 %v3716
    %v3756 = vunpack.c.l.b16 %v3717
    %v3757 = vunpack.c.l.b16 %v3718
    %v3758 = vunpack.c.l.b16 %v3719
    %v3759 = vunpack.c.l.b16 %v3720
    %v3760 = vunpack.c.l.b16 %v3721
    %v3761 = vunpack.c.l.b16 %v3722
    %v3762 = vunpack.c.l.b16 %v3723
    %v3763 = vunpack.c.l.b16 %v3724
    %v3764 = vunpack.c.l.b16 %v3725
    %v3765 = vunpack.c.l.b16 %v3726
    %v3766 = vunpack.c.l.b16 %v3727
    %v3767 = vunpack.c.l.b16 %v3728
    %v3768 = vunpack.c.l.b16 %v3729
    %v3769 = vpack.c.b16 %v3754, %v3753
    %v3770 = vpack.c.b16 %v3756, %v3755
    %v3771 = vpack.c.b16 %v3758, %v3757
    %v3772 = vpack.c.b16 %v3760, %v3759
    %v3773 = vpack.c.b16 %v3762, %v3761
    %v3774 = vpack.c.b16 %v3764, %v3763
    %v3775 = vpack.c.b16 %v3766, %v3765
    %v3776 = vpack.c.b16 %v3768, %v3767
    %3785 = vmatprep.subr.bf16.mxu0 0
    %3786 = vmatpush1.bf16.msra.mxu0 %v3776
    %3787 = vmatprep.subr.bf16.mxu0 0
    %3788 = vmatpush1.bf16.msra.mxu0 %v3775
    %3789 = vmatprep.subr.bf16.mxu0 0
    %3790 = vmatpush1.bf16.msra.mxu0 %v3774
    %3791 = vmatprep.subr.bf16.mxu0 0
    %3792 = vmatpush1.bf16.msra.mxu0 %v3773
    %3793 = vmatprep.subr.bf16.mxu0 0
    %3794 = vmatpush1.bf16.msra.mxu0 %v3772
    %3795 = vmatprep.subr.bf16.mxu0 0
    %3796 = vmatpush1.bf16.msra.mxu0 %v3771
    %3797 = vmatprep.subr.bf16.mxu0 0
    %3798 = vmatpush1.bf16.msra.mxu0 %v3770
    %3799 = vmatprep.subr.bf16.mxu0 0
    %3800 = vmatpush1.bf16.msra.mxu0 %v3769
    %3801 = vmatprep.subr.bf16.mxu0 0
    %3802 = vmatpush2.bf16.msra.mxu0 0
    %3803 = vmatprep.subr.bf16.mxu0 0
    %3804 = vmatpush2.bf16.msra.mxu0 0
    %3805 = vmatprep.subr.bf16.mxu0 0
    %3806 = vmatpush2.bf16.msra.mxu0 0
    %3807 = vmatprep.subr.bf16.mxu0 0
    %3808 = vmatpush2.bf16.msra.mxu0 0
    %3809 = vmatprep.subr.bf16.mxu0 0
    %3810 = vmatpush2.bf16.msra.mxu0 0
    %3811 = vmatprep.subr.bf16.mxu0 0
    %3812 = vmatpush2.bf16.msra.mxu0 0
    %3813 = vmatprep.subr.bf16.mxu0 0
    %3814 = vmatpush2.bf16.msra.mxu0 0
    %3815 = vmatprep.subr.bf16.mxu0 0
    %3816 = vmatpush2.bf16.msra.mxu0 0
    %3817 = vmatprep.mubr.bf16.mxu0 0
    %3818 = vmatmul.mubr.bf16.gmra.mxu0 %v3710
    %v3819 = vpop.f32.mrf.mxu0
    %v3820 = vadd.f32 %v3735, %v3819
    %v3821 = vpop.f32.mrf.mxu0
    %v3822 = vpop.f32.mrf.mxu0
    %v3823 = vadd.f32 %v3735, %v3822
    %v3824 = vpop.f32.mrf.mxu0
    %3825 = vmatprep.mubr.bf16.mxu0 0
    %3826 = vmatmul.mubr.bf16.gmra.mxu0 %v3711
    %v3827 = vpop.f32.mrf.mxu0
    %v3828 = vadd.f32 %v3735, %v3827
    %v3829 = vpop.f32.mrf.mxu0
    %v3830 = vpop.f32.mrf.mxu0
    %v3831 = vadd.f32 %v3735, %v3830
    %v3832 = vpop.f32.mrf.mxu0
    %3833 = vmatprep.mubr.bf16.mxu0 0
    %3834 = vmatmul.mubr.bf16.gmra.mxu0 %v3712
    %v3835 = vpop.f32.mrf.mxu0
    %v3836 = vadd.f32 %v3735, %v3835
    %v3837 = vpop.f32.mrf.mxu0
    %v3838 = vpop.f32.mrf.mxu0
    %v3839 = vadd.f32 %v3735, %v3838
    %v3840 = vpop.f32.mrf.mxu0
    %3841 = vmatprep.mubr.bf16.mxu0 0
    %3842 = vmatmul.mubr.bf16.gmra.mxu0 %v3713
    %v3843 = vpop.f32.mrf.mxu0
    %v3844 = vadd.f32 %v3735, %v3843
    %v3845 = vpop.f32.mrf.mxu0
    %v3846 = vpop.f32.mrf.mxu0
    %v3847 = vadd.f32 %v3735, %v3846
    %v3848 = vpop.f32.mrf.mxu0
    %3849 = vdwg.mxu0
    %v3850 = vadd.f32 %v3510, %v3820
    %v3851 = vadd.f32 %v3511, %v3823
    %v3852 = vadd.f32 %v3512, %v3828
    %v3853 = vadd.f32 %v3513, %v3831
    %v3854 = vadd.f32 %v3514, %v3836
    %v3855 = vadd.f32 %v3515, %v3839
    %v3856 = vadd.f32 %v3516, %v3844
    %v3857 = vadd.f32 %v3517, %v3847
    %v3858 = vld [vmem:[%s43] sm:$0x1]
    %v3859 = vld [vmem:[%s45] sm:$0x1]
    %v3860 = vsel %vm1047, %v3850, 0.0
    %3861 = vadd.xlane.f32.xlu0 %v3860
    %v3862 = vpop.xlane.xlu0 %3861
    %v3863 = vsel %vm1047, %v3851, 0.0
    %3864 = vadd.xlane.f32.xlu0 %v3863
    %v3865 = vpop.xlane.xlu0 %3864
    %v3866 = vsel %vm1047, %v3852, 0.0
    %3867 = vadd.xlane.f32.xlu0 %v3866
    %v3868 = vpop.xlane.xlu0 %3867
    %v3869 = vsel %vm1047, %v3853, 0.0
    %3870 = vadd.xlane.f32.xlu0 %v3869
    %v3871 = vpop.xlane.xlu0 %3870
    %v3872 = vsel %vm1047, %v3854, 0.0
    %3873 = vadd.xlane.f32.xlu0 %v3872
    %v3874 = vpop.xlane.xlu0 %3873
    %v3875 = vsel %vm1047, %v3855, 0.0
    %3876 = vadd.xlane.f32.xlu0 %v3875
    %v3877 = vpop.xlane.xlu0 %3876
    %v3878 = vsel %vm1047, %v3856, 0.0
    %3879 = vadd.xlane.f32.xlu0 %v3878
    %v3880 = vpop.xlane.xlu0 %3879
    %v3881 = vsel %vm1047, %v3857, 0.0
    %3882 = vadd.xlane.f32.xlu0 %v3881
    %v3883 = vpop.xlane.xlu0 %3882
    %v3884 = vmul.f32 %v3862, %v1072
    %v3885 = vmul.f32 %v3865, %v1072
    %v3886 = vmul.f32 %v3868, %v1072
    %v3887 = vmul.f32 %v3871, %v1072
    %v3888 = vmul.f32 %v3874, %v1072
    %v3889 = vmul.f32 %v3877, %v1072
    %v3890 = vmul.f32 %v3880, %v1072
    %v3891 = vmul.f32 %v3883, %v1072
    %v3892 = vsub.f32 %v3850, %v3884
    %v3893 = vsub.f32 %v3851, %v3885
    %v3894 = vsub.f32 %v3852, %v3886
    %v3895 = vsub.f32 %v3853, %v3887
    %v3896 = vsub.f32 %v3854, %v3888
    %v3897 = vsub.f32 %v3855, %v3889
    %v3898 = vsub.f32 %v3856, %v3890
    %v3899 = vsub.f32 %v3857, %v3891
    %v3900 = vmul.f32 %v3892, %v3892
    %v3901 = vmul.f32 %v3893, %v3893
    %v3902 = vmul.f32 %v3894, %v3894
    %v3903 = vmul.f32 %v3895, %v3895
    %v3904 = vmul.f32 %v3896, %v3896
    %v3905 = vmul.f32 %v3897, %v3897
    %v3906 = vmul.f32 %v3898, %v3898
    %v3907 = vmul.f32 %v3899, %v3899
    %v3908 = vsel %vm1047, %v3900, 0.0
    %3909 = vadd.xlane.f32.xlu0 %v3908
    %v3910 = vpop.xlane.xlu0 %3909
    %v3911 = vsel %vm1047, %v3901, 0.0
    %3912 = vadd.xlane.f32.xlu0 %v3911
    %v3913 = vpop.xlane.xlu0 %3912
    %v3914 = vsel %vm1047, %v3902, 0.0
    %3915 = vadd.xlane.f32.xlu0 %v3914
    %v3916 = vpop.xlane.xlu0 %3915
    %v3917 = vsel %vm1047, %v3903, 0.0
    %3918 = vadd.xlane.f32.xlu0 %v3917
    %v3919 = vpop.xlane.xlu0 %3918
    %v3920 = vsel %vm1047, %v3904, 0.0
    %3921 = vadd.xlane.f32.xlu0 %v3920
    %v3922 = vpop.xlane.xlu0 %3921
    %v3923 = vsel %vm1047, %v3905, 0.0
    %3924 = vadd.xlane.f32.xlu0 %v3923
    %v3925 = vpop.xlane.xlu0 %3924
    %v3926 = vsel %vm1047, %v3906, 0.0
    %3927 = vadd.xlane.f32.xlu0 %v3926
    %v3928 = vpop.xlane.xlu0 %3927
    %v3929 = vsel %vm1047, %v3907, 0.0
    %3930 = vadd.xlane.f32.xlu0 %v3929
    %v3931 = vpop.xlane.xlu0 %3930
    %v3932 = vmul.f32 %v3910, %v1072
    %v3933 = vmul.f32 %v3913, %v1072
    %v3934 = vmul.f32 %v3916, %v1072
    %v3935 = vmul.f32 %v3919, %v1072
    %v3936 = vmul.f32 %v3922, %v1072
    %v3937 = vmul.f32 %v3925, %v1072
    %v3938 = vmul.f32 %v3928, %v1072
    %v3939 = vmul.f32 %v3931, %v1072
    %v3940 = vadd.f32 %v3932, 1e-05
    %v3941 = vadd.f32 %v3933, 1e-05
    %v3942 = vadd.f32 %v3934, 1e-05
    %v3943 = vadd.f32 %v3935, 1e-05
    %v3944 = vadd.f32 %v3936, 1e-05
    %v3945 = vadd.f32 %v3937, 1e-05
    %v3946 = vadd.f32 %v3938, 1e-05
    %v3947 = vadd.f32 %v3939, 1e-05
    %v3948 = vrsqrt.pop %v3940
    %v3949 = vrsqrt.pop %v3941
    %v3950 = vrsqrt.pop %v3942
    %v3951 = vrsqrt.pop %v3943
    %v3952 = vrsqrt.pop %v3944
    %v3953 = vrsqrt.pop %v3945
    %v3954 = vrsqrt.pop %v3946
    %v3955 = vrsqrt.pop %v3947
    %v3956 = vmul.f32 %v3892, %v3948
    %v3957 = vmul.f32 %v3893, %v3949
    %v3958 = vmul.f32 %v3894, %v3950
    %v3959 = vmul.f32 %v3895, %v3951
    %v3960 = vmul.f32 %v3896, %v3952
    %v3961 = vmul.f32 %v3897, %v3953
    %v3962 = vmul.f32 %v3898, %v3954
    %v3963 = vmul.f32 %v3899, %v3955
    %v3965 = vlaneseq
    %v3966 = vshrl.u32 %v3965, 7
    %v3967 = vsub.s32 0, %v3966
    %v3968 = vrot.slane %v3858, %v3967
    %v3970 = vmul.f32 %v3956, %v3968
    %v3971 = vmul.f32 %v3957, %v3968
    %v3972 = vmul.f32 %v3958, %v3968
    %v3973 = vmul.f32 %v3959, %v3968
    %v3974 = vmul.f32 %v3960, %v3968
    %v3975 = vmul.f32 %v3961, %v3968
    %v3976 = vmul.f32 %v3962, %v3968
    %v3977 = vmul.f32 %v3963, %v3968
    %v3979 = vlaneseq
    %v3980 = vshrl.u32 %v3979, 7
    %v3981 = vsub.s32 0, %v3980
    %v3982 = vrot.slane %v3859, %v3981
    %v3984 = vadd.f32 %v3970, %v3982
    %v3985 = vadd.f32 %v3971, %v3982
    %v3986 = vadd.f32 %v3972, %v3982
    %v3987 = vadd.f32 %v3973, %v3982
    %v3988 = vadd.f32 %v3974, %v3982
    %v3989 = vadd.f32 %v3975, %v3982
    %v3990 = vadd.f32 %v3976, %v3982
    %v3991 = vadd.f32 %v3977, %v3982
    %v3992 = vpack.c.bf16 %v3985, %v3984
    %v3993 = vpack.c.bf16 %v3987, %v3986
    %v3994 = vpack.c.bf16 %v3989, %v3988
    %v3995 = vpack.c.bf16 %v3991, %v3990
    %v3996 = vld [vmem:[%s47] sm:$0xff]
    %v3997 = vld [vmem:[%s47 + $0x8] sm:$0xff]
    %v3998 = vld [vmem:[%s47 + $0x10] sm:$0xff]
    %v3999 = vld [vmem:[%s47 + $0x18] sm:$0xff]
    %v4000 = vld [vmem:[%s47 + $0x20] sm:$0xff]
    %v4001 = vld [vmem:[%s47 + $0x28] sm:$0xff]
    %v4002 = vld [vmem:[%s47 + $0x30] sm:$0xff]
    %v4003 = vld [vmem:[%s47 + $0x38] sm:$0xff]
    %v4004 = vld [vmem:[%s49] sm:$0x3]
    %v4006 = vlaneseq
    %v4007 = vshrl.u32 %v4006, 7
    %v4008 = vsub.s32 0, %v4007
    %v4009 = vrot.slane %v4004, %v4008
    %v4010 = vlaneseq
    %v4011 = vshrl.u32 %v4010, 7
    %v4012 = vsub.s32 1, %v4011
    %v4013 = vrot.slane %v4004, %v4012
    %v4024 = vunpack.c.l.b16 %v3996
    %v4025 = vunpack.c.h.b16 %v3996
    %v4026 = vunpack.c.l.b16 %v3997
    %v4027 = vunpack.c.h.b16 %v3997
    %v4028 = vunpack.c.l.b16 %v3998
    %v4029 = vunpack.c.h.b16 %v3998
    %v4030 = vunpack.c.l.b16 %v3999
    %v4031 = vunpack.c.h.b16 %v3999
    %v4032 = vunpack.c.l.b16 %v4000
    %v4033 = vunpack.c.h.b16 %v4000
    %v4034 = vunpack.c.l.b16 %v4001
    %v4035 = vunpack.c.h.b16 %v4001
    %v4036 = vunpack.c.l.b16 %v4002
    %v4037 = vunpack.c.h.b16 %v4002
    %v4038 = vunpack.c.l.b16 %v4003
    %v4039 = vunpack.c.h.b16 %v4003
    %v4040 = vpack.c.b16 %v4026, %v4024
    %v4041 = vpack.c.b16 %v4027, %v4025
    %v4042 = vpack.c.b16 %v4030, %v4028
    %v4043 = vpack.c.b16 %v4031, %v4029
    %v4044 = vpack.c.b16 %v4034, %v4032
    %v4045 = vpack.c.b16 %v4035, %v4033
    %v4046 = vpack.c.b16 %v4038, %v4036
    %v4047 = vpack.c.b16 %v4039, %v4037
    %v4057 = vsel %vm1047, %v3992, 0
    %v4060 = vsel %vm1047, %v3993, 0
    %v4063 = vsel %vm1047, %v3994, 0
    %v4066 = vsel %vm1047, %v3995, 0
    %4068 = vmatprep.subr.bf16.mxu0 0
    %4069 = vmatpush1.bf16.msra.mxu0 0
    %4070 = vmatprep.subr.bf16.mxu0 0
    %4071 = vmatpush1.bf16.msra.mxu0 0
    %4072 = vmatprep.subr.bf16.mxu0 0
    %4073 = vmatpush1.bf16.msra.mxu0 0
    %4074 = vmatprep.subr.bf16.mxu0 0
    %4075 = vmatpush1.bf16.msra.mxu0 0
    %4076 = vmatprep.subr.bf16.mxu0 %v4047
    %4077 = vmatpush1.bf16.msra.mxu0 %v4046
    %4078 = vmatprep.subr.bf16.mxu0 %v4045
    %4079 = vmatpush1.bf16.msra.mxu0 %v4044
    %4080 = vmatprep.subr.bf16.mxu0 %v4043
    %4081 = vmatpush1.bf16.msra.mxu0 %v4042
    %4082 = vmatprep.subr.bf16.mxu0 %v4041
    %4083 = vmatpush1.bf16.msra.mxu0 %v4040
    %4084 = vmatprep.subr.bf16.mxu0 0
    %4085 = vmatpush2.bf16.msra.mxu0 0
    %4086 = vmatprep.subr.bf16.mxu0 0
    %4087 = vmatpush2.bf16.msra.mxu0 0
    %4088 = vmatprep.subr.bf16.mxu0 0
    %4089 = vmatpush2.bf16.msra.mxu0 0
    %4090 = vmatprep.subr.bf16.mxu0 0
    %4091 = vmatpush2.bf16.msra.mxu0 0
    %4092 = vmatprep.subr.bf16.mxu0 0
    %4093 = vmatpush2.bf16.msra.mxu0 0
    %4094 = vmatprep.subr.bf16.mxu0 0
    %4095 = vmatpush2.bf16.msra.mxu0 0
    %4096 = vmatprep.subr.bf16.mxu0 0
    %4097 = vmatpush2.bf16.msra.mxu0 0
    %4098 = vmatprep.subr.bf16.mxu0 0
    %4099 = vmatpush2.bf16.msra.mxu0 0
    %4100 = vmatprep.mubr.bf16.mxu0 0
    %4101 = vmatmul.mubr.bf16.gmra.mxu0 %v4057
    %v4102 = vpop.f32.mrf.mxu0
    %v4103 = vadd.f32 %v4009, %v4102
    %v4104 = vpop.f32.mrf.mxu0
    %v4105 = vadd.f32 %v4013, %v4104
    %v4106 = vpop.f32.mrf.mxu0
    %v4107 = vadd.f32 %v4009, %v4106
    %v4108 = vpop.f32.mrf.mxu0
    %v4109 = vadd.f32 %v4013, %v4108
    %4110 = vmatprep.mubr.bf16.mxu0 0
    %4111 = vmatmul.mubr.bf16.gmra.mxu0 %v4060
    %v4112 = vpop.f32.mrf.mxu0
    %v4113 = vadd.f32 %v4009, %v4112
    %v4114 = vpop.f32.mrf.mxu0
    %v4115 = vadd.f32 %v4013, %v4114
    %v4116 = vpop.f32.mrf.mxu0
    %v4117 = vadd.f32 %v4009, %v4116
    %v4118 = vpop.f32.mrf.mxu0
    %v4119 = vadd.f32 %v4013, %v4118
    %4120 = vmatprep.mubr.bf16.mxu0 0
    %4121 = vmatmul.mubr.bf16.gmra.mxu0 %v4063
    %v4122 = vpop.f32.mrf.mxu0
    %v4123 = vadd.f32 %v4009, %v4122
    %v4124 = vpop.f32.mrf.mxu0
    %v4125 = vadd.f32 %v4013, %v4124
    %v4126 = vpop.f32.mrf.mxu0
    %v4127 = vadd.f32 %v4009, %v4126
    %v4128 = vpop.f32.mrf.mxu0
    %v4129 = vadd.f32 %v4013, %v4128
    %4130 = vmatprep.mubr.bf16.mxu0 0
    %4131 = vmatmul.mubr.bf16.gmra.mxu0 %v4066
    %v4132 = vpop.f32.mrf.mxu0
    %v4133 = vadd.f32 %v4009, %v4132
    %v4134 = vpop.f32.mrf.mxu0
    %v4135 = vadd.f32 %v4013, %v4134
    %v4136 = vpop.f32.mrf.mxu0
    %v4137 = vadd.f32 %v4009, %v4136
    %v4138 = vpop.f32.mrf.mxu0
    %v4139 = vadd.f32 %v4013, %v4138
    %4140 = vdwg.mxu0
    %v4141 = vpack.c.bf16 %v4107, %v4103
    %v4142 = vpack.c.bf16 %v4109, %v4105
    %v4143 = vpack.c.bf16 %v4117, %v4113
    %v4144 = vpack.c.bf16 %v4119, %v4115
    %v4145 = vpack.c.bf16 %v4127, %v4123
    %v4146 = vpack.c.bf16 %v4129, %v4125
    %v4147 = vpack.c.bf16 %v4137, %v4133
    %v4148 = vpack.c.bf16 %v4139, %v4135
    %v4149 = vld [vmem:[%s51] sm:$0xf]
    %v4150 = vld [vmem:[%s51 + $0x4] sm:$0xf]
    %v4151 = vld [vmem:[%s51 + $0x8] sm:$0xf]
    %v4152 = vld [vmem:[%s51 + $0xc] sm:$0xf]
    %v4153 = vld [vmem:[%s51 + $0x10] sm:$0xf]
    %v4154 = vld [vmem:[%s51 + $0x14] sm:$0xf]
    %v4155 = vld [vmem:[%s51 + $0x18] sm:$0xf]
    %v4156 = vld [vmem:[%s51 + $0x1c] sm:$0xf]
    %4159 = vrot.lane.b32.xlu0 %v4141, 64
    %v4160 = vpop.permute.xlu0 %4159
    %4161 = vrot.lane.b32.xlu0 %v4143, 64
    %v4162 = vpop.permute.xlu0 %4161
    %v4164 = vsel %vm1606, %v4141, 0
    %v4167 = vsel %vm1606, %v4143, 0
    %v4170 = vsel %vm1606, %v4160, 0
    %v4173 = vsel %vm1606, %v4162, 0
    %4175 = vmatprep.subr.bf16.mxu0 0
    %4176 = vmatpush1.bf16.xpose.msra.mxu0 0
    %4177 = vmatprep.subr.bf16.mxu0 0
    %4178 = vmatpush1.bf16.xpose.msra.mxu0 0
    %4179 = vmatprep.subr.bf16.mxu0 0
    %4180 = vmatpush1.bf16.xpose.msra.mxu0 0
    %4181 = vmatprep.subr.bf16.mxu0 0
    %4182 = vmatpush1.bf16.xpose.msra.mxu0 0
    %4183 = vmatprep.subr.bf16.mxu0 0
    %4184 = vmatpush1.bf16.xpose.msra.mxu0 0
    %4185 = vmatprep.subr.bf16.mxu0 0
    %4186 = vmatpush1.bf16.xpose.msra.mxu0 0
    %4187 = vmatprep.subr.bf16.mxu0 0
    %4188 = vmatpush1.bf16.xpose.msra.mxu0 %v4173
    %4189 = vmatprep.subr.bf16.mxu0 0
    %4190 = vmatpush1.bf16.xpose.msra.mxu0 %v4170
    %4191 = vmatprep.subr.bf16.mxu0 0
    %4192 = vmatpush2.bf16.xpose.msra.mxu0 0
    %4193 = vmatprep.subr.bf16.mxu0 0
    %4194 = vmatpush2.bf16.xpose.msra.mxu0 0
    %4195 = vmatprep.subr.bf16.mxu0 0
    %4196 = vmatpush2.bf16.xpose.msra.mxu0 0
    %4197 = vmatprep.subr.bf16.mxu0 0
    %4198 = vmatpush2.bf16.xpose.msra.mxu0 0
    %4199 = vmatprep.subr.bf16.mxu0 0
    %4200 = vmatpush2.bf16.xpose.msra.mxu0 0
    %4201 = vmatprep.subr.bf16.mxu0 0
    %4202 = vmatpush2.bf16.xpose.msra.mxu0 0
    %4203 = vmatprep.subr.bf16.mxu0 0
    %4204 = vmatpush2.bf16.xpose.msra.mxu0 0
    %4205 = vmatprep.subr.bf16.mxu0 0
    %4206 = vmatpush2.bf16.xpose.msra.mxu0 0
    %4207 = vmatprep.mubr.bf16.mxu0 0
    %4208 = vmatmul.mubr.bf16.gmra.mxu0 %v4164
    %v4209 = vpop.f32.mrf.mxu0
    %v4210 = vadd.f32 0.0, %v4209
    %v4211 = vpop.f32.mrf.mxu0
    %v4212 = vpop.f32.mrf.mxu0
    %v4213 = vadd.f32 0.0, %v4212
    %v4214 = vpop.f32.mrf.mxu0
    %4215 = vmatprep.mubr.bf16.mxu0 0
    %4216 = vmatmul.mubr.bf16.gmra.mxu0 %v4167
    %v4217 = vpop.f32.mrf.mxu0
    %v4218 = vadd.f32 0.0, %v4217
    %v4219 = vpop.f32.mrf.mxu0
    %v4220 = vpop.f32.mrf.mxu0
    %v4221 = vadd.f32 0.0, %v4220
    %v4222 = vpop.f32.mrf.mxu0
    %4223 = vdwg.mxu0
    %4226 = vrot.lane.b32.xlu0 %v4145, 64
    %v4227 = vpop.permute.xlu0 %4226
    %4228 = vrot.lane.b32.xlu0 %v4147, 64
    %v4229 = vpop.permute.xlu0 %4228
    %v4231 = vsel %vm1606, %v4145, 0
    %v4234 = vsel %vm1606, %v4147, 0
    %v4237 = vsel %vm1606, %v4227, 0
    %v4240 = vsel %vm1606, %v4229, 0
    %4242 = vmatprep.subr.bf16.mxu0 0
    %4243 = vmatpush1.bf16.xpose.msra.mxu0 0
    %4244 = vmatprep.subr.bf16.mxu0 0
    %4245 = vmatpush1.bf16.xpose.msra.mxu0 0
    %4246 = vmatprep.subr.bf16.mxu0 0
    %4247 = vmatpush1.bf16.xpose.msra.mxu0 0
    %4248 = vmatprep.subr.bf16.mxu0 0
    %4249 = vmatpush1.bf16.xpose.msra.mxu0 0
    %4250 = vmatprep.subr.bf16.mxu0 0
    %4251 = vmatpush1.bf16.xpose.msra.mxu0 0
    %4252 = vmatprep.subr.bf16.mxu0 0
    %4253 = vmatpush1.bf16.xpose.msra.mxu0 0
    %4254 = vmatprep.subr.bf16.mxu0 0
    %4255 = vmatpush1.bf16.xpose.msra.mxu0 %v4240
    %4256 = vmatprep.subr.bf16.mxu0 0
    %4257 = vmatpush1.bf16.xpose.msra.mxu0 %v4237
    %4258 = vmatprep.subr.bf16.mxu0 0
    %4259 = vmatpush2.bf16.xpose.msra.mxu0 0
    %4260 = vmatprep.subr.bf16.mxu0 0
    %4261 = vmatpush2.bf16.xpose.msra.mxu0 0
    %4262 = vmatprep.subr.bf16.mxu0 0
    %4263 = vmatpush2.bf16.xpose.msra.mxu0 0
    %4264 = vmatprep.subr.bf16.mxu0 0
    %4265 = vmatpush2.bf16.xpose.msra.mxu0 0
    %4266 = vmatprep.subr.bf16.mxu0 0
    %4267 = vmatpush2.bf16.xpose.msra.mxu0 0
    %4268 = vmatprep.subr.bf16.mxu0 0
    %4269 = vmatpush2.bf16.xpose.msra.mxu0 0
    %4270 = vmatprep.subr.bf16.mxu0 0
    %4271 = vmatpush2.bf16.xpose.msra.mxu0 0
    %4272 = vmatprep.subr.bf16.mxu0 0
    %4273 = vmatpush2.bf16.xpose.msra.mxu0 0
    %4274 = vmatprep.mubr.bf16.mxu0 0
    %4275 = vmatmul.mubr.bf16.gmra.mxu0 %v4231
    %v4276 = vpop.f32.mrf.mxu0
    %v4277 = vadd.f32 0.0, %v4276
    %v4278 = vpop.f32.mrf.mxu0
    %v4279 = vpop.f32.mrf.mxu0
    %v4280 = vadd.f32 0.0, %v4279
    %v4281 = vpop.f32.mrf.mxu0
    %4282 = vmatprep.mubr.bf16.mxu0 0
    %4283 = vmatmul.mubr.bf16.gmra.mxu0 %v4234
    %v4284 = vpop.f32.mrf.mxu0
    %v4285 = vadd.f32 0.0, %v4284
    %v4286 = vpop.f32.mrf.mxu0
    %v4287 = vpop.f32.mrf.mxu0
    %v4288 = vadd.f32 0.0, %v4287
    %v4289 = vpop.f32.mrf.mxu0
    %4290 = vdwg.mxu0
    %v4291 = vsel %vm533, %v4210, -inf
    %4292 = vmax.xlane.f32.xlu0 %v4291
    %v4293 = vpop.xlane.xlu0 %4292
    %v4294 = vsel %vm533, %v4213, -inf
    %4295 = vmax.xlane.f32.xlu0 %v4294
    %v4296 = vpop.xlane.xlu0 %4295
    %v4297 = vsel %vm533, %v4218, -inf
    %4298 = vmax.xlane.f32.xlu0 %v4297
    %v4299 = vpop.xlane.xlu0 %4298
    %v4300 = vsel %vm533, %v4221, -inf
    %4301 = vmax.xlane.f32.xlu0 %v4300
    %v4302 = vpop.xlane.xlu0 %4301
    %v4303 = vsel %vm533, %v4277, -inf
    %4304 = vmax.xlane.f32.xlu0 %v4303
    %v4305 = vpop.xlane.xlu0 %4304
    %v4306 = vsel %vm533, %v4280, -inf
    %4307 = vmax.xlane.f32.xlu0 %v4306
    %v4308 = vpop.xlane.xlu0 %4307
    %v4309 = vsel %vm533, %v4285, -inf
    %4310 = vmax.xlane.f32.xlu0 %v4309
    %v4311 = vpop.xlane.xlu0 %4310
    %v4312 = vsel %vm533, %v4288, -inf
    %4313 = vmax.xlane.f32.xlu0 %v4312
    %v4314 = vpop.xlane.xlu0 %4313
    %v4315 = vsub.f32 %v4210, %v4293
    %v4316 = vsub.f32 %v4213, %v4296
    %v4317 = vsub.f32 %v4218, %v4299
    %v4318 = vsub.f32 %v4221, %v4302
    %v4319 = vsub.f32 %v4277, %v4305
    %v4320 = vsub.f32 %v4280, %v4308
    %v4321 = vsub.f32 %v4285, %v4311
    %v4322 = vsub.f32 %v4288, %v4314
    %v4323 = vmul.f32 %v4315, 1.442695
    %v4324 = vpow.pop %v4323
    %v4325 = vmul.f32 %v4316, 1.442695
    %v4326 = vpow.pop %v4325
    %v4327 = vmul.f32 %v4317, 1.442695
    %v4328 = vpow.pop %v4327
    %v4329 = vmul.f32 %v4318, 1.442695
    %v4330 = vpow.pop %v4329
    %v4331 = vmul.f32 %v4319, 1.442695
    %v4332 = vpow.pop %v4331
    %v4333 = vmul.f32 %v4320, 1.442695
    %v4334 = vpow.pop %v4333
    %v4335 = vmul.f32 %v4321, 1.442695
    %v4336 = vpow.pop %v4335
    %v4337 = vmul.f32 %v4322, 1.442695
    %v4338 = vpow.pop %v4337
    %v4339 = vsel %vm533, %v4324, 0.0
    %4340 = vadd.xlane.f32.xlu0 %v4339
    %v4341 = vpop.xlane.xlu0 %4340
    %v4342 = vsel %vm533, %v4326, 0.0
    %4343 = vadd.xlane.f32.xlu0 %v4342
    %v4344 = vpop.xlane.xlu0 %4343
    %v4345 = vsel %vm533, %v4328, 0.0
    %4346 = vadd.xlane.f32.xlu0 %v4345
    %v4347 = vpop.xlane.xlu0 %4346
    %v4348 = vsel %vm533, %v4330, 0.0
    %4349 = vadd.xlane.f32.xlu0 %v4348
    %v4350 = vpop.xlane.xlu0 %4349
    %v4351 = vsel %vm533, %v4332, 0.0
    %4352 = vadd.xlane.f32.xlu0 %v4351
    %v4353 = vpop.xlane.xlu0 %4352
    %v4354 = vsel %vm533, %v4334, 0.0
    %4355 = vadd.xlane.f32.xlu0 %v4354
    %v4356 = vpop.xlane.xlu0 %4355
    %v4357 = vsel %vm533, %v4336, 0.0
    %4358 = vadd.xlane.f32.xlu0 %v4357
    %v4359 = vpop.xlane.xlu0 %4358
    %v4360 = vsel %vm533, %v4338, 0.0
    %4361 = vadd.xlane.f32.xlu0 %v4360
    %v4362 = vpop.xlane.xlu0 %4361
    %v4363 = vrcp.pop %v4341
    %v4364 = vrcp.pop %v4344
    %v4365 = vrcp.pop %v4347
    %v4366 = vrcp.pop %v4350
    %v4367 = vrcp.pop %v4353
    %v4368 = vrcp.pop %v4356
    %v4369 = vrcp.pop %v4359
    %v4370 = vrcp.pop %v4362
    %v4371 = vmul.f32 %v4324, %v4363
    %v4372 = vmul.f32 %v4326, %v4364
    %v4373 = vmul.f32 %v4328, %v4365
    %v4374 = vmul.f32 %v4330, %v4366
    %v4375 = vmul.f32 %v4332, %v4367
    %v4376 = vmul.f32 %v4334, %v4368
    %v4377 = vmul.f32 %v4336, %v4369
    %v4378 = vmul.f32 %v4338, %v4370
    %v4379 = vpack.c.bf16 %v4372, %v4371
    %v4380 = vpack.c.bf16 %v4374, %v4373
    %v4381 = vpack.c.bf16 %v4376, %v4375
    %v4382 = vpack.c.bf16 %v4378, %v4377
    %v4384 = vsel %vm533, %v4379, 0
    %v4387 = vsel %vm533, %v4380, 0
    %4389 = vmatprep.subr.bf16.mxu0 0
    %4390 = vmatpush1.bf16.msra.mxu0 0
    %4391 = vmatprep.subr.bf16.mxu0 0
    %4392 = vmatpush1.bf16.msra.mxu0 0
    %4393 = vmatprep.subr.bf16.mxu0 0
    %4394 = vmatpush1.bf16.msra.mxu0 0
    %4395 = vmatprep.subr.bf16.mxu0 0
    %4396 = vmatpush1.bf16.msra.mxu0 0
    %4397 = vmatprep.subr.bf16.mxu0 0
    %4398 = vmatpush1.bf16.msra.mxu0 0
    %4399 = vmatprep.subr.bf16.mxu0 0
    %4400 = vmatpush1.bf16.msra.mxu0 0
    %4401 = vmatprep.subr.bf16.mxu0 0
    %4402 = vmatpush1.bf16.msra.mxu0 %v4144
    %4403 = vmatprep.subr.bf16.mxu0 0
    %4404 = vmatpush1.bf16.msra.mxu0 %v4142
    %4405 = vmatprep.subr.bf16.mxu0 0
    %4406 = vmatpush2.bf16.msra.mxu0 0
    %4407 = vmatprep.subr.bf16.mxu0 0
    %4408 = vmatpush2.bf16.msra.mxu0 0
    %4409 = vmatprep.subr.bf16.mxu0 0
    %4410 = vmatpush2.bf16.msra.mxu0 0
    %4411 = vmatprep.subr.bf16.mxu0 0
    %4412 = vmatpush2.bf16.msra.mxu0 0
    %4413 = vmatprep.subr.bf16.mxu0 0
    %4414 = vmatpush2.bf16.msra.mxu0 0
    %4415 = vmatprep.subr.bf16.mxu0 0
    %4416 = vmatpush2.bf16.msra.mxu0 0
    %4417 = vmatprep.subr.bf16.mxu0 0
    %4418 = vmatpush2.bf16.msra.mxu0 0
    %4419 = vmatprep.subr.bf16.mxu0 0
    %4420 = vmatpush2.bf16.msra.mxu0 0
    %4421 = vmatprep.mubr.bf16.mxu0 0
    %4422 = vmatmul.mubr.bf16.gmra.mxu0 %v4384
    %v4423 = vpop.f32.mrf.mxu0
    %v4424 = vadd.f32 0.0, %v4423
    %v4425 = vpop.f32.mrf.mxu0
    %v4426 = vpop.f32.mrf.mxu0
    %v4427 = vadd.f32 0.0, %v4426
    %v4428 = vpop.f32.mrf.mxu0
    %4429 = vmatprep.mubr.bf16.mxu0 0
    %4430 = vmatmul.mubr.bf16.gmra.mxu0 %v4387
    %v4431 = vpop.f32.mrf.mxu0
    %v4432 = vadd.f32 0.0, %v4431
    %v4433 = vpop.f32.mrf.mxu0
    %v4434 = vpop.f32.mrf.mxu0
    %v4435 = vadd.f32 0.0, %v4434
    %v4436 = vpop.f32.mrf.mxu0
    %4437 = vdwg.mxu0
    %v4439 = vsel %vm533, %v4381, 0
    %v4442 = vsel %vm533, %v4382, 0
    %4444 = vmatprep.subr.bf16.mxu0 0
    %4445 = vmatpush1.bf16.msra.mxu0 0
    %4446 = vmatprep.subr.bf16.mxu0 0
    %4447 = vmatpush1.bf16.msra.mxu0 0
    %4448 = vmatprep.subr.bf16.mxu0 0
    %4449 = vmatpush1.bf16.msra.mxu0 0
    %4450 = vmatprep.subr.bf16.mxu0 0
    %4451 = vmatpush1.bf16.msra.mxu0 0
    %4452 = vmatprep.subr.bf16.mxu0 0
    %4453 = vmatpush1.bf16.msra.mxu0 0
    %4454 = vmatprep.subr.bf16.mxu0 0
    %4455 = vmatpush1.bf16.msra.mxu0 0
    %4456 = vmatprep.subr.bf16.mxu0 0
    %4457 = vmatpush1.bf16.msra.mxu0 %v4148
    %4458 = vmatprep.subr.bf16.mxu0 0
    %4459 = vmatpush1.bf16.msra.mxu0 %v4146
    %4460 = vmatprep.subr.bf16.mxu0 0
    %4461 = vmatpush2.bf16.msra.mxu0 0
    %4462 = vmatprep.subr.bf16.mxu0 0
    %4463 = vmatpush2.bf16.msra.mxu0 0
    %4464 = vmatprep.subr.bf16.mxu0 0
    %4465 = vmatpush2.bf16.msra.mxu0 0
    %4466 = vmatprep.subr.bf16.mxu0 0
    %4467 = vmatpush2.bf16.msra.mxu0 0
    %4468 = vmatprep.subr.bf16.mxu0 0
    %4469 = vmatpush2.bf16.msra.mxu0 0
    %4470 = vmatprep.subr.bf16.mxu0 0
    %4471 = vmatpush2.bf16.msra.mxu0 0
    %4472 = vmatprep.subr.bf16.mxu0 0
    %4473 = vmatpush2.bf16.msra.mxu0 0
    %4474 = vmatprep.subr.bf16.mxu0 0
    %4475 = vmatpush2.bf16.msra.mxu0 0
    %4476 = vmatprep.mubr.bf16.mxu0 0
    %4477 = vmatmul.mubr.bf16.gmra.mxu0 %v4439
    %v4478 = vpop.f32.mrf.mxu0
    %v4479 = vadd.f32 0.0, %v4478
    %v4480 = vpop.f32.mrf.mxu0
    %v4481 = vpop.f32.mrf.mxu0
    %v4482 = vadd.f32 0.0, %v4481
    %v4483 = vpop.f32.mrf.mxu0
    %4484 = vmatprep.mubr.bf16.mxu0 0
    %4485 = vmatmul.mubr.bf16.gmra.mxu0 %v4442
    %v4486 = vpop.f32.mrf.mxu0
    %v4487 = vadd.f32 0.0, %v4486
    %v4488 = vpop.f32.mrf.mxu0
    %v4489 = vpop.f32.mrf.mxu0
    %v4490 = vadd.f32 0.0, %v4489
    %v4491 = vpop.f32.mrf.mxu0
    %4492 = vdwg.mxu0
    %v4493 = vpack.c.bf16 %v4427, %v4424
    %v4494 = vpack.c.bf16 %v4435, %v4432
    %v4495 = vpack.c.bf16 %v4482, %v4479
    %v4496 = vpack.c.bf16 %v4490, %v4487
    %4497 = vrot.lane.b32.xlu0 %v4141, 112
    %v4498 = vpop.permute.xlu0 %4497
    %4499 = vrot.lane.b32.xlu0 %v4143, 112
    %v4500 = vpop.permute.xlu0 %4499
    %4501 = vrot.lane.b32.xlu0 %v4141, 48
    %v4502 = vpop.permute.xlu0 %4501
    %4503 = vrot.lane.b32.xlu0 %v4143, 48
    %v4504 = vpop.permute.xlu0 %4503
    %v4506 = vsel %vm1606, %v4498, 0
    %v4509 = vsel %vm1606, %v4500, 0
    %v4512 = vsel %vm1606, %v4502, 0
    %v4515 = vsel %vm1606, %v4504, 0
    %4517 = vmatprep.subr.bf16.mxu0 0
    %4518 = vmatpush1.bf16.xpose.msra.mxu0 0
    %4519 = vmatprep.subr.bf16.mxu0 0
    %4520 = vmatpush1.bf16.xpose.msra.mxu0 0
    %4521 = vmatprep.subr.bf16.mxu0 0
    %4522 = vmatpush1.bf16.xpose.msra.mxu0 0
    %4523 = vmatprep.subr.bf16.mxu0 0
    %4524 = vmatpush1.bf16.xpose.msra.mxu0 0
    %4525 = vmatprep.subr.bf16.mxu0 0
    %4526 = vmatpush1.bf16.xpose.msra.mxu0 0
    %4527 = vmatprep.subr.bf16.mxu0 0
    %4528 = vmatpush1.bf16.xpose.msra.mxu0 0
    %4529 = vmatprep.subr.bf16.mxu0 0
    %4530 = vmatpush1.bf16.xpose.msra.mxu0 %v4515
    %4531 = vmatprep.subr.bf16.mxu0 0
    %4532 = vmatpush1.bf16.xpose.msra.mxu0 %v4512
    %4533 = vmatprep.subr.bf16.mxu0 0
    %4534 = vmatpush2.bf16.xpose.msra.mxu0 0
    %4535 = vmatprep.subr.bf16.mxu0 0
    %4536 = vmatpush2.bf16.xpose.msra.mxu0 0
    %4537 = vmatprep.subr.bf16.mxu0 0
    %4538 = vmatpush2.bf16.xpose.msra.mxu0 0
    %4539 = vmatprep.subr.bf16.mxu0 0
    %4540 = vmatpush2.bf16.xpose.msra.mxu0 0
    %4541 = vmatprep.subr.bf16.mxu0 0
    %4542 = vmatpush2.bf16.xpose.msra.mxu0 0
    %4543 = vmatprep.subr.bf16.mxu0 0
    %4544 = vmatpush2.bf16.xpose.msra.mxu0 0
    %4545 = vmatprep.subr.bf16.mxu0 0
    %4546 = vmatpush2.bf16.xpose.msra.mxu0 0
    %4547 = vmatprep.subr.bf16.mxu0 0
    %4548 = vmatpush2.bf16.xpose.msra.mxu0 0
    %4549 = vmatprep.mubr.bf16.mxu0 0
    %4550 = vmatmul.mubr.bf16.gmra.mxu0 %v4506
    %v4551 = vpop.f32.mrf.mxu0
    %v4552 = vadd.f32 0.0, %v4551
    %v4553 = vpop.f32.mrf.mxu0
    %v4554 = vpop.f32.mrf.mxu0
    %v4555 = vadd.f32 0.0, %v4554
    %v4556 = vpop.f32.mrf.mxu0
    %4557 = vmatprep.mubr.bf16.mxu0 0
    %4558 = vmatmul.mubr.bf16.gmra.mxu0 %v4509
    %v4559 = vpop.f32.mrf.mxu0
    %v4560 = vadd.f32 0.0, %v4559
    %v4561 = vpop.f32.mrf.mxu0
    %v4562 = vpop.f32.mrf.mxu0
    %v4563 = vadd.f32 0.0, %v4562
    %v4564 = vpop.f32.mrf.mxu0
    %4565 = vdwg.mxu0
    %4566 = vrot.lane.b32.xlu0 %v4145, 112
    %v4567 = vpop.permute.xlu0 %4566
    %4568 = vrot.lane.b32.xlu0 %v4147, 112
    %v4569 = vpop.permute.xlu0 %4568
    %4570 = vrot.lane.b32.xlu0 %v4145, 48
    %v4571 = vpop.permute.xlu0 %4570
    %4572 = vrot.lane.b32.xlu0 %v4147, 48
    %v4573 = vpop.permute.xlu0 %4572
    %v4575 = vsel %vm1606, %v4567, 0
    %v4578 = vsel %vm1606, %v4569, 0
    %v4581 = vsel %vm1606, %v4571, 0
    %v4584 = vsel %vm1606, %v4573, 0
    %4586 = vmatprep.subr.bf16.mxu0 0
    %4587 = vmatpush1.bf16.xpose.msra.mxu0 0
    %4588 = vmatprep.subr.bf16.mxu0 0
    %4589 = vmatpush1.bf16.xpose.msra.mxu0 0
    %4590 = vmatprep.subr.bf16.mxu0 0
    %4591 = vmatpush1.bf16.xpose.msra.mxu0 0
    %4592 = vmatprep.subr.bf16.mxu0 0
    %4593 = vmatpush1.bf16.xpose.msra.mxu0 0
    %4594 = vmatprep.subr.bf16.mxu0 0
    %4595 = vmatpush1.bf16.xpose.msra.mxu0 0
    %4596 = vmatprep.subr.bf16.mxu0 0
    %4597 = vmatpush1.bf16.xpose.msra.mxu0 0
    %4598 = vmatprep.subr.bf16.mxu0 0
    %4599 = vmatpush1.bf16.xpose.msra.mxu0 %v4584
    %4600 = vmatprep.subr.bf16.mxu0 0
    %4601 = vmatpush1.bf16.xpose.msra.mxu0 %v4581
    %4602 = vmatprep.subr.bf16.mxu0 0
    %4603 = vmatpush2.bf16.xpose.msra.mxu0 0
    %4604 = vmatprep.subr.bf16.mxu0 0
    %4605 = vmatpush2.bf16.xpose.msra.mxu0 0
    %4606 = vmatprep.subr.bf16.mxu0 0
    %4607 = vmatpush2.bf16.xpose.msra.mxu0 0
    %4608 = vmatprep.subr.bf16.mxu0 0
    %4609 = vmatpush2.bf16.xpose.msra.mxu0 0
    %4610 = vmatprep.subr.bf16.mxu0 0
    %4611 = vmatpush2.bf16.xpose.msra.mxu0 0
    %4612 = vmatprep.subr.bf16.mxu0 0
    %4613 = vmatpush2.bf16.xpose.msra.mxu0 0
    %4614 = vmatprep.subr.bf16.mxu0 0
    %4615 = vmatpush2.bf16.xpose.msra.mxu0 0
    %4616 = vmatprep.subr.bf16.mxu0 0
    %4617 = vmatpush2.bf16.xpose.msra.mxu0 0
    %4618 = vmatprep.mubr.bf16.mxu0 0
    %4619 = vmatmul.mubr.bf16.gmra.mxu0 %v4575
    %v4620 = vpop.f32.mrf.mxu0
    %v4621 = vadd.f32 0.0, %v4620
    %v4622 = vpop.f32.mrf.mxu0
    %v4623 = vpop.f32.mrf.mxu0
    %v4624 = vadd.f32 0.0, %v4623
    %v4625 = vpop.f32.mrf.mxu0
    %4626 = vmatprep.mubr.bf16.mxu0 0
    %4627 = vmatmul.mubr.bf16.gmra.mxu0 %v4578
    %v4628 = vpop.f32.mrf.mxu0
    %v4629 = vadd.f32 0.0, %v4628
    %v4630 = vpop.f32.mrf.mxu0
    %v4631 = vpop.f32.mrf.mxu0
    %v4632 = vadd.f32 0.0, %v4631
    %v4633 = vpop.f32.mrf.mxu0
    %4634 = vdwg.mxu0
    %v4635 = vsel %vm533, %v4552, -inf
    %4636 = vmax.xlane.f32.xlu0 %v4635
    %v4637 = vpop.xlane.xlu0 %4636
    %v4638 = vsel %vm533, %v4555, -inf
    %4639 = vmax.xlane.f32.xlu0 %v4638
    %v4640 = vpop.xlane.xlu0 %4639
    %v4641 = vsel %vm533, %v4560, -inf
    %4642 = vmax.xlane.f32.xlu0 %v4641
    %v4643 = vpop.xlane.xlu0 %4642
    %v4644 = vsel %vm533, %v4563, -inf
    %4645 = vmax.xlane.f32.xlu0 %v4644
    %v4646 = vpop.xlane.xlu0 %4645
    %v4647 = vsel %vm533, %v4621, -inf
    %4648 = vmax.xlane.f32.xlu0 %v4647
    %v4649 = vpop.xlane.xlu0 %4648
    %v4650 = vsel %vm533, %v4624, -inf
    %4651 = vmax.xlane.f32.xlu0 %v4650
    %v4652 = vpop.xlane.xlu0 %4651
    %v4653 = vsel %vm533, %v4629, -inf
    %4654 = vmax.xlane.f32.xlu0 %v4653
    %v4655 = vpop.xlane.xlu0 %4654
    %v4656 = vsel %vm533, %v4632, -inf
    %4657 = vmax.xlane.f32.xlu0 %v4656
    %v4658 = vpop.xlane.xlu0 %4657
    %v4659 = vsub.f32 %v4552, %v4637
    %v4660 = vsub.f32 %v4555, %v4640
    %v4661 = vsub.f32 %v4560, %v4643
    %v4662 = vsub.f32 %v4563, %v4646
    %v4663 = vsub.f32 %v4621, %v4649
    %v4664 = vsub.f32 %v4624, %v4652
    %v4665 = vsub.f32 %v4629, %v4655
    %v4666 = vsub.f32 %v4632, %v4658
    %v4667 = vmul.f32 %v4659, 1.442695
    %v4668 = vpow.pop %v4667
    %v4669 = vmul.f32 %v4660, 1.442695
    %v4670 = vpow.pop %v4669
    %v4671 = vmul.f32 %v4661, 1.442695
    %v4672 = vpow.pop %v4671
    %v4673 = vmul.f32 %v4662, 1.442695
    %v4674 = vpow.pop %v4673
    %v4675 = vmul.f32 %v4663, 1.442695
    %v4676 = vpow.pop %v4675
    %v4677 = vmul.f32 %v4664, 1.442695
    %v4678 = vpow.pop %v4677
    %v4679 = vmul.f32 %v4665, 1.442695
    %v4680 = vpow.pop %v4679
    %v4681 = vmul.f32 %v4666, 1.442695
    %v4682 = vpow.pop %v4681
    %v4683 = vsel %vm533, %v4668, 0.0
    %4684 = vadd.xlane.f32.xlu0 %v4683
    %v4685 = vpop.xlane.xlu0 %4684
    %v4686 = vsel %vm533, %v4670, 0.0
    %4687 = vadd.xlane.f32.xlu0 %v4686
    %v4688 = vpop.xlane.xlu0 %4687
    %v4689 = vsel %vm533, %v4672, 0.0
    %4690 = vadd.xlane.f32.xlu0 %v4689
    %v4691 = vpop.xlane.xlu0 %4690
    %v4692 = vsel %vm533, %v4674, 0.0
    %4693 = vadd.xlane.f32.xlu0 %v4692
    %v4694 = vpop.xlane.xlu0 %4693
    %v4695 = vsel %vm533, %v4676, 0.0
    %4696 = vadd.xlane.f32.xlu0 %v4695
    %v4697 = vpop.xlane.xlu0 %4696
    %v4698 = vsel %vm533, %v4678, 0.0
    %4699 = vadd.xlane.f32.xlu0 %v4698
    %v4700 = vpop.xlane.xlu0 %4699
    %v4701 = vsel %vm533, %v4680, 0.0
    %4702 = vadd.xlane.f32.xlu0 %v4701
    %v4703 = vpop.xlane.xlu0 %4702
    %v4704 = vsel %vm533, %v4682, 0.0
    %4705 = vadd.xlane.f32.xlu0 %v4704
    %v4706 = vpop.xlane.xlu0 %4705
    %v4707 = vrcp.pop %v4685
    %v4708 = vrcp.pop %v4688
    %v4709 = vrcp.pop %v4691
    %v4710 = vrcp.pop %v4694
    %v4711 = vrcp.pop %v4697
    %v4712 = vrcp.pop %v4700
    %v4713 = vrcp.pop %v4703
    %v4714 = vrcp.pop %v4706
    %v4715 = vmul.f32 %v4668, %v4707
    %v4716 = vmul.f32 %v4670, %v4708
    %v4717 = vmul.f32 %v4672, %v4709
    %v4718 = vmul.f32 %v4674, %v4710
    %v4719 = vmul.f32 %v4676, %v4711
    %v4720 = vmul.f32 %v4678, %v4712
    %v4721 = vmul.f32 %v4680, %v4713
    %v4722 = vmul.f32 %v4682, %v4714
    %v4723 = vpack.c.bf16 %v4716, %v4715
    %v4724 = vpack.c.bf16 %v4718, %v4717
    %v4725 = vpack.c.bf16 %v4720, %v4719
    %v4726 = vpack.c.bf16 %v4722, %v4721
    %4729 = vrot.lane.b32.xlu0 %v4142, 112
    %v4730 = vpop.permute.xlu0 %4729
    %4731 = vrot.lane.b32.xlu0 %v4144, 112
    %v4732 = vpop.permute.xlu0 %4731
    %v4736 = vsel %vm533, %v4723, 0
    %v4739 = vsel %vm533, %v4724, 0
    %4741 = vmatprep.subr.bf16.mxu0 0
    %4742 = vmatpush1.bf16.msra.mxu0 0
    %4743 = vmatprep.subr.bf16.mxu0 0
    %4744 = vmatpush1.bf16.msra.mxu0 0
    %4745 = vmatprep.subr.bf16.mxu0 0
    %4746 = vmatpush1.bf16.msra.mxu0 0
    %4747 = vmatprep.subr.bf16.mxu0 0
    %4748 = vmatpush1.bf16.msra.mxu0 0
    %4749 = vmatprep.subr.bf16.mxu0 0
    %4750 = vmatpush1.bf16.msra.mxu0 0
    %4751 = vmatprep.subr.bf16.mxu0 0
    %4752 = vmatpush1.bf16.msra.mxu0 0
    %4753 = vmatprep.subr.bf16.mxu0 0
    %4754 = vmatpush1.bf16.msra.mxu0 %v4732
    %4755 = vmatprep.subr.bf16.mxu0 0
    %4756 = vmatpush1.bf16.msra.mxu0 %v4730
    %4757 = vmatprep.subr.bf16.mxu0 0
    %4758 = vmatpush2.bf16.msra.mxu0 0
    %4759 = vmatprep.subr.bf16.mxu0 0
    %4760 = vmatpush2.bf16.msra.mxu0 0
    %4761 = vmatprep.subr.bf16.mxu0 0
    %4762 = vmatpush2.bf16.msra.mxu0 0
    %4763 = vmatprep.subr.bf16.mxu0 0
    %4764 = vmatpush2.bf16.msra.mxu0 0
    %4765 = vmatprep.subr.bf16.mxu0 0
    %4766 = vmatpush2.bf16.msra.mxu0 0
    %4767 = vmatprep.subr.bf16.mxu0 0
    %4768 = vmatpush2.bf16.msra.mxu0 0
    %4769 = vmatprep.subr.bf16.mxu0 0
    %4770 = vmatpush2.bf16.msra.mxu0 0
    %4771 = vmatprep.subr.bf16.mxu0 0
    %4772 = vmatpush2.bf16.msra.mxu0 0
    %4773 = vmatprep.mubr.bf16.mxu0 0
    %4774 = vmatmul.mubr.bf16.gmra.mxu0 %v4736
    %v4775 = vpop.f32.mrf.mxu0
    %v4776 = vadd.f32 0.0, %v4775
    %v4777 = vpop.f32.mrf.mxu0
    %v4778 = vpop.f32.mrf.mxu0
    %v4779 = vadd.f32 0.0, %v4778
    %v4780 = vpop.f32.mrf.mxu0
    %4781 = vmatprep.mubr.bf16.mxu0 0
    %4782 = vmatmul.mubr.bf16.gmra.mxu0 %v4739
    %v4783 = vpop.f32.mrf.mxu0
    %v4784 = vadd.f32 0.0, %v4783
    %v4785 = vpop.f32.mrf.mxu0
    %v4786 = vpop.f32.mrf.mxu0
    %v4787 = vadd.f32 0.0, %v4786
    %v4788 = vpop.f32.mrf.mxu0
    %4789 = vdwg.mxu0
    %4792 = vrot.lane.b32.xlu0 %v4146, 112
    %v4793 = vpop.permute.xlu0 %4792
    %4794 = vrot.lane.b32.xlu0 %v4148, 112
    %v4795 = vpop.permute.xlu0 %4794
    %v4799 = vsel %vm533, %v4725, 0
    %v4802 = vsel %vm533, %v4726, 0
    %4804 = vmatprep.subr.bf16.mxu0 0
    %4805 = vmatpush1.bf16.msra.mxu0 0
    %4806 = vmatprep.subr.bf16.mxu0 0
    %4807 = vmatpush1.bf16.msra.mxu0 0
    %4808 = vmatprep.subr.bf16.mxu0 0
    %4809 = vmatpush1.bf16.msra.mxu0 0
    %4810 = vmatprep.subr.bf16.mxu0 0
    %4811 = vmatpush1.bf16.msra.mxu0 0
    %4812 = vmatprep.subr.bf16.mxu0 0
    %4813 = vmatpush1.bf16.msra.mxu0 0
    %4814 = vmatprep.subr.bf16.mxu0 0
    %4815 = vmatpush1.bf16.msra.mxu0 0
    %4816 = vmatprep.subr.bf16.mxu0 0
    %4817 = vmatpush1.bf16.msra.mxu0 %v4795
    %4818 = vmatprep.subr.bf16.mxu0 0
    %4819 = vmatpush1.bf16.msra.mxu0 %v4793
    %4820 = vmatprep.subr.bf16.mxu0 0
    %4821 = vmatpush2.bf16.msra.mxu0 0
    %4822 = vmatprep.subr.bf16.mxu0 0
    %4823 = vmatpush2.bf16.msra.mxu0 0
    %4824 = vmatprep.subr.bf16.mxu0 0
    %4825 = vmatpush2.bf16.msra.mxu0 0
    %4826 = vmatprep.subr.bf16.mxu0 0
    %4827 = vmatpush2.bf16.msra.mxu0 0
    %4828 = vmatprep.subr.bf16.mxu0 0
    %4829 = vmatpush2.bf16.msra.mxu0 0
    %4830 = vmatprep.subr.bf16.mxu0 0
    %4831 = vmatpush2.bf16.msra.mxu0 0
    %4832 = vmatprep.subr.bf16.mxu0 0
    %4833 = vmatpush2.bf16.msra.mxu0 0
    %4834 = vmatprep.subr.bf16.mxu0 0
    %4835 = vmatpush2.bf16.msra.mxu0 0
    %4836 = vmatprep.mubr.bf16.mxu0 0
    %4837 = vmatmul.mubr.bf16.gmra.mxu0 %v4799
    %v4838 = vpop.f32.mrf.mxu0
    %v4839 = vadd.f32 0.0, %v4838
    %v4840 = vpop.f32.mrf.mxu0
    %v4841 = vpop.f32.mrf.mxu0
    %v4842 = vadd.f32 0.0, %v4841
    %v4843 = vpop.f32.mrf.mxu0
    %4844 = vmatprep.mubr.bf16.mxu0 0
    %4845 = vmatmul.mubr.bf16.gmra.mxu0 %v4802
    %v4846 = vpop.f32.mrf.mxu0
    %v4847 = vadd.f32 0.0, %v4846
    %v4848 = vpop.f32.mrf.mxu0
    %v4849 = vpop.f32.mrf.mxu0
    %v4850 = vadd.f32 0.0, %v4849
    %v4851 = vpop.f32.mrf.mxu0
    %4852 = vdwg.mxu0
    %v4853 = vpack.c.bf16 %v4779, %v4776
    %v4854 = vpack.c.bf16 %v4787, %v4784
    %v4855 = vpack.c.bf16 %v4842, %v4839
    %v4856 = vpack.c.bf16 %v4850, %v4847
    %v4859 = vunpack.c.l.b16 %v4151
    %v4860 = vunpack.c.l.b16 %v4152
    %v4861 = vpack.c.b16 %v4860, %v4859
    %v4864 = vsel %vm1606, %v4853, 0
    %v4867 = vsel %vm1606, %v4854, 0
    %v4870 = vsel %vm1606, %v4855, 0
    %v4873 = vsel %vm1606, %v4856, 0
    %4875 = vmatprep.subr.bf16.mxu0 0
    %4876 = vmatpush1.bf16.msra.mxu0 0
    %4877 = vmatprep.subr.bf16.mxu0 0
    %4878 = vmatpush1.bf16.msra.mxu0 0
    %4879 = vmatprep.subr.bf16.mxu0 0
    %4880 = vmatpush1.bf16.msra.mxu0 0
    %4881 = vmatprep.subr.bf16.mxu0 0
    %4882 = vmatpush1.bf16.msra.mxu0 0
    %4883 = vmatprep.subr.bf16.mxu0 0
    %4884 = vmatpush1.bf16.msra.mxu0 0
    %4885 = vmatprep.subr.bf16.mxu0 0
    %4886 = vmatpush1.bf16.msra.mxu0 0
    %4887 = vmatprep.subr.bf16.mxu0 0
    %4888 = vmatpush1.bf16.msra.mxu0 0
    %4889 = vmatprep.subr.bf16.mxu0 0
    %4890 = vmatpush1.bf16.msra.mxu0 %v4861
    %4891 = vmatprep.subr.bf16.mxu0 0
    %4892 = vmatpush2.bf16.msra.mxu0 0
    %4893 = vmatprep.subr.bf16.mxu0 0
    %4894 = vmatpush2.bf16.msra.mxu0 0
    %4895 = vmatprep.subr.bf16.mxu0 0
    %4896 = vmatpush2.bf16.msra.mxu0 0
    %4897 = vmatprep.subr.bf16.mxu0 0
    %4898 = vmatpush2.bf16.msra.mxu0 0
    %4899 = vmatprep.subr.bf16.mxu0 0
    %4900 = vmatpush2.bf16.msra.mxu0 0
    %4901 = vmatprep.subr.bf16.mxu0 0
    %4902 = vmatpush2.bf16.msra.mxu0 0
    %4903 = vmatprep.subr.bf16.mxu0 0
    %4904 = vmatpush2.bf16.msra.mxu0 0
    %4905 = vmatprep.subr.bf16.mxu0 0
    %4906 = vmatpush2.bf16.msra.mxu0 0
    %4907 = vmatprep.mubr.bf16.mxu0 0
    %4908 = vmatmul.mubr.bf16.gmra.mxu0 %v4864
    %v4909 = vpop.f32.mrf.mxu0
    %v4910 = vadd.f32 0.0, %v4909
    %v4911 = vpop.f32.mrf.mxu0
    %v4912 = vpop.f32.mrf.mxu0
    %v4913 = vadd.f32 0.0, %v4912
    %v4914 = vpop.f32.mrf.mxu0
    %4915 = vmatprep.mubr.bf16.mxu0 0
    %4916 = vmatmul.mubr.bf16.gmra.mxu0 %v4867
    %v4917 = vpop.f32.mrf.mxu0
    %v4918 = vadd.f32 0.0, %v4917
    %v4919 = vpop.f32.mrf.mxu0
    %v4920 = vpop.f32.mrf.mxu0
    %v4921 = vadd.f32 0.0, %v4920
    %v4922 = vpop.f32.mrf.mxu0
    %4923 = vmatprep.mubr.bf16.mxu0 0
    %4924 = vmatmul.mubr.bf16.gmra.mxu0 %v4870
    %v4925 = vpop.f32.mrf.mxu0
    %v4926 = vadd.f32 0.0, %v4925
    %v4927 = vpop.f32.mrf.mxu0
    %v4928 = vpop.f32.mrf.mxu0
    %v4929 = vadd.f32 0.0, %v4928
    %v4930 = vpop.f32.mrf.mxu0
    %4931 = vmatprep.mubr.bf16.mxu0 0
    %4932 = vmatmul.mubr.bf16.gmra.mxu0 %v4873
    %v4933 = vpop.f32.mrf.mxu0
    %v4934 = vadd.f32 0.0, %v4933
    %v4935 = vpop.f32.mrf.mxu0
    %v4936 = vpop.f32.mrf.mxu0
    %v4937 = vadd.f32 0.0, %v4936
    %v4938 = vpop.f32.mrf.mxu0
    %4939 = vdwg.mxu0
    %v4942 = vunpack.c.l.b16 %v4149
    %v4943 = vunpack.c.l.b16 %v4150
    %v4944 = vpack.c.b16 %v4943, %v4942
    %v4947 = vsel %vm1606, %v4493, 0
    %v4950 = vsel %vm1606, %v4494, 0
    %v4953 = vsel %vm1606, %v4495, 0
    %v4956 = vsel %vm1606, %v4496, 0
    %4958 = vmatprep.subr.bf16.mxu0 0
    %4959 = vmatpush1.bf16.msra.mxu0 0
    %4960 = vmatprep.subr.bf16.mxu0 0
    %4961 = vmatpush1.bf16.msra.mxu0 0
    %4962 = vmatprep.subr.bf16.mxu0 0
    %4963 = vmatpush1.bf16.msra.mxu0 0
    %4964 = vmatprep.subr.bf16.mxu0 0
    %4965 = vmatpush1.bf16.msra.mxu0 0
    %4966 = vmatprep.subr.bf16.mxu0 0
    %4967 = vmatpush1.bf16.msra.mxu0 0
    %4968 = vmatprep.subr.bf16.mxu0 0
    %4969 = vmatpush1.bf16.msra.mxu0 0
    %4970 = vmatprep.subr.bf16.mxu0 0
    %4971 = vmatpush1.bf16.msra.mxu0 0
    %4972 = vmatprep.subr.bf16.mxu0 0
    %4973 = vmatpush1.bf16.msra.mxu0 %v4944
    %4974 = vmatprep.subr.bf16.mxu0 0
    %4975 = vmatpush2.bf16.msra.mxu0 0
    %4976 = vmatprep.subr.bf16.mxu0 0
    %4977 = vmatpush2.bf16.msra.mxu0 0
    %4978 = vmatprep.subr.bf16.mxu0 0
    %4979 = vmatpush2.bf16.msra.mxu0 0
    %4980 = vmatprep.subr.bf16.mxu0 0
    %4981 = vmatpush2.bf16.msra.mxu0 0
    %4982 = vmatprep.subr.bf16.mxu0 0
    %4983 = vmatpush2.bf16.msra.mxu0 0
    %4984 = vmatprep.subr.bf16.mxu0 0
    %4985 = vmatpush2.bf16.msra.mxu0 0
    %4986 = vmatprep.subr.bf16.mxu0 0
    %4987 = vmatpush2.bf16.msra.mxu0 0
    %4988 = vmatprep.subr.bf16.mxu0 0
    %4989 = vmatpush2.bf16.msra.mxu0 0
    %4990 = vmatprep.mubr.bf16.mxu0 0
    %4991 = vmatmul.mubr.bf16.gmra.mxu0 %v4947
    %v4992 = vpop.f32.mrf.mxu0
    %v4993 = vadd.f32 %v4910, %v4992
    %v4994 = vpop.f32.mrf.mxu0
    %v4995 = vpop.f32.mrf.mxu0
    %v4996 = vadd.f32 %v4913, %v4995
    %v4997 = vpop.f32.mrf.mxu0
    %4998 = vmatprep.mubr.bf16.mxu0 0
    %4999 = vmatmul.mubr.bf16.gmra.mxu0 %v4950
    %v5000 = vpop.f32.mrf.mxu0
    %v5001 = vadd.f32 %v4918, %v5000
    %v5002 = vpop.f32.mrf.mxu0
    %v5003 = vpop.f32.mrf.mxu0
    %v5004 = vadd.f32 %v4921, %v5003
    %v5005 = vpop.f32.mrf.mxu0
    %5006 = vmatprep.mubr.bf16.mxu0 0
    %5007 = vmatmul.mubr.bf16.gmra.mxu0 %v4953
    %v5008 = vpop.f32.mrf.mxu0
    %v5009 = vadd.f32 %v4926, %v5008
    %v5010 = vpop.f32.mrf.mxu0
    %v5011 = vpop.f32.mrf.mxu0
    %v5012 = vadd.f32 %v4929, %v5011
    %v5013 = vpop.f32.mrf.mxu0
    %5014 = vmatprep.mubr.bf16.mxu0 0
    %5015 = vmatmul.mubr.bf16.gmra.mxu0 %v4956
    %v5016 = vpop.f32.mrf.mxu0
    %v5017 = vadd.f32 %v4934, %v5016
    %v5018 = vpop.f32.mrf.mxu0
    %v5019 = vpop.f32.mrf.mxu0
    %v5020 = vadd.f32 %v4937, %v5019
    %v5021 = vpop.f32.mrf.mxu0
    %5022 = vdwg.mxu0
    %5023 = vrot.lane.b32.xlu0 %v4141, 96
    %v5024 = vpop.permute.xlu0 %5023
    %5025 = vrot.lane.b32.xlu0 %v4143, 96
    %v5026 = vpop.permute.xlu0 %5025
    %5027 = vrot.lane.b32.xlu0 %v4141, 32
    %v5028 = vpop.permute.xlu0 %5027
    %5029 = vrot.lane.b32.xlu0 %v4143, 32
    %v5030 = vpop.permute.xlu0 %5029
    %v5032 = vsel %vm1606, %v5024, 0
    %v5035 = vsel %vm1606, %v5026, 0
    %v5038 = vsel %vm1606, %v5028, 0
    %v5041 = vsel %vm1606, %v5030, 0
    %5043 = vmatprep.subr.bf16.mxu0 0
    %5044 = vmatpush1.bf16.xpose.msra.mxu0 0
    %5045 = vmatprep.subr.bf16.mxu0 0
    %5046 = vmatpush1.bf16.xpose.msra.mxu0 0
    %5047 = vmatprep.subr.bf16.mxu0 0
    %5048 = vmatpush1.bf16.xpose.msra.mxu0 0
    %5049 = vmatprep.subr.bf16.mxu0 0
    %5050 = vmatpush1.bf16.xpose.msra.mxu0 0
    %5051 = vmatprep.subr.bf16.mxu0 0
    %5052 = vmatpush1.bf16.xpose.msra.mxu0 0
    %5053 = vmatprep.subr.bf16.mxu0 0
    %5054 = vmatpush1.bf16.xpose.msra.mxu0 0
    %5055 = vmatprep.subr.bf16.mxu0 0
    %5056 = vmatpush1.bf16.xpose.msra.mxu0 %v5041
    %5057 = vmatprep.subr.bf16.mxu0 0
    %5058 = vmatpush1.bf16.xpose.msra.mxu0 %v5038
    %5059 = vmatprep.subr.bf16.mxu0 0
    %5060 = vmatpush2.bf16.xpose.msra.mxu0 0
    %5061 = vmatprep.subr.bf16.mxu0 0
    %5062 = vmatpush2.bf16.xpose.msra.mxu0 0
    %5063 = vmatprep.subr.bf16.mxu0 0
    %5064 = vmatpush2.bf16.xpose.msra.mxu0 0
    %5065 = vmatprep.subr.bf16.mxu0 0
    %5066 = vmatpush2.bf16.xpose.msra.mxu0 0
    %5067 = vmatprep.subr.bf16.mxu0 0
    %5068 = vmatpush2.bf16.xpose.msra.mxu0 0
    %5069 = vmatprep.subr.bf16.mxu0 0
    %5070 = vmatpush2.bf16.xpose.msra.mxu0 0
    %5071 = vmatprep.subr.bf16.mxu0 0
    %5072 = vmatpush2.bf16.xpose.msra.mxu0 0
    %5073 = vmatprep.subr.bf16.mxu0 0
    %5074 = vmatpush2.bf16.xpose.msra.mxu0 0
    %5075 = vmatprep.mubr.bf16.mxu0 0
    %5076 = vmatmul.mubr.bf16.gmra.mxu0 %v5032
    %v5077 = vpop.f32.mrf.mxu0
    %v5078 = vadd.f32 0.0, %v5077
    %v5079 = vpop.f32.mrf.mxu0
    %v5080 = vpop.f32.mrf.mxu0
    %v5081 = vadd.f32 0.0, %v5080
    %v5082 = vpop.f32.mrf.mxu0
    %5083 = vmatprep.mubr.bf16.mxu0 0
    %5084 = vmatmul.mubr.bf16.gmra.mxu0 %v5035
    %v5085 = vpop.f32.mrf.mxu0
    %v5086 = vadd.f32 0.0, %v5085
    %v5087 = vpop.f32.mrf.mxu0
    %v5088 = vpop.f32.mrf.mxu0
    %v5089 = vadd.f32 0.0, %v5088
    %v5090 = vpop.f32.mrf.mxu0
    %5091 = vdwg.mxu0
    %5092 = vrot.lane.b32.xlu0 %v4145, 96
    %v5093 = vpop.permute.xlu0 %5092
    %5094 = vrot.lane.b32.xlu0 %v4147, 96
    %v5095 = vpop.permute.xlu0 %5094
    %5096 = vrot.lane.b32.xlu0 %v4145, 32
    %v5097 = vpop.permute.xlu0 %5096
    %5098 = vrot.lane.b32.xlu0 %v4147, 32
    %v5099 = vpop.permute.xlu0 %5098
    %v5101 = vsel %vm1606, %v5093, 0
    %v5104 = vsel %vm1606, %v5095, 0
    %v5107 = vsel %vm1606, %v5097, 0
    %v5110 = vsel %vm1606, %v5099, 0
    %5112 = vmatprep.subr.bf16.mxu0 0
    %5113 = vmatpush1.bf16.xpose.msra.mxu0 0
    %5114 = vmatprep.subr.bf16.mxu0 0
    %5115 = vmatpush1.bf16.xpose.msra.mxu0 0
    %5116 = vmatprep.subr.bf16.mxu0 0
    %5117 = vmatpush1.bf16.xpose.msra.mxu0 0
    %5118 = vmatprep.subr.bf16.mxu0 0
    %5119 = vmatpush1.bf16.xpose.msra.mxu0 0
    %5120 = vmatprep.subr.bf16.mxu0 0
    %5121 = vmatpush1.bf16.xpose.msra.mxu0 0
    %5122 = vmatprep.subr.bf16.mxu0 0
    %5123 = vmatpush1.bf16.xpose.msra.mxu0 0
    %5124 = vmatprep.subr.bf16.mxu0 0
    %5125 = vmatpush1.bf16.xpose.msra.mxu0 %v5110
    %5126 = vmatprep.subr.bf16.mxu0 0
    %5127 = vmatpush1.bf16.xpose.msra.mxu0 %v5107
    %5128 = vmatprep.subr.bf16.mxu0 0
    %5129 = vmatpush2.bf16.xpose.msra.mxu0 0
    %5130 = vmatprep.subr.bf16.mxu0 0
    %5131 = vmatpush2.bf16.xpose.msra.mxu0 0
    %5132 = vmatprep.subr.bf16.mxu0 0
    %5133 = vmatpush2.bf16.xpose.msra.mxu0 0
    %5134 = vmatprep.subr.bf16.mxu0 0
    %5135 = vmatpush2.bf16.xpose.msra.mxu0 0
    %5136 = vmatprep.subr.bf16.mxu0 0
    %5137 = vmatpush2.bf16.xpose.msra.mxu0 0
    %5138 = vmatprep.subr.bf16.mxu0 0
    %5139 = vmatpush2.bf16.xpose.msra.mxu0 0
    %5140 = vmatprep.subr.bf16.mxu0 0
    %5141 = vmatpush2.bf16.xpose.msra.mxu0 0
    %5142 = vmatprep.subr.bf16.mxu0 0
    %5143 = vmatpush2.bf16.xpose.msra.mxu0 0
    %5144 = vmatprep.mubr.bf16.mxu0 0
    %5145 = vmatmul.mubr.bf16.gmra.mxu0 %v5101
    %v5146 = vpop.f32.mrf.mxu0
    %v5147 = vadd.f32 0.0, %v5146
    %v5148 = vpop.f32.mrf.mxu0
    %v5149 = vpop.f32.mrf.mxu0
    %v5150 = vadd.f32 0.0, %v5149
    %v5151 = vpop.f32.mrf.mxu0
    %5152 = vmatprep.mubr.bf16.mxu0 0
    %5153 = vmatmul.mubr.bf16.gmra.mxu0 %v5104
    %v5154 = vpop.f32.mrf.mxu0
    %v5155 = vadd.f32 0.0, %v5154
    %v5156 = vpop.f32.mrf.mxu0
    %v5157 = vpop.f32.mrf.mxu0
    %v5158 = vadd.f32 0.0, %v5157
    %v5159 = vpop.f32.mrf.mxu0
    %5160 = vdwg.mxu0
    %v5161 = vsel %vm533, %v5078, -inf
    %5162 = vmax.xlane.f32.xlu0 %v5161
    %v5163 = vpop.xlane.xlu0 %5162
    %v5164 = vsel %vm533, %v5081, -inf
    %5165 = vmax.xlane.f32.xlu0 %v5164
    %v5166 = vpop.xlane.xlu0 %5165
    %v5167 = vsel %vm533, %v5086, -inf
    %5168 = vmax.xlane.f32.xlu0 %v5167
    %v5169 = vpop.xlane.xlu0 %5168
    %v5170 = vsel %vm533, %v5089, -inf
    %5171 = vmax.xlane.f32.xlu0 %v5170
    %v5172 = vpop.xlane.xlu0 %5171
    %v5173 = vsel %vm533, %v5147, -inf
    %5174 = vmax.xlane.f32.xlu0 %v5173
    %v5175 = vpop.xlane.xlu0 %5174
    %v5176 = vsel %vm533, %v5150, -inf
    %5177 = vmax.xlane.f32.xlu0 %v5176
    %v5178 = vpop.xlane.xlu0 %5177
    %v5179 = vsel %vm533, %v5155, -inf
    %5180 = vmax.xlane.f32.xlu0 %v5179
    %v5181 = vpop.xlane.xlu0 %5180
    %v5182 = vsel %vm533, %v5158, -inf
    %5183 = vmax.xlane.f32.xlu0 %v5182
    %v5184 = vpop.xlane.xlu0 %5183
    %v5185 = vsub.f32 %v5078, %v5163
    %v5186 = vsub.f32 %v5081, %v5166
    %v5187 = vsub.f32 %v5086, %v5169
    %v5188 = vsub.f32 %v5089, %v5172
    %v5189 = vsub.f32 %v5147, %v5175
    %v5190 = vsub.f32 %v5150, %v5178
    %v5191 = vsub.f32 %v5155, %v5181
    %v5192 = vsub.f32 %v5158, %v5184
    %v5193 = vmul.f32 %v5185, 1.442695
    %v5194 = vpow.pop %v5193
    %v5195 = vmul.f32 %v5186, 1.442695
    %v5196 = vpow.pop %v5195
    %v5197 = vmul.f32 %v5187, 1.442695
    %v5198 = vpow.pop %v5197
    %v5199 = vmul.f32 %v5188, 1.442695
    %v5200 = vpow.pop %v5199
    %v5201 = vmul.f32 %v5189, 1.442695
    %v5202 = vpow.pop %v5201
    %v5203 = vmul.f32 %v5190, 1.442695
    %v5204 = vpow.pop %v5203
    %v5205 = vmul.f32 %v5191, 1.442695
    %v5206 = vpow.pop %v5205
    %v5207 = vmul.f32 %v5192, 1.442695
    %v5208 = vpow.pop %v5207
    %v5209 = vsel %vm533, %v5194, 0.0
    %5210 = vadd.xlane.f32.xlu0 %v5209
    %v5211 = vpop.xlane.xlu0 %5210
    %v5212 = vsel %vm533, %v5196, 0.0
    %5213 = vadd.xlane.f32.xlu0 %v5212
    %v5214 = vpop.xlane.xlu0 %5213
    %v5215 = vsel %vm533, %v5198, 0.0
    %5216 = vadd.xlane.f32.xlu0 %v5215
    %v5217 = vpop.xlane.xlu0 %5216
    %v5218 = vsel %vm533, %v5200, 0.0
    %5219 = vadd.xlane.f32.xlu0 %v5218
    %v5220 = vpop.xlane.xlu0 %5219
    %v5221 = vsel %vm533, %v5202, 0.0
    %5222 = vadd.xlane.f32.xlu0 %v5221
    %v5223 = vpop.xlane.xlu0 %5222
    %v5224 = vsel %vm533, %v5204, 0.0
    %5225 = vadd.xlane.f32.xlu0 %v5224
    %v5226 = vpop.xlane.xlu0 %5225
    %v5227 = vsel %vm533, %v5206, 0.0
    %5228 = vadd.xlane.f32.xlu0 %v5227
    %v5229 = vpop.xlane.xlu0 %5228
    %v5230 = vsel %vm533, %v5208, 0.0
    %5231 = vadd.xlane.f32.xlu0 %v5230
    %v5232 = vpop.xlane.xlu0 %5231
    %v5233 = vrcp.pop %v5211
    %v5234 = vrcp.pop %v5214
    %v5235 = vrcp.pop %v5217
    %v5236 = vrcp.pop %v5220
    %v5237 = vrcp.pop %v5223
    %v5238 = vrcp.pop %v5226
    %v5239 = vrcp.pop %v5229
    %v5240 = vrcp.pop %v5232
    %v5241 = vmul.f32 %v5194, %v5233
    %v5242 = vmul.f32 %v5196, %v5234
    %v5243 = vmul.f32 %v5198, %v5235
    %v5244 = vmul.f32 %v5200, %v5236
    %v5245 = vmul.f32 %v5202, %v5237
    %v5246 = vmul.f32 %v5204, %v5238
    %v5247 = vmul.f32 %v5206, %v5239
    %v5248 = vmul.f32 %v5208, %v5240
    %v5249 = vpack.c.bf16 %v5242, %v5241
    %v5250 = vpack.c.bf16 %v5244, %v5243
    %v5251 = vpack.c.bf16 %v5246, %v5245
    %v5252 = vpack.c.bf16 %v5248, %v5247
    %5253 = vrot.lane.b32.xlu0 %v4142, 96
    %v5254 = vpop.permute.xlu0 %5253
    %5255 = vrot.lane.b32.xlu0 %v4144, 96
    %v5256 = vpop.permute.xlu0 %5255
    %v5260 = vsel %vm533, %v5249, 0
    %v5263 = vsel %vm533, %v5250, 0
    %5265 = vmatprep.subr.bf16.mxu0 0
    %5266 = vmatpush1.bf16.msra.mxu0 0
    %5267 = vmatprep.subr.bf16.mxu0 0
    %5268 = vmatpush1.bf16.msra.mxu0 0
    %5269 = vmatprep.subr.bf16.mxu0 0
    %5270 = vmatpush1.bf16.msra.mxu0 0
    %5271 = vmatprep.subr.bf16.mxu0 0
    %5272 = vmatpush1.bf16.msra.mxu0 0
    %5273 = vmatprep.subr.bf16.mxu0 0
    %5274 = vmatpush1.bf16.msra.mxu0 0
    %5275 = vmatprep.subr.bf16.mxu0 0
    %5276 = vmatpush1.bf16.msra.mxu0 0
    %5277 = vmatprep.subr.bf16.mxu0 0
    %5278 = vmatpush1.bf16.msra.mxu0 %v5256
    %5279 = vmatprep.subr.bf16.mxu0 0
    %5280 = vmatpush1.bf16.msra.mxu0 %v5254
    %5281 = vmatprep.subr.bf16.mxu0 0
    %5282 = vmatpush2.bf16.msra.mxu0 0
    %5283 = vmatprep.subr.bf16.mxu0 0
    %5284 = vmatpush2.bf16.msra.mxu0 0
    %5285 = vmatprep.subr.bf16.mxu0 0
    %5286 = vmatpush2.bf16.msra.mxu0 0
    %5287 = vmatprep.subr.bf16.mxu0 0
    %5288 = vmatpush2.bf16.msra.mxu0 0
    %5289 = vmatprep.subr.bf16.mxu0 0
    %5290 = vmatpush2.bf16.msra.mxu0 0
    %5291 = vmatprep.subr.bf16.mxu0 0
    %5292 = vmatpush2.bf16.msra.mxu0 0
    %5293 = vmatprep.subr.bf16.mxu0 0
    %5294 = vmatpush2.bf16.msra.mxu0 0
    %5295 = vmatprep.subr.bf16.mxu0 0
    %5296 = vmatpush2.bf16.msra.mxu0 0
    %5297 = vmatprep.mubr.bf16.mxu0 0
    %5298 = vmatmul.mubr.bf16.gmra.mxu0 %v5260
    %v5299 = vpop.f32.mrf.mxu0
    %v5300 = vadd.f32 0.0, %v5299
    %v5301 = vpop.f32.mrf.mxu0
    %v5302 = vpop.f32.mrf.mxu0
    %v5303 = vadd.f32 0.0, %v5302
    %v5304 = vpop.f32.mrf.mxu0
    %5305 = vmatprep.mubr.bf16.mxu0 0
    %5306 = vmatmul.mubr.bf16.gmra.mxu0 %v5263
    %v5307 = vpop.f32.mrf.mxu0
    %v5308 = vadd.f32 0.0, %v5307
    %v5309 = vpop.f32.mrf.mxu0
    %v5310 = vpop.f32.mrf.mxu0
    %v5311 = vadd.f32 0.0, %v5310
    %v5312 = vpop.f32.mrf.mxu0
    %5313 = vdwg.mxu0
    %5314 = vrot.lane.b32.xlu0 %v4146, 96
    %v5315 = vpop.permute.xlu0 %5314
    %5316 = vrot.lane.b32.xlu0 %v4148, 96
    %v5317 = vpop.permute.xlu0 %5316
    %v5321 = vsel %vm533, %v5251, 0
    %v5324 = vsel %vm533, %v5252, 0
    %5326 = vmatprep.subr.bf16.mxu0 0
    %5327 = vmatpush1.bf16.msra.mxu0 0
    %5328 = vmatprep.subr.bf16.mxu0 0
    %5329 = vmatpush1.bf16.msra.mxu0 0
    %5330 = vmatprep.subr.bf16.mxu0 0
    %5331 = vmatpush1.bf16.msra.mxu0 0
    %5332 = vmatprep.subr.bf16.mxu0 0
    %5333 = vmatpush1.bf16.msra.mxu0 0
    %5334 = vmatprep.subr.bf16.mxu0 0
    %5335 = vmatpush1.bf16.msra.mxu0 0
    %5336 = vmatprep.subr.bf16.mxu0 0
    %5337 = vmatpush1.bf16.msra.mxu0 0
    %5338 = vmatprep.subr.bf16.mxu0 0
    %5339 = vmatpush1.bf16.msra.mxu0 %v5317
    %5340 = vmatprep.subr.bf16.mxu0 0
    %5341 = vmatpush1.bf16.msra.mxu0 %v5315
    %5342 = vmatprep.subr.bf16.mxu0 0
    %5343 = vmatpush2.bf16.msra.mxu0 0
    %5344 = vmatprep.subr.bf16.mxu0 0
    %5345 = vmatpush2.bf16.msra.mxu0 0
    %5346 = vmatprep.subr.bf16.mxu0 0
    %5347 = vmatpush2.bf16.msra.mxu0 0
    %5348 = vmatprep.subr.bf16.mxu0 0
    %5349 = vmatpush2.bf16.msra.mxu0 0
    %5350 = vmatprep.subr.bf16.mxu0 0
    %5351 = vmatpush2.bf16.msra.mxu0 0
    %5352 = vmatprep.subr.bf16.mxu0 0
    %5353 = vmatpush2.bf16.msra.mxu0 0
    %5354 = vmatprep.subr.bf16.mxu0 0
    %5355 = vmatpush2.bf16.msra.mxu0 0
    %5356 = vmatprep.subr.bf16.mxu0 0
    %5357 = vmatpush2.bf16.msra.mxu0 0
    %5358 = vmatprep.mubr.bf16.mxu0 0
    %5359 = vmatmul.mubr.bf16.gmra.mxu0 %v5321
    %v5360 = vpop.f32.mrf.mxu0
    %v5361 = vadd.f32 0.0, %v5360
    %v5362 = vpop.f32.mrf.mxu0
    %v5363 = vpop.f32.mrf.mxu0
    %v5364 = vadd.f32 0.0, %v5363
    %v5365 = vpop.f32.mrf.mxu0
    %5366 = vmatprep.mubr.bf16.mxu0 0
    %5367 = vmatmul.mubr.bf16.gmra.mxu0 %v5324
    %v5368 = vpop.f32.mrf.mxu0
    %v5369 = vadd.f32 0.0, %v5368
    %v5370 = vpop.f32.mrf.mxu0
    %v5371 = vpop.f32.mrf.mxu0
    %v5372 = vadd.f32 0.0, %v5371
    %v5373 = vpop.f32.mrf.mxu0
    %5374 = vdwg.mxu0
    %v5375 = vpack.c.bf16 %v5303, %v5300
    %v5376 = vpack.c.bf16 %v5311, %v5308
    %v5377 = vpack.c.bf16 %v5364, %v5361
    %v5378 = vpack.c.bf16 %v5372, %v5369
    %v5381 = vunpack.c.l.b16 %v4153
    %v5382 = vunpack.c.l.b16 %v4154
    %v5383 = vpack.c.b16 %v5382, %v5381
    %v5386 = vsel %vm1606, %v5375, 0
    %v5389 = vsel %vm1606, %v5376, 0
    %v5392 = vsel %vm1606, %v5377, 0
    %v5395 = vsel %vm1606, %v5378, 0
    %5397 = vmatprep.subr.bf16.mxu0 0
    %5398 = vmatpush1.bf16.msra.mxu0 0
    %5399 = vmatprep.subr.bf16.mxu0 0
    %5400 = vmatpush1.bf16.msra.mxu0 0
    %5401 = vmatprep.subr.bf16.mxu0 0
    %5402 = vmatpush1.bf16.msra.mxu0 0
    %5403 = vmatprep.subr.bf16.mxu0 0
    %5404 = vmatpush1.bf16.msra.mxu0 0
    %5405 = vmatprep.subr.bf16.mxu0 0
    %5406 = vmatpush1.bf16.msra.mxu0 0
    %5407 = vmatprep.subr.bf16.mxu0 0
    %5408 = vmatpush1.bf16.msra.mxu0 0
    %5409 = vmatprep.subr.bf16.mxu0 0
    %5410 = vmatpush1.bf16.msra.mxu0 0
    %5411 = vmatprep.subr.bf16.mxu0 0
    %5412 = vmatpush1.bf16.msra.mxu0 %v5383
    %5413 = vmatprep.subr.bf16.mxu0 0
    %5414 = vmatpush2.bf16.msra.mxu0 0
    %5415 = vmatprep.subr.bf16.mxu0 0
    %5416 = vmatpush2.bf16.msra.mxu0 0
    %5417 = vmatprep.subr.bf16.mxu0 0
    %5418 = vmatpush2.bf16.msra.mxu0 0
    %5419 = vmatprep.subr.bf16.mxu0 0
    %5420 = vmatpush2.bf16.msra.mxu0 0
    %5421 = vmatprep.subr.bf16.mxu0 0
    %5422 = vmatpush2.bf16.msra.mxu0 0
    %5423 = vmatprep.subr.bf16.mxu0 0
    %5424 = vmatpush2.bf16.msra.mxu0 0
    %5425 = vmatprep.subr.bf16.mxu0 0
    %5426 = vmatpush2.bf16.msra.mxu0 0
    %5427 = vmatprep.subr.bf16.mxu0 0
    %5428 = vmatpush2.bf16.msra.mxu0 0
    %5429 = vmatprep.mubr.bf16.mxu0 0
    %5430 = vmatmul.mubr.bf16.gmra.mxu0 %v5386
    %v5431 = vpop.f32.mrf.mxu0
    %v5432 = vadd.f32 0.0, %v5431
    %v5433 = vpop.f32.mrf.mxu0
    %v5434 = vpop.f32.mrf.mxu0
    %v5435 = vadd.f32 0.0, %v5434
    %v5436 = vpop.f32.mrf.mxu0
    %5437 = vmatprep.mubr.bf16.mxu0 0
    %5438 = vmatmul.mubr.bf16.gmra.mxu0 %v5389
    %v5439 = vpop.f32.mrf.mxu0
    %v5440 = vadd.f32 0.0, %v5439
    %v5441 = vpop.f32.mrf.mxu0
    %v5442 = vpop.f32.mrf.mxu0
    %v5443 = vadd.f32 0.0, %v5442
    %v5444 = vpop.f32.mrf.mxu0
    %5445 = vmatprep.mubr.bf16.mxu0 0
    %5446 = vmatmul.mubr.bf16.gmra.mxu0 %v5392
    %v5447 = vpop.f32.mrf.mxu0
    %v5448 = vadd.f32 0.0, %v5447
    %v5449 = vpop.f32.mrf.mxu0
    %v5450 = vpop.f32.mrf.mxu0
    %v5451 = vadd.f32 0.0, %v5450
    %v5452 = vpop.f32.mrf.mxu0
    %5453 = vmatprep.mubr.bf16.mxu0 0
    %5454 = vmatmul.mubr.bf16.gmra.mxu0 %v5395
    %v5455 = vpop.f32.mrf.mxu0
    %v5456 = vadd.f32 0.0, %v5455
    %v5457 = vpop.f32.mrf.mxu0
    %v5458 = vpop.f32.mrf.mxu0
    %v5459 = vadd.f32 0.0, %v5458
    %v5460 = vpop.f32.mrf.mxu0
    %5461 = vdwg.mxu0
    %v5462 = vadd.f32 %v4993, %v5432
    %v5463 = vadd.f32 %v4996, %v5435
    %v5464 = vadd.f32 %v5001, %v5440
    %v5465 = vadd.f32 %v5004, %v5443
    %v5466 = vadd.f32 %v5009, %v5448
    %v5467 = vadd.f32 %v5012, %v5451
    %v5468 = vadd.f32 %v5017, %v5456
    %v5469 = vadd.f32 %v5020, %v5459
    %5470 = vrot.lane.b32.xlu0 %v4141, 80
    %v5471 = vpop.permute.xlu0 %5470
    %5472 = vrot.lane.b32.xlu0 %v4143, 80
    %v5473 = vpop.permute.xlu0 %5472
    %5474 = vrot.lane.b32.xlu0 %v4141, 16
    %v5475 = vpop.permute.xlu0 %5474
    %5476 = vrot.lane.b32.xlu0 %v4143, 16
    %v5477 = vpop.permute.xlu0 %5476
    %v5479 = vsel %vm1606, %v5471, 0
    %v5482 = vsel %vm1606, %v5473, 0
    %v5485 = vsel %vm1606, %v5475, 0
    %v5488 = vsel %vm1606, %v5477, 0
    %5490 = vmatprep.subr.bf16.mxu0 0
    %5491 = vmatpush1.bf16.xpose.msra.mxu0 0
    %5492 = vmatprep.subr.bf16.mxu0 0
    %5493 = vmatpush1.bf16.xpose.msra.mxu0 0
    %5494 = vmatprep.subr.bf16.mxu0 0
    %5495 = vmatpush1.bf16.xpose.msra.mxu0 0
    %5496 = vmatprep.subr.bf16.mxu0 0
    %5497 = vmatpush1.bf16.xpose.msra.mxu0 0
    %5498 = vmatprep.subr.bf16.mxu0 0
    %5499 = vmatpush1.bf16.xpose.msra.mxu0 0
    %5500 = vmatprep.subr.bf16.mxu0 0
    %5501 = vmatpush1.bf16.xpose.msra.mxu0 0
    %5502 = vmatprep.subr.bf16.mxu0 0
    %5503 = vmatpush1.bf16.xpose.msra.mxu0 %v5488
    %5504 = vmatprep.subr.bf16.mxu0 0
    %5505 = vmatpush1.bf16.xpose.msra.mxu0 %v5485
    %5506 = vmatprep.subr.bf16.mxu0 0
    %5507 = vmatpush2.bf16.xpose.msra.mxu0 0
    %5508 = vmatprep.subr.bf16.mxu0 0
    %5509 = vmatpush2.bf16.xpose.msra.mxu0 0
    %5510 = vmatprep.subr.bf16.mxu0 0
    %5511 = vmatpush2.bf16.xpose.msra.mxu0 0
    %5512 = vmatprep.subr.bf16.mxu0 0
    %5513 = vmatpush2.bf16.xpose.msra.mxu0 0
    %5514 = vmatprep.subr.bf16.mxu0 0
    %5515 = vmatpush2.bf16.xpose.msra.mxu0 0
    %5516 = vmatprep.subr.bf16.mxu0 0
    %5517 = vmatpush2.bf16.xpose.msra.mxu0 0
    %5518 = vmatprep.subr.bf16.mxu0 0
    %5519 = vmatpush2.bf16.xpose.msra.mxu0 0
    %5520 = vmatprep.subr.bf16.mxu0 0
    %5521 = vmatpush2.bf16.xpose.msra.mxu0 0
    %5522 = vmatprep.mubr.bf16.mxu0 0
    %5523 = vmatmul.mubr.bf16.gmra.mxu0 %v5479
    %v5524 = vpop.f32.mrf.mxu0
    %v5525 = vadd.f32 0.0, %v5524
    %v5526 = vpop.f32.mrf.mxu0
    %v5527 = vpop.f32.mrf.mxu0
    %v5528 = vadd.f32 0.0, %v5527
    %v5529 = vpop.f32.mrf.mxu0
    %5530 = vmatprep.mubr.bf16.mxu0 0
    %5531 = vmatmul.mubr.bf16.gmra.mxu0 %v5482
    %v5532 = vpop.f32.mrf.mxu0
    %v5533 = vadd.f32 0.0, %v5532
    %v5534 = vpop.f32.mrf.mxu0
    %v5535 = vpop.f32.mrf.mxu0
    %v5536 = vadd.f32 0.0, %v5535
    %v5537 = vpop.f32.mrf.mxu0
    %5538 = vdwg.mxu0
    %5539 = vrot.lane.b32.xlu0 %v4145, 80
    %v5540 = vpop.permute.xlu0 %5539
    %5541 = vrot.lane.b32.xlu0 %v4147, 80
    %v5542 = vpop.permute.xlu0 %5541
    %5543 = vrot.lane.b32.xlu0 %v4145, 16
    %v5544 = vpop.permute.xlu0 %5543
    %5545 = vrot.lane.b32.xlu0 %v4147, 16
    %v5546 = vpop.permute.xlu0 %5545
    %v5548 = vsel %vm1606, %v5540, 0
    %v5551 = vsel %vm1606, %v5542, 0
    %v5554 = vsel %vm1606, %v5544, 0
    %v5557 = vsel %vm1606, %v5546, 0
    %5559 = vmatprep.subr.bf16.mxu0 0
    %5560 = vmatpush1.bf16.xpose.msra.mxu0 0
    %5561 = vmatprep.subr.bf16.mxu0 0
    %5562 = vmatpush1.bf16.xpose.msra.mxu0 0
    %5563 = vmatprep.subr.bf16.mxu0 0
    %5564 = vmatpush1.bf16.xpose.msra.mxu0 0
    %5565 = vmatprep.subr.bf16.mxu0 0
    %5566 = vmatpush1.bf16.xpose.msra.mxu0 0
    %5567 = vmatprep.subr.bf16.mxu0 0
    %5568 = vmatpush1.bf16.xpose.msra.mxu0 0
    %5569 = vmatprep.subr.bf16.mxu0 0
    %5570 = vmatpush1.bf16.xpose.msra.mxu0 0
    %5571 = vmatprep.subr.bf16.mxu0 0
    %5572 = vmatpush1.bf16.xpose.msra.mxu0 %v5557
    %5573 = vmatprep.subr.bf16.mxu0 0
    %5574 = vmatpush1.bf16.xpose.msra.mxu0 %v5554
    %5575 = vmatprep.subr.bf16.mxu0 0
    %5576 = vmatpush2.bf16.xpose.msra.mxu0 0
    %5577 = vmatprep.subr.bf16.mxu0 0
    %5578 = vmatpush2.bf16.xpose.msra.mxu0 0
    %5579 = vmatprep.subr.bf16.mxu0 0
    %5580 = vmatpush2.bf16.xpose.msra.mxu0 0
    %5581 = vmatprep.subr.bf16.mxu0 0
    %5582 = vmatpush2.bf16.xpose.msra.mxu0 0
    %5583 = vmatprep.subr.bf16.mxu0 0
    %5584 = vmatpush2.bf16.xpose.msra.mxu0 0
    %5585 = vmatprep.subr.bf16.mxu0 0
    %5586 = vmatpush2.bf16.xpose.msra.mxu0 0
    %5587 = vmatprep.subr.bf16.mxu0 0
    %5588 = vmatpush2.bf16.xpose.msra.mxu0 0
    %5589 = vmatprep.subr.bf16.mxu0 0
    %5590 = vmatpush2.bf16.xpose.msra.mxu0 0
    %5591 = vmatprep.mubr.bf16.mxu0 0
    %5592 = vmatmul.mubr.bf16.gmra.mxu0 %v5548
    %v5593 = vpop.f32.mrf.mxu0
    %v5594 = vadd.f32 0.0, %v5593
    %v5595 = vpop.f32.mrf.mxu0
    %v5596 = vpop.f32.mrf.mxu0
    %v5597 = vadd.f32 0.0, %v5596
    %v5598 = vpop.f32.mrf.mxu0
    %5599 = vmatprep.mubr.bf16.mxu0 0
    %5600 = vmatmul.mubr.bf16.gmra.mxu0 %v5551
    %v5601 = vpop.f32.mrf.mxu0
    %v5602 = vadd.f32 0.0, %v5601
    %v5603 = vpop.f32.mrf.mxu0
    %v5604 = vpop.f32.mrf.mxu0
    %v5605 = vadd.f32 0.0, %v5604
    %v5606 = vpop.f32.mrf.mxu0
    %5607 = vdwg.mxu0
    %v5608 = vsel %vm533, %v5525, -inf
    %5609 = vmax.xlane.f32.xlu0 %v5608
    %v5610 = vpop.xlane.xlu0 %5609
    %v5611 = vsel %vm533, %v5528, -inf
    %5612 = vmax.xlane.f32.xlu0 %v5611
    %v5613 = vpop.xlane.xlu0 %5612
    %v5614 = vsel %vm533, %v5533, -inf
    %5615 = vmax.xlane.f32.xlu0 %v5614
    %v5616 = vpop.xlane.xlu0 %5615
    %v5617 = vsel %vm533, %v5536, -inf
    %5618 = vmax.xlane.f32.xlu0 %v5617
    %v5619 = vpop.xlane.xlu0 %5618
    %v5620 = vsel %vm533, %v5594, -inf
    %5621 = vmax.xlane.f32.xlu0 %v5620
    %v5622 = vpop.xlane.xlu0 %5621
    %v5623 = vsel %vm533, %v5597, -inf
    %5624 = vmax.xlane.f32.xlu0 %v5623
    %v5625 = vpop.xlane.xlu0 %5624
    %v5626 = vsel %vm533, %v5602, -inf
    %5627 = vmax.xlane.f32.xlu0 %v5626
    %v5628 = vpop.xlane.xlu0 %5627
    %v5629 = vsel %vm533, %v5605, -inf
    %5630 = vmax.xlane.f32.xlu0 %v5629
    %v5631 = vpop.xlane.xlu0 %5630
    %v5632 = vsub.f32 %v5525, %v5610
    %v5633 = vsub.f32 %v5528, %v5613
    %v5634 = vsub.f32 %v5533, %v5616
    %v5635 = vsub.f32 %v5536, %v5619
    %v5636 = vsub.f32 %v5594, %v5622
    %v5637 = vsub.f32 %v5597, %v5625
    %v5638 = vsub.f32 %v5602, %v5628
    %v5639 = vsub.f32 %v5605, %v5631
    %v5640 = vmul.f32 %v5632, 1.442695
    %v5641 = vpow.pop %v5640
    %v5642 = vmul.f32 %v5633, 1.442695
    %v5643 = vpow.pop %v5642
    %v5644 = vmul.f32 %v5634, 1.442695
    %v5645 = vpow.pop %v5644
    %v5646 = vmul.f32 %v5635, 1.442695
    %v5647 = vpow.pop %v5646
    %v5648 = vmul.f32 %v5636, 1.442695
    %v5649 = vpow.pop %v5648
    %v5650 = vmul.f32 %v5637, 1.442695
    %v5651 = vpow.pop %v5650
    %v5652 = vmul.f32 %v5638, 1.442695
    %v5653 = vpow.pop %v5652
    %v5654 = vmul.f32 %v5639, 1.442695
    %v5655 = vpow.pop %v5654
    %v5656 = vsel %vm533, %v5641, 0.0
    %5657 = vadd.xlane.f32.xlu0 %v5656
    %v5658 = vpop.xlane.xlu0 %5657
    %v5659 = vsel %vm533, %v5643, 0.0
    %5660 = vadd.xlane.f32.xlu0 %v5659
    %v5661 = vpop.xlane.xlu0 %5660
    %v5662 = vsel %vm533, %v5645, 0.0
    %5663 = vadd.xlane.f32.xlu0 %v5662
    %v5664 = vpop.xlane.xlu0 %5663
    %v5665 = vsel %vm533, %v5647, 0.0
    %5666 = vadd.xlane.f32.xlu0 %v5665
    %v5667 = vpop.xlane.xlu0 %5666
    %v5668 = vsel %vm533, %v5649, 0.0
    %5669 = vadd.xlane.f32.xlu0 %v5668
    %v5670 = vpop.xlane.xlu0 %5669
    %v5671 = vsel %vm533, %v5651, 0.0
    %5672 = vadd.xlane.f32.xlu0 %v5671
    %v5673 = vpop.xlane.xlu0 %5672
    %v5674 = vsel %vm533, %v5653, 0.0
    %5675 = vadd.xlane.f32.xlu0 %v5674
    %v5676 = vpop.xlane.xlu0 %5675
    %v5677 = vsel %vm533, %v5655, 0.0
    %5678 = vadd.xlane.f32.xlu0 %v5677
    %v5679 = vpop.xlane.xlu0 %5678
    %v5680 = vrcp.pop %v5658
    %v5681 = vrcp.pop %v5661
    %v5682 = vrcp.pop %v5664
    %v5683 = vrcp.pop %v5667
    %v5684 = vrcp.pop %v5670
    %v5685 = vrcp.pop %v5673
    %v5686 = vrcp.pop %v5676
    %v5687 = vrcp.pop %v5679
    %v5688 = vmul.f32 %v5641, %v5680
    %v5689 = vmul.f32 %v5643, %v5681
    %v5690 = vmul.f32 %v5645, %v5682
    %v5691 = vmul.f32 %v5647, %v5683
    %v5692 = vmul.f32 %v5649, %v5684
    %v5693 = vmul.f32 %v5651, %v5685
    %v5694 = vmul.f32 %v5653, %v5686
    %v5695 = vmul.f32 %v5655, %v5687
    %v5696 = vpack.c.bf16 %v5689, %v5688
    %v5697 = vpack.c.bf16 %v5691, %v5690
    %v5698 = vpack.c.bf16 %v5693, %v5692
    %v5699 = vpack.c.bf16 %v5695, %v5694
    %5700 = vrot.lane.b32.xlu0 %v4142, 80
    %v5701 = vpop.permute.xlu0 %5700
    %5702 = vrot.lane.b32.xlu0 %v4144, 80
    %v5703 = vpop.permute.xlu0 %5702
    %v5707 = vsel %vm533, %v5696, 0
    %v5710 = vsel %vm533, %v5697, 0
    %5712 = vmatprep.subr.bf16.mxu0 0
    %5713 = vmatpush1.bf16.msra.mxu0 0
    %5714 = vmatprep.subr.bf16.mxu0 0
    %5715 = vmatpush1.bf16.msra.mxu0 0
    %5716 = vmatprep.subr.bf16.mxu0 0
    %5717 = vmatpush1.bf16.msra.mxu0 0
    %5718 = vmatprep.subr.bf16.mxu0 0
    %5719 = vmatpush1.bf16.msra.mxu0 0
    %5720 = vmatprep.subr.bf16.mxu0 0
    %5721 = vmatpush1.bf16.msra.mxu0 0
    %5722 = vmatprep.subr.bf16.mxu0 0
    %5723 = vmatpush1.bf16.msra.mxu0 0
    %5724 = vmatprep.subr.bf16.mxu0 0
    %5725 = vmatpush1.bf16.msra.mxu0 %v5703
    %5726 = vmatprep.subr.bf16.mxu0 0
    %5727 = vmatpush1.bf16.msra.mxu0 %v5701
    %5728 = vmatprep.subr.bf16.mxu0 0
    %5729 = vmatpush2.bf16.msra.mxu0 0
    %5730 = vmatprep.subr.bf16.mxu0 0
    %5731 = vmatpush2.bf16.msra.mxu0 0
    %5732 = vmatprep.subr.bf16.mxu0 0
    %5733 = vmatpush2.bf16.msra.mxu0 0
    %5734 = vmatprep.subr.bf16.mxu0 0
    %5735 = vmatpush2.bf16.msra.mxu0 0
    %5736 = vmatprep.subr.bf16.mxu0 0
    %5737 = vmatpush2.bf16.msra.mxu0 0
    %5738 = vmatprep.subr.bf16.mxu0 0
    %5739 = vmatpush2.bf16.msra.mxu0 0
    %5740 = vmatprep.subr.bf16.mxu0 0
    %5741 = vmatpush2.bf16.msra.mxu0 0
    %5742 = vmatprep.subr.bf16.mxu0 0
    %5743 = vmatpush2.bf16.msra.mxu0 0
    %5744 = vmatprep.mubr.bf16.mxu0 0
    %5745 = vmatmul.mubr.bf16.gmra.mxu0 %v5707
    %v5746 = vpop.f32.mrf.mxu0
    %v5747 = vadd.f32 0.0, %v5746
    %v5748 = vpop.f32.mrf.mxu0
    %v5749 = vpop.f32.mrf.mxu0
    %v5750 = vadd.f32 0.0, %v5749
    %v5751 = vpop.f32.mrf.mxu0
    %5752 = vmatprep.mubr.bf16.mxu0 0
    %5753 = vmatmul.mubr.bf16.gmra.mxu0 %v5710
    %v5754 = vpop.f32.mrf.mxu0
    %v5755 = vadd.f32 0.0, %v5754
    %v5756 = vpop.f32.mrf.mxu0
    %v5757 = vpop.f32.mrf.mxu0
    %v5758 = vadd.f32 0.0, %v5757
    %v5759 = vpop.f32.mrf.mxu0
    %5760 = vdwg.mxu0
    %5761 = vrot.lane.b32.xlu0 %v4146, 80
    %v5762 = vpop.permute.xlu0 %5761
    %5763 = vrot.lane.b32.xlu0 %v4148, 80
    %v5764 = vpop.permute.xlu0 %5763
    %v5768 = vsel %vm533, %v5698, 0
    %v5771 = vsel %vm533, %v5699, 0
    %5773 = vmatprep.subr.bf16.mxu0 0
    %5774 = vmatpush1.bf16.msra.mxu0 0
    %5775 = vmatprep.subr.bf16.mxu0 0
    %5776 = vmatpush1.bf16.msra.mxu0 0
    %5777 = vmatprep.subr.bf16.mxu0 0
    %5778 = vmatpush1.bf16.msra.mxu0 0
    %5779 = vmatprep.subr.bf16.mxu0 0
    %5780 = vmatpush1.bf16.msra.mxu0 0
    %5781 = vmatprep.subr.bf16.mxu0 0
    %5782 = vmatpush1.bf16.msra.mxu0 0
    %5783 = vmatprep.subr.bf16.mxu0 0
    %5784 = vmatpush1.bf16.msra.mxu0 0
    %5785 = vmatprep.subr.bf16.mxu0 0
    %5786 = vmatpush1.bf16.msra.mxu0 %v5764
    %5787 = vmatprep.subr.bf16.mxu0 0
    %5788 = vmatpush1.bf16.msra.mxu0 %v5762
    %5789 = vmatprep.subr.bf16.mxu0 0
    %5790 = vmatpush2.bf16.msra.mxu0 0
    %5791 = vmatprep.subr.bf16.mxu0 0
    %5792 = vmatpush2.bf16.msra.mxu0 0
    %5793 = vmatprep.subr.bf16.mxu0 0
    %5794 = vmatpush2.bf16.msra.mxu0 0
    %5795 = vmatprep.subr.bf16.mxu0 0
    %5796 = vmatpush2.bf16.msra.mxu0 0
    %5797 = vmatprep.subr.bf16.mxu0 0
    %5798 = vmatpush2.bf16.msra.mxu0 0
    %5799 = vmatprep.subr.bf16.mxu0 0
    %5800 = vmatpush2.bf16.msra.mxu0 0
    %5801 = vmatprep.subr.bf16.mxu0 0
    %5802 = vmatpush2.bf16.msra.mxu0 0
    %5803 = vmatprep.subr.bf16.mxu0 0
    %5804 = vmatpush2.bf16.msra.mxu0 0
    %5805 = vmatprep.mubr.bf16.mxu0 0
    %5806 = vmatmul.mubr.bf16.gmra.mxu0 %v5768
    %v5807 = vpop.f32.mrf.mxu0
    %v5808 = vadd.f32 0.0, %v5807
    %v5809 = vpop.f32.mrf.mxu0
    %v5810 = vpop.f32.mrf.mxu0
    %v5811 = vadd.f32 0.0, %v5810
    %v5812 = vpop.f32.mrf.mxu0
    %5813 = vmatprep.mubr.bf16.mxu0 0
    %5814 = vmatmul.mubr.bf16.gmra.mxu0 %v5771
    %v5815 = vpop.f32.mrf.mxu0
    %v5816 = vadd.f32 0.0, %v5815
    %v5817 = vpop.f32.mrf.mxu0
    %v5818 = vpop.f32.mrf.mxu0
    %v5819 = vadd.f32 0.0, %v5818
    %v5820 = vpop.f32.mrf.mxu0
    %5821 = vdwg.mxu0
    %v5822 = vpack.c.bf16 %v5750, %v5747
    %v5823 = vpack.c.bf16 %v5758, %v5755
    %v5824 = vpack.c.bf16 %v5811, %v5808
    %v5825 = vpack.c.bf16 %v5819, %v5816
    %v5828 = vunpack.c.l.b16 %v4155
    %v5829 = vunpack.c.l.b16 %v4156
    %v5830 = vpack.c.b16 %v5829, %v5828
    %v5833 = vsel %vm1606, %v5822, 0
    %v5836 = vsel %vm1606, %v5823, 0
    %v5839 = vsel %vm1606, %v5824, 0
    %v5842 = vsel %vm1606, %v5825, 0
    %5844 = vmatprep.subr.bf16.mxu0 0
    %5845 = vmatpush1.bf16.msra.mxu0 0
    %5846 = vmatprep.subr.bf16.mxu0 0
    %5847 = vmatpush1.bf16.msra.mxu0 0
    %5848 = vmatprep.subr.bf16.mxu0 0
    %5849 = vmatpush1.bf16.msra.mxu0 0
    %5850 = vmatprep.subr.bf16.mxu0 0
    %5851 = vmatpush1.bf16.msra.mxu0 0
    %5852 = vmatprep.subr.bf16.mxu0 0
    %5853 = vmatpush1.bf16.msra.mxu0 0
    %5854 = vmatprep.subr.bf16.mxu0 0
    %5855 = vmatpush1.bf16.msra.mxu0 0
    %5856 = vmatprep.subr.bf16.mxu0 0
    %5857 = vmatpush1.bf16.msra.mxu0 0
    %5858 = vmatprep.subr.bf16.mxu0 0
    %5859 = vmatpush1.bf16.msra.mxu0 %v5830
    %5860 = vmatprep.subr.bf16.mxu0 0
    %5861 = vmatpush2.bf16.msra.mxu0 0
    %5862 = vmatprep.subr.bf16.mxu0 0
    %5863 = vmatpush2.bf16.msra.mxu0 0
    %5864 = vmatprep.subr.bf16.mxu0 0
    %5865 = vmatpush2.bf16.msra.mxu0 0
    %5866 = vmatprep.subr.bf16.mxu0 0
    %5867 = vmatpush2.bf16.msra.mxu0 0
    %5868 = vmatprep.subr.bf16.mxu0 0
    %5869 = vmatpush2.bf16.msra.mxu0 0
    %5870 = vmatprep.subr.bf16.mxu0 0
    %5871 = vmatpush2.bf16.msra.mxu0 0
    %5872 = vmatprep.subr.bf16.mxu0 0
    %5873 = vmatpush2.bf16.msra.mxu0 0
    %5874 = vmatprep.subr.bf16.mxu0 0
    %5875 = vmatpush2.bf16.msra.mxu0 0
    %5876 = vmatprep.mubr.bf16.mxu0 0
    %5877 = vmatmul.mubr.bf16.gmra.mxu0 %v5833
    %v5878 = vpop.f32.mrf.mxu0
    %v5879 = vadd.f32 0.0, %v5878
    %v5880 = vpop.f32.mrf.mxu0
    %v5881 = vpop.f32.mrf.mxu0
    %v5882 = vadd.f32 0.0, %v5881
    %v5883 = vpop.f32.mrf.mxu0
    %5884 = vmatprep.mubr.bf16.mxu0 0
    %5885 = vmatmul.mubr.bf16.gmra.mxu0 %v5836
    %v5886 = vpop.f32.mrf.mxu0
    %v5887 = vadd.f32 0.0, %v5886
    %v5888 = vpop.f32.mrf.mxu0
    %v5889 = vpop.f32.mrf.mxu0
    %v5890 = vadd.f32 0.0, %v5889
    %v5891 = vpop.f32.mrf.mxu0
    %5892 = vmatprep.mubr.bf16.mxu0 0
    %5893 = vmatmul.mubr.bf16.gmra.mxu0 %v5839
    %v5894 = vpop.f32.mrf.mxu0
    %v5895 = vadd.f32 0.0, %v5894
    %v5896 = vpop.f32.mrf.mxu0
    %v5897 = vpop.f32.mrf.mxu0
    %v5898 = vadd.f32 0.0, %v5897
    %v5899 = vpop.f32.mrf.mxu0
    %5900 = vmatprep.mubr.bf16.mxu0 0
    %5901 = vmatmul.mubr.bf16.gmra.mxu0 %v5842
    %v5902 = vpop.f32.mrf.mxu0
    %v5903 = vadd.f32 0.0, %v5902
    %v5904 = vpop.f32.mrf.mxu0
    %v5905 = vpop.f32.mrf.mxu0
    %v5906 = vadd.f32 0.0, %v5905
    %v5907 = vpop.f32.mrf.mxu0
    %5908 = vdwg.mxu0
    %v5909 = vadd.f32 %v5462, %v5879
    %v5910 = vadd.f32 %v5463, %v5882
    %v5911 = vadd.f32 %v5464, %v5887
    %v5912 = vadd.f32 %v5465, %v5890
    %v5913 = vadd.f32 %v5466, %v5895
    %v5914 = vadd.f32 %v5467, %v5898
    %v5915 = vadd.f32 %v5468, %v5903
    %v5916 = vadd.f32 %v5469, %v5906
    %v5917 = vadd.f32 %v3984, %v5909
    %v5918 = vadd.f32 %v3985, %v5910
    %v5919 = vadd.f32 %v3986, %v5911
    %v5920 = vadd.f32 %v3987, %v5912
    %v5921 = vadd.f32 %v3988, %v5913
    %v5922 = vadd.f32 %v3989, %v5914
    %v5923 = vadd.f32 %v3990, %v5915
    %v5924 = vadd.f32 %v3991, %v5916
    %v5925 = vld [vmem:[%s53] sm:$0x1]
    %v5927 = vlaneseq
    %v5928 = vshrl.u32 %v5927, 7
    %v5929 = vsub.s32 0, %v5928
    %v5930 = vrot.slane %v5925, %v5929
    %v5932 = vadd.f32 %v5917, %v5930
    %v5933 = vadd.f32 %v5918, %v5930
    %v5934 = vadd.f32 %v5919, %v5930
    %v5935 = vadd.f32 %v5920, %v5930
    %v5936 = vadd.f32 %v5921, %v5930
    %v5937 = vadd.f32 %v5922, %v5930
    %v5938 = vadd.f32 %v5923, %v5930
    %v5939 = vadd.f32 %v5924, %v5930
    %v5940 = vld [vmem:[%s55] sm:$0x1]
    %v5941 = vld [vmem:[%s57] sm:$0x1]
    %v5942 = vsel %vm1047, %v5932, 0.0
    %5943 = vadd.xlane.f32.xlu0 %v5942
    %v5944 = vpop.xlane.xlu0 %5943
    %v5945 = vsel %vm1047, %v5933, 0.0
    %5946 = vadd.xlane.f32.xlu0 %v5945
    %v5947 = vpop.xlane.xlu0 %5946
    %v5948 = vsel %vm1047, %v5934, 0.0
    %5949 = vadd.xlane.f32.xlu0 %v5948
    %v5950 = vpop.xlane.xlu0 %5949
    %v5951 = vsel %vm1047, %v5935, 0.0
    %5952 = vadd.xlane.f32.xlu0 %v5951
    %v5953 = vpop.xlane.xlu0 %5952
    %v5954 = vsel %vm1047, %v5936, 0.0
    %5955 = vadd.xlane.f32.xlu0 %v5954
    %v5956 = vpop.xlane.xlu0 %5955
    %v5957 = vsel %vm1047, %v5937, 0.0
    %5958 = vadd.xlane.f32.xlu0 %v5957
    %v5959 = vpop.xlane.xlu0 %5958
    %v5960 = vsel %vm1047, %v5938, 0.0
    %5961 = vadd.xlane.f32.xlu0 %v5960
    %v5962 = vpop.xlane.xlu0 %5961
    %v5963 = vsel %vm1047, %v5939, 0.0
    %5964 = vadd.xlane.f32.xlu0 %v5963
    %v5965 = vpop.xlane.xlu0 %5964
    %v5966 = vmul.f32 %v5944, %v1072
    %v5967 = vmul.f32 %v5947, %v1072
    %v5968 = vmul.f32 %v5950, %v1072
    %v5969 = vmul.f32 %v5953, %v1072
    %v5970 = vmul.f32 %v5956, %v1072
    %v5971 = vmul.f32 %v5959, %v1072
    %v5972 = vmul.f32 %v5962, %v1072
    %v5973 = vmul.f32 %v5965, %v1072
    %v5974 = vsub.f32 %v5932, %v5966
    %v5975 = vsub.f32 %v5933, %v5967
    %v5976 = vsub.f32 %v5934, %v5968
    %v5977 = vsub.f32 %v5935, %v5969
    %v5978 = vsub.f32 %v5936, %v5970
    %v5979 = vsub.f32 %v5937, %v5971
    %v5980 = vsub.f32 %v5938, %v5972
    %v5981 = vsub.f32 %v5939, %v5973
    %v5982 = vmul.f32 %v5974, %v5974
    %v5983 = vmul.f32 %v5975, %v5975
    %v5984 = vmul.f32 %v5976, %v5976
    %v5985 = vmul.f32 %v5977, %v5977
    %v5986 = vmul.f32 %v5978, %v5978
    %v5987 = vmul.f32 %v5979, %v5979
    %v5988 = vmul.f32 %v5980, %v5980
    %v5989 = vmul.f32 %v5981, %v5981
    %v5990 = vsel %vm1047, %v5982, 0.0
    %5991 = vadd.xlane.f32.xlu0 %v5990
    %v5992 = vpop.xlane.xlu0 %5991
    %v5993 = vsel %vm1047, %v5983, 0.0
    %5994 = vadd.xlane.f32.xlu0 %v5993
    %v5995 = vpop.xlane.xlu0 %5994
    %v5996 = vsel %vm1047, %v5984, 0.0
    %5997 = vadd.xlane.f32.xlu0 %v5996
    %v5998 = vpop.xlane.xlu0 %5997
    %v5999 = vsel %vm1047, %v5985, 0.0
    %6000 = vadd.xlane.f32.xlu0 %v5999
    %v6001 = vpop.xlane.xlu0 %6000
    %v6002 = vsel %vm1047, %v5986, 0.0
    %6003 = vadd.xlane.f32.xlu0 %v6002
    %v6004 = vpop.xlane.xlu0 %6003
    %v6005 = vsel %vm1047, %v5987, 0.0
    %6006 = vadd.xlane.f32.xlu0 %v6005
    %v6007 = vpop.xlane.xlu0 %6006
    %v6008 = vsel %vm1047, %v5988, 0.0
    %6009 = vadd.xlane.f32.xlu0 %v6008
    %v6010 = vpop.xlane.xlu0 %6009
    %v6011 = vsel %vm1047, %v5989, 0.0
    %6012 = vadd.xlane.f32.xlu0 %v6011
    %v6013 = vpop.xlane.xlu0 %6012
    %v6014 = vmul.f32 %v5992, %v1072
    %v6015 = vmul.f32 %v5995, %v1072
    %v6016 = vmul.f32 %v5998, %v1072
    %v6017 = vmul.f32 %v6001, %v1072
    %v6018 = vmul.f32 %v6004, %v1072
    %v6019 = vmul.f32 %v6007, %v1072
    %v6020 = vmul.f32 %v6010, %v1072
    %v6021 = vmul.f32 %v6013, %v1072
    %v6022 = vadd.f32 %v6014, 1e-05
    %v6023 = vadd.f32 %v6015, 1e-05
    %v6024 = vadd.f32 %v6016, 1e-05
    %v6025 = vadd.f32 %v6017, 1e-05
    %v6026 = vadd.f32 %v6018, 1e-05
    %v6027 = vadd.f32 %v6019, 1e-05
    %v6028 = vadd.f32 %v6020, 1e-05
    %v6029 = vadd.f32 %v6021, 1e-05
    %v6030 = vrsqrt.pop %v6022
    %v6031 = vrsqrt.pop %v6023
    %v6032 = vrsqrt.pop %v6024
    %v6033 = vrsqrt.pop %v6025
    %v6034 = vrsqrt.pop %v6026
    %v6035 = vrsqrt.pop %v6027
    %v6036 = vrsqrt.pop %v6028
    %v6037 = vrsqrt.pop %v6029
    %v6038 = vmul.f32 %v5974, %v6030
    %v6039 = vmul.f32 %v5975, %v6031
    %v6040 = vmul.f32 %v5976, %v6032
    %v6041 = vmul.f32 %v5977, %v6033
    %v6042 = vmul.f32 %v5978, %v6034
    %v6043 = vmul.f32 %v5979, %v6035
    %v6044 = vmul.f32 %v5980, %v6036
    %v6045 = vmul.f32 %v5981, %v6037
    %v6047 = vlaneseq
    %v6048 = vshrl.u32 %v6047, 7
    %v6049 = vsub.s32 0, %v6048
    %v6050 = vrot.slane %v5940, %v6049
    %v6052 = vmul.f32 %v6038, %v6050
    %v6053 = vmul.f32 %v6039, %v6050
    %v6054 = vmul.f32 %v6040, %v6050
    %v6055 = vmul.f32 %v6041, %v6050
    %v6056 = vmul.f32 %v6042, %v6050
    %v6057 = vmul.f32 %v6043, %v6050
    %v6058 = vmul.f32 %v6044, %v6050
    %v6059 = vmul.f32 %v6045, %v6050
    %v6061 = vlaneseq
    %v6062 = vshrl.u32 %v6061, 7
    %v6063 = vsub.s32 0, %v6062
    %v6064 = vrot.slane %v5941, %v6063
    %v6066 = vadd.f32 %v6052, %v6064
    %v6067 = vadd.f32 %v6053, %v6064
    %v6068 = vadd.f32 %v6054, %v6064
    %v6069 = vadd.f32 %v6055, %v6064
    %v6070 = vadd.f32 %v6056, %v6064
    %v6071 = vadd.f32 %v6057, %v6064
    %v6072 = vadd.f32 %v6058, %v6064
    %v6073 = vadd.f32 %v6059, %v6064
    %v6074 = vpack.c.bf16 %v6067, %v6066
    %v6075 = vpack.c.bf16 %v6069, %v6068
    %v6076 = vpack.c.bf16 %v6071, %v6070
    %v6077 = vpack.c.bf16 %v6073, %v6072
    %v6078 = vld [vmem:[%s59] sm:$0xf]
    %v6079 = vld [vmem:[%s59 + $0x4] sm:$0xf]
    %v6080 = vld [vmem:[%s59 + $0x8] sm:$0xf]
    %v6081 = vld [vmem:[%s59 + $0xc] sm:$0xf]
    %v6082 = vld [vmem:[%s59 + $0x10] sm:$0xf]
    %v6083 = vld [vmem:[%s59 + $0x14] sm:$0xf]
    %v6084 = vld [vmem:[%s59 + $0x18] sm:$0xf]
    %v6085 = vld [vmem:[%s59 + $0x1c] sm:$0xf]
    %v6086 = vld [vmem:[%s61] sm:$0x1]
    %v6088 = vlaneseq
    %v6089 = vshrl.u32 %v6088, 7
    %v6090 = vsub.s32 0, %v6089
    %v6091 = vrot.slane %v6086, %v6090
    %v6101 = vunpack.c.l.b16 %v6078
    %v6102 = vunpack.c.l.b16 %v6079
    %v6103 = vunpack.c.l.b16 %v6080
    %v6104 = vunpack.c.l.b16 %v6081
    %v6105 = vunpack.c.l.b16 %v6082
    %v6106 = vunpack.c.l.b16 %v6083
    %v6107 = vunpack.c.l.b16 %v6084
    %v6108 = vunpack.c.l.b16 %v6085
    %v6109 = vpack.c.b16 %v6102, %v6101
    %v6110 = vpack.c.b16 %v6104, %v6103
    %v6111 = vpack.c.b16 %v6106, %v6105
    %v6112 = vpack.c.b16 %v6108, %v6107
    %v6118 = vsel %vm1047, %v6074, 0
    %v6121 = vsel %vm1047, %v6075, 0
    %v6124 = vsel %vm1047, %v6076, 0
    %v6127 = vsel %vm1047, %v6077, 0
    %6129 = vmatprep.subr.bf16.mxu0 0
    %6130 = vmatpush1.bf16.msra.mxu0 0
    %6131 = vmatprep.subr.bf16.mxu0 0
    %6132 = vmatpush1.bf16.msra.mxu0 0
    %6133 = vmatprep.subr.bf16.mxu0 0
    %6134 = vmatpush1.bf16.msra.mxu0 0
    %6135 = vmatprep.subr.bf16.mxu0 0
    %6136 = vmatpush1.bf16.msra.mxu0 0
    %6137 = vmatprep.subr.bf16.mxu0 0
    %6138 = vmatpush1.bf16.msra.mxu0 %v6112
    %6139 = vmatprep.subr.bf16.mxu0 0
    %6140 = vmatpush1.bf16.msra.mxu0 %v6111
    %6141 = vmatprep.subr.bf16.mxu0 0
    %6142 = vmatpush1.bf16.msra.mxu0 %v6110
    %6143 = vmatprep.subr.bf16.mxu0 0
    %6144 = vmatpush1.bf16.msra.mxu0 %v6109
    %6145 = vmatprep.subr.bf16.mxu0 0
    %6146 = vmatpush2.bf16.msra.mxu0 0
    %6147 = vmatprep.subr.bf16.mxu0 0
    %6148 = vmatpush2.bf16.msra.mxu0 0
    %6149 = vmatprep.subr.bf16.mxu0 0
    %6150 = vmatpush2.bf16.msra.mxu0 0
    %6151 = vmatprep.subr.bf16.mxu0 0
    %6152 = vmatpush2.bf16.msra.mxu0 0
    %6153 = vmatprep.subr.bf16.mxu0 0
    %6154 = vmatpush2.bf16.msra.mxu0 0
    %6155 = vmatprep.subr.bf16.mxu0 0
    %6156 = vmatpush2.bf16.msra.mxu0 0
    %6157 = vmatprep.subr.bf16.mxu0 0
    %6158 = vmatpush2.bf16.msra.mxu0 0
    %6159 = vmatprep.subr.bf16.mxu0 0
    %6160 = vmatpush2.bf16.msra.mxu0 0
    %6161 = vmatprep.mubr.bf16.mxu0 0
    %6162 = vmatmul.mubr.bf16.gmra.mxu0 %v6118
    %v6163 = vpop.f32.mrf.mxu0
    %v6164 = vadd.f32 %v6091, %v6163
    %v6165 = vpop.f32.mrf.mxu0
    %v6166 = vpop.f32.mrf.mxu0
    %v6167 = vadd.f32 %v6091, %v6166
    %v6168 = vpop.f32.mrf.mxu0
    %6169 = vmatprep.mubr.bf16.mxu0 0
    %6170 = vmatmul.mubr.bf16.gmra.mxu0 %v6121
    %v6171 = vpop.f32.mrf.mxu0
    %v6172 = vadd.f32 %v6091, %v6171
    %v6173 = vpop.f32.mrf.mxu0
    %v6174 = vpop.f32.mrf.mxu0
    %v6175 = vadd.f32 %v6091, %v6174
    %v6176 = vpop.f32.mrf.mxu0
    %6177 = vmatprep.mubr.bf16.mxu0 0
    %6178 = vmatmul.mubr.bf16.gmra.mxu0 %v6124
    %v6179 = vpop.f32.mrf.mxu0
    %v6180 = vadd.f32 %v6091, %v6179
    %v6181 = vpop.f32.mrf.mxu0
    %v6182 = vpop.f32.mrf.mxu0
    %v6183 = vadd.f32 %v6091, %v6182
    %v6184 = vpop.f32.mrf.mxu0
    %6185 = vmatprep.mubr.bf16.mxu0 0
    %6186 = vmatmul.mubr.bf16.gmra.mxu0 %v6127
    %v6187 = vpop.f32.mrf.mxu0
    %v6188 = vadd.f32 %v6091, %v6187
    %v6189 = vpop.f32.mrf.mxu0
    %v6190 = vpop.f32.mrf.mxu0
    %v6191 = vadd.f32 %v6091, %v6190
    %v6192 = vpop.f32.mrf.mxu0
    %6193 = vdwg.mxu0
    %v6194 = vmul.f32 %v6164, %v6164
    %v6195 = vmul.f32 %v6167, %v6167
    %v6196 = vmul.f32 %v6172, %v6172
    %v6197 = vmul.f32 %v6175, %v6175
    %v6198 = vmul.f32 %v6180, %v6180
    %v6199 = vmul.f32 %v6183, %v6183
    %v6200 = vmul.f32 %v6188, %v6188
    %v6201 = vmul.f32 %v6191, %v6191
    %v6202 = vmul.f32 %v6164, %v6194
    %v6203 = vmul.f32 %v6167, %v6195
    %v6204 = vmul.f32 %v6172, %v6196
    %v6205 = vmul.f32 %v6175, %v6197
    %v6206 = vmul.f32 %v6180, %v6198
    %v6207 = vmul.f32 %v6183, %v6199
    %v6208 = vmul.f32 %v6188, %v6200
    %v6209 = vmul.f32 %v6191, %v6201
    %v6210 = vmul.f32 %v6202, 0.044715
    %v6211 = vmul.f32 %v6203, 0.044715
    %v6212 = vmul.f32 %v6204, 0.044715
    %v6213 = vmul.f32 %v6205, 0.044715
    %v6214 = vmul.f32 %v6206, 0.044715
    %v6215 = vmul.f32 %v6207, 0.044715
    %v6216 = vmul.f32 %v6208, 0.044715
    %v6217 = vmul.f32 %v6209, 0.044715
    %v6218 = vadd.f32 %v6164, %v6210
    %v6219 = vadd.f32 %v6167, %v6211
    %v6220 = vadd.f32 %v6172, %v6212
    %v6221 = vadd.f32 %v6175, %v6213
    %v6222 = vadd.f32 %v6180, %v6214
    %v6223 = vadd.f32 %v6183, %v6215
    %v6224 = vadd.f32 %v6188, %v6216
    %v6225 = vadd.f32 %v6191, %v6217
    %v6226 = vmul.f32 %v6218, 0.7978846
    %v6227 = vmul.f32 %v6219, 0.7978846
    %v6228 = vmul.f32 %v6220, 0.7978846
    %v6229 = vmul.f32 %v6221, 0.7978846
    %v6230 = vmul.f32 %v6222, 0.7978846
    %v6231 = vmul.f32 %v6223, 0.7978846
    %v6232 = vmul.f32 %v6224, 0.7978846
    %v6233 = vmul.f32 %v6225, 0.7978846
    %v6234 = vtanh.pop %v6226
    %v6235 = vtanh.pop %v6227
    %v6236 = vtanh.pop %v6228
    %v6237 = vtanh.pop %v6229
    %v6238 = vtanh.pop %v6230
    %v6239 = vtanh.pop %v6231
    %v6240 = vtanh.pop %v6232
    %v6241 = vtanh.pop %v6233
    %v6242 = vadd.f32 %v6234, 1.0
    %v6243 = vadd.f32 %v6235, 1.0
    %v6244 = vadd.f32 %v6236, 1.0
    %v6245 = vadd.f32 %v6237, 1.0
    %v6246 = vadd.f32 %v6238, 1.0
    %v6247 = vadd.f32 %v6239, 1.0
    %v6248 = vadd.f32 %v6240, 1.0
    %v6249 = vadd.f32 %v6241, 1.0
    %v6250 = vmul.f32 %v6242, 0.5
    %v6251 = vmul.f32 %v6243, 0.5
    %v6252 = vmul.f32 %v6244, 0.5
    %v6253 = vmul.f32 %v6245, 0.5
    %v6254 = vmul.f32 %v6246, 0.5
    %v6255 = vmul.f32 %v6247, 0.5
    %v6256 = vmul.f32 %v6248, 0.5
    %v6257 = vmul.f32 %v6249, 0.5
    %v6258 = vmul.f32 %v6164, %v6250
    %v6259 = vmul.f32 %v6167, %v6251
    %v6260 = vmul.f32 %v6172, %v6252
    %v6261 = vmul.f32 %v6175, %v6253
    %v6262 = vmul.f32 %v6180, %v6254
    %v6263 = vmul.f32 %v6183, %v6255
    %v6264 = vmul.f32 %v6188, %v6256
    %v6265 = vmul.f32 %v6191, %v6257
    %v6266 = vpack.c.bf16 %v6259, %v6258
    %v6267 = vpack.c.bf16 %v6261, %v6260
    %v6268 = vpack.c.bf16 %v6263, %v6262
    %v6269 = vpack.c.bf16 %v6265, %v6264
    %v6270 = vld [vmem:[%s63] sm:$0xf]
    %v6271 = vld [vmem:[%s63 + $0x4] sm:$0xf]
    %v6272 = vld [vmem:[%s63 + $0x8] sm:$0xf]
    %v6273 = vld [vmem:[%s63 + $0xc] sm:$0xf]
    %v6274 = vld [vmem:[%s63 + $0x10] sm:$0xf]
    %v6275 = vld [vmem:[%s63 + $0x14] sm:$0xf]
    %v6276 = vld [vmem:[%s63 + $0x18] sm:$0xf]
    %v6277 = vld [vmem:[%s63 + $0x1c] sm:$0xf]
    %v6278 = vld [vmem:[%s63 + $0x20] sm:$0xf]
    %v6279 = vld [vmem:[%s63 + $0x24] sm:$0xf]
    %v6280 = vld [vmem:[%s63 + $0x28] sm:$0xf]
    %v6281 = vld [vmem:[%s63 + $0x2c] sm:$0xf]
    %v6282 = vld [vmem:[%s63 + $0x30] sm:$0xf]
    %v6283 = vld [vmem:[%s63 + $0x34] sm:$0xf]
    %v6284 = vld [vmem:[%s63 + $0x38] sm:$0xf]
    %v6285 = vld [vmem:[%s63 + $0x3c] sm:$0xf]
    %v6286 = vld [vmem:[%s65] sm:$0x1]
    %v6288 = vlaneseq
    %v6289 = vshrl.u32 %v6288, 7
    %v6290 = vsub.s32 0, %v6289
    %v6291 = vrot.slane %v6286, %v6290
    %v6309 = vunpack.c.l.b16 %v6270
    %v6310 = vunpack.c.l.b16 %v6271
    %v6311 = vunpack.c.l.b16 %v6272
    %v6312 = vunpack.c.l.b16 %v6273
    %v6313 = vunpack.c.l.b16 %v6274
    %v6314 = vunpack.c.l.b16 %v6275
    %v6315 = vunpack.c.l.b16 %v6276
    %v6316 = vunpack.c.l.b16 %v6277
    %v6317 = vunpack.c.l.b16 %v6278
    %v6318 = vunpack.c.l.b16 %v6279
    %v6319 = vunpack.c.l.b16 %v6280
    %v6320 = vunpack.c.l.b16 %v6281
    %v6321 = vunpack.c.l.b16 %v6282
    %v6322 = vunpack.c.l.b16 %v6283
    %v6323 = vunpack.c.l.b16 %v6284
    %v6324 = vunpack.c.l.b16 %v6285
    %v6325 = vpack.c.b16 %v6310, %v6309
    %v6326 = vpack.c.b16 %v6312, %v6311
    %v6327 = vpack.c.b16 %v6314, %v6313
    %v6328 = vpack.c.b16 %v6316, %v6315
    %v6329 = vpack.c.b16 %v6318, %v6317
    %v6330 = vpack.c.b16 %v6320, %v6319
    %v6331 = vpack.c.b16 %v6322, %v6321
    %v6332 = vpack.c.b16 %v6324, %v6323
    %6341 = vmatprep.subr.bf16.mxu0 0
    %6342 = vmatpush1.bf16.msra.mxu0 %v6332
    %6343 = vmatprep.subr.bf16.mxu0 0
    %6344 = vmatpush1.bf16.msra.mxu0 %v6331
    %6345 = vmatprep.subr.bf16.mxu0 0
    %6346 = vmatpush1.bf16.msra.mxu0 %v6330
    %6347 = vmatprep.subr.bf16.mxu0 0
    %6348 = vmatpush1.bf16.msra.mxu0 %v6329
    %6349 = vmatprep.subr.bf16.mxu0 0
    %6350 = vmatpush1.bf16.msra.mxu0 %v6328
    %6351 = vmatprep.subr.bf16.mxu0 0
    %6352 = vmatpush1.bf16.msra.mxu0 %v6327
    %6353 = vmatprep.subr.bf16.mxu0 0
    %6354 = vmatpush1.bf16.msra.mxu0 %v6326
    %6355 = vmatprep.subr.bf16.mxu0 0
    %6356 = vmatpush1.bf16.msra.mxu0 %v6325
    %6357 = vmatprep.subr.bf16.mxu0 0
    %6358 = vmatpush2.bf16.msra.mxu0 0
    %6359 = vmatprep.subr.bf16.mxu0 0
    %6360 = vmatpush2.bf16.msra.mxu0 0
    %6361 = vmatprep.subr.bf16.mxu0 0
    %6362 = vmatpush2.bf16.msra.mxu0 0
    %6363 = vmatprep.subr.bf16.mxu0 0
    %6364 = vmatpush2.bf16.msra.mxu0 0
    %6365 = vmatprep.subr.bf16.mxu0 0
    %6366 = vmatpush2.bf16.msra.mxu0 0
    %6367 = vmatprep.subr.bf16.mxu0 0
    %6368 = vmatpush2.bf16.msra.mxu0 0
    %6369 = vmatprep.subr.bf16.mxu0 0
    %6370 = vmatpush2.bf16.msra.mxu0 0
    %6371 = vmatprep.subr.bf16.mxu0 0
    %6372 = vmatpush2.bf16.msra.mxu0 0
    %6373 = vmatprep.mubr.bf16.mxu0 0
    %6374 = vmatmul.mubr.bf16.gmra.mxu0 %v6266
    %v6375 = vpop.f32.mrf.mxu0
    %v6376 = vadd.f32 %v6291, %v6375
    %v6377 = vpop.f32.mrf.mxu0
    %v6378 = vpop.f32.mrf.mxu0
    %v6379 = vadd.f32 %v6291, %v6378
    %v6380 = vpop.f32.mrf.mxu0
    %6381 = vmatprep.mubr.bf16.mxu0 0
    %6382 = vmatmul.mubr.bf16.gmra.mxu0 %v6267
    %v6383 = vpop.f32.mrf.mxu0
    %v6384 = vadd.f32 %v6291, %v6383
    %v6385 = vpop.f32.mrf.mxu0
    %v6386 = vpop.f32.mrf.mxu0
    %v6387 = vadd.f32 %v6291, %v6386
    %v6388 = vpop.f32.mrf.mxu0
    %6389 = vmatprep.mubr.bf16.mxu0 0
    %6390 = vmatmul.mubr.bf16.gmra.mxu0 %v6268
    %v6391 = vpop.f32.mrf.mxu0
    %v6392 = vadd.f32 %v6291, %v6391
    %v6393 = vpop.f32.mrf.mxu0
    %v6394 = vpop.f32.mrf.mxu0
    %v6395 = vadd.f32 %v6291, %v6394
    %v6396 = vpop.f32.mrf.mxu0
    %6397 = vmatprep.mubr.bf16.mxu0 0
    %6398 = vmatmul.mubr.bf16.gmra.mxu0 %v6269
    %v6399 = vpop.f32.mrf.mxu0
    %v6400 = vadd.f32 %v6291, %v6399
    %v6401 = vpop.f32.mrf.mxu0
    %v6402 = vpop.f32.mrf.mxu0
    %v6403 = vadd.f32 %v6291, %v6402
    %v6404 = vpop.f32.mrf.mxu0
    %6405 = vdwg.mxu0
    %v6406 = vadd.f32 %v6066, %v6376
    %v6407 = vadd.f32 %v6067, %v6379
    %v6408 = vadd.f32 %v6068, %v6384
    %v6409 = vadd.f32 %v6069, %v6387
    %v6410 = vadd.f32 %v6070, %v6392
    %v6411 = vadd.f32 %v6071, %v6395
    %v6412 = vadd.f32 %v6072, %v6400
    %v6413 = vadd.f32 %v6073, %v6403
    %v6414 = vld [vmem:[%s67] sm:$0x1]
    %v6415 = vld [vmem:[%s69] sm:$0x1]
    %v6416 = vsel %vm1047, %v6406, 0.0
    %6417 = vadd.xlane.f32.xlu0 %v6416
    %v6418 = vpop.xlane.xlu0 %6417
    %v6419 = vsel %vm1047, %v6407, 0.0
    %6420 = vadd.xlane.f32.xlu0 %v6419
    %v6421 = vpop.xlane.xlu0 %6420
    %v6422 = vsel %vm1047, %v6408, 0.0
    %6423 = vadd.xlane.f32.xlu0 %v6422
    %v6424 = vpop.xlane.xlu0 %6423
    %v6425 = vsel %vm1047, %v6409, 0.0
    %6426 = vadd.xlane.f32.xlu0 %v6425
    %v6427 = vpop.xlane.xlu0 %6426
    %v6428 = vsel %vm1047, %v6410, 0.0
    %6429 = vadd.xlane.f32.xlu0 %v6428
    %v6430 = vpop.xlane.xlu0 %6429
    %v6431 = vsel %vm1047, %v6411, 0.0
    %6432 = vadd.xlane.f32.xlu0 %v6431
    %v6433 = vpop.xlane.xlu0 %6432
    %v6434 = vsel %vm1047, %v6412, 0.0
    %6435 = vadd.xlane.f32.xlu0 %v6434
    %v6436 = vpop.xlane.xlu0 %6435
    %v6437 = vsel %vm1047, %v6413, 0.0
    %6438 = vadd.xlane.f32.xlu0 %v6437
    %v6439 = vpop.xlane.xlu0 %6438
    %v6440 = vmul.f32 %v6418, %v1072
    %v6441 = vmul.f32 %v6421, %v1072
    %v6442 = vmul.f32 %v6424, %v1072
    %v6443 = vmul.f32 %v6427, %v1072
    %v6444 = vmul.f32 %v6430, %v1072
    %v6445 = vmul.f32 %v6433, %v1072
    %v6446 = vmul.f32 %v6436, %v1072
    %v6447 = vmul.f32 %v6439, %v1072
    %v6448 = vsub.f32 %v6406, %v6440
    %v6449 = vsub.f32 %v6407, %v6441
    %v6450 = vsub.f32 %v6408, %v6442
    %v6451 = vsub.f32 %v6409, %v6443
    %v6452 = vsub.f32 %v6410, %v6444
    %v6453 = vsub.f32 %v6411, %v6445
    %v6454 = vsub.f32 %v6412, %v6446
    %v6455 = vsub.f32 %v6413, %v6447
    %v6456 = vmul.f32 %v6448, %v6448
    %v6457 = vmul.f32 %v6449, %v6449
    %v6458 = vmul.f32 %v6450, %v6450
    %v6459 = vmul.f32 %v6451, %v6451
    %v6460 = vmul.f32 %v6452, %v6452
    %v6461 = vmul.f32 %v6453, %v6453
    %v6462 = vmul.f32 %v6454, %v6454
    %v6463 = vmul.f32 %v6455, %v6455
    %v6464 = vsel %vm1047, %v6456, 0.0
    %6465 = vadd.xlane.f32.xlu0 %v6464
    %v6466 = vpop.xlane.xlu0 %6465
    %v6467 = vsel %vm1047, %v6457, 0.0
    %6468 = vadd.xlane.f32.xlu0 %v6467
    %v6469 = vpop.xlane.xlu0 %6468
    %v6470 = vsel %vm1047, %v6458, 0.0
    %6471 = vadd.xlane.f32.xlu0 %v6470
    %v6472 = vpop.xlane.xlu0 %6471
    %v6473 = vsel %vm1047, %v6459, 0.0
    %6474 = vadd.xlane.f32.xlu0 %v6473
    %v6475 = vpop.xlane.xlu0 %6474
    %v6476 = vsel %vm1047, %v6460, 0.0
    %6477 = vadd.xlane.f32.xlu0 %v6476
    %v6478 = vpop.xlane.xlu0 %6477
    %v6479 = vsel %vm1047, %v6461, 0.0
    %6480 = vadd.xlane.f32.xlu0 %v6479
    %v6481 = vpop.xlane.xlu0 %6480
    %v6482 = vsel %vm1047, %v6462, 0.0
    %6483 = vadd.xlane.f32.xlu0 %v6482
    %v6484 = vpop.xlane.xlu0 %6483
    %v6485 = vsel %vm1047, %v6463, 0.0
    %6486 = vadd.xlane.f32.xlu0 %v6485
    %v6487 = vpop.xlane.xlu0 %6486
    %v6488 = vmul.f32 %v6466, %v1072
    %v6489 = vmul.f32 %v6469, %v1072
    %v6490 = vmul.f32 %v6472, %v1072
    %v6491 = vmul.f32 %v6475, %v1072
    %v6492 = vmul.f32 %v6478, %v1072
    %v6493 = vmul.f32 %v6481, %v1072
    %v6494 = vmul.f32 %v6484, %v1072
    %v6495 = vmul.f32 %v6487, %v1072
    %v6496 = vadd.f32 %v6488, 1e-05
    %v6497 = vadd.f32 %v6489, 1e-05
    %v6498 = vadd.f32 %v6490, 1e-05
    %v6499 = vadd.f32 %v6491, 1e-05
    %v6500 = vadd.f32 %v6492, 1e-05
    %v6501 = vadd.f32 %v6493, 1e-05
    %v6502 = vadd.f32 %v6494, 1e-05
    %v6503 = vadd.f32 %v6495, 1e-05
    %v6504 = vrsqrt.pop %v6496
    %v6505 = vrsqrt.pop %v6497
    %v6506 = vrsqrt.pop %v6498
    %v6507 = vrsqrt.pop %v6499
    %v6508 = vrsqrt.pop %v6500
    %v6509 = vrsqrt.pop %v6501
    %v6510 = vrsqrt.pop %v6502
    %v6511 = vrsqrt.pop %v6503
    %v6512 = vmul.f32 %v6448, %v6504
    %v6513 = vmul.f32 %v6449, %v6505
    %v6514 = vmul.f32 %v6450, %v6506
    %v6515 = vmul.f32 %v6451, %v6507
    %v6516 = vmul.f32 %v6452, %v6508
    %v6517 = vmul.f32 %v6453, %v6509
    %v6518 = vmul.f32 %v6454, %v6510
    %v6519 = vmul.f32 %v6455, %v6511
    %v6521 = vlaneseq
    %v6522 = vshrl.u32 %v6521, 7
    %v6523 = vsub.s32 0, %v6522
    %v6524 = vrot.slane %v6414, %v6523
    %v6526 = vmul.f32 %v6512, %v6524
    %v6527 = vmul.f32 %v6513, %v6524
    %v6528 = vmul.f32 %v6514, %v6524
    %v6529 = vmul.f32 %v6515, %v6524
    %v6530 = vmul.f32 %v6516, %v6524
    %v6531 = vmul.f32 %v6517, %v6524
    %v6532 = vmul.f32 %v6518, %v6524
    %v6533 = vmul.f32 %v6519, %v6524
    %v6535 = vlaneseq
    %v6536 = vshrl.u32 %v6535, 7
    %v6537 = vsub.s32 0, %v6536
    %v6538 = vrot.slane %v6415, %v6537
    %v6540 = vadd.f32 %v6526, %v6538
    %v6541 = vadd.f32 %v6527, %v6538
    %v6542 = vadd.f32 %v6528, %v6538
    %v6543 = vadd.f32 %v6529, %v6538
    %v6544 = vadd.f32 %v6530, %v6538
    %v6545 = vadd.f32 %v6531, %v6538
    %v6546 = vadd.f32 %v6532, %v6538
    %v6547 = vadd.f32 %v6533, %v6538
    %v6548 = vld [vmem:[%s71] sm:$0x1]
    %v6549 = vpack.c.bf16 %v6541, %v6540
    %v6550 = vpack.c.bf16 %v6543, %v6542
    %v6551 = vpack.c.bf16 %v6545, %v6544
    %v6552 = vpack.c.bf16 %v6547, %v6546
    %v6554 = vsel %vm1047, %v6548, 0
    %6556 = vmatprep.subr.bf16.mxu0 0
    %6557 = vmatpush1.bf16.msra.mxu0 0
    %6558 = vmatprep.subr.bf16.mxu0 0
    %6559 = vmatpush1.bf16.msra.mxu0 0
    %6560 = vmatprep.subr.bf16.mxu0 0
    %6561 = vmatpush1.bf16.msra.mxu0 0
    %6562 = vmatprep.subr.bf16.mxu0 0
    %6563 = vmatpush1.bf16.msra.mxu0 0
    %6564 = vmatprep.subr.bf16.mxu0 0
    %6565 = vmatpush1.bf16.msra.mxu0 %v6552
    %6566 = vmatprep.subr.bf16.mxu0 0
    %6567 = vmatpush1.bf16.msra.mxu0 %v6551
    %6568 = vmatprep.subr.bf16.mxu0 0
    %6569 = vmatpush1.bf16.msra.mxu0 %v6550
    %6570 = vmatprep.subr.bf16.mxu0 0
    %6571 = vmatpush1.bf16.msra.mxu0 %v6549
    %6572 = vmatprep.subr.bf16.mxu0 0
    %6573 = vmatpush2.bf16.msra.mxu0 0
    %6574 = vmatprep.subr.bf16.mxu0 0
    %6575 = vmatpush2.bf16.msra.mxu0 0
    %6576 = vmatprep.subr.bf16.mxu0 0
    %6577 = vmatpush2.bf16.msra.mxu0 0
    %6578 = vmatprep.subr.bf16.mxu0 0
    %6579 = vmatpush2.bf16.msra.mxu0 0
    %6580 = vmatprep.subr.bf16.mxu0 0
    %6581 = vmatpush2.bf16.msra.mxu0 0
    %6582 = vmatprep.subr.bf16.mxu0 0
    %6583 = vmatpush2.bf16.msra.mxu0 0
    %6584 = vmatprep.subr.bf16.mxu0 0
    %6585 = vmatpush2.bf16.msra.mxu0 0
    %6586 = vmatprep.subr.bf16.mxu0 0
    %6587 = vmatpush2.bf16.msra.mxu0 0
    %6588 = vmatprep.mubr.bf16.mxu0 0
    %6589 = vmatmul.mubr.bf16.gmra.mxu0 %v6554
    %v6590 = vpop.f32.mrf.mxu0
    %v6591 = vadd.f32 0.0, %v6590
    %v6592 = vpop.f32.mrf.mxu0
    %v6593 = vpop.f32.mrf.mxu0
    %v6594 = vpop.f32.mrf.mxu0
    %6595 = vdwg.mxu0
    %v6596 = vpack.c.bf16 %v6591, %v6591
    %v6597 = vld [vmem:[%s73] sm:$0xff]
    %v6598 = vld [vmem:[%s73 + $0x8] sm:$0xff]
    %v6599 = vld [vmem:[%s73 + $0x10] sm:$0xff]
    %v6600 = vld [vmem:[%s73 + $0x18] sm:$0xff]
    %v6601 = vld [vmem:[%s73 + $0x20] sm:$0xff]
    %v6602 = vld [vmem:[%s73 + $0x28] sm:$0xff]
    %v6603 = vld [vmem:[%s73 + $0x30] sm:$0xff]
    %v6604 = vld [vmem:[%s73 + $0x38] sm:$0xff]
    %v6605 = vld [vmem:[%s73 + $0x40] sm:$0xff]
    %v6606 = vld [vmem:[%s73 + $0x48] sm:$0xff]
    %v6607 = vld [vmem:[%s73 + $0x50] sm:$0xff]
    %v6608 = vld [vmem:[%s73 + $0x58] sm:$0xff]
    %v6609 = vld [vmem:[%s73 + $0x60] sm:$0xff]
    %v6610 = vld [vmem:[%s73 + $0x68] sm:$0xff]
    %v6611 = vld [vmem:[%s73 + $0x70] sm:$0xff]
    %v6612 = vld [vmem:[%s73 + $0x78] sm:$0xff]
    %v6613 = vld [vmem:[%s73 + $0x80] sm:$0xff]
    %v6614 = vld [vmem:[%s73 + $0x88] sm:$0xff]
    %v6615 = vld [vmem:[%s73 + $0x90] sm:$0xff]
    %v6616 = vld [vmem:[%s73 + $0x98] sm:$0xff]
    %v6617 = vld [vmem:[%s73 + $0xa0] sm:$0xff]
    %v6618 = vld [vmem:[%s73 + $0xa8] sm:$0xff]
    %v6619 = vld [vmem:[%s73 + $0xb0] sm:$0xff]
    %v6620 = vld [vmem:[%s73 + $0xb8] sm:$0xff]
    %v6621 = vld [vmem:[%s75] sm:$0x3f]
    %v6623 = vlaneseq
    %v6624 = vshrl.u32 %v6623, 7
    %v6625 = vsub.s32 0, %v6624
    %v6626 = vrot.slane %v6621, %v6625
    %v6627 = vlaneseq
    %v6628 = vshrl.u32 %v6627, 7
    %v6629 = vsub.s32 1, %v6628
    %v6630 = vrot.slane %v6621, %v6629
    %v6631 = vlaneseq
    %v6632 = vshrl.u32 %v6631, 7
    %v6633 = vsub.s32 2, %v6632
    %v6634 = vrot.slane %v6621, %v6633
    %v6635 = vlaneseq
    %v6636 = vshrl.u32 %v6635, 7
    %v6637 = vsub.s32 3, %v6636
    %v6638 = vrot.slane %v6621, %v6637
    %v6639 = vlaneseq
    %v6640 = vshrl.u32 %v6639, 7
    %v6641 = vsub.s32 4, %v6640
    %v6642 = vrot.slane %v6621, %v6641
    %v6643 = vlaneseq
    %v6644 = vshrl.u32 %v6643, 7
    %v6645 = vsub.s32 5, %v6644
    %v6646 = vrot.slane %v6621, %v6645
    %v6677 = vunpack.c.l.b16 %v6597
    %v6678 = vunpack.c.h.b16 %v6597
    %v6679 = vunpack.c.l.b16 %v6598
    %v6680 = vunpack.c.h.b16 %v6598
    %v6681 = vunpack.c.l.b16 %v6599
    %v6682 = vunpack.c.h.b16 %v6599
    %v6683 = vunpack.c.l.b16 %v6600
    %v6684 = vunpack.c.h.b16 %v6600
    %v6685 = vunpack.c.l.b16 %v6601
    %v6686 = vunpack.c.h.b16 %v6601
    %v6687 = vunpack.c.l.b16 %v6602
    %v6688 = vunpack.c.h.b16 %v6602
    %v6689 = vunpack.c.l.b16 %v6603
    %v6690 = vunpack.c.h.b16 %v6603
    %v6691 = vunpack.c.l.b16 %v6604
    %v6692 = vunpack.c.h.b16 %v6604
    %v6693 = vunpack.c.l.b16 %v6605
    %v6694 = vunpack.c.h.b16 %v6605
    %v6695 = vunpack.c.l.b16 %v6606
    %v6696 = vunpack.c.h.b16 %v6606
    %v6697 = vunpack.c.l.b16 %v6607
    %v6698 = vunpack.c.h.b16 %v6607
    %v6699 = vunpack.c.l.b16 %v6608
    %v6700 = vunpack.c.h.b16 %v6608
    %v6701 = vunpack.c.l.b16 %v6609
    %v6702 = vunpack.c.h.b16 %v6609
    %v6703 = vunpack.c.l.b16 %v6610
    %v6704 = vunpack.c.h.b16 %v6610
    %v6705 = vunpack.c.l.b16 %v6611
    %v6706 = vunpack.c.h.b16 %v6611
    %v6707 = vunpack.c.l.b16 %v6612
    %v6708 = vunpack.c.h.b16 %v6612
    %v6709 = vunpack.c.l.b16 %v6613
    %v6710 = vunpack.c.h.b16 %v6613
    %v6711 = vunpack.c.l.b16 %v6614
    %v6712 = vunpack.c.h.b16 %v6614
    %v6713 = vunpack.c.l.b16 %v6615
    %v6714 = vunpack.c.h.b16 %v6615
    %v6715 = vunpack.c.l.b16 %v6616
    %v6716 = vunpack.c.h.b16 %v6616
    %v6717 = vunpack.c.l.b16 %v6617
    %v6718 = vunpack.c.h.b16 %v6617
    %v6719 = vunpack.c.l.b16 %v6618
    %v6720 = vunpack.c.h.b16 %v6618
    %v6721 = vunpack.c.l.b16 %v6619
    %v6722 = vunpack.c.h.b16 %v6619
    %v6723 = vunpack.c.l.b16 %v6620
    %v6724 = vunpack.c.h.b16 %v6620
    %v6725 = vpack.c.b16 %v6683, %v6677
    %v6726 = vpack.c.b16 %v6684, %v6678
    %v6727 = vpack.c.b16 %v6685, %v6679
    %v6728 = vpack.c.b16 %v6686, %v6680
    %v6729 = vpack.c.b16 %v6687, %v6681
    %v6730 = vpack.c.b16 %v6688, %v6682
    %v6731 = vpack.c.b16 %v6695, %v6689
    %v6732 = vpack.c.b16 %v6696, %v6690
    %v6733 = vpack.c.b16 %v6697, %v6691
    %v6734 = vpack.c.b16 %v6698, %v6692
    %v6735 = vpack.c.b16 %v6699, %v6693
    %v6736 = vpack.c.b16 %v6700, %v6694
    %v6737 = vpack.c.b16 %v6707, %v6701
    %v6738 = vpack.c.b16 %v6708, %v6702
    %v6739 = vpack.c.b16 %v6709, %v6703
    %v6740 = vpack.c.b16 %v6710, %v6704
    %v6741 = vpack.c.b16 %v6711, %v6705
    %v6742 = vpack.c.b16 %v6712, %v6706
    %v6743 = vpack.c.b16 %v6719, %v6713
    %v6744 = vpack.c.b16 %v6720, %v6714
    %v6745 = vpack.c.b16 %v6721, %v6715
    %v6746 = vpack.c.b16 %v6722, %v6716
    %v6747 = vpack.c.b16 %v6723, %v6717
    %v6748 = vpack.c.b16 %v6724, %v6718
    %v6774 = vsel %vm1047, %v6596, 0
    %6776 = vmatprep.subr.bf16.mxu0 0
    %6777 = vmatpush1.bf16.msra.mxu0 0
    %6778 = vmatprep.subr.bf16.mxu0 0
    %6779 = vmatpush1.bf16.msra.mxu0 0
    %6780 = vmatprep.subr.bf16.mxu0 0
    %6781 = vmatpush1.bf16.msra.mxu0 0
    %6782 = vmatprep.subr.bf16.mxu0 0
    %6783 = vmatpush1.bf16.msra.mxu0 0
    %6784 = vmatprep.subr.bf16.mxu0 %v6744
    %6785 = vmatpush1.bf16.msra.mxu0 %v6743
    %6786 = vmatprep.subr.bf16.mxu0 %v6738
    %6787 = vmatpush1.bf16.msra.mxu0 %v6737
    %6788 = vmatprep.subr.bf16.mxu0 %v6732
    %6789 = vmatpush1.bf16.msra.mxu0 %v6731
    %6790 = vmatprep.subr.bf16.mxu0 %v6726
    %6791 = vmatpush1.bf16.msra.mxu0 %v6725
    %6792 = vmatprep.subr.bf16.mxu0 0
    %6793 = vmatpush2.bf16.msra.mxu0 0
    %6794 = vmatprep.subr.bf16.mxu0 0
    %6795 = vmatpush2.bf16.msra.mxu0 0
    %6796 = vmatprep.subr.bf16.mxu0 0
    %6797 = vmatpush2.bf16.msra.mxu0 0
    %6798 = vmatprep.subr.bf16.mxu0 0
    %6799 = vmatpush2.bf16.msra.mxu0 0
    %6800 = vmatprep.subr.bf16.mxu0 0
    %6801 = vmatpush2.bf16.msra.mxu0 0
    %6802 = vmatprep.subr.bf16.mxu0 0
    %6803 = vmatpush2.bf16.msra.mxu0 0
    %6804 = vmatprep.subr.bf16.mxu0 0
    %6805 = vmatpush2.bf16.msra.mxu0 0
    %6806 = vmatprep.subr.bf16.mxu0 0
    %6807 = vmatpush2.bf16.msra.mxu0 0
    %6808 = vmatprep.mubr.bf16.mxu0 0
    %6809 = vmatmul.mubr.bf16.gmra.mxu0 %v6774
    %v6810 = vpop.f32.mrf.mxu0
    %v6811 = vadd.f32 %v6626, %v6810
    %v6812 = vpop.f32.mrf.mxu0
    %v6813 = vadd.f32 %v6630, %v6812
    %v6814 = vpop.f32.mrf.mxu0
    %v6815 = vpop.f32.mrf.mxu0
    %6816 = vdwg.mxu0
    %6817 = vmatprep.subr.bf16.mxu0 0
    %6818 = vmatpush1.bf16.msra.mxu0 0
    %6819 = vmatprep.subr.bf16.mxu0 0
    %6820 = vmatpush1.bf16.msra.mxu0 0
    %6821 = vmatprep.subr.bf16.mxu0 0
    %6822 = vmatpush1.bf16.msra.mxu0 0
    %6823 = vmatprep.subr.bf16.mxu0 0
    %6824 = vmatpush1.bf16.msra.mxu0 0
    %6825 = vmatprep.subr.bf16.mxu0 %v6746
    %6826 = vmatpush1.bf16.msra.mxu0 %v6745
    %6827 = vmatprep.subr.bf16.mxu0 %v6740
    %6828 = vmatpush1.bf16.msra.mxu0 %v6739
    %6829 = vmatprep.subr.bf16.mxu0 %v6734
    %6830 = vmatpush1.bf16.msra.mxu0 %v6733
    %6831 = vmatprep.subr.bf16.mxu0 %v6728
    %6832 = vmatpush1.bf16.msra.mxu0 %v6727
    %6833 = vmatprep.subr.bf16.mxu0 0
    %6834 = vmatpush2.bf16.msra.mxu0 0
    %6835 = vmatprep.subr.bf16.mxu0 0
    %6836 = vmatpush2.bf16.msra.mxu0 0
    %6837 = vmatprep.subr.bf16.mxu0 0
    %6838 = vmatpush2.bf16.msra.mxu0 0
    %6839 = vmatprep.subr.bf16.mxu0 0
    %6840 = vmatpush2.bf16.msra.mxu0 0
    %6841 = vmatprep.subr.bf16.mxu0 0
    %6842 = vmatpush2.bf16.msra.mxu0 0
    %6843 = vmatprep.subr.bf16.mxu0 0
    %6844 = vmatpush2.bf16.msra.mxu0 0
    %6845 = vmatprep.subr.bf16.mxu0 0
    %6846 = vmatpush2.bf16.msra.mxu0 0
    %6847 = vmatprep.subr.bf16.mxu0 0
    %6848 = vmatpush2.bf16.msra.mxu0 0
    %6849 = vmatprep.mubr.bf16.mxu0 0
    %6850 = vmatmul.mubr.bf16.gmra.mxu0 %v6774
    %v6851 = vpop.f32.mrf.mxu0
    %v6852 = vadd.f32 %v6634, %v6851
    %v6853 = vpop.f32.mrf.mxu0
    %v6854 = vadd.f32 %v6638, %v6853
    %v6855 = vpop.f32.mrf.mxu0
    %v6856 = vpop.f32.mrf.mxu0
    %6857 = vdwg.mxu0
    %6858 = vmatprep.subr.bf16.mxu0 0
    %6859 = vmatpush1.bf16.msra.mxu0 0
    %6860 = vmatprep.subr.bf16.mxu0 0
    %6861 = vmatpush1.bf16.msra.mxu0 0
    %6862 = vmatprep.subr.bf16.mxu0 0
    %6863 = vmatpush1.bf16.msra.mxu0 0
    %6864 = vmatprep.subr.bf16.mxu0 0
    %6865 = vmatpush1.bf16.msra.mxu0 0
    %6866 = vmatprep.subr.bf16.mxu0 %v6748
    %6867 = vmatpush1.bf16.msra.mxu0 %v6747
    %6868 = vmatprep.subr.bf16.mxu0 %v6742
    %6869 = vmatpush1.bf16.msra.mxu0 %v6741
    %6870 = vmatprep.subr.bf16.mxu0 %v6736
    %6871 = vmatpush1.bf16.msra.mxu0 %v6735
    %6872 = vmatprep.subr.bf16.mxu0 %v6730
    %6873 = vmatpush1.bf16.msra.mxu0 %v6729
    %6874 = vmatprep.subr.bf16.mxu0 0
    %6875 = vmatpush2.bf16.msra.mxu0 0
    %6876 = vmatprep.subr.bf16.mxu0 0
    %6877 = vmatpush2.bf16.msra.mxu0 0
    %6878 = vmatprep.subr.bf16.mxu0 0
    %6879 = vmatpush2.bf16.msra.mxu0 0
    %6880 = vmatprep.subr.bf16.mxu0 0
    %6881 = vmatpush2.bf16.msra.mxu0 0
    %6882 = vmatprep.subr.bf16.mxu0 0
    %6883 = vmatpush2.bf16.msra.mxu0 0
    %6884 = vmatprep.subr.bf16.mxu0 0
    %6885 = vmatpush2.bf16.msra.mxu0 0
    %6886 = vmatprep.subr.bf16.mxu0 0
    %6887 = vmatpush2.bf16.msra.mxu0 0
    %6888 = vmatprep.subr.bf16.mxu0 0
    %6889 = vmatpush2.bf16.msra.mxu0 0
    %6890 = vmatprep.mubr.bf16.mxu0 0
    %6891 = vmatmul.mubr.bf16.gmra.mxu0 %v6774
    %v6892 = vpop.f32.mrf.mxu0
    %v6893 = vadd.f32 %v6642, %v6892
    %v6894 = vpop.f32.mrf.mxu0
    %v6895 = vadd.f32 %v6646, %v6894
    %v6896 = vpop.f32.mrf.mxu0
    %v6897 = vpop.f32.mrf.mxu0
    %6898 = vdwg.mxu0
    %v6905 = vcombine.low %v6811, %v6813
    %v6906 = vcombine.low %v6852, %v6854
    %v6908 = vunpack.c.l.s4 1983009808
    %v6909 = vunpack.c.0.s8 %v6908
    %v6910 = vlaneseq
    %v6911 = vshrl.u32 %v6910, 7
    %v6912 = vsub.s32 %v6909, %v6911
    %v6913 = vrot.slane %v6905, %v6912
    %v6915 = vunpack.c.l.s4 1983009808
    %v6916 = vunpack.c.0.s8 %v6915
    %v6917 = vlaneseq
    %v6918 = vshrl.u32 %v6917, 7
    %v6919 = vsub.s32 %v6916, %v6918
    %v6920 = vrot.slane %v6906, %v6919
    %v6921 = vcombine.low %v6913, %v6920
    %v6922 = vcombine.low %v6893, %v6895
    %v6924 = vunpack.c.l.s4 1983009808
    %v6925 = vunpack.c.0.s8 %v6924
    %v6926 = vlaneseq
    %v6927 = vshrl.u32 %v6926, 7
    %v6928 = vsub.s32 %v6925, %v6927
    %v6929 = vrot.slane %v6922, %v6928
    %6932 = vst [vmem:[#allocation2] sm:$0xff] %v6921
    %6933 = vst [vmem:[#allocation2 + $0x8] sm:$0xf] %v6929
    // Predicated region
    $region154: #{audio_feature_extractor.1} parent=1 // pred_check
      _
    $region155: #{audio_feature_extractor.1} parent=1 // pred_check_branch
      %6935 = sbr.rel (0) target = $region157
    $region156: #{audio_feature_extractor.1} parent=1 // pred_region
      %s6937 = ssub.s32 192, 192
      %6938 = vsyncadd [#allocation3], %s6937
      %s6940 = sshll.u32 [#allocation2], 4
      %s6941 = int_to_ptr.vmem [resolvable:$true] %s6940
      %6943 = dma.vmem_to_hbm [thread:$0]  %s6941, 192, %s77, [#allocation3]
    $region157: #{audio_feature_extractor.1} parent=1 // pred_fallthru
      _
    // Predicated region
    $region158: #{audio_feature_extractor.1} parent=1 // pred_check
      _
    $region159: #{audio_feature_extractor.1} parent=1 // pred_check_branch
      %6945 = sbr.rel (0) target = $region161
    $region160: #{audio_feature_extractor.1} parent=1 // pred_region
      %6946 = dma.done [#allocation3], 192
    $region161: #{audio_feature_extractor.1} parent=1 // pred_fallthru
      _
    %6947 = vsyncpa [#allocation3], 1

</llo_original>
